<compile_context>
chip_gen: v6e
topology: v6e:2x2x1
jax: 0.10.0
libtpu: 0.0.40
codegen_flags: <defaults>
</compile_context>

<pallas_src>
import jax
import jax.numpy as jnp
from jax.experimental import pallas as pl
from jax.experimental.pallas import tpu as pltpu
import numpy as np


def _gelu_exact(x):
    # PyTorch nn.GELU() default = exact erf formulation (kept for the tiny SE GELU).
    return 0.5 * x * (1.0 + jax.lax.erf(x / jnp.sqrt(2.0).astype(x.dtype)))


def _gelu_tanh(x):
    # tanh formulation: transcendental goes to the EUP slot instead of erf on the VALU.
    c = jnp.float32(0.7978845608028654)  # sqrt(2/pi)
    return 0.5 * x * (1.0 + jnp.tanh(c * (x + 0.044715 * (x * x * x))))


# --------------------------------------------------------------------------- #
#  Kernel                                                                      #
# --------------------------------------------------------------------------- #
def fused_mbconv_kernel(
    x_ref,                       # (Bblk, T, C)  f32
    w1_ref, b1_ref,              # (3C, 2C) bf16 [BN1 folded], (1, 2C) f32
    sew1_ref, seb1_ref,          # (2C, Cse) bf16 [1/T folded], (1, Cse) f32
    sew2_ref, seb2_ref,          # (Cse, 2C) bf16, (1, 2C) f32
    w2_ref, b2_ref,              # (2C, C)  bf16 [BN2 folded], (1, C)  f32
    out_ref,                     # (Bblk, T, C)  f32
):
    Bblk, T, C = x_ref.shape
    C2 = w1_ref.shape[1]
    M = Bblk * T

    x = x_ref[...]                                   # (Bblk, T, C) f32
    x2d = x.reshape(M, C)                            # rows = packed sequences

    # --- k=3 conv shifts via XLU rolls + one-row-per-sequence zero mask ------
    # Row m of x_prev must be 0 whenever m is the first row of a sequence
    # (m % T == 0); row m of x_next must be 0 whenever it is the last row
    # (m % T == T-1).  These masked rows also cover any cross-sequence wrap
    # of the roll, so nothing leaks between packed sequences.
    m_iota = jax.lax.broadcasted_iota(jnp.int32, (M, 1), 0)
    first_row = (m_iota % T) == 0
    last_row = (m_iota % T) == (T - 1)

    x_prev = jnp.where(first_row, 0.0, pltpu.roll(x2d, 1, 0)).astype(jnp.bfloat16)
    x_ctr = x2d.astype(jnp.bfloat16)
    x_next = jnp.where(last_row, 0.0, pltpu.roll(x2d, M - 1, 0)).astype(jnp.bfloat16)

    # --- Conv1d(C -> 2C, k=3, pad=1) as ONE (M,3C) x (3C,2C) MXU matmul ------
    # (BatchNorm1d(2C) eval scale/bias pre-folded into w1/b1 on the host.)
    x3 = jnp.concatenate([x_prev, x_ctr, x_next], axis=-1)            # (M, 3C) bf16
    h = jnp.dot(x3, w1_ref[...], preferred_element_type=jnp.float32) + b1_ref[...]
    h = _gelu_tanh(h)                                                 # (M, 2C) f32

    # --- SqueezeExcitation (per sequence) ------------------------------------
    # mean-pool over T: the 1/T is folded into sew1, so only a sum is needed.
    s = jnp.sum(h.reshape(Bblk, T, C2), axis=1).astype(jnp.bfloat16)  # (Bblk, 2C)
    z = _gelu_exact(jnp.dot(s, sew1_ref[...],
                            preferred_element_type=jnp.float32) + seb1_ref[...])
    g = jax.nn.sigmoid(jnp.dot(z.astype(jnp.bfloat16), sew2_ref[...],
                               preferred_element_type=jnp.float32) + seb2_ref[...])
    h = h.reshape(Bblk, T, C2) * g[:, None, :]                        # gate, bcast over T

    # --- Conv1d(2C -> C, k=1) with BN2 folded; Dropout(eval) = identity ------
    y = jnp.dot(h.reshape(M, C2).astype(jnp.bfloat16), w2_ref[...],
                preferred_element_type=jnp.float32) + b2_ref[...]     # (M, C) f32

    # residual add; full lane-dense store
    out_ref[...] = x + y.reshape(Bblk, T, C)


# --------------------------------------------------------------------------- #
#  Wrapper                                                                     #
# --------------------------------------------------------------------------- #
def _num_tensorcores_per_chip():
    """2 on megacore / dual-TC chips (v4, v5p, v7x); 1 on v5e/v6e; 1 on failure."""
    try:
        kind = jax.devices()[0].device_kind.lower()
    except Exception:
        return 1
    return 2 if any(tag in kind for tag in ("v4", "v5p", "v7")) else 1


def _pick_batch_block(B, T, C, num_cores, *, max_rows=4096, vmem_budget=20 << 20):
    """LARGEST divisor of B whose activation footprint fits the VMEM budget and
    whose row count stays <= max_rows; on dual-TC chips the grid must stay a
    multiple of the core count so megacore 'parallel' sharding keeps both busy."""
    # per-row live VMEM (bytes), conservative:
    #   x f32 dbl-buf 8C + out f32 dbl-buf 8C + rolled f32 temps 8C
    #   + shifted bf16 6C + x3 bf16 6C + h f32 8C + h bf16 4C + y f32 4C ≈ 52C
    bytes_per_row = 52 * C
    best = 1
    for bblk in range(1, B + 1):
        if B % bblk:
            continue
        grid = B // bblk
        if num_cores > 1 and B >= num_cores and grid % num_cores != 0:
            continue
        rows = bblk * T
        if rows > max_rows or rows * bytes_per_row > vmem_budget:
            continue
        best = bblk
    return best


def fused_mbconv(x, prepared, *, batch_block=None, num_cores=None):
    """x: (B, T, C) float32 -> (B, T, C) float32 (eval-mode FusedMBConv)."""
    B, T, C = x.shape
    w1, b1, sew1, seb1, sew2, seb2, w2, b2 = prepared
    C2 = w1.shape[1]
    Cse = sew1.shape[1]
    assert C % 128 == 0, "pad d_model to a multiple of 128 for lane-dense tiles"
    assert T % 8 == 0, "pad T to a multiple of 8 sublanes"

    ncores = _num_tensorcores_per_chip() if num_cores is None else num_cores
    Bblk = batch_block if batch_block is not None else _pick_batch_block(B, T, C, ncores)
    assert B % Bblk == 0

    def full(shape):  # constant-index full-array block (weights / biases)
        nd = len(shape)
        return pl.BlockSpec(shape, lambda b, _nd=nd: (0,) * _nd)

    return pl.pallas_call(
        fused_mbconv_kernel,
        out_shape=jax.ShapeDtypeStruct((B, T, C), x.dtype),
        grid_spec=pltpu.PrefetchScalarGridSpec(
            num_scalar_prefetch=0,
            grid=(B // Bblk,),
            in_specs=[
                pl.BlockSpec((Bblk, T, C), lambda b: (b, 0, 0)),   # x
                full((3 * C, C2)), full((1, C2)),                  # fused k=3 conv (BN1 folded)
                full((C2, Cse)), full((1, Cse)),                   # SE conv1 (1/T folded)
                full((Cse, C2)), full((1, C2)),                    # SE conv2
                full((C2, C)), full((1, C)),                       # 1x1 conv (BN2 folded)
            ],
            out_specs=pl.BlockSpec((Bblk, T, C), lambda b: (b, 0, 0)),
        ),
        compiler_params=pltpu.CompilerParams(
            dimension_semantics=("parallel",),
            vmem_limit_bytes=48 * 1024 * 1024,   # actual usage is a few MiB; < v7x 64 MiB
        ),
    )(x, w1, b1, sew1, seb1, sew2, seb2, w2, b2)


# --------------------------------------------------------------------------- #
#  Host-side parameter prep (BN folding, conv fusion, bf16 cast)               #
# --------------------------------------------------------------------------- #
def _bn_fold(gamma, beta, mean, var, eps=1e-5):
    scale = gamma / jnp.sqrt(var + eps)
    return scale, beta - mean * scale


def prepare_params(p, T):
    """Fold eval-mode BN into conv weights, fuse k=3 conv to one (3C,2C) matmul,
    fold the SE mean-pool 1/T, and cast all matmul weights to bf16."""
    s1, b1bn = _bn_fold(p["bn1_gamma"], p["bn1_beta"], p["bn1_mean"], p["bn1_var"])
    s2, b2bn = _bn_fold(p["bn2_gamma"], p["bn2_beta"], p["bn2_mean"], p["bn2_var"])

    # Conv1d(C, 2C, 3) weight (2C, C, 3): k=0 hits x[t-1], k=1 x[t], k=2 x[t+1].
    w1cat = jnp.concatenate([p["conv1_w"][:, :, k].T for k in range(3)], axis=0)  # (3C, 2C)
    w1cat = (w1cat * s1[None, :]).astype(jnp.bfloat16)
    b1 = (p["conv1_b"] * s1 + b1bn).reshape(1, -1)

    sew1 = (p["se1_w"][:, :, 0].T / jnp.float32(T)).astype(jnp.bfloat16)  # (2C, Cse)
    seb1 = p["se1_b"].reshape(1, -1)
    sew2 = p["se2_w"][:, :, 0].T.astype(jnp.bfloat16)                     # (Cse, 2C)
    seb2 = p["se2_b"].reshape(1, -1)

    w2 = (p["conv2_w"][:, :, 0].T * s2[None, :]).astype(jnp.bfloat16)     # (2C, C)
    b2 = (p["conv2_b"] * s2 + b2bn).reshape(1, -1)

    return (w1cat, b1, sew1, seb1, sew2, seb2, w2, b2)


def make_params(key, d_model, reduction=16):
    """Deterministic synthetic parameters in PyTorch shapes (eval mode)."""
    C, C2 = d_model, 2 * d_model
    Cse = C2 // reduction
    ks = jax.random.split(key, 16)
    f32 = jnp.float32

    def n(k, shape, scale=0.1):
        return scale * jax.random.normal(k, shape, dtype=f32)

    return dict(
        conv1_w=n(ks[0], (C2, C, 3)), conv1_b=n(ks[1], (C2,)),
        bn1_gamma=1.0 + n(ks[2], (C2,)), bn1_beta=n(ks[3], (C2,)),
        bn1_mean=n(ks[4], (C2,)),
        bn1_var=0.5 + jax.random.uniform(ks[5], (C2,), dtype=f32),
        se1_w=n(ks[6], (Cse, C2, 1)), se1_b=n(ks[7], (Cse,)),
        se2_w=n(ks[8], (C2, Cse, 1)), se2_b=n(ks[9], (C2,)),
        conv2_w=n(ks[10], (C, C2, 1)), conv2_b=n(ks[11], (C,)),
        bn2_gamma=1.0 + n(ks[12], (C,)), bn2_beta=n(ks[13], (C,)),
        bn2_mean=n(ks[14], (C,)),
        bn2_var=0.5 + jax.random.uniform(ks[15], (C,), dtype=f32),
    )


# --------------------------------------------------------------------------- #
#  References                                                                  #
# --------------------------------------------------------------------------- #
def reference_exact(x, p):
    """Pure-JAX, pure-f32 reimplementation of the PyTorch module (eval mode)."""
    B, T, C = x.shape
    eps = 1e-5
    xp = jnp.pad(x, ((0, 0), (1, 1), (0, 0)))
    w1 = p["conv1_w"]
    h = (jnp.einsum("btc,dc->btd", xp[:, 0:T], w1[:, :, 0])
         + jnp.einsum("btc,dc->btd", xp[:, 1:T + 1], w1[:, :, 1])
         + jnp.einsum("btc,dc->btd", xp[:, 2:T + 2], w1[:, :, 2])
         + p["conv1_b"])
    h = (h - p["bn1_mean"]) / jnp.sqrt(p["bn1_var"] + eps) * p["bn1_gamma"] + p["bn1_beta"]
    h = _gelu_exact(h)
    s = jnp.mean(h, axis=1)                                            # (B, 2C)
    z = _gelu_exact(s @ p["se1_w"][:, :, 0].T + p["se1_b"])
    g = jax.nn.sigmoid(z @ p["se2_w"][:, :, 0].T + p["se2_b"])
    h = h * g[:, None, :]
    y = jnp.einsum("btd,cd->btc", h, p["conv2_w"][:, :, 0]) + p["conv2_b"]
    y = (y - p["bn2_mean"]) / jnp.sqrt(p["bn2_var"] + eps) * p["bn2_gamma"] + p["bn2_beta"]
    return x + y


def reference_folded(x, prep):
    """Pure-JAX mirror of the kernel math (folded BN, bf16 matmuls, tanh GELU)."""
    w1, b1, sew1, seb1, sew2, seb2, w2, b2 = prep
    B, T, C = x.shape
    xp = jnp.pad(x, ((0, 0), (1, 1), (0, 0)))
    x3 = jnp.concatenate([xp[:, 0:T], xp[:, 1:T + 1], xp[:, 2:T + 2]],
                         axis=-1).astype(jnp.bfloat16)                  # (B, T, 3C)
    h = jnp.einsum("btk,kd->btd", x3, w1,
                   preferred_element_type=jnp.float32) + b1
    h = _gelu_tanh(h)
    s = jnp.sum(h, axis=1).astype(jnp.bfloat16)                         # (B, 2C)
    z = _gelu_exact(jnp.dot(s, sew1, preferred_element_type=jnp.float32) + seb1)
    g = jax.nn.sigmoid(jnp.dot(z.astype(jnp.bfloat16), sew2,
                               preferred_element_type=jnp.float32) + seb2)
    h = h * g[:, None, :]
    y = jnp.einsum("btd,dc->btc", h.astype(jnp.bfloat16), w2,
                   preferred_element_type=jnp.float32) + b2
    return x + y


# --------------------------------------------------------------------------- #
#  Main                                                                        #
# --------------------------------------------------------------------------- #
if __name__ == "__main__":
    # C=128 -> lane-dense (2C=256).  B=8, T=128 -> up to 1024 MXU rows per grid
    # step on single-TC chips; on dual-TC chips the picker keeps grid % 2 == 0.
    B, T, d_model = 8, 128, 128
    key = jax.random.PRNGKey(0)
    kx, kp = jax.random.split(key)
    x = jax.random.normal(kx, (B, T, d_model), dtype=jnp.float32)
    raw = make_params(kp, d_model)
    prep = prepare_params(raw, T)

    out = jax.block_until_ready(fused_mbconv(x, prep))

    # 1) Tight check vs. a pure-JAX mirror of the kernel's folded/bf16/tanh math.
    mirror = jax.block_until_ready(reference_folded(x, prep))
    np.testing.assert_allclose(np.asarray(out), np.asarray(mirror),
                               rtol=2e-2, atol=5e-3)

    # 2) Semantics check vs. the exact f32 PyTorch eval math; the gap is the
    #    intentional bf16 matmuls + tanh-GELU, so the atol is sized for it.
    exact = jax.block_until_ready(reference_exact(x, raw))
    np.testing.assert_allclose(np.asarray(out), np.asarray(exact),
                               rtol=2e-2, atol=6e-2)

    print("KERNEL_OK")
</pallas_src>

<mosaic_0001>
module attributes {stable_mosaic.version = 11 : i64} {
  func.func @fused_mbconv_kernel(%arg0: i32, %arg1: memref<8x128x128xf32, #tpu.memory_space<vmem>>, %arg2: memref<384x256xbf16, #tpu.memory_space<vmem>>, %arg3: memref<1x256xf32, #tpu.memory_space<vmem>>, %arg4: memref<256x16xbf16, #tpu.memory_space<vmem>>, %arg5: memref<1x16xf32, #tpu.memory_space<vmem>>, %arg6: memref<16x256xbf16, #tpu.memory_space<vmem>>, %arg7: memref<1x256xf32, #tpu.memory_space<vmem>>, %arg8: memref<256x128xbf16, #tpu.memory_space<vmem>>, %arg9: memref<1x128xf32, #tpu.memory_space<vmem>>, %arg10: memref<8x128x128xf32, #tpu.memory_space<vmem>>) attributes {dimension_semantics = [#tpu.dimension_semantics<parallel>], iteration_bounds = array<i64: 1>, scalar_prefetch = 0 : i64, scratch_operands = 0 : i64, tpu.core_type = #tpu.core_type<tc>, window_params = [{transform_indices = @transform_0, window_bounds = array<i64: 8, 128, 128>}, {pipeline_mode = #tpu.pipeline_mode<synchronous>, transform_indices = @transform_1, window_bounds = array<i64: 384, 256>}, {pipeline_mode = #tpu.pipeline_mode<synchronous>, transform_indices = @transform_2, window_bounds = array<i64: 1, 256>}, {pipeline_mode = #tpu.pipeline_mode<synchronous>, transform_indices = @transform_3, window_bounds = array<i64: 256, 16>}, {pipeline_mode = #tpu.pipeline_mode<synchronous>, transform_indices = @transform_4, window_bounds = array<i64: 1, 16>}, {pipeline_mode = #tpu.pipeline_mode<synchronous>, transform_indices = @transform_5, window_bounds = array<i64: 16, 256>}, {pipeline_mode = #tpu.pipeline_mode<synchronous>, transform_indices = @transform_6, window_bounds = array<i64: 1, 256>}, {pipeline_mode = #tpu.pipeline_mode<synchronous>, transform_indices = @transform_7, window_bounds = array<i64: 256, 128>}, {pipeline_mode = #tpu.pipeline_mode<synchronous>, transform_indices = @transform_8, window_bounds = array<i64: 1, 128>}, {transform_indices = @transform_9, window_bounds = array<i64: 8, 128, 128>}]} {
    %c0 = arith.constant 0 : index
    %c0_0 = arith.constant 0 : index
    %c0_1 = arith.constant 0 : index
    %0 = vector.load %arg1[%c0, %c0_0, %c0_1] : memref<8x128x128xf32, #tpu.memory_space<vmem>>, vector<8x128x128xf32>
    %1 = vector.shape_cast %0 : vector<8x128x128xf32> to vector<1024x128xf32>
    %2 = tpu.iota {dimensions = array<i32: 0>} : vector<1024x1xi32>
    %c128_i32 = arith.constant 128 : i32
    %c0_i32 = arith.constant 0 : i32
    %3 = arith.cmpi eq, %c128_i32, %c0_i32 : i32
    %c1_i32 = arith.constant 1 : i32
    %4 = arith.select %3, %c1_i32, %c128_i32 : i32
    %5 = vector.broadcast %4 : i32 to vector<1024x1xi32>
    %6 = arith.remsi %2, %5 : vector<1024x1xi32>
    %c0_i32_2 = arith.constant 0 : i32
    %7 = vector.broadcast %c0_i32_2 : i32 to vector<1024x1xi32>
    %8 = arith.cmpi ne, %6, %7 : vector<1024x1xi32>
    %c0_i32_3 = arith.constant 0 : i32
    %9 = vector.broadcast %c0_i32_3 : i32 to vector<1024x1xi32>
    %10 = arith.cmpi slt, %6, %9 : vector<1024x1xi32>
    %c0_i32_4 = arith.constant 0 : i32
    %11 = arith.cmpi slt, %4, %c0_i32_4 : i32
    %12 = vector.broadcast %11 : i1 to vector<1024x1xi1>
    %13 = vector.broadcast %12 : vector<1024x1xi1> to vector<1024x1xi1>
    %14 = arith.xori %10, %13 : vector<1024x1xi1>
    %15 = arith.andi %14, %8 : vector<1024x1xi1>
    %16 = vector.broadcast %4 : i32 to vector<1024x1xi32>
    %17 = arith.addi %6, %16 : vector<1024x1xi32>
    %18 = arith.select %15, %17, %6 : vector<1024x1xi1>, vector<1024x1xi32>
    %c0_i32_5 = arith.constant 0 : i32
    %19 = vector.broadcast %c0_i32_5 : i32 to vector<1024x1xi32>
    %20 = arith.cmpi eq, %18, %19 : vector<1024x1xi32>
    %c128_i32_6 = arith.constant 128 : i32
    %c0_i32_7 = arith.constant 0 : i32
    %21 = arith.cmpi eq, %c128_i32_6, %c0_i32_7 : i32
    %c1_i32_8 = arith.constant 1 : i32
    %22 = arith.select %21, %c1_i32_8, %c128_i32_6 : i32
    %23 = vector.broadcast %22 : i32 to vector<1024x1xi32>
    %24 = arith.remsi %2, %23 : vector<1024x1xi32>
    %c0_i32_9 = arith.constant 0 : i32
    %25 = vector.broadcast %c0_i32_9 : i32 to vector<1024x1xi32>
    %26 = arith.cmpi ne, %24, %25 : vector<1024x1xi32>
    %c0_i32_10 = arith.constant 0 : i32
    %27 = vector.broadcast %c0_i32_10 : i32 to vector<1024x1xi32>
    %28 = arith.cmpi slt, %24, %27 : vector<1024x1xi32>
    %c0_i32_11 = arith.constant 0 : i32
    %29 = arith.cmpi slt, %22, %c0_i32_11 : i32
    %30 = vector.broadcast %29 : i1 to vector<1024x1xi1>
    %31 = vector.broadcast %30 : vector<1024x1xi1> to vector<1024x1xi1>
    %32 = arith.xori %28, %31 : vector<1024x1xi1>
    %33 = arith.andi %32, %26 : vector<1024x1xi1>
    %34 = vector.broadcast %22 : i32 to vector<1024x1xi32>
    %35 = arith.addi %24, %34 : vector<1024x1xi32>
    %36 = arith.select %33, %35, %24 : vector<1024x1xi1>, vector<1024x1xi32>
    %c127_i32 = arith.constant 127 : i32
    %37 = vector.broadcast %c127_i32 : i32 to vector<1024x1xi32>
    %38 = arith.cmpi eq, %36, %37 : vector<1024x1xi32>
    %c1_i32_12 = arith.constant 1 : i32
    %39 = tpu.dynamic_rotate %1 by %c1_i32_12 dim 0 : vector<1024x128xf32>, i32 -> vector<1024x128xf32>
    %cst = arith.constant 0.000000e+00 : f32
    %40 = vector.shape_cast %20 : vector<1024x1xi1> to vector<1024x1xi1>
    %41 = vector.broadcast %40 : vector<1024x1xi1> to vector<1024x128xi1>
    %42 = vector.broadcast %cst : f32 to vector<1024x128xf32>
    %43 = arith.select %41, %42, %39 : vector<1024x128xi1>, vector<1024x128xf32>
    %44 = arith.truncf %43 : vector<1024x128xf32> to vector<1024x128xbf16>
    %45 = arith.truncf %1 : vector<1024x128xf32> to vector<1024x128xbf16>
    %c1023_i32 = arith.constant 1023 : i32
    %46 = tpu.dynamic_rotate %1 by %c1023_i32 dim 0 : vector<1024x128xf32>, i32 -> vector<1024x128xf32>
    %cst_13 = arith.constant 0.000000e+00 : f32
    %47 = vector.shape_cast %38 : vector<1024x1xi1> to vector<1024x1xi1>
    %48 = vector.broadcast %47 : vector<1024x1xi1> to vector<1024x128xi1>
    %49 = vector.broadcast %cst_13 : f32 to vector<1024x128xf32>
    %50 = arith.select %48, %49, %46 : vector<1024x128xi1>, vector<1024x128xf32>
    %51 = arith.truncf %50 : vector<1024x128xf32> to vector<1024x128xbf16>
    %52 = tpu.concatenate %44, %45, %51 in 1 : vector<1024x128xbf16>, vector<1024x128xbf16>, vector<1024x128xbf16> -> vector<1024x384xbf16>
    %c0_14 = arith.constant 0 : index
    %c0_15 = arith.constant 0 : index
    %53 = vector.load %arg2[%c0_14, %c0_15] : memref<384x256xbf16, #tpu.memory_space<vmem>>, vector<384x256xbf16>
    %cst_16 = arith.constant dense<0.000000e+00> : vector<1024x256xf32>
    %54 = tpu.matmul %52, %53, %cst_16 {dimension_numbers = #tpu.dot_dimension_numbers<[1], [0], [0], [1], [0, 0, 1, 1], [], []>} : vector<1024x384xbf16>, vector<384x256xbf16>, vector<1024x256xf32> -> vector<1024x256xf32>
    %c0_17 = arith.constant 0 : index
    %c0_18 = arith.constant 0 : index
    %55 = vector.load %arg3[%c0_17, %c0_18] : memref<1x256xf32, #tpu.memory_space<vmem>>, vector<1x256xf32>
    %56 = vector.broadcast %55 : vector<1x256xf32> to vector<1024x256xf32>
    %57 = arith.addf %54, %56 : vector<1024x256xf32>
    %cst_19 = arith.constant 5.000000e-01 : f32
    %58 = vector.broadcast %cst_19 : f32 to vector<1024x256xf32>
    %59 = arith.mulf %58, %57 : vector<1024x256xf32>
    %60 = arith.mulf %57, %57 : vector<1024x256xf32>
    %61 = arith.mulf %60, %57 : vector<1024x256xf32>
    %cst_20 = arith.constant 4.471500e-02 : f32
    %62 = vector.broadcast %cst_20 : f32 to vector<1024x256xf32>
    %63 = arith.mulf %62, %61 : vector<1024x256xf32>
    %64 = arith.addf %57, %63 : vector<1024x256xf32>
    %cst_21 = arith.constant 0.797884583 : f32
    %65 = vector.broadcast %cst_21 : f32 to vector<1024x256xf32>
    %66 = arith.mulf %65, %64 : vector<1024x256xf32>
    %67 = math.tanh %66 : vector<1024x256xf32>
    %cst_22 = arith.constant 1.000000e+00 : f32
    %68 = vector.broadcast %cst_22 : f32 to vector<1024x256xf32>
    %69 = arith.addf %68, %67 : vector<1024x256xf32>
    %70 = arith.mulf %59, %69 : vector<1024x256xf32>
    %71 = vector.shape_cast %70 : vector<1024x256xf32> to vector<8x128x256xf32>
    %cst_23 = arith.constant dense<0.000000e+00> : vector<8x256xf32>
    %72 = vector.multi_reduction <add>, %71, %cst_23 [1] : vector<8x128x256xf32> to vector<8x256xf32>
    %73 = arith.truncf %72 : vector<8x256xf32> to vector<8x256xbf16>
    %c0_24 = arith.constant 0 : index
    %c0_25 = arith.constant 0 : index
    %74 = vector.load %arg4[%c0_24, %c0_25] : memref<256x16xbf16, #tpu.memory_space<vmem>>, vector<256x16xbf16>
    %cst_26 = arith.constant dense<0.000000e+00> : vector<8x16xf32>
    %75 = tpu.matmul %73, %74, %cst_26 {dimension_numbers = #tpu.dot_dimension_numbers<[1], [0], [0], [1], [0, 0, 1, 1], [], []>} : vector<8x256xbf16>, vector<256x16xbf16>, vector<8x16xf32> -> vector<8x16xf32>
    %c0_27 = arith.constant 0 : index
    %c0_28 = arith.constant 0 : index
    %76 = vector.load %arg5[%c0_27, %c0_28] : memref<1x16xf32, #tpu.memory_space<vmem>>, vector<1x16xf32>
    %77 = vector.broadcast %76 : vector<1x16xf32> to vector<8x16xf32>
    %78 = arith.addf %75, %77 : vector<8x16xf32>
    %cst_29 = arith.constant 5.000000e-01 : f32
    %79 = vector.broadcast %cst_29 : f32 to vector<8x16xf32>
    %80 = arith.mulf %79, %78 : vector<8x16xf32>
    %cst_30 = arith.constant 2.000000e+00 : f32
    %81 = math.sqrt %cst_30 : f32
    %82 = vector.broadcast %81 : f32 to vector<8x16xf32>
    %83 = arith.divf %78, %82 : vector<8x16xf32>
    %84 = math.erf %83 : vector<8x16xf32>
    %cst_31 = arith.constant 1.000000e+00 : f32
    %85 = vector.broadcast %cst_31 : f32 to vector<8x16xf32>
    %86 = arith.addf %85, %84 : vector<8x16xf32>
    %87 = arith.mulf %80, %86 : vector<8x16xf32>
    %88 = arith.truncf %87 : vector<8x16xf32> to vector<8x16xbf16>
    %c0_32 = arith.constant 0 : index
    %c0_33 = arith.constant 0 : index
    %89 = vector.load %arg6[%c0_32, %c0_33] : memref<16x256xbf16, #tpu.memory_space<vmem>>, vector<16x256xbf16>
    %cst_34 = arith.constant dense<0.000000e+00> : vector<8x256xf32>
    %90 = tpu.matmul %88, %89, %cst_34 {dimension_numbers = #tpu.dot_dimension_numbers<[1], [0], [0], [1], [0, 0, 1, 1], [], []>} : vector<8x16xbf16>, vector<16x256xbf16>, vector<8x256xf32> -> vector<8x256xf32>
    %c0_35 = arith.constant 0 : index
    %c0_36 = arith.constant 0 : index
    %91 = vector.load %arg7[%c0_35, %c0_36] : memref<1x256xf32, #tpu.memory_space<vmem>>, vector<1x256xf32>
    %92 = vector.broadcast %91 : vector<1x256xf32> to vector<8x256xf32>
    %93 = arith.addf %90, %92 : vector<8x256xf32>
    %94 = arith.negf %93 : vector<8x256xf32>
    %95 = math.exp %94 : vector<8x256xf32>
    %cst_37 = arith.constant 1.000000e+00 : f32
    %96 = vector.broadcast %cst_37 : f32 to vector<8x256xf32>
    %97 = arith.addf %96, %95 : vector<8x256xf32>
    %98 = arith.divf %96, %97 : vector<8x256xf32>
    %99 = vector.shape_cast %70 : vector<1024x256xf32> to vector<8x128x256xf32>
    %100 = vector.shape_cast %98 : vector<8x256xf32> to vector<8x1x256xf32>
    %101 = vector.broadcast %100 : vector<8x1x256xf32> to vector<8x128x256xf32>
    %102 = arith.mulf %99, %101 : vector<8x128x256xf32>
    %103 = vector.shape_cast %102 : vector<8x128x256xf32> to vector<1024x256xf32>
    %104 = arith.truncf %103 : vector<1024x256xf32> to vector<1024x256xbf16>
    %c0_38 = arith.constant 0 : index
    %c0_39 = arith.constant 0 : index
    %105 = vector.load %arg8[%c0_38, %c0_39] : memref<256x128xbf16, #tpu.memory_space<vmem>>, vector<256x128xbf16>
    %cst_40 = arith.constant dense<0.000000e+00> : vector<1024x128xf32>
    %106 = tpu.matmul %104, %105, %cst_40 {dimension_numbers = #tpu.dot_dimension_numbers<[1], [0], [0], [1], [0, 0, 1, 1], [], []>} : vector<1024x256xbf16>, vector<256x128xbf16>, vector<1024x128xf32> -> vector<1024x128xf32>
    %c0_41 = arith.constant 0 : index
    %c0_42 = arith.constant 0 : index
    %107 = vector.load %arg9[%c0_41, %c0_42] : memref<1x128xf32, #tpu.memory_space<vmem>>, vector<1x128xf32>
    %108 = vector.broadcast %107 : vector<1x128xf32> to vector<1024x128xf32>
    %109 = arith.addf %106, %108 : vector<1024x128xf32>
    %110 = vector.shape_cast %109 : vector<1024x128xf32> to vector<8x128x128xf32>
    %111 = arith.addf %0, %110 : vector<8x128x128xf32>
    %c0_43 = arith.constant 0 : index
    %c0_44 = arith.constant 0 : index
    %c0_45 = arith.constant 0 : index
    %112 = vector.load %arg10[%c0_43, %c0_44, %c0_45] : memref<8x128x128xf32, #tpu.memory_space<vmem>>, vector<8x128x128xf32>
    tpu.vector_store %arg10[%c0_43, %c0_44, %c0_45], %111 {strides = array<i32>} : memref<8x128x128xf32, #tpu.memory_space<vmem>>, vector<8x128x128xf32>,
    return
  }
  func.func @transform_0(%arg0: i32) -> (i32, i32, i32) {
    %c0_i32 = arith.constant 0 : i32
    %c0_i32_0 = arith.constant 0 : i32
    %c0_i32_1 = arith.constant 0 : i32
    return %arg0, %c0_i32, %c0_i32_0 : i32, i32, i32
  }
  func.func @transform_1(%arg0: i32) -> (i32, i32) {
    %c0_i32 = arith.constant 0 : i32
    %c0_i32_0 = arith.constant 0 : i32
    %c0_i32_1 = arith.constant 0 : i32
    return %c0_i32, %c0_i32_0 : i32, i32
  }
  func.func @transform_2(%arg0: i32) -> (i32, i32) {
    %c0_i32 = arith.constant 0 : i32
    %c0_i32_0 = arith.constant 0 : i32
    %c0_i32_1 = arith.constant 0 : i32
    return %c0_i32, %c0_i32_0 : i32, i32
  }
  func.func @transform_3(%arg0: i32) -> (i32, i32) {
    %c0_i32 = arith.constant 0 : i32
    %c0_i32_0 = arith.constant 0 : i32
    %c0_i32_1 = arith.constant 0 : i32
    return %c0_i32, %c0_i32_0 : i32, i32
  }
  func.func @transform_4(%arg0: i32) -> (i32, i32) {
    %c0_i32 = arith.constant 0 : i32
    %c0_i32_0 = arith.constant 0 : i32
    %c0_i32_1 = arith.constant 0 : i32
    return %c0_i32, %c0_i32_0 : i32, i32
  }
  func.func @transform_5(%arg0: i32) -> (i32, i32) {
    %c0_i32 = arith.constant 0 : i32
    %c0_i32_0 = arith.constant 0 : i32
    %c0_i32_1 = arith.constant 0 : i32
    return %c0_i32, %c0_i32_0 : i32, i32
  }
  func.func @transform_6(%arg0: i32) -> (i32, i32) {
    %c0_i32 = arith.constant 0 : i32
    %c0_i32_0 = arith.constant 0 : i32
    %c0_i32_1 = arith.constant 0 : i32
    return %c0_i32, %c0_i32_0 : i32, i32
  }
  func.func @transform_7(%arg0: i32) -> (i32, i32) {
    %c0_i32 = arith.constant 0 : i32
    %c0_i32_0 = arith.constant 0 : i32
    %c0_i32_1 = arith.constant 0 : i32
    return %c0_i32, %c0_i32_0 : i32, i32
  }
  func.func @transform_8(%arg0: i32) -> (i32, i32) {
    %c0_i32 = arith.constant 0 : i32
    %c0_i32_0 = arith.constant 0 : i32
    %c0_i32_1 = arith.constant 0 : i32
    return %c0_i32, %c0_i32_0 : i32, i32
  }
  func.func @transform_9(%arg0: i32) -> (i32, i32, i32) {
    %c0_i32 = arith.constant 0 : i32
    %c0_i32_0 = arith.constant 0 : i32
    %c0_i32_1 = arith.constant 0 : i32
    return %arg0, %c0_i32, %c0_i32_0 : i32, i32, i32
  }
}

</mosaic_0001>

<llo_original>
// kernel: tpu_custom_call.1
$region0: #{tpu_custom_call.1}
  #allocation0 [shape = 'u32[]', space=smem, size = 0x4, offset = 0x4, fixed_abs, tag = 'smem constant byte address 0x4 - core index']
  #allocation1 [shape = 'u32[144,128]{1,0:T(1,128)}', space=vmem, size = 0x12000, scoped, tag = 'internal scratch']
  %s0 = inlined_call_operand.hbm [shape: f32[8,128,128], index: 0, kind: input, shape index: {}]
  %s1 = inlined_call_operand.hbm [shape: bf16[384,256], index: 1, kind: input, shape index: {}]
  %s2 = inlined_call_operand.vmem [shape: f32[1,256], index: 2, kind: input, shape index: {}]
  %s3 = inlined_call_operand.vmem [shape: bf16[256,16], index: 3, kind: input, shape index: {}]
  %s4 = inlined_call_operand.vmem [shape: f32[1,16], index: 4, kind: input, shape index: {}]
  %s5 = inlined_call_operand.vmem [shape: bf16[16,256], index: 5, kind: input, shape index: {}]
  %s6 = inlined_call_operand.vmem [shape: f32[1,256], index: 6, kind: input, shape index: {}]
  %s7 = inlined_call_operand.vmem [shape: bf16[256,128], index: 7, kind: input, shape index: {}]
  %s8 = inlined_call_operand.vmem [shape: f32[1,128], index: 8, kind: input, shape index: {}]
  %s9 = inlined_call_operand.hbm [shape: f32[8,128,128], index: 9, kind: output, shape index: {}]
  %s10 = sld [smem:[#allocation0]]
  $region54: #{tpu_custom_call.1} parent=0
    _
  %s12 = ssub.s32 1, %s10
  %s13 = scalar_select 0, %s12, %s10
  $region1: #{tpu_custom_call.1} parent=0
    #allocation2 [shape = 'u8[524288]{0}', space=vmem, size = 0x80000, scoped, tag = 'input window, operand 0, single buffered']
    #allocation3 [shape = 's32[1]{0}', space=sflag, size = 0x4, scoped, tag = 'scoped memory for tpu_custom_call.1']
    #allocation4 [shape = 's32[1]{0}', space=sflag, size = 0x4, scoped, tag = 'scoped memory for tpu_custom_call.1']
    #allocation5 [shape = 'u8[196608]{0}', space=vmem, size = 0x30000, scoped, tag = 'input window, operand 1, single buffered']
    #allocation6 [shape = 's32[1]{0}', space=sflag, size = 0x4, scoped, tag = 'scoped memory for tpu_custom_call.1']
    #allocation7 [shape = 'u8[524288]{0}', space=vmem, size = 0x80000, scoped, tag = 'output window, operand 0, single buffered']
    %14 = vsyncpa [#allocation3], 0
    %15 = vsyncpa [#allocation6], 0
    %16 = vsyncpa [#allocation4], 0
    // Predicated region
    $region2: #{tpu_custom_call.1} parent=1 // pred_check
      _
    $region3: #{tpu_custom_call.1} parent=1 // pred_check_branch
      %18 = sbr.rel (0) target = $region5
    $region4: #{tpu_custom_call.1} parent=1 // pred_region
      %s20 = ssub.s32 16384, 16384
      %21 = vsyncadd [#allocation3], %s20
      %s22 = sshll.u32 [#allocation2], 4
      %s23 = int_to_ptr.vmem [resolvable:$true] %s22
      %28 = dma.hbm_to_vmem [thread:$0]  %s0, 16384, %s23, [#allocation3], 128, 128, 8
    $region5: #{tpu_custom_call.1} parent=1 // pred_fallthru
      _
    // Predicated region
    $region6: #{tpu_custom_call.1} parent=1 // pred_check
      _
    $region7: #{tpu_custom_call.1} parent=1 // pred_check_branch
      %30 = sbr.rel (0) target = $region9
    $region8: #{tpu_custom_call.1} parent=1 // pred_region
      %s32 = ssub.s32 6144, 6144
      %33 = vsyncadd [#allocation6], %s32
      %s34 = sshll.u32 [#allocation5], 4
      %s35 = int_to_ptr.vmem [resolvable:$true] %s34
      %40 = dma.hbm_to_vmem [thread:$0]  %s1, 6144, %s35, [#allocation6], 128, 128, 8
    $region9: #{tpu_custom_call.1} parent=1 // pred_fallthru
      _
    // Predicated region
    $region10: #{tpu_custom_call.1} parent=1 // pred_check
      _
    $region11: #{tpu_custom_call.1} parent=1 // pred_check_branch
      %42 = sbr.rel (0) target = $region13
    $region12: #{tpu_custom_call.1} parent=1 // pred_region
      _
    $region13: #{tpu_custom_call.1} parent=1 // pred_fallthru
      _
    // Predicated region
    $region14: #{tpu_custom_call.1} parent=1 // pred_check
      _
    $region15: #{tpu_custom_call.1} parent=1 // pred_check_branch
      %44 = sbr.rel (0) target = $region17
    $region16: #{tpu_custom_call.1} parent=1 // pred_region
      _
    $region17: #{tpu_custom_call.1} parent=1 // pred_fallthru
      _
    // Predicated region
    $region18: #{tpu_custom_call.1} parent=1 // pred_check
      _
    $region19: #{tpu_custom_call.1} parent=1 // pred_check_branch
      %46 = sbr.rel (0) target = $region21
    $region20: #{tpu_custom_call.1} parent=1 // pred_region
      _
    $region21: #{tpu_custom_call.1} parent=1 // pred_fallthru
      _
    // Predicated region
    $region22: #{tpu_custom_call.1} parent=1 // pred_check
      _
    $region23: #{tpu_custom_call.1} parent=1 // pred_check_branch
      %48 = sbr.rel (0) target = $region25
    $region24: #{tpu_custom_call.1} parent=1 // pred_region
      _
    $region25: #{tpu_custom_call.1} parent=1 // pred_fallthru
      _
    // Predicated region
    $region26: #{tpu_custom_call.1} parent=1 // pred_check
      _
    $region27: #{tpu_custom_call.1} parent=1 // pred_check_branch
      %50 = sbr.rel (0) target = $region29
    $region28: #{tpu_custom_call.1} parent=1 // pred_region
      _
    $region29: #{tpu_custom_call.1} parent=1 // pred_fallthru
      _
    // Predicated region
    $region30: #{tpu_custom_call.1} parent=1 // pred_check
      _
    $region31: #{tpu_custom_call.1} parent=1 // pred_check_branch
      %52 = sbr.rel (0) target = $region33
    $region32: #{tpu_custom_call.1} parent=1 // pred_region
      _
    $region33: #{tpu_custom_call.1} parent=1 // pred_fallthru
      _
    // Predicated region
    $region34: #{tpu_custom_call.1} parent=1 // pred_check
      _
    $region35: #{tpu_custom_call.1} parent=1 // pred_check_branch
      %54 = sbr.rel (0) target = $region37
    $region36: #{tpu_custom_call.1} parent=1 // pred_region
      _
    $region37: #{tpu_custom_call.1} parent=1 // pred_fallthru
      _
    // Predicated region
    $region38: #{tpu_custom_call.1} parent=1 // pred_check
      _
    $region39: #{tpu_custom_call.1} parent=1 // pred_check_branch
      %56 = sbr.rel (0) target = $region41
    $region40: #{tpu_custom_call.1} parent=1 // pred_region
      %57 = dma.done [#allocation3], 16384
    $region41: #{tpu_custom_call.1} parent=1 // pred_fallthru
      _
    // Predicated region
    $region42: #{tpu_custom_call.1} parent=1 // pred_check
      _
    $region43: #{tpu_custom_call.1} parent=1 // pred_check_branch
      %59 = sbr.rel (0) target = $region45
    $region44: #{tpu_custom_call.1} parent=1 // pred_region
      %60 = dma.done [#allocation6], 6144
    $region45: #{tpu_custom_call.1} parent=1 // pred_fallthru
      _
    %v62 = vld [vmem:[#allocation2] sm:$0xff]
    %v63 = vld [vmem:[#allocation2 + $0x8] sm:$0xff]
    %v64 = vld [vmem:[#allocation2 + $0x10] sm:$0xff]
    %v65 = vld [vmem:[#allocation2 + $0x18] sm:$0xff]
    %v66 = vld [vmem:[#allocation2 + $0x20] sm:$0xff]
    %v67 = vld [vmem:[#allocation2 + $0x28] sm:$0xff]
    %v68 = vld [vmem:[#allocation2 + $0x30] sm:$0xff]
    %v69 = vld [vmem:[#allocation2 + $0x38] sm:$0xff]
    %v70 = vld [vmem:[#allocation2 + $0x40] sm:$0xff]
    %v71 = vld [vmem:[#allocation2 + $0x48] sm:$0xff]
    %v72 = vld [vmem:[#allocation2 + $0x50] sm:$0xff]
    %v73 = vld [vmem:[#allocation2 + $0x58] sm:$0xff]
    %v74 = vld [vmem:[#allocation2 + $0x60] sm:$0xff]
    %v75 = vld [vmem:[#allocation2 + $0x68] sm:$0xff]
    %v76 = vld [vmem:[#allocation2 + $0x70] sm:$0xff]
    %v77 = vld [vmem:[#allocation2 + $0x78] sm:$0xff]
    %v78 = vld [vmem:[#allocation2 + $0x80] sm:$0xff]
    %v79 = vld [vmem:[#allocation2 + $0x88] sm:$0xff]
    %v80 = vld [vmem:[#allocation2 + $0x90] sm:$0xff]
    %v81 = vld [vmem:[#allocation2 + $0x98] sm:$0xff]
    %v82 = vld [vmem:[#allocation2 + $0xa0] sm:$0xff]
    %v83 = vld [vmem:[#allocation2 + $0xa8] sm:$0xff]
    %v84 = vld [vmem:[#allocation2 + $0xb0] sm:$0xff]
    %v85 = vld [vmem:[#allocation2 + $0xb8] sm:$0xff]
    %v86 = vld [vmem:[#allocation2 + $0xc0] sm:$0xff]
    %v87 = vld [vmem:[#allocation2 + $0xc8] sm:$0xff]
    %v88 = vld [vmem:[#allocation2 + $0xd0] sm:$0xff]
    %v89 = vld [vmem:[#allocation2 + $0xd8] sm:$0xff]
    %v90 = vld [vmem:[#allocation2 + $0xe0] sm:$0xff]
    %v91 = vld [vmem:[#allocation2 + $0xe8] sm:$0xff]
    %v92 = vld [vmem:[#allocation2 + $0xf0] sm:$0xff]
    %v93 = vld [vmem:[#allocation2 + $0xf8] sm:$0xff]
    %v94 = vld [vmem:[#allocation2 + $0x100] sm:$0xff]
    %v95 = vld [vmem:[#allocation2 + $0x108] sm:$0xff]
    %v96 = vld [vmem:[#allocation2 + $0x110] sm:$0xff]
    %v97 = vld [vmem:[#allocation2 + $0x118] sm:$0xff]
    %v98 = vld [vmem:[#allocation2 + $0x120] sm:$0xff]
    %v99 = vld [vmem:[#allocation2 + $0x128] sm:$0xff]
    %v100 = vld [vmem:[#allocation2 + $0x130] sm:$0xff]
    %v101 = vld [vmem:[#allocation2 + $0x138] sm:$0xff]
    %v102 = vld [vmem:[#allocation2 + $0x140] sm:$0xff]
    %v103 = vld [vmem:[#allocation2 + $0x148] sm:$0xff]
    %v104 = vld [vmem:[#allocation2 + $0x150] sm:$0xff]
    %v105 = vld [vmem:[#allocation2 + $0x158] sm:$0xff]
    %v106 = vld [vmem:[#allocation2 + $0x160] sm:$0xff]
    %v107 = vld [vmem:[#allocation2 + $0x168] sm:$0xff]
    %v108 = vld [vmem:[#allocation2 + $0x170] sm:$0xff]
    %v109 = vld [vmem:[#allocation2 + $0x178] sm:$0xff]
    %v110 = vld [vmem:[#allocation2 + $0x180] sm:$0xff]
    %v111 = vld [vmem:[#allocation2 + $0x188] sm:$0xff]
    %v112 = vld [vmem:[#allocation2 + $0x190] sm:$0xff]
    %v113 = vld [vmem:[#allocation2 + $0x198] sm:$0xff]
    %v114 = vld [vmem:[#allocation2 + $0x1a0] sm:$0xff]
    %v115 = vld [vmem:[#allocation2 + $0x1a8] sm:$0xff]
    %v116 = vld [vmem:[#allocation2 + $0x1b0] sm:$0xff]
    %v117 = vld [vmem:[#allocation2 + $0x1b8] sm:$0xff]
    %v118 = vld [vmem:[#allocation2 + $0x1c0] sm:$0xff]
    %v119 = vld [vmem:[#allocation2 + $0x1c8] sm:$0xff]
    %v120 = vld [vmem:[#allocation2 + $0x1d0] sm:$0xff]
    %v121 = vld [vmem:[#allocation2 + $0x1d8] sm:$0xff]
    %v122 = vld [vmem:[#allocation2 + $0x1e0] sm:$0xff]
    %v123 = vld [vmem:[#allocation2 + $0x1e8] sm:$0xff]
    %v124 = vld [vmem:[#allocation2 + $0x1f0] sm:$0xff]
    %v125 = vld [vmem:[#allocation2 + $0x1f8] sm:$0xff]
    %v126 = vld [vmem:[#allocation2 + $0x200] sm:$0xff]
    %v127 = vld [vmem:[#allocation2 + $0x208] sm:$0xff]
    %v128 = vld [vmem:[#allocation2 + $0x210] sm:$0xff]
    %v129 = vld [vmem:[#allocation2 + $0x218] sm:$0xff]
    %v130 = vld [vmem:[#allocation2 + $0x220] sm:$0xff]
    %v131 = vld [vmem:[#allocation2 + $0x228] sm:$0xff]
    %v132 = vld [vmem:[#allocation2 + $0x230] sm:$0xff]
    %v133 = vld [vmem:[#allocation2 + $0x238] sm:$0xff]
    %v134 = vld [vmem:[#allocation2 + $0x240] sm:$0xff]
    %v135 = vld [vmem:[#allocation2 + $0x248] sm:$0xff]
    %v136 = vld [vmem:[#allocation2 + $0x250] sm:$0xff]
    %v137 = vld [vmem:[#allocation2 + $0x258] sm:$0xff]
    %v138 = vld [vmem:[#allocation2 + $0x260] sm:$0xff]
    %v139 = vld [vmem:[#allocation2 + $0x268] sm:$0xff]
    %v140 = vld [vmem:[#allocation2 + $0x270] sm:$0xff]
    %v141 = vld [vmem:[#allocation2 + $0x278] sm:$0xff]
    %v142 = vld [vmem:[#allocation2 + $0x280] sm:$0xff]
    %v143 = vld [vmem:[#allocation2 + $0x288] sm:$0xff]
    %v144 = vld [vmem:[#allocation2 + $0x290] sm:$0xff]
    %v145 = vld [vmem:[#allocation2 + $0x298] sm:$0xff]
    %v146 = vld [vmem:[#allocation2 + $0x2a0] sm:$0xff]
    %v147 = vld [vmem:[#allocation2 + $0x2a8] sm:$0xff]
    %v148 = vld [vmem:[#allocation2 + $0x2b0] sm:$0xff]
    %v149 = vld [vmem:[#allocation2 + $0x2b8] sm:$0xff]
    %v150 = vld [vmem:[#allocation2 + $0x2c0] sm:$0xff]
    %v151 = vld [vmem:[#allocation2 + $0x2c8] sm:$0xff]
    %v152 = vld [vmem:[#allocation2 + $0x2d0] sm:$0xff]
    %v153 = vld [vmem:[#allocation2 + $0x2d8] sm:$0xff]
    %v154 = vld [vmem:[#allocation2 + $0x2e0] sm:$0xff]
    %v155 = vld [vmem:[#allocation2 + $0x2e8] sm:$0xff]
    %v156 = vld [vmem:[#allocation2 + $0x2f0] sm:$0xff]
    %v157 = vld [vmem:[#allocation2 + $0x2f8] sm:$0xff]
    %v158 = vld [vmem:[#allocation2 + $0x300] sm:$0xff]
    %v159 = vld [vmem:[#allocation2 + $0x308] sm:$0xff]
    %v160 = vld [vmem:[#allocation2 + $0x310] sm:$0xff]
    %v161 = vld [vmem:[#allocation2 + $0x318] sm:$0xff]
    %v162 = vld [vmem:[#allocation2 + $0x320] sm:$0xff]
    %v163 = vld [vmem:[#allocation2 + $0x328] sm:$0xff]
    %v164 = vld [vmem:[#allocation2 + $0x330] sm:$0xff]
    %v165 = vld [vmem:[#allocation2 + $0x338] sm:$0xff]
    %v166 = vld [vmem:[#allocation2 + $0x340] sm:$0xff]
    %v167 = vld [vmem:[#allocation2 + $0x348] sm:$0xff]
    %v168 = vld [vmem:[#allocation2 + $0x350] sm:$0xff]
    %v169 = vld [vmem:[#allocation2 + $0x358] sm:$0xff]
    %v170 = vld [vmem:[#allocation2 + $0x360] sm:$0xff]
    %v171 = vld [vmem:[#allocation2 + $0x368] sm:$0xff]
    %v172 = vld [vmem:[#allocation2 + $0x370] sm:$0xff]
    %v173 = vld [vmem:[#allocation2 + $0x378] sm:$0xff]
    %v174 = vld [vmem:[#allocation2 + $0x380] sm:$0xff]
    %v175 = vld [vmem:[#allocation2 + $0x388] sm:$0xff]
    %v176 = vld [vmem:[#allocation2 + $0x390] sm:$0xff]
    %v177 = vld [vmem:[#allocation2 + $0x398] sm:$0xff]
    %v178 = vld [vmem:[#allocation2 + $0x3a0] sm:$0xff]
    %v179 = vld [vmem:[#allocation2 + $0x3a8] sm:$0xff]
    %v180 = vld [vmem:[#allocation2 + $0x3b0] sm:$0xff]
    %v181 = vld [vmem:[#allocation2 + $0x3b8] sm:$0xff]
    %v182 = vld [vmem:[#allocation2 + $0x3c0] sm:$0xff]
    %v183 = vld [vmem:[#allocation2 + $0x3c8] sm:$0xff]
    %v184 = vld [vmem:[#allocation2 + $0x3d0] sm:$0xff]
    %v185 = vld [vmem:[#allocation2 + $0x3d8] sm:$0xff]
    %v186 = vld [vmem:[#allocation2 + $0x3e0] sm:$0xff]
    %v187 = vld [vmem:[#allocation2 + $0x3e8] sm:$0xff]
    %v188 = vld [vmem:[#allocation2 + $0x3f0] sm:$0xff]
    %v189 = vld [vmem:[#allocation2 + $0x3f8] sm:$0xff]
    %v190 = vlaneseq
    %v191 = vshrl.u32 %v190, 7
    %v192 = vadd.s32 %v191, 8
    %v193 = vadd.s32 %v191, 16
    %v194 = vadd.s32 %v191, 24
    %v195 = vadd.s32 %v191, 32
    %v196 = vadd.s32 %v191, 40
    %v197 = vadd.s32 %v191, 48
    %v198 = vadd.s32 %v191, 56
    %v199 = vadd.s32 %v191, 64
    %v200 = vadd.s32 %v191, 72
    %v201 = vadd.s32 %v191, 80
    %v202 = vadd.s32 %v191, 88
    %v203 = vadd.s32 %v191, 96
    %v204 = vadd.s32 %v191, 104
    %v205 = vadd.s32 %v191, 112
    %v206 = vadd.s32 %v191, 120
    %v207 = vadd.s32 %v191, 128
    %v208 = vadd.s32 %v191, 136
    %v209 = vadd.s32 %v191, 144
    %v210 = vadd.s32 %v191, 152
    %v211 = vadd.s32 %v191, 160
    %v212 = vadd.s32 %v191, 168
    %v213 = vadd.s32 %v191, 176
    %v214 = vadd.s32 %v191, 184
    %v215 = vadd.s32 %v191, 192
    %v216 = vadd.s32 %v191, 200
    %v217 = vadd.s32 %v191, 208
    %v218 = vadd.s32 %v191, 216
    %v219 = vadd.s32 %v191, 224
    %v220 = vadd.s32 %v191, 232
    %v221 = vadd.s32 %v191, 240
    %v222 = vadd.s32 %v191, 248
    %v223 = vadd.s32 %v191, 256
    %v224 = vadd.s32 %v191, 264
    %v225 = vadd.s32 %v191, 272
    %v226 = vadd.s32 %v191, 280
    %v227 = vadd.s32 %v191, 288
    %v228 = vadd.s32 %v191, 296
    %v229 = vadd.s32 %v191, 304
    %v230 = vadd.s32 %v191, 312
    %v231 = vadd.s32 %v191, 320
    %v232 = vadd.s32 %v191, 328
    %v233 = vadd.s32 %v191, 336
    %v234 = vadd.s32 %v191, 344
    %v235 = vadd.s32 %v191, 352
    %v236 = vadd.s32 %v191, 360
    %v237 = vadd.s32 %v191, 368
    %v238 = vadd.s32 %v191, 376
    %v239 = vadd.s32 %v191, 384
    %v240 = vadd.s32 %v191, 392
    %v241 = vadd.s32 %v191, 400
    %v242 = vadd.s32 %v191, 408
    %v243 = vadd.s32 %v191, 416
    %v244 = vadd.s32 %v191, 424
    %v245 = vadd.s32 %v191, 432
    %v246 = vadd.s32 %v191, 440
    %v247 = vadd.s32 %v191, 448
    %v248 = vadd.s32 %v191, 456
    %v249 = vadd.s32 %v191, 464
    %v250 = vadd.s32 %v191, 472
    %v251 = vadd.s32 %v191, 480
    %v252 = vadd.s32 %v191, 488
    %v253 = vadd.s32 %v191, 496
    %v254 = vadd.s32 %v191, 504
    %v255 = vadd.s32 %v191, 512
    %v256 = vadd.s32 %v191, 520
    %v257 = vadd.s32 %v191, 528
    %v258 = vadd.s32 %v191, 536
    %v259 = vadd.s32 %v191, 544
    %v260 = vadd.s32 %v191, 552
    %v261 = vadd.s32 %v191, 560
    %v262 = vadd.s32 %v191, 568
    %v263 = vadd.s32 %v191, 576
    %v264 = vadd.s32 %v191, 584
    %v265 = vadd.s32 %v191, 592
    %v266 = vadd.s32 %v191, 600
    %v267 = vadd.s32 %v191, 608
    %v268 = vadd.s32 %v191, 616
    %v269 = vadd.s32 %v191, 624
    %v270 = vadd.s32 %v191, 632
    %v271 = vadd.s32 %v191, 640
    %v272 = vadd.s32 %v191, 648
    %v273 = vadd.s32 %v191, 656
    %v274 = vadd.s32 %v191, 664
    %v275 = vadd.s32 %v191, 672
    %v276 = vadd.s32 %v191, 680
    %v277 = vadd.s32 %v191, 688
    %v278 = vadd.s32 %v191, 696
    %v279 = vadd.s32 %v191, 704
    %v280 = vadd.s32 %v191, 712
    %v281 = vadd.s32 %v191, 720
    %v282 = vadd.s32 %v191, 728
    %v283 = vadd.s32 %v191, 736
    %v284 = vadd.s32 %v191, 744
    %v285 = vadd.s32 %v191, 752
    %v286 = vadd.s32 %v191, 760
    %v287 = vadd.s32 %v191, 768
    %v288 = vadd.s32 %v191, 776
    %v289 = vadd.s32 %v191, 784
    %v290 = vadd.s32 %v191, 792
    %v291 = vadd.s32 %v191, 800
    %v292 = vadd.s32 %v191, 808
    %v293 = vadd.s32 %v191, 816
    %v294 = vadd.s32 %v191, 824
    %v295 = vadd.s32 %v191, 832
    %v296 = vadd.s32 %v191, 840
    %v297 = vadd.s32 %v191, 848
    %v298 = vadd.s32 %v191, 856
    %v299 = vadd.s32 %v191, 864
    %v300 = vadd.s32 %v191, 872
    %v301 = vadd.s32 %v191, 880
    %v302 = vadd.s32 %v191, 888
    %v303 = vadd.s32 %v191, 896
    %v304 = vadd.s32 %v191, 904
    %v305 = vadd.s32 %v191, 912
    %v306 = vadd.s32 %v191, 920
    %v307 = vadd.s32 %v191, 928
    %v308 = vadd.s32 %v191, 936
    %v309 = vadd.s32 %v191, 944
    %v310 = vadd.s32 %v191, 952
    %v311 = vadd.s32 %v191, 960
    %v312 = vadd.s32 %v191, 968
    %v313 = vadd.s32 %v191, 976
    %v314 = vadd.s32 %v191, 984
    %v315 = vadd.s32 %v191, 992
    %v316 = vadd.s32 %v191, 1000
    %v317 = vadd.s32 %v191, 1008
    %v318 = vadd.s32 %v191, 1016
    %vm319 = vcmp.lt.s32.totalorder %v191, 0
    %v320 = vsub.s32 0, %v191
    %v321 = vsel %vm319, %v320, %v191
    %v322 = vshrl.u32 %v321, 7
    %v323 = vand.u32 %v321, 127
    %v324 = vsub.s32 0, %v323
    %v325 = vsel %vm319, %v324, %v323
    %vm326 = vcmp.lt.s32.totalorder %v192, 0
    %v327 = vsub.s32 0, %v192
    %v328 = vsel %vm326, %v327, %v192
    %v329 = vshrl.u32 %v328, 7
    %v330 = vand.u32 %v328, 127
    %v331 = vsub.s32 0, %v330
    %v332 = vsel %vm326, %v331, %v330
    %vm333 = vcmp.lt.s32.totalorder %v193, 0
    %v334 = vsub.s32 0, %v193
    %v335 = vsel %vm333, %v334, %v193
    %v336 = vshrl.u32 %v335, 7
    %v337 = vand.u32 %v335, 127
    %v338 = vsub.s32 0, %v337
    %v339 = vsel %vm333, %v338, %v337
    %vm340 = vcmp.lt.s32.totalorder %v194, 0
    %v341 = vsub.s32 0, %v194
    %v342 = vsel %vm340, %v341, %v194
    %v343 = vshrl.u32 %v342, 7
    %v344 = vand.u32 %v342, 127
    %v345 = vsub.s32 0, %v344
    %v346 = vsel %vm340, %v345, %v344
    %vm347 = vcmp.lt.s32.totalorder %v195, 0
    %v348 = vsub.s32 0, %v195
    %v349 = vsel %vm347, %v348, %v195
    %v350 = vshrl.u32 %v349, 7
    %v351 = vand.u32 %v349, 127
    %v352 = vsub.s32 0, %v351
    %v353 = vsel %vm347, %v352, %v351
    %vm354 = vcmp.lt.s32.totalorder %v196, 0
    %v355 = vsub.s32 0, %v196
    %v356 = vsel %vm354, %v355, %v196
    %v357 = vshrl.u32 %v356, 7
    %v358 = vand.u32 %v356, 127
    %v359 = vsub.s32 0, %v358
    %v360 = vsel %vm354, %v359, %v358
    %vm361 = vcmp.lt.s32.totalorder %v197, 0
    %v362 = vsub.s32 0, %v197
    %v363 = vsel %vm361, %v362, %v197
    %v364 = vshrl.u32 %v363, 7
    %v365 = vand.u32 %v363, 127
    %v366 = vsub.s32 0, %v365
    %v367 = vsel %vm361, %v366, %v365
    %vm368 = vcmp.lt.s32.totalorder %v198, 0
    %v369 = vsub.s32 0, %v198
    %v370 = vsel %vm368, %v369, %v198
    %v371 = vshrl.u32 %v370, 7
    %v372 = vand.u32 %v370, 127
    %v373 = vsub.s32 0, %v372
    %v374 = vsel %vm368, %v373, %v372
    %vm375 = vcmp.lt.s32.totalorder %v199, 0
    %v376 = vsub.s32 0, %v199
    %v377 = vsel %vm375, %v376, %v199
    %v378 = vshrl.u32 %v377, 7
    %v379 = vand.u32 %v377, 127
    %v380 = vsub.s32 0, %v379
    %v381 = vsel %vm375, %v380, %v379
    %vm382 = vcmp.lt.s32.totalorder %v200, 0
    %v383 = vsub.s32 0, %v200
    %v384 = vsel %vm382, %v383, %v200
    %v385 = vshrl.u32 %v384, 7
    %v386 = vand.u32 %v384, 127
    %v387 = vsub.s32 0, %v386
    %v388 = vsel %vm382, %v387, %v386
    %vm389 = vcmp.lt.s32.totalorder %v201, 0
    %v390 = vsub.s32 0, %v201
    %v391 = vsel %vm389, %v390, %v201
    %v392 = vshrl.u32 %v391, 7
    %v393 = vand.u32 %v391, 127
    %v394 = vsub.s32 0, %v393
    %v395 = vsel %vm389, %v394, %v393
    %vm396 = vcmp.lt.s32.totalorder %v202, 0
    %v397 = vsub.s32 0, %v202
    %v398 = vsel %vm396, %v397, %v202
    %v399 = vshrl.u32 %v398, 7
    %v400 = vand.u32 %v398, 127
    %v401 = vsub.s32 0, %v400
    %v402 = vsel %vm396, %v401, %v400
    %vm403 = vcmp.lt.s32.totalorder %v203, 0
    %v404 = vsub.s32 0, %v203
    %v405 = vsel %vm403, %v404, %v203
    %v406 = vshrl.u32 %v405, 7
    %v407 = vand.u32 %v405, 127
    %v408 = vsub.s32 0, %v407
    %v409 = vsel %vm403, %v408, %v407
    %vm410 = vcmp.lt.s32.totalorder %v204, 0
    %v411 = vsub.s32 0, %v204
    %v412 = vsel %vm410, %v411, %v204
    %v413 = vshrl.u32 %v412, 7
    %v414 = vand.u32 %v412, 127
    %v415 = vsub.s32 0, %v414
    %v416 = vsel %vm410, %v415, %v414
    %vm417 = vcmp.lt.s32.totalorder %v205, 0
    %v418 = vsub.s32 0, %v205
    %v419 = vsel %vm417, %v418, %v205
    %v420 = vshrl.u32 %v419, 7
    %v421 = vand.u32 %v419, 127
    %v422 = vsub.s32 0, %v421
    %v423 = vsel %vm417, %v422, %v421
    %vm424 = vcmp.lt.s32.totalorder %v206, 0
    %v425 = vsub.s32 0, %v206
    %v426 = vsel %vm424, %v425, %v206
    %v427 = vshrl.u32 %v426, 7
    %v428 = vand.u32 %v426, 127
    %v429 = vsub.s32 0, %v428
    %v430 = vsel %vm424, %v429, %v428
    %vm431 = vcmp.lt.s32.totalorder %v207, 0
    %v432 = vsub.s32 0, %v207
    %v433 = vsel %vm431, %v432, %v207
    %v434 = vshrl.u32 %v433, 7
    %v435 = vand.u32 %v433, 127
    %v436 = vsub.s32 0, %v435
    %v437 = vsel %vm431, %v436, %v435
    %vm438 = vcmp.lt.s32.totalorder %v208, 0
    %v439 = vsub.s32 0, %v208
    %v440 = vsel %vm438, %v439, %v208
    %v441 = vshrl.u32 %v440, 7
    %v442 = vand.u32 %v440, 127
    %v443 = vsub.s32 0, %v442
    %v444 = vsel %vm438, %v443, %v442
    %vm445 = vcmp.lt.s32.totalorder %v209, 0
    %v446 = vsub.s32 0, %v209
    %v447 = vsel %vm445, %v446, %v209
    %v448 = vshrl.u32 %v447, 7
    %v449 = vand.u32 %v447, 127
    %v450 = vsub.s32 0, %v449
    %v451 = vsel %vm445, %v450, %v449
    %vm452 = vcmp.lt.s32.totalorder %v210, 0
    %v453 = vsub.s32 0, %v210
    %v454 = vsel %vm452, %v453, %v210
    %v455 = vshrl.u32 %v454, 7
    %v456 = vand.u32 %v454, 127
    %v457 = vsub.s32 0, %v456
    %v458 = vsel %vm452, %v457, %v456
    %vm459 = vcmp.lt.s32.totalorder %v211, 0
    %v460 = vsub.s32 0, %v211
    %v461 = vsel %vm459, %v460, %v211
    %v462 = vshrl.u32 %v461, 7
    %v463 = vand.u32 %v461, 127
    %v464 = vsub.s32 0, %v463
    %v465 = vsel %vm459, %v464, %v463
    %vm466 = vcmp.lt.s32.totalorder %v212, 0
    %v467 = vsub.s32 0, %v212
    %v468 = vsel %vm466, %v467, %v212
    %v469 = vshrl.u32 %v468, 7
    %v470 = vand.u32 %v468, 127
    %v471 = vsub.s32 0, %v470
    %v472 = vsel %vm466, %v471, %v470
    %vm473 = vcmp.lt.s32.totalorder %v213, 0
    %v474 = vsub.s32 0, %v213
    %v475 = vsel %vm473, %v474, %v213
    %v476 = vshrl.u32 %v475, 7
    %v477 = vand.u32 %v475, 127
    %v478 = vsub.s32 0, %v477
    %v479 = vsel %vm473, %v478, %v477
    %vm480 = vcmp.lt.s32.totalorder %v214, 0
    %v481 = vsub.s32 0, %v214
    %v482 = vsel %vm480, %v481, %v214
    %v483 = vshrl.u32 %v482, 7
    %v484 = vand.u32 %v482, 127
    %v485 = vsub.s32 0, %v484
    %v486 = vsel %vm480, %v485, %v484
    %vm487 = vcmp.lt.s32.totalorder %v215, 0
    %v488 = vsub.s32 0, %v215
    %v489 = vsel %vm487, %v488, %v215
    %v490 = vshrl.u32 %v489, 7
    %v491 = vand.u32 %v489, 127
    %v492 = vsub.s32 0, %v491
    %v493 = vsel %vm487, %v492, %v491
    %vm494 = vcmp.lt.s32.totalorder %v216, 0
    %v495 = vsub.s32 0, %v216
    %v496 = vsel %vm494, %v495, %v216
    %v497 = vshrl.u32 %v496, 7
    %v498 = vand.u32 %v496, 127
    %v499 = vsub.s32 0, %v498
    %v500 = vsel %vm494, %v499, %v498
    %vm501 = vcmp.lt.s32.totalorder %v217, 0
    %v502 = vsub.s32 0, %v217
    %v503 = vsel %vm501, %v502, %v217
    %v504 = vshrl.u32 %v503, 7
    %v505 = vand.u32 %v503, 127
    %v506 = vsub.s32 0, %v505
    %v507 = vsel %vm501, %v506, %v505
    %vm508 = vcmp.lt.s32.totalorder %v218, 0
    %v509 = vsub.s32 0, %v218
    %v510 = vsel %vm508, %v509, %v218
    %v511 = vshrl.u32 %v510, 7
    %v512 = vand.u32 %v510, 127
    %v513 = vsub.s32 0, %v512
    %v514 = vsel %vm508, %v513, %v512
    %vm515 = vcmp.lt.s32.totalorder %v219, 0
    %v516 = vsub.s32 0, %v219
    %v517 = vsel %vm515, %v516, %v219
    %v518 = vshrl.u32 %v517, 7
    %v519 = vand.u32 %v517, 127
    %v520 = vsub.s32 0, %v519
    %v521 = vsel %vm515, %v520, %v519
    %vm522 = vcmp.lt.s32.totalorder %v220, 0
    %v523 = vsub.s32 0, %v220
    %v524 = vsel %vm522, %v523, %v220
    %v525 = vshrl.u32 %v524, 7
    %v526 = vand.u32 %v524, 127
    %v527 = vsub.s32 0, %v526
    %v528 = vsel %vm522, %v527, %v526
    %vm529 = vcmp.lt.s32.totalorder %v221, 0
    %v530 = vsub.s32 0, %v221
    %v531 = vsel %vm529, %v530, %v221
    %v532 = vshrl.u32 %v531, 7
    %v533 = vand.u32 %v531, 127
    %v534 = vsub.s32 0, %v533
    %v535 = vsel %vm529, %v534, %v533
    %vm536 = vcmp.lt.s32.totalorder %v222, 0
    %v537 = vsub.s32 0, %v222
    %v538 = vsel %vm536, %v537, %v222
    %v539 = vshrl.u32 %v538, 7
    %v540 = vand.u32 %v538, 127
    %v541 = vsub.s32 0, %v540
    %v542 = vsel %vm536, %v541, %v540
    %vm543 = vcmp.lt.s32.totalorder %v223, 0
    %v544 = vsub.s32 0, %v223
    %v545 = vsel %vm543, %v544, %v223
    %v546 = vshrl.u32 %v545, 7
    %v547 = vand.u32 %v545, 127
    %v548 = vsub.s32 0, %v547
    %v549 = vsel %vm543, %v548, %v547
    %vm550 = vcmp.lt.s32.totalorder %v224, 0
    %v551 = vsub.s32 0, %v224
    %v552 = vsel %vm550, %v551, %v224
    %v553 = vshrl.u32 %v552, 7
    %v554 = vand.u32 %v552, 127
    %v555 = vsub.s32 0, %v554
    %v556 = vsel %vm550, %v555, %v554
    %vm557 = vcmp.lt.s32.totalorder %v225, 0
    %v558 = vsub.s32 0, %v225
    %v559 = vsel %vm557, %v558, %v225
    %v560 = vshrl.u32 %v559, 7
    %v561 = vand.u32 %v559, 127
    %v562 = vsub.s32 0, %v561
    %v563 = vsel %vm557, %v562, %v561
    %vm564 = vcmp.lt.s32.totalorder %v226, 0
    %v565 = vsub.s32 0, %v226
    %v566 = vsel %vm564, %v565, %v226
    %v567 = vshrl.u32 %v566, 7
    %v568 = vand.u32 %v566, 127
    %v569 = vsub.s32 0, %v568
    %v570 = vsel %vm564, %v569, %v568
    %vm571 = vcmp.lt.s32.totalorder %v227, 0
    %v572 = vsub.s32 0, %v227
    %v573 = vsel %vm571, %v572, %v227
    %v574 = vshrl.u32 %v573, 7
    %v575 = vand.u32 %v573, 127
    %v576 = vsub.s32 0, %v575
    %v577 = vsel %vm571, %v576, %v575
    %vm578 = vcmp.lt.s32.totalorder %v228, 0
    %v579 = vsub.s32 0, %v228
    %v580 = vsel %vm578, %v579, %v228
    %v581 = vshrl.u32 %v580, 7
    %v582 = vand.u32 %v580, 127
    %v583 = vsub.s32 0, %v582
    %v584 = vsel %vm578, %v583, %v582
    %vm585 = vcmp.lt.s32.totalorder %v229, 0
    %v586 = vsub.s32 0, %v229
    %v587 = vsel %vm585, %v586, %v229
    %v588 = vshrl.u32 %v587, 7
    %v589 = vand.u32 %v587, 127
    %v590 = vsub.s32 0, %v589
    %v591 = vsel %vm585, %v590, %v589
    %vm592 = vcmp.lt.s32.totalorder %v230, 0
    %v593 = vsub.s32 0, %v230
    %v594 = vsel %vm592, %v593, %v230
    %v595 = vshrl.u32 %v594, 7
    %v596 = vand.u32 %v594, 127
    %v597 = vsub.s32 0, %v596
    %v598 = vsel %vm592, %v597, %v596
    %vm599 = vcmp.lt.s32.totalorder %v231, 0
    %v600 = vsub.s32 0, %v231
    %v601 = vsel %vm599, %v600, %v231
    %v602 = vshrl.u32 %v601, 7
    %v603 = vand.u32 %v601, 127
    %v604 = vsub.s32 0, %v603
    %v605 = vsel %vm599, %v604, %v603
    %vm606 = vcmp.lt.s32.totalorder %v232, 0
    %v607 = vsub.s32 0, %v232
    %v608 = vsel %vm606, %v607, %v232
    %v609 = vshrl.u32 %v608, 7
    %v610 = vand.u32 %v608, 127
    %v611 = vsub.s32 0, %v610
    %v612 = vsel %vm606, %v611, %v610
    %vm613 = vcmp.lt.s32.totalorder %v233, 0
    %v614 = vsub.s32 0, %v233
    %v615 = vsel %vm613, %v614, %v233
    %v616 = vshrl.u32 %v615, 7
    %v617 = vand.u32 %v615, 127
    %v618 = vsub.s32 0, %v617
    %v619 = vsel %vm613, %v618, %v617
    %vm620 = vcmp.lt.s32.totalorder %v234, 0
    %v621 = vsub.s32 0, %v234
    %v622 = vsel %vm620, %v621, %v234
    %v623 = vshrl.u32 %v622, 7
    %v624 = vand.u32 %v622, 127
    %v625 = vsub.s32 0, %v624
    %v626 = vsel %vm620, %v625, %v624
    %vm627 = vcmp.lt.s32.totalorder %v235, 0
    %v628 = vsub.s32 0, %v235
    %v629 = vsel %vm627, %v628, %v235
    %v630 = vshrl.u32 %v629, 7
    %v631 = vand.u32 %v629, 127
    %v632 = vsub.s32 0, %v631
    %v633 = vsel %vm627, %v632, %v631
    %vm634 = vcmp.lt.s32.totalorder %v236, 0
    %v635 = vsub.s32 0, %v236
    %v636 = vsel %vm634, %v635, %v236
    %v637 = vshrl.u32 %v636, 7
    %v638 = vand.u32 %v636, 127
    %v639 = vsub.s32 0, %v638
    %v640 = vsel %vm634, %v639, %v638
    %vm641 = vcmp.lt.s32.totalorder %v237, 0
    %v642 = vsub.s32 0, %v237
    %v643 = vsel %vm641, %v642, %v237
    %v644 = vshrl.u32 %v643, 7
    %v645 = vand.u32 %v643, 127
    %v646 = vsub.s32 0, %v645
    %v647 = vsel %vm641, %v646, %v645
    %vm648 = vcmp.lt.s32.totalorder %v238, 0
    %v649 = vsub.s32 0, %v238
    %v650 = vsel %vm648, %v649, %v238
    %v651 = vshrl.u32 %v650, 7
    %v652 = vand.u32 %v650, 127
    %v653 = vsub.s32 0, %v652
    %v654 = vsel %vm648, %v653, %v652
    %vm655 = vcmp.lt.s32.totalorder %v239, 0
    %v656 = vsub.s32 0, %v239
    %v657 = vsel %vm655, %v656, %v239
    %v658 = vshrl.u32 %v657, 7
    %v659 = vand.u32 %v657, 127
    %v660 = vsub.s32 0, %v659
    %v661 = vsel %vm655, %v660, %v659
    %vm662 = vcmp.lt.s32.totalorder %v240, 0
    %v663 = vsub.s32 0, %v240
    %v664 = vsel %vm662, %v663, %v240
    %v665 = vshrl.u32 %v664, 7
    %v666 = vand.u32 %v664, 127
    %v667 = vsub.s32 0, %v666
    %v668 = vsel %vm662, %v667, %v666
    %vm669 = vcmp.lt.s32.totalorder %v241, 0
    %v670 = vsub.s32 0, %v241
    %v671 = vsel %vm669, %v670, %v241
    %v672 = vshrl.u32 %v671, 7
    %v673 = vand.u32 %v671, 127
    %v674 = vsub.s32 0, %v673
    %v675 = vsel %vm669, %v674, %v673
    %vm676 = vcmp.lt.s32.totalorder %v242, 0
    %v677 = vsub.s32 0, %v242
    %v678 = vsel %vm676, %v677, %v242
    %v679 = vshrl.u32 %v678, 7
    %v680 = vand.u32 %v678, 127
    %v681 = vsub.s32 0, %v680
    %v682 = vsel %vm676, %v681, %v680
    %vm683 = vcmp.lt.s32.totalorder %v243, 0
    %v684 = vsub.s32 0, %v243
    %v685 = vsel %vm683, %v684, %v243
    %v686 = vshrl.u32 %v685, 7
    %v687 = vand.u32 %v685, 127
    %v688 = vsub.s32 0, %v687
    %v689 = vsel %vm683, %v688, %v687
    %vm690 = vcmp.lt.s32.totalorder %v244, 0
    %v691 = vsub.s32 0, %v244
    %v692 = vsel %vm690, %v691, %v244
    %v693 = vshrl.u32 %v692, 7
    %v694 = vand.u32 %v692, 127
    %v695 = vsub.s32 0, %v694
    %v696 = vsel %vm690, %v695, %v694
    %vm697 = vcmp.lt.s32.totalorder %v245, 0
    %v698 = vsub.s32 0, %v245
    %v699 = vsel %vm697, %v698, %v245
    %v700 = vshrl.u32 %v699, 7
    %v701 = vand.u32 %v699, 127
    %v702 = vsub.s32 0, %v701
    %v703 = vsel %vm697, %v702, %v701
    %vm704 = vcmp.lt.s32.totalorder %v246, 0
    %v705 = vsub.s32 0, %v246
    %v706 = vsel %vm704, %v705, %v246
    %v707 = vshrl.u32 %v706, 7
    %v708 = vand.u32 %v706, 127
    %v709 = vsub.s32 0, %v708
    %v710 = vsel %vm704, %v709, %v708
    %vm711 = vcmp.lt.s32.totalorder %v247, 0
    %v712 = vsub.s32 0, %v247
    %v713 = vsel %vm711, %v712, %v247
    %v714 = vshrl.u32 %v713, 7
    %v715 = vand.u32 %v713, 127
    %v716 = vsub.s32 0, %v715
    %v717 = vsel %vm711, %v716, %v715
    %vm718 = vcmp.lt.s32.totalorder %v248, 0
    %v719 = vsub.s32 0, %v248
    %v720 = vsel %vm718, %v719, %v248
    %v721 = vshrl.u32 %v720, 7
    %v722 = vand.u32 %v720, 127
    %v723 = vsub.s32 0, %v722
    %v724 = vsel %vm718, %v723, %v722
    %vm725 = vcmp.lt.s32.totalorder %v249, 0
    %v726 = vsub.s32 0, %v249
    %v727 = vsel %vm725, %v726, %v249
    %v728 = vshrl.u32 %v727, 7
    %v729 = vand.u32 %v727, 127
    %v730 = vsub.s32 0, %v729
    %v731 = vsel %vm725, %v730, %v729
    %vm732 = vcmp.lt.s32.totalorder %v250, 0
    %v733 = vsub.s32 0, %v250
    %v734 = vsel %vm732, %v733, %v250
    %v735 = vshrl.u32 %v734, 7
    %v736 = vand.u32 %v734, 127
    %v737 = vsub.s32 0, %v736
    %v738 = vsel %vm732, %v737, %v736
    %vm739 = vcmp.lt.s32.totalorder %v251, 0
    %v740 = vsub.s32 0, %v251
    %v741 = vsel %vm739, %v740, %v251
    %v742 = vshrl.u32 %v741, 7
    %v743 = vand.u32 %v741, 127
    %v744 = vsub.s32 0, %v743
    %v745 = vsel %vm739, %v744, %v743
    %vm746 = vcmp.lt.s32.totalorder %v252, 0
    %v747 = vsub.s32 0, %v252
    %v748 = vsel %vm746, %v747, %v252
    %v749 = vshrl.u32 %v748, 7
    %v750 = vand.u32 %v748, 127
    %v751 = vsub.s32 0, %v750
    %v752 = vsel %vm746, %v751, %v750
    %vm753 = vcmp.lt.s32.totalorder %v253, 0
    %v754 = vsub.s32 0, %v253
    %v755 = vsel %vm753, %v754, %v253
    %v756 = vshrl.u32 %v755, 7
    %v757 = vand.u32 %v755, 127
    %v758 = vsub.s32 0, %v757
    %v759 = vsel %vm753, %v758, %v757
    %vm760 = vcmp.lt.s32.totalorder %v254, 0
    %v761 = vsub.s32 0, %v254
    %v762 = vsel %vm760, %v761, %v254
    %v763 = vshrl.u32 %v762, 7
    %v764 = vand.u32 %v762, 127
    %v765 = vsub.s32 0, %v764
    %v766 = vsel %vm760, %v765, %v764
    %vm767 = vcmp.lt.s32.totalorder %v255, 0
    %v768 = vsub.s32 0, %v255
    %v769 = vsel %vm767, %v768, %v255
    %v770 = vshrl.u32 %v769, 7
    %v771 = vand.u32 %v769, 127
    %v772 = vsub.s32 0, %v771
    %v773 = vsel %vm767, %v772, %v771
    %vm774 = vcmp.lt.s32.totalorder %v256, 0
    %v775 = vsub.s32 0, %v256
    %v776 = vsel %vm774, %v775, %v256
    %v777 = vshrl.u32 %v776, 7
    %v778 = vand.u32 %v776, 127
    %v779 = vsub.s32 0, %v778
    %v780 = vsel %vm774, %v779, %v778
    %vm781 = vcmp.lt.s32.totalorder %v257, 0
    %v782 = vsub.s32 0, %v257
    %v783 = vsel %vm781, %v782, %v257
    %v784 = vshrl.u32 %v783, 7
    %v785 = vand.u32 %v783, 127
    %v786 = vsub.s32 0, %v785
    %v787 = vsel %vm781, %v786, %v785
    %vm788 = vcmp.lt.s32.totalorder %v258, 0
    %v789 = vsub.s32 0, %v258
    %v790 = vsel %vm788, %v789, %v258
    %v791 = vshrl.u32 %v790, 7
    %v792 = vand.u32 %v790, 127
    %v793 = vsub.s32 0, %v792
    %v794 = vsel %vm788, %v793, %v792
    %vm795 = vcmp.lt.s32.totalorder %v259, 0
    %v796 = vsub.s32 0, %v259
    %v797 = vsel %vm795, %v796, %v259
    %v798 = vshrl.u32 %v797, 7
    %v799 = vand.u32 %v797, 127
    %v800 = vsub.s32 0, %v799
    %v801 = vsel %vm795, %v800, %v799
    %vm802 = vcmp.lt.s32.totalorder %v260, 0
    %v803 = vsub.s32 0, %v260
    %v804 = vsel %vm802, %v803, %v260
    %v805 = vshrl.u32 %v804, 7
    %v806 = vand.u32 %v804, 127
    %v807 = vsub.s32 0, %v806
    %v808 = vsel %vm802, %v807, %v806
    %vm809 = vcmp.lt.s32.totalorder %v261, 0
    %v810 = vsub.s32 0, %v261
    %v811 = vsel %vm809, %v810, %v261
    %v812 = vshrl.u32 %v811, 7
    %v813 = vand.u32 %v811, 127
    %v814 = vsub.s32 0, %v813
    %v815 = vsel %vm809, %v814, %v813
    %vm816 = vcmp.lt.s32.totalorder %v262, 0
    %v817 = vsub.s32 0, %v262
    %v818 = vsel %vm816, %v817, %v262
    %v819 = vshrl.u32 %v818, 7
    %v820 = vand.u32 %v818, 127
    %v821 = vsub.s32 0, %v820
    %v822 = vsel %vm816, %v821, %v820
    %vm823 = vcmp.lt.s32.totalorder %v263, 0
    %v824 = vsub.s32 0, %v263
    %v825 = vsel %vm823, %v824, %v263
    %v826 = vshrl.u32 %v825, 7
    %v827 = vand.u32 %v825, 127
    %v828 = vsub.s32 0, %v827
    %v829 = vsel %vm823, %v828, %v827
    %vm830 = vcmp.lt.s32.totalorder %v264, 0
    %v831 = vsub.s32 0, %v264
    %v832 = vsel %vm830, %v831, %v264
    %v833 = vshrl.u32 %v832, 7
    %v834 = vand.u32 %v832, 127
    %v835 = vsub.s32 0, %v834
    %v836 = vsel %vm830, %v835, %v834
    %vm837 = vcmp.lt.s32.totalorder %v265, 0
    %v838 = vsub.s32 0, %v265
    %v839 = vsel %vm837, %v838, %v265
    %v840 = vshrl.u32 %v839, 7
    %v841 = vand.u32 %v839, 127
    %v842 = vsub.s32 0, %v841
    %v843 = vsel %vm837, %v842, %v841
    %vm844 = vcmp.lt.s32.totalorder %v266, 0
    %v845 = vsub.s32 0, %v266
    %v846 = vsel %vm844, %v845, %v266
    %v847 = vshrl.u32 %v846, 7
    %v848 = vand.u32 %v846, 127
    %v849 = vsub.s32 0, %v848
    %v850 = vsel %vm844, %v849, %v848
    %vm851 = vcmp.lt.s32.totalorder %v267, 0
    %v852 = vsub.s32 0, %v267
    %v853 = vsel %vm851, %v852, %v267
    %v854 = vshrl.u32 %v853, 7
    %v855 = vand.u32 %v853, 127
    %v856 = vsub.s32 0, %v855
    %v857 = vsel %vm851, %v856, %v855
    %vm858 = vcmp.lt.s32.totalorder %v268, 0
    %v859 = vsub.s32 0, %v268
    %v860 = vsel %vm858, %v859, %v268
    %v861 = vshrl.u32 %v860, 7
    %v862 = vand.u32 %v860, 127
    %v863 = vsub.s32 0, %v862
    %v864 = vsel %vm858, %v863, %v862
    %vm865 = vcmp.lt.s32.totalorder %v269, 0
    %v866 = vsub.s32 0, %v269
    %v867 = vsel %vm865, %v866, %v269
    %v868 = vshrl.u32 %v867, 7
    %v869 = vand.u32 %v867, 127
    %v870 = vsub.s32 0, %v869
    %v871 = vsel %vm865, %v870, %v869
    %vm872 = vcmp.lt.s32.totalorder %v270, 0
    %v873 = vsub.s32 0, %v270
    %v874 = vsel %vm872, %v873, %v270
    %v875 = vshrl.u32 %v874, 7
    %v876 = vand.u32 %v874, 127
    %v877 = vsub.s32 0, %v876
    %v878 = vsel %vm872, %v877, %v876
    %vm879 = vcmp.lt.s32.totalorder %v271, 0
    %v880 = vsub.s32 0, %v271
    %v881 = vsel %vm879, %v880, %v271
    %v882 = vshrl.u32 %v881, 7
    %v883 = vand.u32 %v881, 127
    %v884 = vsub.s32 0, %v883
    %v885 = vsel %vm879, %v884, %v883
    %vm886 = vcmp.lt.s32.totalorder %v272, 0
    %v887 = vsub.s32 0, %v272
    %v888 = vsel %vm886, %v887, %v272
    %v889 = vshrl.u32 %v888, 7
    %v890 = vand.u32 %v888, 127
    %v891 = vsub.s32 0, %v890
    %v892 = vsel %vm886, %v891, %v890
    %vm893 = vcmp.lt.s32.totalorder %v273, 0
    %v894 = vsub.s32 0, %v273
    %v895 = vsel %vm893, %v894, %v273
    %v896 = vshrl.u32 %v895, 7
    %v897 = vand.u32 %v895, 127
    %v898 = vsub.s32 0, %v897
    %v899 = vsel %vm893, %v898, %v897
    %vm900 = vcmp.lt.s32.totalorder %v274, 0
    %v901 = vsub.s32 0, %v274
    %v902 = vsel %vm900, %v901, %v274
    %v903 = vshrl.u32 %v902, 7
    %v904 = vand.u32 %v902, 127
    %v905 = vsub.s32 0, %v904
    %v906 = vsel %vm900, %v905, %v904
    %vm907 = vcmp.lt.s32.totalorder %v275, 0
    %v908 = vsub.s32 0, %v275
    %v909 = vsel %vm907, %v908, %v275
    %v910 = vshrl.u32 %v909, 7
    %v911 = vand.u32 %v909, 127
    %v912 = vsub.s32 0, %v911
    %v913 = vsel %vm907, %v912, %v911
    %vm914 = vcmp.lt.s32.totalorder %v276, 0
    %v915 = vsub.s32 0, %v276
    %v916 = vsel %vm914, %v915, %v276
    %v917 = vshrl.u32 %v916, 7
    %v918 = vand.u32 %v916, 127
    %v919 = vsub.s32 0, %v918
    %v920 = vsel %vm914, %v919, %v918
    %vm921 = vcmp.lt.s32.totalorder %v277, 0
    %v922 = vsub.s32 0, %v277
    %v923 = vsel %vm921, %v922, %v277
    %v924 = vshrl.u32 %v923, 7
    %v925 = vand.u32 %v923, 127
    %v926 = vsub.s32 0, %v925
    %v927 = vsel %vm921, %v926, %v925
    %vm928 = vcmp.lt.s32.totalorder %v278, 0
    %v929 = vsub.s32 0, %v278
    %v930 = vsel %vm928, %v929, %v278
    %v931 = vshrl.u32 %v930, 7
    %v932 = vand.u32 %v930, 127
    %v933 = vsub.s32 0, %v932
    %v934 = vsel %vm928, %v933, %v932
    %vm935 = vcmp.lt.s32.totalorder %v279, 0
    %v936 = vsub.s32 0, %v279
    %v937 = vsel %vm935, %v936, %v279
    %v938 = vshrl.u32 %v937, 7
    %v939 = vand.u32 %v937, 127
    %v940 = vsub.s32 0, %v939
    %v941 = vsel %vm935, %v940, %v939
    %vm942 = vcmp.lt.s32.totalorder %v280, 0
    %v943 = vsub.s32 0, %v280
    %v944 = vsel %vm942, %v943, %v280
    %v945 = vshrl.u32 %v944, 7
    %v946 = vand.u32 %v944, 127
    %v947 = vsub.s32 0, %v946
    %v948 = vsel %vm942, %v947, %v946
    %vm949 = vcmp.lt.s32.totalorder %v281, 0
    %v950 = vsub.s32 0, %v281
    %v951 = vsel %vm949, %v950, %v281
    %v952 = vshrl.u32 %v951, 7
    %v953 = vand.u32 %v951, 127
    %v954 = vsub.s32 0, %v953
    %v955 = vsel %vm949, %v954, %v953
    %vm956 = vcmp.lt.s32.totalorder %v282, 0
    %v957 = vsub.s32 0, %v282
    %v958 = vsel %vm956, %v957, %v282
    %v959 = vshrl.u32 %v958, 7
    %v960 = vand.u32 %v958, 127
    %v961 = vsub.s32 0, %v960
    %v962 = vsel %vm956, %v961, %v960
    %vm963 = vcmp.lt.s32.totalorder %v283, 0
    %v964 = vsub.s32 0, %v283
    %v965 = vsel %vm963, %v964, %v283
    %v966 = vshrl.u32 %v965, 7
    %v967 = vand.u32 %v965, 127
    %v968 = vsub.s32 0, %v967
    %v969 = vsel %vm963, %v968, %v967
    %vm970 = vcmp.lt.s32.totalorder %v284, 0
    %v971 = vsub.s32 0, %v284
    %v972 = vsel %vm970, %v971, %v284
    %v973 = vshrl.u32 %v972, 7
    %v974 = vand.u32 %v972, 127
    %v975 = vsub.s32 0, %v974
    %v976 = vsel %vm970, %v975, %v974
    %vm977 = vcmp.lt.s32.totalorder %v285, 0
    %v978 = vsub.s32 0, %v285
    %v979 = vsel %vm977, %v978, %v285
    %v980 = vshrl.u32 %v979, 7
    %v981 = vand.u32 %v979, 127
    %v982 = vsub.s32 0, %v981
    %v983 = vsel %vm977, %v982, %v981
    %vm984 = vcmp.lt.s32.totalorder %v286, 0
    %v985 = vsub.s32 0, %v286
    %v986 = vsel %vm984, %v985, %v286
    %v987 = vshrl.u32 %v986, 7
    %v988 = vand.u32 %v986, 127
    %v989 = vsub.s32 0, %v988
    %v990 = vsel %vm984, %v989, %v988
    %vm991 = vcmp.lt.s32.totalorder %v287, 0
    %v992 = vsub.s32 0, %v287
    %v993 = vsel %vm991, %v992, %v287
    %v994 = vshrl.u32 %v993, 7
    %v995 = vand.u32 %v993, 127
    %v996 = vsub.s32 0, %v995
    %v997 = vsel %vm991, %v996, %v995
    %vm998 = vcmp.lt.s32.totalorder %v288, 0
    %v999 = vsub.s32 0, %v288
    %v1000 = vsel %vm998, %v999, %v288
    %v1001 = vshrl.u32 %v1000, 7
    %v1002 = vand.u32 %v1000, 127
    %v1003 = vsub.s32 0, %v1002
    %v1004 = vsel %vm998, %v1003, %v1002
    %vm1005 = vcmp.lt.s32.totalorder %v289, 0
    %v1006 = vsub.s32 0, %v289
    %v1007 = vsel %vm1005, %v1006, %v289
    %v1008 = vshrl.u32 %v1007, 7
    %v1009 = vand.u32 %v1007, 127
    %v1010 = vsub.s32 0, %v1009
    %v1011 = vsel %vm1005, %v1010, %v1009
    %vm1012 = vcmp.lt.s32.totalorder %v290, 0
    %v1013 = vsub.s32 0, %v290
    %v1014 = vsel %vm1012, %v1013, %v290
    %v1015 = vshrl.u32 %v1014, 7
    %v1016 = vand.u32 %v1014, 127
    %v1017 = vsub.s32 0, %v1016
    %v1018 = vsel %vm1012, %v1017, %v1016
    %vm1019 = vcmp.lt.s32.totalorder %v291, 0
    %v1020 = vsub.s32 0, %v291
    %v1021 = vsel %vm1019, %v1020, %v291
    %v1022 = vshrl.u32 %v1021, 7
    %v1023 = vand.u32 %v1021, 127
    %v1024 = vsub.s32 0, %v1023
    %v1025 = vsel %vm1019, %v1024, %v1023
    %vm1026 = vcmp.lt.s32.totalorder %v292, 0
    %v1027 = vsub.s32 0, %v292
    %v1028 = vsel %vm1026, %v1027, %v292
    %v1029 = vshrl.u32 %v1028, 7
    %v1030 = vand.u32 %v1028, 127
    %v1031 = vsub.s32 0, %v1030
    %v1032 = vsel %vm1026, %v1031, %v1030
    %vm1033 = vcmp.lt.s32.totalorder %v293, 0
    %v1034 = vsub.s32 0, %v293
    %v1035 = vsel %vm1033, %v1034, %v293
    %v1036 = vshrl.u32 %v1035, 7
    %v1037 = vand.u32 %v1035, 127
    %v1038 = vsub.s32 0, %v1037
    %v1039 = vsel %vm1033, %v1038, %v1037
    %vm1040 = vcmp.lt.s32.totalorder %v294, 0
    %v1041 = vsub.s32 0, %v294
    %v1042 = vsel %vm1040, %v1041, %v294
    %v1043 = vshrl.u32 %v1042, 7
    %v1044 = vand.u32 %v1042, 127
    %v1045 = vsub.s32 0, %v1044
    %v1046 = vsel %vm1040, %v1045, %v1044
    %vm1047 = vcmp.lt.s32.totalorder %v295, 0
    %v1048 = vsub.s32 0, %v295
    %v1049 = vsel %vm1047, %v1048, %v295
    %v1050 = vshrl.u32 %v1049, 7
    %v1051 = vand.u32 %v1049, 127
    %v1052 = vsub.s32 0, %v1051
    %v1053 = vsel %vm1047, %v1052, %v1051
    %vm1054 = vcmp.lt.s32.totalorder %v296, 0
    %v1055 = vsub.s32 0, %v296
    %v1056 = vsel %vm1054, %v1055, %v296
    %v1057 = vshrl.u32 %v1056, 7
    %v1058 = vand.u32 %v1056, 127
    %v1059 = vsub.s32 0, %v1058
    %v1060 = vsel %vm1054, %v1059, %v1058
    %vm1061 = vcmp.lt.s32.totalorder %v297, 0
    %v1062 = vsub.s32 0, %v297
    %v1063 = vsel %vm1061, %v1062, %v297
    %v1064 = vshrl.u32 %v1063, 7
    %v1065 = vand.u32 %v1063, 127
    %v1066 = vsub.s32 0, %v1065
    %v1067 = vsel %vm1061, %v1066, %v1065
    %vm1068 = vcmp.lt.s32.totalorder %v298, 0
    %v1069 = vsub.s32 0, %v298
    %v1070 = vsel %vm1068, %v1069, %v298
    %v1071 = vshrl.u32 %v1070, 7
    %v1072 = vand.u32 %v1070, 127
    %v1073 = vsub.s32 0, %v1072
    %v1074 = vsel %vm1068, %v1073, %v1072
    %vm1075 = vcmp.lt.s32.totalorder %v299, 0
    %v1076 = vsub.s32 0, %v299
    %v1077 = vsel %vm1075, %v1076, %v299
    %v1078 = vshrl.u32 %v1077, 7
    %v1079 = vand.u32 %v1077, 127
    %v1080 = vsub.s32 0, %v1079
    %v1081 = vsel %vm1075, %v1080, %v1079
    %vm1082 = vcmp.lt.s32.totalorder %v300, 0
    %v1083 = vsub.s32 0, %v300
    %v1084 = vsel %vm1082, %v1083, %v300
    %v1085 = vshrl.u32 %v1084, 7
    %v1086 = vand.u32 %v1084, 127
    %v1087 = vsub.s32 0, %v1086
    %v1088 = vsel %vm1082, %v1087, %v1086
    %vm1089 = vcmp.lt.s32.totalorder %v301, 0
    %v1090 = vsub.s32 0, %v301
    %v1091 = vsel %vm1089, %v1090, %v301
    %v1092 = vshrl.u32 %v1091, 7
    %v1093 = vand.u32 %v1091, 127
    %v1094 = vsub.s32 0, %v1093
    %v1095 = vsel %vm1089, %v1094, %v1093
    %vm1096 = vcmp.lt.s32.totalorder %v302, 0
    %v1097 = vsub.s32 0, %v302
    %v1098 = vsel %vm1096, %v1097, %v302
    %v1099 = vshrl.u32 %v1098, 7
    %v1100 = vand.u32 %v1098, 127
    %v1101 = vsub.s32 0, %v1100
    %v1102 = vsel %vm1096, %v1101, %v1100
    %vm1103 = vcmp.lt.s32.totalorder %v303, 0
    %v1104 = vsub.s32 0, %v303
    %v1105 = vsel %vm1103, %v1104, %v303
    %v1106 = vshrl.u32 %v1105, 7
    %v1107 = vand.u32 %v1105, 127
    %v1108 = vsub.s32 0, %v1107
    %v1109 = vsel %vm1103, %v1108, %v1107
    %vm1110 = vcmp.lt.s32.totalorder %v304, 0
    %v1111 = vsub.s32 0, %v304
    %v1112 = vsel %vm1110, %v1111, %v304
    %v1113 = vshrl.u32 %v1112, 7
    %v1114 = vand.u32 %v1112, 127
    %v1115 = vsub.s32 0, %v1114
    %v1116 = vsel %vm1110, %v1115, %v1114
    %vm1117 = vcmp.lt.s32.totalorder %v305, 0
    %v1118 = vsub.s32 0, %v305
    %v1119 = vsel %vm1117, %v1118, %v305
    %v1120 = vshrl.u32 %v1119, 7
    %v1121 = vand.u32 %v1119, 127
    %v1122 = vsub.s32 0, %v1121
    %v1123 = vsel %vm1117, %v1122, %v1121
    %vm1124 = vcmp.lt.s32.totalorder %v306, 0
    %v1125 = vsub.s32 0, %v306
    %v1126 = vsel %vm1124, %v1125, %v306
    %v1127 = vshrl.u32 %v1126, 7
    %v1128 = vand.u32 %v1126, 127
    %v1129 = vsub.s32 0, %v1128
    %v1130 = vsel %vm1124, %v1129, %v1128
    %vm1131 = vcmp.lt.s32.totalorder %v307, 0
    %v1132 = vsub.s32 0, %v307
    %v1133 = vsel %vm1131, %v1132, %v307
    %v1134 = vshrl.u32 %v1133, 7
    %v1135 = vand.u32 %v1133, 127
    %v1136 = vsub.s32 0, %v1135
    %v1137 = vsel %vm1131, %v1136, %v1135
    %vm1138 = vcmp.lt.s32.totalorder %v308, 0
    %v1139 = vsub.s32 0, %v308
    %v1140 = vsel %vm1138, %v1139, %v308
    %v1141 = vshrl.u32 %v1140, 7
    %v1142 = vand.u32 %v1140, 127
    %v1143 = vsub.s32 0, %v1142
    %v1144 = vsel %vm1138, %v1143, %v1142
    %vm1145 = vcmp.lt.s32.totalorder %v309, 0
    %v1146 = vsub.s32 0, %v309
    %v1147 = vsel %vm1145, %v1146, %v309
    %v1148 = vshrl.u32 %v1147, 7
    %v1149 = vand.u32 %v1147, 127
    %v1150 = vsub.s32 0, %v1149
    %v1151 = vsel %vm1145, %v1150, %v1149
    %vm1152 = vcmp.lt.s32.totalorder %v310, 0
    %v1153 = vsub.s32 0, %v310
    %v1154 = vsel %vm1152, %v1153, %v310
    %v1155 = vshrl.u32 %v1154, 7
    %v1156 = vand.u32 %v1154, 127
    %v1157 = vsub.s32 0, %v1156
    %v1158 = vsel %vm1152, %v1157, %v1156
    %vm1159 = vcmp.lt.s32.totalorder %v311, 0
    %v1160 = vsub.s32 0, %v311
    %v1161 = vsel %vm1159, %v1160, %v311
    %v1162 = vshrl.u32 %v1161, 7
    %v1163 = vand.u32 %v1161, 127
    %v1164 = vsub.s32 0, %v1163
    %v1165 = vsel %vm1159, %v1164, %v1163
    %vm1166 = vcmp.lt.s32.totalorder %v312, 0
    %v1167 = vsub.s32 0, %v312
    %v1168 = vsel %vm1166, %v1167, %v312
    %v1169 = vshrl.u32 %v1168, 7
    %v1170 = vand.u32 %v1168, 127
    %v1171 = vsub.s32 0, %v1170
    %v1172 = vsel %vm1166, %v1171, %v1170
    %vm1173 = vcmp.lt.s32.totalorder %v313, 0
    %v1174 = vsub.s32 0, %v313
    %v1175 = vsel %vm1173, %v1174, %v313
    %v1176 = vshrl.u32 %v1175, 7
    %v1177 = vand.u32 %v1175, 127
    %v1178 = vsub.s32 0, %v1177
    %v1179 = vsel %vm1173, %v1178, %v1177
    %vm1180 = vcmp.lt.s32.totalorder %v314, 0
    %v1181 = vsub.s32 0, %v314
    %v1182 = vsel %vm1180, %v1181, %v314
    %v1183 = vshrl.u32 %v1182, 7
    %v1184 = vand.u32 %v1182, 127
    %v1185 = vsub.s32 0, %v1184
    %v1186 = vsel %vm1180, %v1185, %v1184
    %vm1187 = vcmp.lt.s32.totalorder %v315, 0
    %v1188 = vsub.s32 0, %v315
    %v1189 = vsel %vm1187, %v1188, %v315
    %v1190 = vshrl.u32 %v1189, 7
    %v1191 = vand.u32 %v1189, 127
    %v1192 = vsub.s32 0, %v1191
    %v1193 = vsel %vm1187, %v1192, %v1191
    %vm1194 = vcmp.lt.s32.totalorder %v316, 0
    %v1195 = vsub.s32 0, %v316
    %v1196 = vsel %vm1194, %v1195, %v316
    %v1197 = vshrl.u32 %v1196, 7
    %v1198 = vand.u32 %v1196, 127
    %v1199 = vsub.s32 0, %v1198
    %v1200 = vsel %vm1194, %v1199, %v1198
    %vm1201 = vcmp.lt.s32.totalorder %v317, 0
    %v1202 = vsub.s32 0, %v317
    %v1203 = vsel %vm1201, %v1202, %v317
    %v1204 = vshrl.u32 %v1203, 7
    %v1205 = vand.u32 %v1203, 127
    %v1206 = vsub.s32 0, %v1205
    %v1207 = vsel %vm1201, %v1206, %v1205
    %vm1208 = vcmp.lt.s32.totalorder %v318, 0
    %v1209 = vsub.s32 0, %v318
    %v1210 = vsel %vm1208, %v1209, %v318
    %v1211 = vshrl.u32 %v1210, 7
    %v1212 = vand.u32 %v1210, 127
    %v1213 = vsub.s32 0, %v1212
    %v1214 = vsel %vm1208, %v1213, %v1212
    %vm1215 = vcmp.ne.s32.totalorder %v325, 0
    %vm1216 = vcmp.ne.s32.totalorder %v332, 0
    %vm1217 = vcmp.ne.s32.totalorder %v339, 0
    %vm1218 = vcmp.ne.s32.totalorder %v346, 0
    %vm1219 = vcmp.ne.s32.totalorder %v353, 0
    %vm1220 = vcmp.ne.s32.totalorder %v360, 0
    %vm1221 = vcmp.ne.s32.totalorder %v367, 0
    %vm1222 = vcmp.ne.s32.totalorder %v374, 0
    %vm1223 = vcmp.ne.s32.totalorder %v381, 0
    %vm1224 = vcmp.ne.s32.totalorder %v388, 0
    %vm1225 = vcmp.ne.s32.totalorder %v395, 0
    %vm1226 = vcmp.ne.s32.totalorder %v402, 0
    %vm1227 = vcmp.ne.s32.totalorder %v409, 0
    %vm1228 = vcmp.ne.s32.totalorder %v416, 0
    %vm1229 = vcmp.ne.s32.totalorder %v423, 0
    %vm1230 = vcmp.ne.s32.totalorder %v430, 0
    %vm1231 = vcmp.ne.s32.totalorder %v437, 0
    %vm1232 = vcmp.ne.s32.totalorder %v444, 0
    %vm1233 = vcmp.ne.s32.totalorder %v451, 0
    %vm1234 = vcmp.ne.s32.totalorder %v458, 0
    %vm1235 = vcmp.ne.s32.totalorder %v465, 0
    %vm1236 = vcmp.ne.s32.totalorder %v472, 0
    %vm1237 = vcmp.ne.s32.totalorder %v479, 0
    %vm1238 = vcmp.ne.s32.totalorder %v486, 0
    %vm1239 = vcmp.ne.s32.totalorder %v493, 0
    %vm1240 = vcmp.ne.s32.totalorder %v500, 0
    %vm1241 = vcmp.ne.s32.totalorder %v507, 0
    %vm1242 = vcmp.ne.s32.totalorder %v514, 0
    %vm1243 = vcmp.ne.s32.totalorder %v521, 0
    %vm1244 = vcmp.ne.s32.totalorder %v528, 0
    %vm1245 = vcmp.ne.s32.totalorder %v535, 0
    %vm1246 = vcmp.ne.s32.totalorder %v542, 0
    %vm1247 = vcmp.ne.s32.totalorder %v549, 0
    %vm1248 = vcmp.ne.s32.totalorder %v556, 0
    %vm1249 = vcmp.ne.s32.totalorder %v563, 0
    %vm1250 = vcmp.ne.s32.totalorder %v570, 0
    %vm1251 = vcmp.ne.s32.totalorder %v577, 0
    %vm1252 = vcmp.ne.s32.totalorder %v584, 0
    %vm1253 = vcmp.ne.s32.totalorder %v591, 0
    %vm1254 = vcmp.ne.s32.totalorder %v598, 0
    %vm1255 = vcmp.ne.s32.totalorder %v605, 0
    %vm1256 = vcmp.ne.s32.totalorder %v612, 0
    %vm1257 = vcmp.ne.s32.totalorder %v619, 0
    %vm1258 = vcmp.ne.s32.totalorder %v626, 0
    %vm1259 = vcmp.ne.s32.totalorder %v633, 0
    %vm1260 = vcmp.ne.s32.totalorder %v640, 0
    %vm1261 = vcmp.ne.s32.totalorder %v647, 0
    %vm1262 = vcmp.ne.s32.totalorder %v654, 0
    %vm1263 = vcmp.ne.s32.totalorder %v661, 0
    %vm1264 = vcmp.ne.s32.totalorder %v668, 0
    %vm1265 = vcmp.ne.s32.totalorder %v675, 0
    %vm1266 = vcmp.ne.s32.totalorder %v682, 0
    %vm1267 = vcmp.ne.s32.totalorder %v689, 0
    %vm1268 = vcmp.ne.s32.totalorder %v696, 0
    %vm1269 = vcmp.ne.s32.totalorder %v703, 0
    %vm1270 = vcmp.ne.s32.totalorder %v710, 0
    %vm1271 = vcmp.ne.s32.totalorder %v717, 0
    %vm1272 = vcmp.ne.s32.totalorder %v724, 0
    %vm1273 = vcmp.ne.s32.totalorder %v731, 0
    %vm1274 = vcmp.ne.s32.totalorder %v738, 0
    %vm1275 = vcmp.ne.s32.totalorder %v745, 0
    %vm1276 = vcmp.ne.s32.totalorder %v752, 0
    %vm1277 = vcmp.ne.s32.totalorder %v759, 0
    %vm1278 = vcmp.ne.s32.totalorder %v766, 0
    %vm1279 = vcmp.ne.s32.totalorder %v773, 0
    %vm1280 = vcmp.ne.s32.totalorder %v780, 0
    %vm1281 = vcmp.ne.s32.totalorder %v787, 0
    %vm1282 = vcmp.ne.s32.totalorder %v794, 0
    %vm1283 = vcmp.ne.s32.totalorder %v801, 0
    %vm1284 = vcmp.ne.s32.totalorder %v808, 0
    %vm1285 = vcmp.ne.s32.totalorder %v815, 0
    %vm1286 = vcmp.ne.s32.totalorder %v822, 0
    %vm1287 = vcmp.ne.s32.totalorder %v829, 0
    %vm1288 = vcmp.ne.s32.totalorder %v836, 0
    %vm1289 = vcmp.ne.s32.totalorder %v843, 0
    %vm1290 = vcmp.ne.s32.totalorder %v850, 0
    %vm1291 = vcmp.ne.s32.totalorder %v857, 0
    %vm1292 = vcmp.ne.s32.totalorder %v864, 0
    %vm1293 = vcmp.ne.s32.totalorder %v871, 0
    %vm1294 = vcmp.ne.s32.totalorder %v878, 0
    %vm1295 = vcmp.ne.s32.totalorder %v885, 0
    %vm1296 = vcmp.ne.s32.totalorder %v892, 0
    %vm1297 = vcmp.ne.s32.totalorder %v899, 0
    %vm1298 = vcmp.ne.s32.totalorder %v906, 0
    %vm1299 = vcmp.ne.s32.totalorder %v913, 0
    %vm1300 = vcmp.ne.s32.totalorder %v920, 0
    %vm1301 = vcmp.ne.s32.totalorder %v927, 0
    %vm1302 = vcmp.ne.s32.totalorder %v934, 0
    %vm1303 = vcmp.ne.s32.totalorder %v941, 0
    %vm1304 = vcmp.ne.s32.totalorder %v948, 0
    %vm1305 = vcmp.ne.s32.totalorder %v955, 0
    %vm1306 = vcmp.ne.s32.totalorder %v962, 0
    %vm1307 = vcmp.ne.s32.totalorder %v969, 0
    %vm1308 = vcmp.ne.s32.totalorder %v976, 0
    %vm1309 = vcmp.ne.s32.totalorder %v983, 0
    %vm1310 = vcmp.ne.s32.totalorder %v990, 0
    %vm1311 = vcmp.ne.s32.totalorder %v997, 0
    %vm1312 = vcmp.ne.s32.totalorder %v1004, 0
    %vm1313 = vcmp.ne.s32.totalorder %v1011, 0
    %vm1314 = vcmp.ne.s32.totalorder %v1018, 0
    %vm1315 = vcmp.ne.s32.totalorder %v1025, 0
    %vm1316 = vcmp.ne.s32.totalorder %v1032, 0
    %vm1317 = vcmp.ne.s32.totalorder %v1039, 0
    %vm1318 = vcmp.ne.s32.totalorder %v1046, 0
    %vm1319 = vcmp.ne.s32.totalorder %v1053, 0
    %vm1320 = vcmp.ne.s32.totalorder %v1060, 0
    %vm1321 = vcmp.ne.s32.totalorder %v1067, 0
    %vm1322 = vcmp.ne.s32.totalorder %v1074, 0
    %vm1323 = vcmp.ne.s32.totalorder %v1081, 0
    %vm1324 = vcmp.ne.s32.totalorder %v1088, 0
    %vm1325 = vcmp.ne.s32.totalorder %v1095, 0
    %vm1326 = vcmp.ne.s32.totalorder %v1102, 0
    %vm1327 = vcmp.ne.s32.totalorder %v1109, 0
    %vm1328 = vcmp.ne.s32.totalorder %v1116, 0
    %vm1329 = vcmp.ne.s32.totalorder %v1123, 0
    %vm1330 = vcmp.ne.s32.totalorder %v1130, 0
    %vm1331 = vcmp.ne.s32.totalorder %v1137, 0
    %vm1332 = vcmp.ne.s32.totalorder %v1144, 0
    %vm1333 = vcmp.ne.s32.totalorder %v1151, 0
    %vm1334 = vcmp.ne.s32.totalorder %v1158, 0
    %vm1335 = vcmp.ne.s32.totalorder %v1165, 0
    %vm1336 = vcmp.ne.s32.totalorder %v1172, 0
    %vm1337 = vcmp.ne.s32.totalorder %v1179, 0
    %vm1338 = vcmp.ne.s32.totalorder %v1186, 0
    %vm1339 = vcmp.ne.s32.totalorder %v1193, 0
    %vm1340 = vcmp.ne.s32.totalorder %v1200, 0
    %vm1341 = vcmp.ne.s32.totalorder %v1207, 0
    %vm1342 = vcmp.ne.s32.totalorder %v1214, 0
    %vm1343 = vcmp.lt.s32.totalorder %v325, 0
    %vm1344 = vcmp.lt.s32.totalorder %v332, 0
    %vm1345 = vcmp.lt.s32.totalorder %v339, 0
    %vm1346 = vcmp.lt.s32.totalorder %v346, 0
    %vm1347 = vcmp.lt.s32.totalorder %v353, 0
    %vm1348 = vcmp.lt.s32.totalorder %v360, 0
    %vm1349 = vcmp.lt.s32.totalorder %v367, 0
    %vm1350 = vcmp.lt.s32.totalorder %v374, 0
    %vm1351 = vcmp.lt.s32.totalorder %v381, 0
    %vm1352 = vcmp.lt.s32.totalorder %v388, 0
    %vm1353 = vcmp.lt.s32.totalorder %v395, 0
    %vm1354 = vcmp.lt.s32.totalorder %v402, 0
    %vm1355 = vcmp.lt.s32.totalorder %v409, 0
    %vm1356 = vcmp.lt.s32.totalorder %v416, 0
    %vm1357 = vcmp.lt.s32.totalorder %v423, 0
    %vm1358 = vcmp.lt.s32.totalorder %v430, 0
    %vm1359 = vcmp.lt.s32.totalorder %v437, 0
    %vm1360 = vcmp.lt.s32.totalorder %v444, 0
    %vm1361 = vcmp.lt.s32.totalorder %v451, 0
    %vm1362 = vcmp.lt.s32.totalorder %v458, 0
    %vm1363 = vcmp.lt.s32.totalorder %v465, 0
    %vm1364 = vcmp.lt.s32.totalorder %v472, 0
    %vm1365 = vcmp.lt.s32.totalorder %v479, 0
    %vm1366 = vcmp.lt.s32.totalorder %v486, 0
    %vm1367 = vcmp.lt.s32.totalorder %v493, 0
    %vm1368 = vcmp.lt.s32.totalorder %v500, 0
    %vm1369 = vcmp.lt.s32.totalorder %v507, 0
    %vm1370 = vcmp.lt.s32.totalorder %v514, 0
    %vm1371 = vcmp.lt.s32.totalorder %v521, 0
    %vm1372 = vcmp.lt.s32.totalorder %v528, 0
    %vm1373 = vcmp.lt.s32.totalorder %v535, 0
    %vm1374 = vcmp.lt.s32.totalorder %v542, 0
    %vm1375 = vcmp.lt.s32.totalorder %v549, 0
    %vm1376 = vcmp.lt.s32.totalorder %v556, 0
    %vm1377 = vcmp.lt.s32.totalorder %v563, 0
    %vm1378 = vcmp.lt.s32.totalorder %v570, 0
    %vm1379 = vcmp.lt.s32.totalorder %v577, 0
    %vm1380 = vcmp.lt.s32.totalorder %v584, 0
    %vm1381 = vcmp.lt.s32.totalorder %v591, 0
    %vm1382 = vcmp.lt.s32.totalorder %v598, 0
    %vm1383 = vcmp.lt.s32.totalorder %v605, 0
    %vm1384 = vcmp.lt.s32.totalorder %v612, 0
    %vm1385 = vcmp.lt.s32.totalorder %v619, 0
    %vm1386 = vcmp.lt.s32.totalorder %v626, 0
    %vm1387 = vcmp.lt.s32.totalorder %v633, 0
    %vm1388 = vcmp.lt.s32.totalorder %v640, 0
    %vm1389 = vcmp.lt.s32.totalorder %v647, 0
    %vm1390 = vcmp.lt.s32.totalorder %v654, 0
    %vm1391 = vcmp.lt.s32.totalorder %v661, 0
    %vm1392 = vcmp.lt.s32.totalorder %v668, 0
    %vm1393 = vcmp.lt.s32.totalorder %v675, 0
    %vm1394 = vcmp.lt.s32.totalorder %v682, 0
    %vm1395 = vcmp.lt.s32.totalorder %v689, 0
    %vm1396 = vcmp.lt.s32.totalorder %v696, 0
    %vm1397 = vcmp.lt.s32.totalorder %v703, 0
    %vm1398 = vcmp.lt.s32.totalorder %v710, 0
    %vm1399 = vcmp.lt.s32.totalorder %v717, 0
    %vm1400 = vcmp.lt.s32.totalorder %v724, 0
    %vm1401 = vcmp.lt.s32.totalorder %v731, 0
    %vm1402 = vcmp.lt.s32.totalorder %v738, 0
    %vm1403 = vcmp.lt.s32.totalorder %v745, 0
    %vm1404 = vcmp.lt.s32.totalorder %v752, 0
    %vm1405 = vcmp.lt.s32.totalorder %v759, 0
    %vm1406 = vcmp.lt.s32.totalorder %v766, 0
    %vm1407 = vcmp.lt.s32.totalorder %v773, 0
    %vm1408 = vcmp.lt.s32.totalorder %v780, 0
    %vm1409 = vcmp.lt.s32.totalorder %v787, 0
    %vm1410 = vcmp.lt.s32.totalorder %v794, 0
    %vm1411 = vcmp.lt.s32.totalorder %v801, 0
    %vm1412 = vcmp.lt.s32.totalorder %v808, 0
    %vm1413 = vcmp.lt.s32.totalorder %v815, 0
    %vm1414 = vcmp.lt.s32.totalorder %v822, 0
    %vm1415 = vcmp.lt.s32.totalorder %v829, 0
    %vm1416 = vcmp.lt.s32.totalorder %v836, 0
    %vm1417 = vcmp.lt.s32.totalorder %v843, 0
    %vm1418 = vcmp.lt.s32.totalorder %v850, 0
    %vm1419 = vcmp.lt.s32.totalorder %v857, 0
    %vm1420 = vcmp.lt.s32.totalorder %v864, 0
    %vm1421 = vcmp.lt.s32.totalorder %v871, 0
    %vm1422 = vcmp.lt.s32.totalorder %v878, 0
    %vm1423 = vcmp.lt.s32.totalorder %v885, 0
    %vm1424 = vcmp.lt.s32.totalorder %v892, 0
    %vm1425 = vcmp.lt.s32.totalorder %v899, 0
    %vm1426 = vcmp.lt.s32.totalorder %v906, 0
    %vm1427 = vcmp.lt.s32.totalorder %v913, 0
    %vm1428 = vcmp.lt.s32.totalorder %v920, 0
    %vm1429 = vcmp.lt.s32.totalorder %v927, 0
    %vm1430 = vcmp.lt.s32.totalorder %v934, 0
    %vm1431 = vcmp.lt.s32.totalorder %v941, 0
    %vm1432 = vcmp.lt.s32.totalorder %v948, 0
    %vm1433 = vcmp.lt.s32.totalorder %v955, 0
    %vm1434 = vcmp.lt.s32.totalorder %v962, 0
    %vm1435 = vcmp.lt.s32.totalorder %v969, 0
    %vm1436 = vcmp.lt.s32.totalorder %v976, 0
    %vm1437 = vcmp.lt.s32.totalorder %v983, 0
    %vm1438 = vcmp.lt.s32.totalorder %v990, 0
    %vm1439 = vcmp.lt.s32.totalorder %v997, 0
    %vm1440 = vcmp.lt.s32.totalorder %v1004, 0
    %vm1441 = vcmp.lt.s32.totalorder %v1011, 0
    %vm1442 = vcmp.lt.s32.totalorder %v1018, 0
    %vm1443 = vcmp.lt.s32.totalorder %v1025, 0
    %vm1444 = vcmp.lt.s32.totalorder %v1032, 0
    %vm1445 = vcmp.lt.s32.totalorder %v1039, 0
    %vm1446 = vcmp.lt.s32.totalorder %v1046, 0
    %vm1447 = vcmp.lt.s32.totalorder %v1053, 0
    %vm1448 = vcmp.lt.s32.totalorder %v1060, 0
    %vm1449 = vcmp.lt.s32.totalorder %v1067, 0
    %vm1450 = vcmp.lt.s32.totalorder %v1074, 0
    %vm1451 = vcmp.lt.s32.totalorder %v1081, 0
    %vm1452 = vcmp.lt.s32.totalorder %v1088, 0
    %vm1453 = vcmp.lt.s32.totalorder %v1095, 0
    %vm1454 = vcmp.lt.s32.totalorder %v1102, 0
    %vm1455 = vcmp.lt.s32.totalorder %v1109, 0
    %vm1456 = vcmp.lt.s32.totalorder %v1116, 0
    %vm1457 = vcmp.lt.s32.totalorder %v1123, 0
    %vm1458 = vcmp.lt.s32.totalorder %v1130, 0
    %vm1459 = vcmp.lt.s32.totalorder %v1137, 0
    %vm1460 = vcmp.lt.s32.totalorder %v1144, 0
    %vm1461 = vcmp.lt.s32.totalorder %v1151, 0
    %vm1462 = vcmp.lt.s32.totalorder %v1158, 0
    %vm1463 = vcmp.lt.s32.totalorder %v1165, 0
    %vm1464 = vcmp.lt.s32.totalorder %v1172, 0
    %vm1465 = vcmp.lt.s32.totalorder %v1179, 0
    %vm1466 = vcmp.lt.s32.totalorder %v1186, 0
    %vm1467 = vcmp.lt.s32.totalorder %v1193, 0
    %vm1468 = vcmp.lt.s32.totalorder %v1200, 0
    %vm1469 = vcmp.lt.s32.totalorder %v1207, 0
    %vm1470 = vcmp.lt.s32.totalorder %v1214, 0
    %vm1471 = vmand %vm1343, %vm1215
    %vm1472 = vmand %vm1344, %vm1216
    %vm1473 = vmand %vm1345, %vm1217
    %vm1474 = vmand %vm1346, %vm1218
    %vm1475 = vmand %vm1347, %vm1219
    %vm1476 = vmand %vm1348, %vm1220
    %vm1477 = vmand %vm1349, %vm1221
    %vm1478 = vmand %vm1350, %vm1222
    %vm1479 = vmand %vm1351, %vm1223
    %vm1480 = vmand %vm1352, %vm1224
    %vm1481 = vmand %vm1353, %vm1225
    %vm1482 = vmand %vm1354, %vm1226
    %vm1483 = vmand %vm1355, %vm1227
    %vm1484 = vmand %vm1356, %vm1228
    %vm1485 = vmand %vm1357, %vm1229
    %vm1486 = vmand %vm1358, %vm1230
    %vm1487 = vmand %vm1359, %vm1231
    %vm1488 = vmand %vm1360, %vm1232
    %vm1489 = vmand %vm1361, %vm1233
    %vm1490 = vmand %vm1362, %vm1234
    %vm1491 = vmand %vm1363, %vm1235
    %vm1492 = vmand %vm1364, %vm1236
    %vm1493 = vmand %vm1365, %vm1237
    %vm1494 = vmand %vm1366, %vm1238
    %vm1495 = vmand %vm1367, %vm1239
    %vm1496 = vmand %vm1368, %vm1240
    %vm1497 = vmand %vm1369, %vm1241
    %vm1498 = vmand %vm1370, %vm1242
    %vm1499 = vmand %vm1371, %vm1243
    %vm1500 = vmand %vm1372, %vm1244
    %vm1501 = vmand %vm1373, %vm1245
    %vm1502 = vmand %vm1374, %vm1246
    %vm1503 = vmand %vm1375, %vm1247
    %vm1504 = vmand %vm1376, %vm1248
    %vm1505 = vmand %vm1377, %vm1249
    %vm1506 = vmand %vm1378, %vm1250
    %vm1507 = vmand %vm1379, %vm1251
    %vm1508 = vmand %vm1380, %vm1252
    %vm1509 = vmand %vm1381, %vm1253
    %vm1510 = vmand %vm1382, %vm1254
    %vm1511 = vmand %vm1383, %vm1255
    %vm1512 = vmand %vm1384, %vm1256
    %vm1513 = vmand %vm1385, %vm1257
    %vm1514 = vmand %vm1386, %vm1258
    %vm1515 = vmand %vm1387, %vm1259
    %vm1516 = vmand %vm1388, %vm1260
    %vm1517 = vmand %vm1389, %vm1261
    %vm1518 = vmand %vm1390, %vm1262
    %vm1519 = vmand %vm1391, %vm1263
    %vm1520 = vmand %vm1392, %vm1264
    %vm1521 = vmand %vm1393, %vm1265
    %vm1522 = vmand %vm1394, %vm1266
    %vm1523 = vmand %vm1395, %vm1267
    %vm1524 = vmand %vm1396, %vm1268
    %vm1525 = vmand %vm1397, %vm1269
    %vm1526 = vmand %vm1398, %vm1270
    %vm1527 = vmand %vm1399, %vm1271
    %vm1528 = vmand %vm1400, %vm1272
    %vm1529 = vmand %vm1401, %vm1273
    %vm1530 = vmand %vm1402, %vm1274
    %vm1531 = vmand %vm1403, %vm1275
    %vm1532 = vmand %vm1404, %vm1276
    %vm1533 = vmand %vm1405, %vm1277
    %vm1534 = vmand %vm1406, %vm1278
    %vm1535 = vmand %vm1407, %vm1279
    %vm1536 = vmand %vm1408, %vm1280
    %vm1537 = vmand %vm1409, %vm1281
    %vm1538 = vmand %vm1410, %vm1282
    %vm1539 = vmand %vm1411, %vm1283
    %vm1540 = vmand %vm1412, %vm1284
    %vm1541 = vmand %vm1413, %vm1285
    %vm1542 = vmand %vm1414, %vm1286
    %vm1543 = vmand %vm1415, %vm1287
    %vm1544 = vmand %vm1416, %vm1288
    %vm1545 = vmand %vm1417, %vm1289
    %vm1546 = vmand %vm1418, %vm1290
    %vm1547 = vmand %vm1419, %vm1291
    %vm1548 = vmand %vm1420, %vm1292
    %vm1549 = vmand %vm1421, %vm1293
    %vm1550 = vmand %vm1422, %vm1294
    %vm1551 = vmand %vm1423, %vm1295
    %vm1552 = vmand %vm1424, %vm1296
    %vm1553 = vmand %vm1425, %vm1297
    %vm1554 = vmand %vm1426, %vm1298
    %vm1555 = vmand %vm1427, %vm1299
    %vm1556 = vmand %vm1428, %vm1300
    %vm1557 = vmand %vm1429, %vm1301
    %vm1558 = vmand %vm1430, %vm1302
    %vm1559 = vmand %vm1431, %vm1303
    %vm1560 = vmand %vm1432, %vm1304
    %vm1561 = vmand %vm1433, %vm1305
    %vm1562 = vmand %vm1434, %vm1306
    %vm1563 = vmand %vm1435, %vm1307
    %vm1564 = vmand %vm1436, %vm1308
    %vm1565 = vmand %vm1437, %vm1309
    %vm1566 = vmand %vm1438, %vm1310
    %vm1567 = vmand %vm1439, %vm1311
    %vm1568 = vmand %vm1440, %vm1312
    %vm1569 = vmand %vm1441, %vm1313
    %vm1570 = vmand %vm1442, %vm1314
    %vm1571 = vmand %vm1443, %vm1315
    %vm1572 = vmand %vm1444, %vm1316
    %vm1573 = vmand %vm1445, %vm1317
    %vm1574 = vmand %vm1446, %vm1318
    %vm1575 = vmand %vm1447, %vm1319
    %vm1576 = vmand %vm1448, %vm1320
    %vm1577 = vmand %vm1449, %vm1321
    %vm1578 = vmand %vm1450, %vm1322
    %vm1579 = vmand %vm1451, %vm1323
    %vm1580 = vmand %vm1452, %vm1324
    %vm1581 = vmand %vm1453, %vm1325
    %vm1582 = vmand %vm1454, %vm1326
    %vm1583 = vmand %vm1455, %vm1327
    %vm1584 = vmand %vm1456, %vm1328
    %vm1585 = vmand %vm1457, %vm1329
    %vm1586 = vmand %vm1458, %vm1330
    %vm1587 = vmand %vm1459, %vm1331
    %vm1588 = vmand %vm1460, %vm1332
    %vm1589 = vmand %vm1461, %vm1333
    %vm1590 = vmand %vm1462, %vm1334
    %vm1591 = vmand %vm1463, %vm1335
    %vm1592 = vmand %vm1464, %vm1336
    %vm1593 = vmand %vm1465, %vm1337
    %vm1594 = vmand %vm1466, %vm1338
    %vm1595 = vmand %vm1467, %vm1339
    %vm1596 = vmand %vm1468, %vm1340
    %vm1597 = vmand %vm1469, %vm1341
    %vm1598 = vmand %vm1470, %vm1342
    %v1599 = vadd.s32 %v325, 128
    %v1600 = vadd.s32 %v332, 128
    %v1601 = vadd.s32 %v339, 128
    %v1602 = vadd.s32 %v346, 128
    %v1603 = vadd.s32 %v353, 128
    %v1604 = vadd.s32 %v360, 128
    %v1605 = vadd.s32 %v367, 128
    %v1606 = vadd.s32 %v374, 128
    %v1607 = vadd.s32 %v381, 128
    %v1608 = vadd.s32 %v388, 128
    %v1609 = vadd.s32 %v395, 128
    %v1610 = vadd.s32 %v402, 128
    %v1611 = vadd.s32 %v409, 128
    %v1612 = vadd.s32 %v416, 128
    %v1613 = vadd.s32 %v423, 128
    %v1614 = vadd.s32 %v430, 128
    %v1615 = vadd.s32 %v437, 128
    %v1616 = vadd.s32 %v444, 128
    %v1617 = vadd.s32 %v451, 128
    %v1618 = vadd.s32 %v458, 128
    %v1619 = vadd.s32 %v465, 128
    %v1620 = vadd.s32 %v472, 128
    %v1621 = vadd.s32 %v479, 128
    %v1622 = vadd.s32 %v486, 128
    %v1623 = vadd.s32 %v493, 128
    %v1624 = vadd.s32 %v500, 128
    %v1625 = vadd.s32 %v507, 128
    %v1626 = vadd.s32 %v514, 128
    %v1627 = vadd.s32 %v521, 128
    %v1628 = vadd.s32 %v528, 128
    %v1629 = vadd.s32 %v535, 128
    %v1630 = vadd.s32 %v542, 128
    %v1631 = vadd.s32 %v549, 128
    %v1632 = vadd.s32 %v556, 128
    %v1633 = vadd.s32 %v563, 128
    %v1634 = vadd.s32 %v570, 128
    %v1635 = vadd.s32 %v577, 128
    %v1636 = vadd.s32 %v584, 128
    %v1637 = vadd.s32 %v591, 128
    %v1638 = vadd.s32 %v598, 128
    %v1639 = vadd.s32 %v605, 128
    %v1640 = vadd.s32 %v612, 128
    %v1641 = vadd.s32 %v619, 128
    %v1642 = vadd.s32 %v626, 128
    %v1643 = vadd.s32 %v633, 128
    %v1644 = vadd.s32 %v640, 128
    %v1645 = vadd.s32 %v647, 128
    %v1646 = vadd.s32 %v654, 128
    %v1647 = vadd.s32 %v661, 128
    %v1648 = vadd.s32 %v668, 128
    %v1649 = vadd.s32 %v675, 128
    %v1650 = vadd.s32 %v682, 128
    %v1651 = vadd.s32 %v689, 128
    %v1652 = vadd.s32 %v696, 128
    %v1653 = vadd.s32 %v703, 128
    %v1654 = vadd.s32 %v710, 128
    %v1655 = vadd.s32 %v717, 128
    %v1656 = vadd.s32 %v724, 128
    %v1657 = vadd.s32 %v731, 128
    %v1658 = vadd.s32 %v738, 128
    %v1659 = vadd.s32 %v745, 128
    %v1660 = vadd.s32 %v752, 128
    %v1661 = vadd.s32 %v759, 128
    %v1662 = vadd.s32 %v766, 128
    %v1663 = vadd.s32 %v773, 128
    %v1664 = vadd.s32 %v780, 128
    %v1665 = vadd.s32 %v787, 128
    %v1666 = vadd.s32 %v794, 128
    %v1667 = vadd.s32 %v801, 128
    %v1668 = vadd.s32 %v808, 128
    %v1669 = vadd.s32 %v815, 128
    %v1670 = vadd.s32 %v822, 128
    %v1671 = vadd.s32 %v829, 128
    %v1672 = vadd.s32 %v836, 128
    %v1673 = vadd.s32 %v843, 128
    %v1674 = vadd.s32 %v850, 128
    %v1675 = vadd.s32 %v857, 128
    %v1676 = vadd.s32 %v864, 128
    %v1677 = vadd.s32 %v871, 128
    %v1678 = vadd.s32 %v878, 128
    %v1679 = vadd.s32 %v885, 128
    %v1680 = vadd.s32 %v892, 128
    %v1681 = vadd.s32 %v899, 128
    %v1682 = vadd.s32 %v906, 128
    %v1683 = vadd.s32 %v913, 128
    %v1684 = vadd.s32 %v920, 128
    %v1685 = vadd.s32 %v927, 128
    %v1686 = vadd.s32 %v934, 128
    %v1687 = vadd.s32 %v941, 128
    %v1688 = vadd.s32 %v948, 128
    %v1689 = vadd.s32 %v955, 128
    %v1690 = vadd.s32 %v962, 128
    %v1691 = vadd.s32 %v969, 128
    %v1692 = vadd.s32 %v976, 128
    %v1693 = vadd.s32 %v983, 128
    %v1694 = vadd.s32 %v990, 128
    %v1695 = vadd.s32 %v997, 128
    %v1696 = vadd.s32 %v1004, 128
    %v1697 = vadd.s32 %v1011, 128
    %v1698 = vadd.s32 %v1018, 128
    %v1699 = vadd.s32 %v1025, 128
    %v1700 = vadd.s32 %v1032, 128
    %v1701 = vadd.s32 %v1039, 128
    %v1702 = vadd.s32 %v1046, 128
    %v1703 = vadd.s32 %v1053, 128
    %v1704 = vadd.s32 %v1060, 128
    %v1705 = vadd.s32 %v1067, 128
    %v1706 = vadd.s32 %v1074, 128
    %v1707 = vadd.s32 %v1081, 128
    %v1708 = vadd.s32 %v1088, 128
    %v1709 = vadd.s32 %v1095, 128
    %v1710 = vadd.s32 %v1102, 128
    %v1711 = vadd.s32 %v1109, 128
    %v1712 = vadd.s32 %v1116, 128
    %v1713 = vadd.s32 %v1123, 128
    %v1714 = vadd.s32 %v1130, 128
    %v1715 = vadd.s32 %v1137, 128
    %v1716 = vadd.s32 %v1144, 128
    %v1717 = vadd.s32 %v1151, 128
    %v1718 = vadd.s32 %v1158, 128
    %v1719 = vadd.s32 %v1165, 128
    %v1720 = vadd.s32 %v1172, 128
    %v1721 = vadd.s32 %v1179, 128
    %v1722 = vadd.s32 %v1186, 128
    %v1723 = vadd.s32 %v1193, 128
    %v1724 = vadd.s32 %v1200, 128
    %v1725 = vadd.s32 %v1207, 128
    %v1726 = vadd.s32 %v1214, 128
    %v1727 = vsel %vm1471, %v1599, %v325
    %v1728 = vsel %vm1472, %v1600, %v332
    %v1729 = vsel %vm1473, %v1601, %v339
    %v1730 = vsel %vm1474, %v1602, %v346
    %v1731 = vsel %vm1475, %v1603, %v353
    %v1732 = vsel %vm1476, %v1604, %v360
    %v1733 = vsel %vm1477, %v1605, %v367
    %v1734 = vsel %vm1478, %v1606, %v374
    %v1735 = vsel %vm1479, %v1607, %v381
    %v1736 = vsel %vm1480, %v1608, %v388
    %v1737 = vsel %vm1481, %v1609, %v395
    %v1738 = vsel %vm1482, %v1610, %v402
    %v1739 = vsel %vm1483, %v1611, %v409
    %v1740 = vsel %vm1484, %v1612, %v416
    %v1741 = vsel %vm1485, %v1613, %v423
    %v1742 = vsel %vm1486, %v1614, %v430
    %v1743 = vsel %vm1487, %v1615, %v437
    %v1744 = vsel %vm1488, %v1616, %v444
    %v1745 = vsel %vm1489, %v1617, %v451
    %v1746 = vsel %vm1490, %v1618, %v458
    %v1747 = vsel %vm1491, %v1619, %v465
    %v1748 = vsel %vm1492, %v1620, %v472
    %v1749 = vsel %vm1493, %v1621, %v479
    %v1750 = vsel %vm1494, %v1622, %v486
    %v1751 = vsel %vm1495, %v1623, %v493
    %v1752 = vsel %vm1496, %v1624, %v500
    %v1753 = vsel %vm1497, %v1625, %v507
    %v1754 = vsel %vm1498, %v1626, %v514
    %v1755 = vsel %vm1499, %v1627, %v521
    %v1756 = vsel %vm1500, %v1628, %v528
    %v1757 = vsel %vm1501, %v1629, %v535
    %v1758 = vsel %vm1502, %v1630, %v542
    %v1759 = vsel %vm1503, %v1631, %v549
    %v1760 = vsel %vm1504, %v1632, %v556
    %v1761 = vsel %vm1505, %v1633, %v563
    %v1762 = vsel %vm1506, %v1634, %v570
    %v1763 = vsel %vm1507, %v1635, %v577
    %v1764 = vsel %vm1508, %v1636, %v584
    %v1765 = vsel %vm1509, %v1637, %v591
    %v1766 = vsel %vm1510, %v1638, %v598
    %v1767 = vsel %vm1511, %v1639, %v605
    %v1768 = vsel %vm1512, %v1640, %v612
    %v1769 = vsel %vm1513, %v1641, %v619
    %v1770 = vsel %vm1514, %v1642, %v626
    %v1771 = vsel %vm1515, %v1643, %v633
    %v1772 = vsel %vm1516, %v1644, %v640
    %v1773 = vsel %vm1517, %v1645, %v647
    %v1774 = vsel %vm1518, %v1646, %v654
    %v1775 = vsel %vm1519, %v1647, %v661
    %v1776 = vsel %vm1520, %v1648, %v668
    %v1777 = vsel %vm1521, %v1649, %v675
    %v1778 = vsel %vm1522, %v1650, %v682
    %v1779 = vsel %vm1523, %v1651, %v689
    %v1780 = vsel %vm1524, %v1652, %v696
    %v1781 = vsel %vm1525, %v1653, %v703
    %v1782 = vsel %vm1526, %v1654, %v710
    %v1783 = vsel %vm1527, %v1655, %v717
    %v1784 = vsel %vm1528, %v1656, %v724
    %v1785 = vsel %vm1529, %v1657, %v731
    %v1786 = vsel %vm1530, %v1658, %v738
    %v1787 = vsel %vm1531, %v1659, %v745
    %v1788 = vsel %vm1532, %v1660, %v752
    %v1789 = vsel %vm1533, %v1661, %v759
    %v1790 = vsel %vm1534, %v1662, %v766
    %v1791 = vsel %vm1535, %v1663, %v773
    %v1792 = vsel %vm1536, %v1664, %v780
    %v1793 = vsel %vm1537, %v1665, %v787
    %v1794 = vsel %vm1538, %v1666, %v794
    %v1795 = vsel %vm1539, %v1667, %v801
    %v1796 = vsel %vm1540, %v1668, %v808
    %v1797 = vsel %vm1541, %v1669, %v815
    %v1798 = vsel %vm1542, %v1670, %v822
    %v1799 = vsel %vm1543, %v1671, %v829
    %v1800 = vsel %vm1544, %v1672, %v836
    %v1801 = vsel %vm1545, %v1673, %v843
    %v1802 = vsel %vm1546, %v1674, %v850
    %v1803 = vsel %vm1547, %v1675, %v857
    %v1804 = vsel %vm1548, %v1676, %v864
    %v1805 = vsel %vm1549, %v1677, %v871
    %v1806 = vsel %vm1550, %v1678, %v878
    %v1807 = vsel %vm1551, %v1679, %v885
    %v1808 = vsel %vm1552, %v1680, %v892
    %v1809 = vsel %vm1553, %v1681, %v899
    %v1810 = vsel %vm1554, %v1682, %v906
    %v1811 = vsel %vm1555, %v1683, %v913
    %v1812 = vsel %vm1556, %v1684, %v920
    %v1813 = vsel %vm1557, %v1685, %v927
    %v1814 = vsel %vm1558, %v1686, %v934
    %v1815 = vsel %vm1559, %v1687, %v941
    %v1816 = vsel %vm1560, %v1688, %v948
    %v1817 = vsel %vm1561, %v1689, %v955
    %v1818 = vsel %vm1562, %v1690, %v962
    %v1819 = vsel %vm1563, %v1691, %v969
    %v1820 = vsel %vm1564, %v1692, %v976
    %v1821 = vsel %vm1565, %v1693, %v983
    %v1822 = vsel %vm1566, %v1694, %v990
    %v1823 = vsel %vm1567, %v1695, %v997
    %v1824 = vsel %vm1568, %v1696, %v1004
    %v1825 = vsel %vm1569, %v1697, %v1011
    %v1826 = vsel %vm1570, %v1698, %v1018
    %v1827 = vsel %vm1571, %v1699, %v1025
    %v1828 = vsel %vm1572, %v1700, %v1032
    %v1829 = vsel %vm1573, %v1701, %v1039
    %v1830 = vsel %vm1574, %v1702, %v1046
    %v1831 = vsel %vm1575, %v1703, %v1053
    %v1832 = vsel %vm1576, %v1704, %v1060
    %v1833 = vsel %vm1577, %v1705, %v1067
    %v1834 = vsel %vm1578, %v1706, %v1074
    %v1835 = vsel %vm1579, %v1707, %v1081
    %v1836 = vsel %vm1580, %v1708, %v1088
    %v1837 = vsel %vm1581, %v1709, %v1095
    %v1838 = vsel %vm1582, %v1710, %v1102
    %v1839 = vsel %vm1583, %v1711, %v1109
    %v1840 = vsel %vm1584, %v1712, %v1116
    %v1841 = vsel %vm1585, %v1713, %v1123
    %v1842 = vsel %vm1586, %v1714, %v1130
    %v1843 = vsel %vm1587, %v1715, %v1137
    %v1844 = vsel %vm1588, %v1716, %v1144
    %v1845 = vsel %vm1589, %v1717, %v1151
    %v1846 = vsel %vm1590, %v1718, %v1158
    %v1847 = vsel %vm1591, %v1719, %v1165
    %v1848 = vsel %vm1592, %v1720, %v1172
    %v1849 = vsel %vm1593, %v1721, %v1179
    %v1850 = vsel %vm1594, %v1722, %v1186
    %v1851 = vsel %vm1595, %v1723, %v1193
    %v1852 = vsel %vm1596, %v1724, %v1200
    %v1853 = vsel %vm1597, %v1725, %v1207
    %v1854 = vsel %vm1598, %v1726, %v1214
    %vm1855 = vcmp.eq.s32.totalorder %v1727, 0
    %vm1856 = vcmp.eq.s32.totalorder %v1728, 0
    %vm1857 = vcmp.eq.s32.totalorder %v1729, 0
    %vm1858 = vcmp.eq.s32.totalorder %v1730, 0
    %vm1859 = vcmp.eq.s32.totalorder %v1731, 0
    %vm1860 = vcmp.eq.s32.totalorder %v1732, 0
    %vm1861 = vcmp.eq.s32.totalorder %v1733, 0
    %vm1862 = vcmp.eq.s32.totalorder %v1734, 0
    %vm1863 = vcmp.eq.s32.totalorder %v1735, 0
    %vm1864 = vcmp.eq.s32.totalorder %v1736, 0
    %vm1865 = vcmp.eq.s32.totalorder %v1737, 0
    %vm1866 = vcmp.eq.s32.totalorder %v1738, 0
    %vm1867 = vcmp.eq.s32.totalorder %v1739, 0
    %vm1868 = vcmp.eq.s32.totalorder %v1740, 0
    %vm1869 = vcmp.eq.s32.totalorder %v1741, 0
    %vm1870 = vcmp.eq.s32.totalorder %v1742, 0
    %vm1871 = vcmp.eq.s32.totalorder %v1743, 0
    %vm1872 = vcmp.eq.s32.totalorder %v1744, 0
    %vm1873 = vcmp.eq.s32.totalorder %v1745, 0
    %vm1874 = vcmp.eq.s32.totalorder %v1746, 0
    %vm1875 = vcmp.eq.s32.totalorder %v1747, 0
    %vm1876 = vcmp.eq.s32.totalorder %v1748, 0
    %vm1877 = vcmp.eq.s32.totalorder %v1749, 0
    %vm1878 = vcmp.eq.s32.totalorder %v1750, 0
    %vm1879 = vcmp.eq.s32.totalorder %v1751, 0
    %vm1880 = vcmp.eq.s32.totalorder %v1752, 0
    %vm1881 = vcmp.eq.s32.totalorder %v1753, 0
    %vm1882 = vcmp.eq.s32.totalorder %v1754, 0
    %vm1883 = vcmp.eq.s32.totalorder %v1755, 0
    %vm1884 = vcmp.eq.s32.totalorder %v1756, 0
    %vm1885 = vcmp.eq.s32.totalorder %v1757, 0
    %vm1886 = vcmp.eq.s32.totalorder %v1758, 0
    %vm1887 = vcmp.eq.s32.totalorder %v1759, 0
    %vm1888 = vcmp.eq.s32.totalorder %v1760, 0
    %vm1889 = vcmp.eq.s32.totalorder %v1761, 0
    %vm1890 = vcmp.eq.s32.totalorder %v1762, 0
    %vm1891 = vcmp.eq.s32.totalorder %v1763, 0
    %vm1892 = vcmp.eq.s32.totalorder %v1764, 0
    %vm1893 = vcmp.eq.s32.totalorder %v1765, 0
    %vm1894 = vcmp.eq.s32.totalorder %v1766, 0
    %vm1895 = vcmp.eq.s32.totalorder %v1767, 0
    %vm1896 = vcmp.eq.s32.totalorder %v1768, 0
    %vm1897 = vcmp.eq.s32.totalorder %v1769, 0
    %vm1898 = vcmp.eq.s32.totalorder %v1770, 0
    %vm1899 = vcmp.eq.s32.totalorder %v1771, 0
    %vm1900 = vcmp.eq.s32.totalorder %v1772, 0
    %vm1901 = vcmp.eq.s32.totalorder %v1773, 0
    %vm1902 = vcmp.eq.s32.totalorder %v1774, 0
    %vm1903 = vcmp.eq.s32.totalorder %v1775, 0
    %vm1904 = vcmp.eq.s32.totalorder %v1776, 0
    %vm1905 = vcmp.eq.s32.totalorder %v1777, 0
    %vm1906 = vcmp.eq.s32.totalorder %v1778, 0
    %vm1907 = vcmp.eq.s32.totalorder %v1779, 0
    %vm1908 = vcmp.eq.s32.totalorder %v1780, 0
    %vm1909 = vcmp.eq.s32.totalorder %v1781, 0
    %vm1910 = vcmp.eq.s32.totalorder %v1782, 0
    %vm1911 = vcmp.eq.s32.totalorder %v1783, 0
    %vm1912 = vcmp.eq.s32.totalorder %v1784, 0
    %vm1913 = vcmp.eq.s32.totalorder %v1785, 0
    %vm1914 = vcmp.eq.s32.totalorder %v1786, 0
    %vm1915 = vcmp.eq.s32.totalorder %v1787, 0
    %vm1916 = vcmp.eq.s32.totalorder %v1788, 0
    %vm1917 = vcmp.eq.s32.totalorder %v1789, 0
    %vm1918 = vcmp.eq.s32.totalorder %v1790, 0
    %vm1919 = vcmp.eq.s32.totalorder %v1791, 0
    %vm1920 = vcmp.eq.s32.totalorder %v1792, 0
    %vm1921 = vcmp.eq.s32.totalorder %v1793, 0
    %vm1922 = vcmp.eq.s32.totalorder %v1794, 0
    %vm1923 = vcmp.eq.s32.totalorder %v1795, 0
    %vm1924 = vcmp.eq.s32.totalorder %v1796, 0
    %vm1925 = vcmp.eq.s32.totalorder %v1797, 0
    %vm1926 = vcmp.eq.s32.totalorder %v1798, 0
    %vm1927 = vcmp.eq.s32.totalorder %v1799, 0
    %vm1928 = vcmp.eq.s32.totalorder %v1800, 0
    %vm1929 = vcmp.eq.s32.totalorder %v1801, 0
    %vm1930 = vcmp.eq.s32.totalorder %v1802, 0
    %vm1931 = vcmp.eq.s32.totalorder %v1803, 0
    %vm1932 = vcmp.eq.s32.totalorder %v1804, 0
    %vm1933 = vcmp.eq.s32.totalorder %v1805, 0
    %vm1934 = vcmp.eq.s32.totalorder %v1806, 0
    %vm1935 = vcmp.eq.s32.totalorder %v1807, 0
    %vm1936 = vcmp.eq.s32.totalorder %v1808, 0
    %vm1937 = vcmp.eq.s32.totalorder %v1809, 0
    %vm1938 = vcmp.eq.s32.totalorder %v1810, 0
    %vm1939 = vcmp.eq.s32.totalorder %v1811, 0
    %vm1940 = vcmp.eq.s32.totalorder %v1812, 0
    %vm1941 = vcmp.eq.s32.totalorder %v1813, 0
    %vm1942 = vcmp.eq.s32.totalorder %v1814, 0
    %vm1943 = vcmp.eq.s32.totalorder %v1815, 0
    %vm1944 = vcmp.eq.s32.totalorder %v1816, 0
    %vm1945 = vcmp.eq.s32.totalorder %v1817, 0
    %vm1946 = vcmp.eq.s32.totalorder %v1818, 0
    %vm1947 = vcmp.eq.s32.totalorder %v1819, 0
    %vm1948 = vcmp.eq.s32.totalorder %v1820, 0
    %vm1949 = vcmp.eq.s32.totalorder %v1821, 0
    %vm1950 = vcmp.eq.s32.totalorder %v1822, 0
    %vm1951 = vcmp.eq.s32.totalorder %v1823, 0
    %vm1952 = vcmp.eq.s32.totalorder %v1824, 0
    %vm1953 = vcmp.eq.s32.totalorder %v1825, 0
    %vm1954 = vcmp.eq.s32.totalorder %v1826, 0
    %vm1955 = vcmp.eq.s32.totalorder %v1827, 0
    %vm1956 = vcmp.eq.s32.totalorder %v1828, 0
    %vm1957 = vcmp.eq.s32.totalorder %v1829, 0
    %vm1958 = vcmp.eq.s32.totalorder %v1830, 0
    %vm1959 = vcmp.eq.s32.totalorder %v1831, 0
    %vm1960 = vcmp.eq.s32.totalorder %v1832, 0
    %vm1961 = vcmp.eq.s32.totalorder %v1833, 0
    %vm1962 = vcmp.eq.s32.totalorder %v1834, 0
    %vm1963 = vcmp.eq.s32.totalorder %v1835, 0
    %vm1964 = vcmp.eq.s32.totalorder %v1836, 0
    %vm1965 = vcmp.eq.s32.totalorder %v1837, 0
    %vm1966 = vcmp.eq.s32.totalorder %v1838, 0
    %vm1967 = vcmp.eq.s32.totalorder %v1839, 0
    %vm1968 = vcmp.eq.s32.totalorder %v1840, 0
    %vm1969 = vcmp.eq.s32.totalorder %v1841, 0
    %vm1970 = vcmp.eq.s32.totalorder %v1842, 0
    %vm1971 = vcmp.eq.s32.totalorder %v1843, 0
    %vm1972 = vcmp.eq.s32.totalorder %v1844, 0
    %vm1973 = vcmp.eq.s32.totalorder %v1845, 0
    %vm1974 = vcmp.eq.s32.totalorder %v1846, 0
    %vm1975 = vcmp.eq.s32.totalorder %v1847, 0
    %vm1976 = vcmp.eq.s32.totalorder %v1848, 0
    %vm1977 = vcmp.eq.s32.totalorder %v1849, 0
    %vm1978 = vcmp.eq.s32.totalorder %v1850, 0
    %vm1979 = vcmp.eq.s32.totalorder %v1851, 0
    %vm1980 = vcmp.eq.s32.totalorder %v1852, 0
    %vm1981 = vcmp.eq.s32.totalorder %v1853, 0
    %vm1982 = vcmp.eq.s32.totalorder %v1854, 0
    %vm1983 = vcmp.eq.s32.totalorder %v1727, 127
    %vm1984 = vcmp.eq.s32.totalorder %v1728, 127
    %vm1985 = vcmp.eq.s32.totalorder %v1729, 127
    %vm1986 = vcmp.eq.s32.totalorder %v1730, 127
    %vm1987 = vcmp.eq.s32.totalorder %v1731, 127
    %vm1988 = vcmp.eq.s32.totalorder %v1732, 127
    %vm1989 = vcmp.eq.s32.totalorder %v1733, 127
    %vm1990 = vcmp.eq.s32.totalorder %v1734, 127
    %vm1991 = vcmp.eq.s32.totalorder %v1735, 127
    %vm1992 = vcmp.eq.s32.totalorder %v1736, 127
    %vm1993 = vcmp.eq.s32.totalorder %v1737, 127
    %vm1994 = vcmp.eq.s32.totalorder %v1738, 127
    %vm1995 = vcmp.eq.s32.totalorder %v1739, 127
    %vm1996 = vcmp.eq.s32.totalorder %v1740, 127
    %vm1997 = vcmp.eq.s32.totalorder %v1741, 127
    %vm1998 = vcmp.eq.s32.totalorder %v1742, 127
    %vm1999 = vcmp.eq.s32.totalorder %v1743, 127
    %vm2000 = vcmp.eq.s32.totalorder %v1744, 127
    %vm2001 = vcmp.eq.s32.totalorder %v1745, 127
    %vm2002 = vcmp.eq.s32.totalorder %v1746, 127
    %vm2003 = vcmp.eq.s32.totalorder %v1747, 127
    %vm2004 = vcmp.eq.s32.totalorder %v1748, 127
    %vm2005 = vcmp.eq.s32.totalorder %v1749, 127
    %vm2006 = vcmp.eq.s32.totalorder %v1750, 127
    %vm2007 = vcmp.eq.s32.totalorder %v1751, 127
    %vm2008 = vcmp.eq.s32.totalorder %v1752, 127
    %vm2009 = vcmp.eq.s32.totalorder %v1753, 127
    %vm2010 = vcmp.eq.s32.totalorder %v1754, 127
    %vm2011 = vcmp.eq.s32.totalorder %v1755, 127
    %vm2012 = vcmp.eq.s32.totalorder %v1756, 127
    %vm2013 = vcmp.eq.s32.totalorder %v1757, 127
    %vm2014 = vcmp.eq.s32.totalorder %v1758, 127
    %vm2015 = vcmp.eq.s32.totalorder %v1759, 127
    %vm2016 = vcmp.eq.s32.totalorder %v1760, 127
    %vm2017 = vcmp.eq.s32.totalorder %v1761, 127
    %vm2018 = vcmp.eq.s32.totalorder %v1762, 127
    %vm2019 = vcmp.eq.s32.totalorder %v1763, 127
    %vm2020 = vcmp.eq.s32.totalorder %v1764, 127
    %vm2021 = vcmp.eq.s32.totalorder %v1765, 127
    %vm2022 = vcmp.eq.s32.totalorder %v1766, 127
    %vm2023 = vcmp.eq.s32.totalorder %v1767, 127
    %vm2024 = vcmp.eq.s32.totalorder %v1768, 127
    %vm2025 = vcmp.eq.s32.totalorder %v1769, 127
    %vm2026 = vcmp.eq.s32.totalorder %v1770, 127
    %vm2027 = vcmp.eq.s32.totalorder %v1771, 127
    %vm2028 = vcmp.eq.s32.totalorder %v1772, 127
    %vm2029 = vcmp.eq.s32.totalorder %v1773, 127
    %vm2030 = vcmp.eq.s32.totalorder %v1774, 127
    %vm2031 = vcmp.eq.s32.totalorder %v1775, 127
    %vm2032 = vcmp.eq.s32.totalorder %v1776, 127
    %vm2033 = vcmp.eq.s32.totalorder %v1777, 127
    %vm2034 = vcmp.eq.s32.totalorder %v1778, 127
    %vm2035 = vcmp.eq.s32.totalorder %v1779, 127
    %vm2036 = vcmp.eq.s32.totalorder %v1780, 127
    %vm2037 = vcmp.eq.s32.totalorder %v1781, 127
    %vm2038 = vcmp.eq.s32.totalorder %v1782, 127
    %vm2039 = vcmp.eq.s32.totalorder %v1783, 127
    %vm2040 = vcmp.eq.s32.totalorder %v1784, 127
    %vm2041 = vcmp.eq.s32.totalorder %v1785, 127
    %vm2042 = vcmp.eq.s32.totalorder %v1786, 127
    %vm2043 = vcmp.eq.s32.totalorder %v1787, 127
    %vm2044 = vcmp.eq.s32.totalorder %v1788, 127
    %vm2045 = vcmp.eq.s32.totalorder %v1789, 127
    %vm2046 = vcmp.eq.s32.totalorder %v1790, 127
    %vm2047 = vcmp.eq.s32.totalorder %v1791, 127
    %vm2048 = vcmp.eq.s32.totalorder %v1792, 127
    %vm2049 = vcmp.eq.s32.totalorder %v1793, 127
    %vm2050 = vcmp.eq.s32.totalorder %v1794, 127
    %vm2051 = vcmp.eq.s32.totalorder %v1795, 127
    %vm2052 = vcmp.eq.s32.totalorder %v1796, 127
    %vm2053 = vcmp.eq.s32.totalorder %v1797, 127
    %vm2054 = vcmp.eq.s32.totalorder %v1798, 127
    %vm2055 = vcmp.eq.s32.totalorder %v1799, 127
    %vm2056 = vcmp.eq.s32.totalorder %v1800, 127
    %vm2057 = vcmp.eq.s32.totalorder %v1801, 127
    %vm2058 = vcmp.eq.s32.totalorder %v1802, 127
    %vm2059 = vcmp.eq.s32.totalorder %v1803, 127
    %vm2060 = vcmp.eq.s32.totalorder %v1804, 127
    %vm2061 = vcmp.eq.s32.totalorder %v1805, 127
    %vm2062 = vcmp.eq.s32.totalorder %v1806, 127
    %vm2063 = vcmp.eq.s32.totalorder %v1807, 127
    %vm2064 = vcmp.eq.s32.totalorder %v1808, 127
    %vm2065 = vcmp.eq.s32.totalorder %v1809, 127
    %vm2066 = vcmp.eq.s32.totalorder %v1810, 127
    %vm2067 = vcmp.eq.s32.totalorder %v1811, 127
    %vm2068 = vcmp.eq.s32.totalorder %v1812, 127
    %vm2069 = vcmp.eq.s32.totalorder %v1813, 127
    %vm2070 = vcmp.eq.s32.totalorder %v1814, 127
    %vm2071 = vcmp.eq.s32.totalorder %v1815, 127
    %vm2072 = vcmp.eq.s32.totalorder %v1816, 127
    %vm2073 = vcmp.eq.s32.totalorder %v1817, 127
    %vm2074 = vcmp.eq.s32.totalorder %v1818, 127
    %vm2075 = vcmp.eq.s32.totalorder %v1819, 127
    %vm2076 = vcmp.eq.s32.totalorder %v1820, 127
    %vm2077 = vcmp.eq.s32.totalorder %v1821, 127
    %vm2078 = vcmp.eq.s32.totalorder %v1822, 127
    %vm2079 = vcmp.eq.s32.totalorder %v1823, 127
    %vm2080 = vcmp.eq.s32.totalorder %v1824, 127
    %vm2081 = vcmp.eq.s32.totalorder %v1825, 127
    %vm2082 = vcmp.eq.s32.totalorder %v1826, 127
    %vm2083 = vcmp.eq.s32.totalorder %v1827, 127
    %vm2084 = vcmp.eq.s32.totalorder %v1828, 127
    %vm2085 = vcmp.eq.s32.totalorder %v1829, 127
    %vm2086 = vcmp.eq.s32.totalorder %v1830, 127
    %vm2087 = vcmp.eq.s32.totalorder %v1831, 127
    %vm2088 = vcmp.eq.s32.totalorder %v1832, 127
    %vm2089 = vcmp.eq.s32.totalorder %v1833, 127
    %vm2090 = vcmp.eq.s32.totalorder %v1834, 127
    %vm2091 = vcmp.eq.s32.totalorder %v1835, 127
    %vm2092 = vcmp.eq.s32.totalorder %v1836, 127
    %vm2093 = vcmp.eq.s32.totalorder %v1837, 127
    %vm2094 = vcmp.eq.s32.totalorder %v1838, 127
    %vm2095 = vcmp.eq.s32.totalorder %v1839, 127
    %vm2096 = vcmp.eq.s32.totalorder %v1840, 127
    %vm2097 = vcmp.eq.s32.totalorder %v1841, 127
    %vm2098 = vcmp.eq.s32.totalorder %v1842, 127
    %vm2099 = vcmp.eq.s32.totalorder %v1843, 127
    %vm2100 = vcmp.eq.s32.totalorder %v1844, 127
    %vm2101 = vcmp.eq.s32.totalorder %v1845, 127
    %vm2102 = vcmp.eq.s32.totalorder %v1846, 127
    %vm2103 = vcmp.eq.s32.totalorder %v1847, 127
    %vm2104 = vcmp.eq.s32.totalorder %v1848, 127
    %vm2105 = vcmp.eq.s32.totalorder %v1849, 127
    %vm2106 = vcmp.eq.s32.totalorder %v1850, 127
    %vm2107 = vcmp.eq.s32.totalorder %v1851, 127
    %vm2108 = vcmp.eq.s32.totalorder %v1852, 127
    %vm2109 = vcmp.eq.s32.totalorder %v1853, 127
    %vm2110 = vcmp.eq.s32.totalorder %v1854, 127
    %v2111 = vrot.slane %v62, 7
    %v2112 = vrot.slane %v63, 7
    %v2113 = vrot.slane %v64, 7
    %v2114 = vrot.slane %v65, 7
    %v2115 = vrot.slane %v66, 7
    %v2116 = vrot.slane %v67, 7
    %v2117 = vrot.slane %v68, 7
    %v2118 = vrot.slane %v69, 7
    %v2119 = vrot.slane %v70, 7
    %v2120 = vrot.slane %v71, 7
    %v2121 = vrot.slane %v72, 7
    %v2122 = vrot.slane %v73, 7
    %v2123 = vrot.slane %v74, 7
    %v2124 = vrot.slane %v75, 7
    %v2125 = vrot.slane %v76, 7
    %v2126 = vrot.slane %v77, 7
    %v2127 = vrot.slane %v78, 7
    %v2128 = vrot.slane %v79, 7
    %v2129 = vrot.slane %v80, 7
    %v2130 = vrot.slane %v81, 7
    %v2131 = vrot.slane %v82, 7
    %v2132 = vrot.slane %v83, 7
    %v2133 = vrot.slane %v84, 7
    %v2134 = vrot.slane %v85, 7
    %v2135 = vrot.slane %v86, 7
    %v2136 = vrot.slane %v87, 7
    %v2137 = vrot.slane %v88, 7
    %v2138 = vrot.slane %v89, 7
    %v2139 = vrot.slane %v90, 7
    %v2140 = vrot.slane %v91, 7
    %v2141 = vrot.slane %v92, 7
    %v2142 = vrot.slane %v93, 7
    %v2143 = vrot.slane %v94, 7
    %v2144 = vrot.slane %v95, 7
    %v2145 = vrot.slane %v96, 7
    %v2146 = vrot.slane %v97, 7
    %v2147 = vrot.slane %v98, 7
    %v2148 = vrot.slane %v99, 7
    %v2149 = vrot.slane %v100, 7
    %v2150 = vrot.slane %v101, 7
    %v2151 = vrot.slane %v102, 7
    %v2152 = vrot.slane %v103, 7
    %v2153 = vrot.slane %v104, 7
    %v2154 = vrot.slane %v105, 7
    %v2155 = vrot.slane %v106, 7
    %v2156 = vrot.slane %v107, 7
    %v2157 = vrot.slane %v108, 7
    %v2158 = vrot.slane %v109, 7
    %v2159 = vrot.slane %v110, 7
    %v2160 = vrot.slane %v111, 7
    %v2161 = vrot.slane %v112, 7
    %v2162 = vrot.slane %v113, 7
    %v2163 = vrot.slane %v114, 7
    %v2164 = vrot.slane %v115, 7
    %v2165 = vrot.slane %v116, 7
    %v2166 = vrot.slane %v117, 7
    %v2167 = vrot.slane %v118, 7
    %v2168 = vrot.slane %v119, 7
    %v2169 = vrot.slane %v120, 7
    %v2170 = vrot.slane %v121, 7
    %v2171 = vrot.slane %v122, 7
    %v2172 = vrot.slane %v123, 7
    %v2173 = vrot.slane %v124, 7
    %v2174 = vrot.slane %v125, 7
    %v2175 = vrot.slane %v126, 7
    %v2176 = vrot.slane %v127, 7
    %v2177 = vrot.slane %v128, 7
    %v2178 = vrot.slane %v129, 7
    %v2179 = vrot.slane %v130, 7
    %v2180 = vrot.slane %v131, 7
    %v2181 = vrot.slane %v132, 7
    %v2182 = vrot.slane %v133, 7
    %v2183 = vrot.slane %v134, 7
    %v2184 = vrot.slane %v135, 7
    %v2185 = vrot.slane %v136, 7
    %v2186 = vrot.slane %v137, 7
    %v2187 = vrot.slane %v138, 7
    %v2188 = vrot.slane %v139, 7
    %v2189 = vrot.slane %v140, 7
    %v2190 = vrot.slane %v141, 7
    %v2191 = vrot.slane %v142, 7
    %v2192 = vrot.slane %v143, 7
    %v2193 = vrot.slane %v144, 7
    %v2194 = vrot.slane %v145, 7
    %v2195 = vrot.slane %v146, 7
    %v2196 = vrot.slane %v147, 7
    %v2197 = vrot.slane %v148, 7
    %v2198 = vrot.slane %v149, 7
    %v2199 = vrot.slane %v150, 7
    %v2200 = vrot.slane %v151, 7
    %v2201 = vrot.slane %v152, 7
    %v2202 = vrot.slane %v153, 7
    %v2203 = vrot.slane %v154, 7
    %v2204 = vrot.slane %v155, 7
    %v2205 = vrot.slane %v156, 7
    %v2206 = vrot.slane %v157, 7
    %v2207 = vrot.slane %v158, 7
    %v2208 = vrot.slane %v159, 7
    %v2209 = vrot.slane %v160, 7
    %v2210 = vrot.slane %v161, 7
    %v2211 = vrot.slane %v162, 7
    %v2212 = vrot.slane %v163, 7
    %v2213 = vrot.slane %v164, 7
    %v2214 = vrot.slane %v165, 7
    %v2215 = vrot.slane %v166, 7
    %v2216 = vrot.slane %v167, 7
    %v2217 = vrot.slane %v168, 7
    %v2218 = vrot.slane %v169, 7
    %v2219 = vrot.slane %v170, 7
    %v2220 = vrot.slane %v171, 7
    %v2221 = vrot.slane %v172, 7
    %v2222 = vrot.slane %v173, 7
    %v2223 = vrot.slane %v174, 7
    %v2224 = vrot.slane %v175, 7
    %v2225 = vrot.slane %v176, 7
    %v2226 = vrot.slane %v177, 7
    %v2227 = vrot.slane %v178, 7
    %v2228 = vrot.slane %v179, 7
    %v2229 = vrot.slane %v180, 7
    %v2230 = vrot.slane %v181, 7
    %v2231 = vrot.slane %v182, 7
    %v2232 = vrot.slane %v183, 7
    %v2233 = vrot.slane %v184, 7
    %v2234 = vrot.slane %v185, 7
    %v2235 = vrot.slane %v186, 7
    %v2236 = vrot.slane %v187, 7
    %v2237 = vrot.slane %v188, 7
    %v2238 = vrot.slane %v189, 7
    %vm2239 = vcmp.lt.s32.totalorder %v191, 1
    %v2240 = vsel %vm2239, %v2237, %v2238
    %v2241 = vsel %vm2239, %v2236, %v2237
    %v2242 = vsel %vm2239, %v2235, %v2236
    %v2243 = vsel %vm2239, %v2234, %v2235
    %v2244 = vsel %vm2239, %v2233, %v2234
    %v2245 = vsel %vm2239, %v2232, %v2233
    %v2246 = vsel %vm2239, %v2231, %v2232
    %v2247 = vsel %vm2239, %v2230, %v2231
    %v2248 = vsel %vm2239, %v2229, %v2230
    %v2249 = vsel %vm2239, %v2228, %v2229
    %v2250 = vsel %vm2239, %v2227, %v2228
    %v2251 = vsel %vm2239, %v2226, %v2227
    %v2252 = vsel %vm2239, %v2225, %v2226
    %v2253 = vsel %vm2239, %v2224, %v2225
    %v2254 = vsel %vm2239, %v2223, %v2224
    %v2255 = vsel %vm2239, %v2222, %v2223
    %v2256 = vsel %vm2239, %v2221, %v2222
    %v2257 = vsel %vm2239, %v2220, %v2221
    %v2258 = vsel %vm2239, %v2219, %v2220
    %v2259 = vsel %vm2239, %v2218, %v2219
    %v2260 = vsel %vm2239, %v2217, %v2218
    %v2261 = vsel %vm2239, %v2216, %v2217
    %v2262 = vsel %vm2239, %v2215, %v2216
    %v2263 = vsel %vm2239, %v2214, %v2215
    %v2264 = vsel %vm2239, %v2213, %v2214
    %v2265 = vsel %vm2239, %v2212, %v2213
    %v2266 = vsel %vm2239, %v2211, %v2212
    %v2267 = vsel %vm2239, %v2210, %v2211
    %v2268 = vsel %vm2239, %v2209, %v2210
    %v2269 = vsel %vm2239, %v2208, %v2209
    %v2270 = vsel %vm2239, %v2207, %v2208
    %v2271 = vsel %vm2239, %v2206, %v2207
    %v2272 = vsel %vm2239, %v2205, %v2206
    %v2273 = vsel %vm2239, %v2204, %v2205
    %v2274 = vsel %vm2239, %v2203, %v2204
    %v2275 = vsel %vm2239, %v2202, %v2203
    %v2276 = vsel %vm2239, %v2201, %v2202
    %v2277 = vsel %vm2239, %v2200, %v2201
    %v2278 = vsel %vm2239, %v2199, %v2200
    %v2279 = vsel %vm2239, %v2198, %v2199
    %v2280 = vsel %vm2239, %v2197, %v2198
    %v2281 = vsel %vm2239, %v2196, %v2197
    %v2282 = vsel %vm2239, %v2195, %v2196
    %v2283 = vsel %vm2239, %v2194, %v2195
    %v2284 = vsel %vm2239, %v2193, %v2194
    %v2285 = vsel %vm2239, %v2192, %v2193
    %v2286 = vsel %vm2239, %v2191, %v2192
    %v2287 = vsel %vm2239, %v2190, %v2191
    %v2288 = vsel %vm2239, %v2189, %v2190
    %v2289 = vsel %vm2239, %v2188, %v2189
    %v2290 = vsel %vm2239, %v2187, %v2188
    %v2291 = vsel %vm2239, %v2186, %v2187
    %v2292 = vsel %vm2239, %v2185, %v2186
    %v2293 = vsel %vm2239, %v2184, %v2185
    %v2294 = vsel %vm2239, %v2183, %v2184
    %v2295 = vsel %vm2239, %v2182, %v2183
    %v2296 = vsel %vm2239, %v2181, %v2182
    %v2297 = vsel %vm2239, %v2180, %v2181
    %v2298 = vsel %vm2239, %v2179, %v2180
    %v2299 = vsel %vm2239, %v2178, %v2179
    %v2300 = vsel %vm2239, %v2177, %v2178
    %v2301 = vsel %vm2239, %v2176, %v2177
    %v2302 = vsel %vm2239, %v2175, %v2176
    %v2303 = vsel %vm2239, %v2174, %v2175
    %v2304 = vsel %vm2239, %v2173, %v2174
    %v2305 = vsel %vm2239, %v2172, %v2173
    %v2306 = vsel %vm2239, %v2171, %v2172
    %v2307 = vsel %vm2239, %v2170, %v2171
    %v2308 = vsel %vm2239, %v2169, %v2170
    %v2309 = vsel %vm2239, %v2168, %v2169
    %v2310 = vsel %vm2239, %v2167, %v2168
    %v2311 = vsel %vm2239, %v2166, %v2167
    %v2312 = vsel %vm2239, %v2165, %v2166
    %v2313 = vsel %vm2239, %v2164, %v2165
    %v2314 = vsel %vm2239, %v2163, %v2164
    %v2315 = vsel %vm2239, %v2162, %v2163
    %v2316 = vsel %vm2239, %v2161, %v2162
    %v2317 = vsel %vm2239, %v2160, %v2161
    %v2318 = vsel %vm2239, %v2159, %v2160
    %v2319 = vsel %vm2239, %v2158, %v2159
    %v2320 = vsel %vm2239, %v2157, %v2158
    %v2321 = vsel %vm2239, %v2156, %v2157
    %v2322 = vsel %vm2239, %v2155, %v2156
    %v2323 = vsel %vm2239, %v2154, %v2155
    %v2324 = vsel %vm2239, %v2153, %v2154
    %v2325 = vsel %vm2239, %v2152, %v2153
    %v2326 = vsel %vm2239, %v2151, %v2152
    %v2327 = vsel %vm2239, %v2150, %v2151
    %v2328 = vsel %vm2239, %v2149, %v2150
    %v2329 = vsel %vm2239, %v2148, %v2149
    %v2330 = vsel %vm2239, %v2147, %v2148
    %v2331 = vsel %vm2239, %v2146, %v2147
    %v2332 = vsel %vm2239, %v2145, %v2146
    %v2333 = vsel %vm2239, %v2144, %v2145
    %v2334 = vsel %vm2239, %v2143, %v2144
    %v2335 = vsel %vm2239, %v2142, %v2143
    %v2336 = vsel %vm2239, %v2141, %v2142
    %v2337 = vsel %vm2239, %v2140, %v2141
    %v2338 = vsel %vm2239, %v2139, %v2140
    %v2339 = vsel %vm2239, %v2138, %v2139
    %v2340 = vsel %vm2239, %v2137, %v2138
    %v2341 = vsel %vm2239, %v2136, %v2137
    %v2342 = vsel %vm2239, %v2135, %v2136
    %v2343 = vsel %vm2239, %v2134, %v2135
    %v2344 = vsel %vm2239, %v2133, %v2134
    %v2345 = vsel %vm2239, %v2132, %v2133
    %v2346 = vsel %vm2239, %v2131, %v2132
    %v2347 = vsel %vm2239, %v2130, %v2131
    %v2348 = vsel %vm2239, %v2129, %v2130
    %v2349 = vsel %vm2239, %v2128, %v2129
    %v2350 = vsel %vm2239, %v2127, %v2128
    %v2351 = vsel %vm2239, %v2126, %v2127
    %v2352 = vsel %vm2239, %v2125, %v2126
    %v2353 = vsel %vm2239, %v2124, %v2125
    %v2354 = vsel %vm2239, %v2123, %v2124
    %v2355 = vsel %vm2239, %v2122, %v2123
    %v2356 = vsel %vm2239, %v2121, %v2122
    %v2357 = vsel %vm2239, %v2120, %v2121
    %v2358 = vsel %vm2239, %v2119, %v2120
    %v2359 = vsel %vm2239, %v2118, %v2119
    %v2360 = vsel %vm2239, %v2117, %v2118
    %v2361 = vsel %vm2239, %v2116, %v2117
    %v2362 = vsel %vm2239, %v2115, %v2116
    %v2363 = vsel %vm2239, %v2114, %v2115
    %v2364 = vsel %vm2239, %v2113, %v2114
    %v2365 = vsel %vm2239, %v2112, %v2113
    %v2366 = vsel %vm2239, %v2111, %v2112
    %v2367 = vsel %vm2239, %v2238, %v2111
    %v2368 = vsel %vm1855, 1, 0
    %v2369 = vsel %vm1856, 1, 0
    %v2370 = vsel %vm1857, 1, 0
    %v2371 = vsel %vm1858, 1, 0
    %v2372 = vsel %vm1859, 1, 0
    %v2373 = vsel %vm1860, 1, 0
    %v2374 = vsel %vm1861, 1, 0
    %v2375 = vsel %vm1862, 1, 0
    %v2376 = vsel %vm1863, 1, 0
    %v2377 = vsel %vm1864, 1, 0
    %v2378 = vsel %vm1865, 1, 0
    %v2379 = vsel %vm1866, 1, 0
    %v2380 = vsel %vm1867, 1, 0
    %v2381 = vsel %vm1868, 1, 0
    %v2382 = vsel %vm1869, 1, 0
    %v2383 = vsel %vm1870, 1, 0
    %v2384 = vsel %vm1871, 1, 0
    %v2385 = vsel %vm1872, 1, 0
    %v2386 = vsel %vm1873, 1, 0
    %v2387 = vsel %vm1874, 1, 0
    %v2388 = vsel %vm1875, 1, 0
    %v2389 = vsel %vm1876, 1, 0
    %v2390 = vsel %vm1877, 1, 0
    %v2391 = vsel %vm1878, 1, 0
    %v2392 = vsel %vm1879, 1, 0
    %v2393 = vsel %vm1880, 1, 0
    %v2394 = vsel %vm1881, 1, 0
    %v2395 = vsel %vm1882, 1, 0
    %v2396 = vsel %vm1883, 1, 0
    %v2397 = vsel %vm1884, 1, 0
    %v2398 = vsel %vm1885, 1, 0
    %v2399 = vsel %vm1886, 1, 0
    %v2400 = vsel %vm1887, 1, 0
    %v2401 = vsel %vm1888, 1, 0
    %v2402 = vsel %vm1889, 1, 0
    %v2403 = vsel %vm1890, 1, 0
    %v2404 = vsel %vm1891, 1, 0
    %v2405 = vsel %vm1892, 1, 0
    %v2406 = vsel %vm1893, 1, 0
    %v2407 = vsel %vm1894, 1, 0
    %v2408 = vsel %vm1895, 1, 0
    %v2409 = vsel %vm1896, 1, 0
    %v2410 = vsel %vm1897, 1, 0
    %v2411 = vsel %vm1898, 1, 0
    %v2412 = vsel %vm1899, 1, 0
    %v2413 = vsel %vm1900, 1, 0
    %v2414 = vsel %vm1901, 1, 0
    %v2415 = vsel %vm1902, 1, 0
    %v2416 = vsel %vm1903, 1, 0
    %v2417 = vsel %vm1904, 1, 0
    %v2418 = vsel %vm1905, 1, 0
    %v2419 = vsel %vm1906, 1, 0
    %v2420 = vsel %vm1907, 1, 0
    %v2421 = vsel %vm1908, 1, 0
    %v2422 = vsel %vm1909, 1, 0
    %v2423 = vsel %vm1910, 1, 0
    %v2424 = vsel %vm1911, 1, 0
    %v2425 = vsel %vm1912, 1, 0
    %v2426 = vsel %vm1913, 1, 0
    %v2427 = vsel %vm1914, 1, 0
    %v2428 = vsel %vm1915, 1, 0
    %v2429 = vsel %vm1916, 1, 0
    %v2430 = vsel %vm1917, 1, 0
    %v2431 = vsel %vm1918, 1, 0
    %v2432 = vsel %vm1919, 1, 0
    %v2433 = vsel %vm1920, 1, 0
    %v2434 = vsel %vm1921, 1, 0
    %v2435 = vsel %vm1922, 1, 0
    %v2436 = vsel %vm1923, 1, 0
    %v2437 = vsel %vm1924, 1, 0
    %v2438 = vsel %vm1925, 1, 0
    %v2439 = vsel %vm1926, 1, 0
    %v2440 = vsel %vm1927, 1, 0
    %v2441 = vsel %vm1928, 1, 0
    %v2442 = vsel %vm1929, 1, 0
    %v2443 = vsel %vm1930, 1, 0
    %v2444 = vsel %vm1931, 1, 0
    %v2445 = vsel %vm1932, 1, 0
    %v2446 = vsel %vm1933, 1, 0
    %v2447 = vsel %vm1934, 1, 0
    %v2448 = vsel %vm1935, 1, 0
    %v2449 = vsel %vm1936, 1, 0
    %v2450 = vsel %vm1937, 1, 0
    %v2451 = vsel %vm1938, 1, 0
    %v2452 = vsel %vm1939, 1, 0
    %v2453 = vsel %vm1940, 1, 0
    %v2454 = vsel %vm1941, 1, 0
    %v2455 = vsel %vm1942, 1, 0
    %v2456 = vsel %vm1943, 1, 0
    %v2457 = vsel %vm1944, 1, 0
    %v2458 = vsel %vm1945, 1, 0
    %v2459 = vsel %vm1946, 1, 0
    %v2460 = vsel %vm1947, 1, 0
    %v2461 = vsel %vm1948, 1, 0
    %v2462 = vsel %vm1949, 1, 0
    %v2463 = vsel %vm1950, 1, 0
    %v2464 = vsel %vm1951, 1, 0
    %v2465 = vsel %vm1952, 1, 0
    %v2466 = vsel %vm1953, 1, 0
    %v2467 = vsel %vm1954, 1, 0
    %v2468 = vsel %vm1955, 1, 0
    %v2469 = vsel %vm1956, 1, 0
    %v2470 = vsel %vm1957, 1, 0
    %v2471 = vsel %vm1958, 1, 0
    %v2472 = vsel %vm1959, 1, 0
    %v2473 = vsel %vm1960, 1, 0
    %v2474 = vsel %vm1961, 1, 0
    %v2475 = vsel %vm1962, 1, 0
    %v2476 = vsel %vm1963, 1, 0
    %v2477 = vsel %vm1964, 1, 0
    %v2478 = vsel %vm1965, 1, 0
    %v2479 = vsel %vm1966, 1, 0
    %v2480 = vsel %vm1967, 1, 0
    %v2481 = vsel %vm1968, 1, 0
    %v2482 = vsel %vm1969, 1, 0
    %v2483 = vsel %vm1970, 1, 0
    %v2484 = vsel %vm1971, 1, 0
    %v2485 = vsel %vm1972, 1, 0
    %v2486 = vsel %vm1973, 1, 0
    %v2487 = vsel %vm1974, 1, 0
    %v2488 = vsel %vm1975, 1, 0
    %v2489 = vsel %vm1976, 1, 0
    %v2490 = vsel %vm1977, 1, 0
    %v2491 = vsel %vm1978, 1, 0
    %v2492 = vsel %vm1979, 1, 0
    %v2493 = vsel %vm1980, 1, 0
    %v2494 = vsel %vm1981, 1, 0
    %v2495 = vsel %vm1982, 1, 0
    %vm2496 = vcmp.eq.s32.totalorder %v2368, 1
    %vm2497 = vcmp.eq.s32.totalorder %v2369, 1
    %vm2498 = vcmp.eq.s32.totalorder %v2370, 1
    %vm2499 = vcmp.eq.s32.totalorder %v2371, 1
    %vm2500 = vcmp.eq.s32.totalorder %v2372, 1
    %vm2501 = vcmp.eq.s32.totalorder %v2373, 1
    %vm2502 = vcmp.eq.s32.totalorder %v2374, 1
    %vm2503 = vcmp.eq.s32.totalorder %v2375, 1
    %vm2504 = vcmp.eq.s32.totalorder %v2376, 1
    %vm2505 = vcmp.eq.s32.totalorder %v2377, 1
    %vm2506 = vcmp.eq.s32.totalorder %v2378, 1
    %vm2507 = vcmp.eq.s32.totalorder %v2379, 1
    %vm2508 = vcmp.eq.s32.totalorder %v2380, 1
    %vm2509 = vcmp.eq.s32.totalorder %v2381, 1
    %vm2510 = vcmp.eq.s32.totalorder %v2382, 1
    %vm2511 = vcmp.eq.s32.totalorder %v2383, 1
    %vm2512 = vcmp.eq.s32.totalorder %v2384, 1
    %vm2513 = vcmp.eq.s32.totalorder %v2385, 1
    %vm2514 = vcmp.eq.s32.totalorder %v2386, 1
    %vm2515 = vcmp.eq.s32.totalorder %v2387, 1
    %vm2516 = vcmp.eq.s32.totalorder %v2388, 1
    %vm2517 = vcmp.eq.s32.totalorder %v2389, 1
    %vm2518 = vcmp.eq.s32.totalorder %v2390, 1
    %vm2519 = vcmp.eq.s32.totalorder %v2391, 1
    %vm2520 = vcmp.eq.s32.totalorder %v2392, 1
    %vm2521 = vcmp.eq.s32.totalorder %v2393, 1
    %vm2522 = vcmp.eq.s32.totalorder %v2394, 1
    %vm2523 = vcmp.eq.s32.totalorder %v2395, 1
    %vm2524 = vcmp.eq.s32.totalorder %v2396, 1
    %vm2525 = vcmp.eq.s32.totalorder %v2397, 1
    %vm2526 = vcmp.eq.s32.totalorder %v2398, 1
    %vm2527 = vcmp.eq.s32.totalorder %v2399, 1
    %vm2528 = vcmp.eq.s32.totalorder %v2400, 1
    %vm2529 = vcmp.eq.s32.totalorder %v2401, 1
    %vm2530 = vcmp.eq.s32.totalorder %v2402, 1
    %vm2531 = vcmp.eq.s32.totalorder %v2403, 1
    %vm2532 = vcmp.eq.s32.totalorder %v2404, 1
    %vm2533 = vcmp.eq.s32.totalorder %v2405, 1
    %vm2534 = vcmp.eq.s32.totalorder %v2406, 1
    %vm2535 = vcmp.eq.s32.totalorder %v2407, 1
    %vm2536 = vcmp.eq.s32.totalorder %v2408, 1
    %vm2537 = vcmp.eq.s32.totalorder %v2409, 1
    %vm2538 = vcmp.eq.s32.totalorder %v2410, 1
    %vm2539 = vcmp.eq.s32.totalorder %v2411, 1
    %vm2540 = vcmp.eq.s32.totalorder %v2412, 1
    %vm2541 = vcmp.eq.s32.totalorder %v2413, 1
    %vm2542 = vcmp.eq.s32.totalorder %v2414, 1
    %vm2543 = vcmp.eq.s32.totalorder %v2415, 1
    %vm2544 = vcmp.eq.s32.totalorder %v2416, 1
    %vm2545 = vcmp.eq.s32.totalorder %v2417, 1
    %vm2546 = vcmp.eq.s32.totalorder %v2418, 1
    %vm2547 = vcmp.eq.s32.totalorder %v2419, 1
    %vm2548 = vcmp.eq.s32.totalorder %v2420, 1
    %vm2549 = vcmp.eq.s32.totalorder %v2421, 1
    %vm2550 = vcmp.eq.s32.totalorder %v2422, 1
    %vm2551 = vcmp.eq.s32.totalorder %v2423, 1
    %vm2552 = vcmp.eq.s32.totalorder %v2424, 1
    %vm2553 = vcmp.eq.s32.totalorder %v2425, 1
    %vm2554 = vcmp.eq.s32.totalorder %v2426, 1
    %vm2555 = vcmp.eq.s32.totalorder %v2427, 1
    %vm2556 = vcmp.eq.s32.totalorder %v2428, 1
    %vm2557 = vcmp.eq.s32.totalorder %v2429, 1
    %vm2558 = vcmp.eq.s32.totalorder %v2430, 1
    %vm2559 = vcmp.eq.s32.totalorder %v2431, 1
    %vm2560 = vcmp.eq.s32.totalorder %v2432, 1
    %vm2561 = vcmp.eq.s32.totalorder %v2433, 1
    %vm2562 = vcmp.eq.s32.totalorder %v2434, 1
    %vm2563 = vcmp.eq.s32.totalorder %v2435, 1
    %vm2564 = vcmp.eq.s32.totalorder %v2436, 1
    %vm2565 = vcmp.eq.s32.totalorder %v2437, 1
    %vm2566 = vcmp.eq.s32.totalorder %v2438, 1
    %vm2567 = vcmp.eq.s32.totalorder %v2439, 1
    %vm2568 = vcmp.eq.s32.totalorder %v2440, 1
    %vm2569 = vcmp.eq.s32.totalorder %v2441, 1
    %vm2570 = vcmp.eq.s32.totalorder %v2442, 1
    %vm2571 = vcmp.eq.s32.totalorder %v2443, 1
    %vm2572 = vcmp.eq.s32.totalorder %v2444, 1
    %vm2573 = vcmp.eq.s32.totalorder %v2445, 1
    %vm2574 = vcmp.eq.s32.totalorder %v2446, 1
    %vm2575 = vcmp.eq.s32.totalorder %v2447, 1
    %vm2576 = vcmp.eq.s32.totalorder %v2448, 1
    %vm2577 = vcmp.eq.s32.totalorder %v2449, 1
    %vm2578 = vcmp.eq.s32.totalorder %v2450, 1
    %vm2579 = vcmp.eq.s32.totalorder %v2451, 1
    %vm2580 = vcmp.eq.s32.totalorder %v2452, 1
    %vm2581 = vcmp.eq.s32.totalorder %v2453, 1
    %vm2582 = vcmp.eq.s32.totalorder %v2454, 1
    %vm2583 = vcmp.eq.s32.totalorder %v2455, 1
    %vm2584 = vcmp.eq.s32.totalorder %v2456, 1
    %vm2585 = vcmp.eq.s32.totalorder %v2457, 1
    %vm2586 = vcmp.eq.s32.totalorder %v2458, 1
    %vm2587 = vcmp.eq.s32.totalorder %v2459, 1
    %vm2588 = vcmp.eq.s32.totalorder %v2460, 1
    %vm2589 = vcmp.eq.s32.totalorder %v2461, 1
    %vm2590 = vcmp.eq.s32.totalorder %v2462, 1
    %vm2591 = vcmp.eq.s32.totalorder %v2463, 1
    %vm2592 = vcmp.eq.s32.totalorder %v2464, 1
    %vm2593 = vcmp.eq.s32.totalorder %v2465, 1
    %vm2594 = vcmp.eq.s32.totalorder %v2466, 1
    %vm2595 = vcmp.eq.s32.totalorder %v2467, 1
    %vm2596 = vcmp.eq.s32.totalorder %v2468, 1
    %vm2597 = vcmp.eq.s32.totalorder %v2469, 1
    %vm2598 = vcmp.eq.s32.totalorder %v2470, 1
    %vm2599 = vcmp.eq.s32.totalorder %v2471, 1
    %vm2600 = vcmp.eq.s32.totalorder %v2472, 1
    %vm2601 = vcmp.eq.s32.totalorder %v2473, 1
    %vm2602 = vcmp.eq.s32.totalorder %v2474, 1
    %vm2603 = vcmp.eq.s32.totalorder %v2475, 1
    %vm2604 = vcmp.eq.s32.totalorder %v2476, 1
    %vm2605 = vcmp.eq.s32.totalorder %v2477, 1
    %vm2606 = vcmp.eq.s32.totalorder %v2478, 1
    %vm2607 = vcmp.eq.s32.totalorder %v2479, 1
    %vm2608 = vcmp.eq.s32.totalorder %v2480, 1
    %vm2609 = vcmp.eq.s32.totalorder %v2481, 1
    %vm2610 = vcmp.eq.s32.totalorder %v2482, 1
    %vm2611 = vcmp.eq.s32.totalorder %v2483, 1
    %vm2612 = vcmp.eq.s32.totalorder %v2484, 1
    %vm2613 = vcmp.eq.s32.totalorder %v2485, 1
    %vm2614 = vcmp.eq.s32.totalorder %v2486, 1
    %vm2615 = vcmp.eq.s32.totalorder %v2487, 1
    %vm2616 = vcmp.eq.s32.totalorder %v2488, 1
    %vm2617 = vcmp.eq.s32.totalorder %v2489, 1
    %vm2618 = vcmp.eq.s32.totalorder %v2490, 1
    %vm2619 = vcmp.eq.s32.totalorder %v2491, 1
    %vm2620 = vcmp.eq.s32.totalorder %v2492, 1
    %vm2621 = vcmp.eq.s32.totalorder %v2493, 1
    %vm2622 = vcmp.eq.s32.totalorder %v2494, 1
    %vm2623 = vcmp.eq.s32.totalorder %v2495, 1
    %v2624 = vsel %vm2496, 0.0, %v2367
    %v2625 = vsel %vm2497, 0.0, %v2366
    %v2626 = vsel %vm2498, 0.0, %v2365
    %v2627 = vsel %vm2499, 0.0, %v2364
    %v2628 = vsel %vm2500, 0.0, %v2363
    %v2629 = vsel %vm2501, 0.0, %v2362
    %v2630 = vsel %vm2502, 0.0, %v2361
    %v2631 = vsel %vm2503, 0.0, %v2360
    %v2632 = vsel %vm2504, 0.0, %v2359
    %v2633 = vsel %vm2505, 0.0, %v2358
    %v2634 = vsel %vm2506, 0.0, %v2357
    %v2635 = vsel %vm2507, 0.0, %v2356
    %v2636 = vsel %vm2508, 0.0, %v2355
    %v2637 = vsel %vm2509, 0.0, %v2354
    %v2638 = vsel %vm2510, 0.0, %v2353
    %v2639 = vsel %vm2511, 0.0, %v2352
    %v2640 = vsel %vm2512, 0.0, %v2351
    %v2641 = vsel %vm2513, 0.0, %v2350
    %v2642 = vsel %vm2514, 0.0, %v2349
    %v2643 = vsel %vm2515, 0.0, %v2348
    %v2644 = vsel %vm2516, 0.0, %v2347
    %v2645 = vsel %vm2517, 0.0, %v2346
    %v2646 = vsel %vm2518, 0.0, %v2345
    %v2647 = vsel %vm2519, 0.0, %v2344
    %v2648 = vsel %vm2520, 0.0, %v2343
    %v2649 = vsel %vm2521, 0.0, %v2342
    %v2650 = vsel %vm2522, 0.0, %v2341
    %v2651 = vsel %vm2523, 0.0, %v2340
    %v2652 = vsel %vm2524, 0.0, %v2339
    %v2653 = vsel %vm2525, 0.0, %v2338
    %v2654 = vsel %vm2526, 0.0, %v2337
    %v2655 = vsel %vm2527, 0.0, %v2336
    %v2656 = vsel %vm2528, 0.0, %v2335
    %v2657 = vsel %vm2529, 0.0, %v2334
    %v2658 = vsel %vm2530, 0.0, %v2333
    %v2659 = vsel %vm2531, 0.0, %v2332
    %v2660 = vsel %vm2532, 0.0, %v2331
    %v2661 = vsel %vm2533, 0.0, %v2330
    %v2662 = vsel %vm2534, 0.0, %v2329
    %v2663 = vsel %vm2535, 0.0, %v2328
    %v2664 = vsel %vm2536, 0.0, %v2327
    %v2665 = vsel %vm2537, 0.0, %v2326
    %v2666 = vsel %vm2538, 0.0, %v2325
    %v2667 = vsel %vm2539, 0.0, %v2324
    %v2668 = vsel %vm2540, 0.0, %v2323
    %v2669 = vsel %vm2541, 0.0, %v2322
    %v2670 = vsel %vm2542, 0.0, %v2321
    %v2671 = vsel %vm2543, 0.0, %v2320
    %v2672 = vsel %vm2544, 0.0, %v2319
    %v2673 = vsel %vm2545, 0.0, %v2318
    %v2674 = vsel %vm2546, 0.0, %v2317
    %v2675 = vsel %vm2547, 0.0, %v2316
    %v2676 = vsel %vm2548, 0.0, %v2315
    %v2677 = vsel %vm2549, 0.0, %v2314
    %v2678 = vsel %vm2550, 0.0, %v2313
    %v2679 = vsel %vm2551, 0.0, %v2312
    %v2680 = vsel %vm2552, 0.0, %v2311
    %v2681 = vsel %vm2553, 0.0, %v2310
    %v2682 = vsel %vm2554, 0.0, %v2309
    %v2683 = vsel %vm2555, 0.0, %v2308
    %v2684 = vsel %vm2556, 0.0, %v2307
    %v2685 = vsel %vm2557, 0.0, %v2306
    %v2686 = vsel %vm2558, 0.0, %v2305
    %v2687 = vsel %vm2559, 0.0, %v2304
    %v2688 = vsel %vm2560, 0.0, %v2303
    %v2689 = vsel %vm2561, 0.0, %v2302
    %v2690 = vsel %vm2562, 0.0, %v2301
    %v2691 = vsel %vm2563, 0.0, %v2300
    %v2692 = vsel %vm2564, 0.0, %v2299
    %v2693 = vsel %vm2565, 0.0, %v2298
    %v2694 = vsel %vm2566, 0.0, %v2297
    %v2695 = vsel %vm2567, 0.0, %v2296
    %v2696 = vsel %vm2568, 0.0, %v2295
    %v2697 = vsel %vm2569, 0.0, %v2294
    %v2698 = vsel %vm2570, 0.0, %v2293
    %v2699 = vsel %vm2571, 0.0, %v2292
    %v2700 = vsel %vm2572, 0.0, %v2291
    %v2701 = vsel %vm2573, 0.0, %v2290
    %v2702 = vsel %vm2574, 0.0, %v2289
    %v2703 = vsel %vm2575, 0.0, %v2288
    %v2704 = vsel %vm2576, 0.0, %v2287
    %v2705 = vsel %vm2577, 0.0, %v2286
    %v2706 = vsel %vm2578, 0.0, %v2285
    %v2707 = vsel %vm2579, 0.0, %v2284
    %v2708 = vsel %vm2580, 0.0, %v2283
    %v2709 = vsel %vm2581, 0.0, %v2282
    %v2710 = vsel %vm2582, 0.0, %v2281
    %v2711 = vsel %vm2583, 0.0, %v2280
    %v2712 = vsel %vm2584, 0.0, %v2279
    %v2713 = vsel %vm2585, 0.0, %v2278
    %v2714 = vsel %vm2586, 0.0, %v2277
    %v2715 = vsel %vm2587, 0.0, %v2276
    %v2716 = vsel %vm2588, 0.0, %v2275
    %v2717 = vsel %vm2589, 0.0, %v2274
    %v2718 = vsel %vm2590, 0.0, %v2273
    %v2719 = vsel %vm2591, 0.0, %v2272
    %v2720 = vsel %vm2592, 0.0, %v2271
    %v2721 = vsel %vm2593, 0.0, %v2270
    %v2722 = vsel %vm2594, 0.0, %v2269
    %v2723 = vsel %vm2595, 0.0, %v2268
    %v2724 = vsel %vm2596, 0.0, %v2267
    %v2725 = vsel %vm2597, 0.0, %v2266
    %v2726 = vsel %vm2598, 0.0, %v2265
    %v2727 = vsel %vm2599, 0.0, %v2264
    %v2728 = vsel %vm2600, 0.0, %v2263
    %v2729 = vsel %vm2601, 0.0, %v2262
    %v2730 = vsel %vm2602, 0.0, %v2261
    %v2731 = vsel %vm2603, 0.0, %v2260
    %v2732 = vsel %vm2604, 0.0, %v2259
    %v2733 = vsel %vm2605, 0.0, %v2258
    %v2734 = vsel %vm2606, 0.0, %v2257
    %v2735 = vsel %vm2607, 0.0, %v2256
    %v2736 = vsel %vm2608, 0.0, %v2255
    %v2737 = vsel %vm2609, 0.0, %v2254
    %v2738 = vsel %vm2610, 0.0, %v2253
    %v2739 = vsel %vm2611, 0.0, %v2252
    %v2740 = vsel %vm2612, 0.0, %v2251
    %v2741 = vsel %vm2613, 0.0, %v2250
    %v2742 = vsel %vm2614, 0.0, %v2249
    %v2743 = vsel %vm2615, 0.0, %v2248
    %v2744 = vsel %vm2616, 0.0, %v2247
    %v2745 = vsel %vm2617, 0.0, %v2246
    %v2746 = vsel %vm2618, 0.0, %v2245
    %v2747 = vsel %vm2619, 0.0, %v2244
    %v2748 = vsel %vm2620, 0.0, %v2243
    %v2749 = vsel %vm2621, 0.0, %v2242
    %v2750 = vsel %vm2622, 0.0, %v2241
    %v2751 = vsel %vm2623, 0.0, %v2240
    %v2752 = vpack.c.bf16 %v2625, %v2624
    %v2753 = vpack.c.bf16 %v2627, %v2626
    %v2754 = vpack.c.bf16 %v2629, %v2628
    %v2755 = vpack.c.bf16 %v2631, %v2630
    %v2756 = vpack.c.bf16 %v2633, %v2632
    %v2757 = vpack.c.bf16 %v2635, %v2634
    %v2758 = vpack.c.bf16 %v2637, %v2636
    %v2759 = vpack.c.bf16 %v2639, %v2638
    %v2760 = vpack.c.bf16 %v2641, %v2640
    %v2761 = vpack.c.bf16 %v2643, %v2642
    %v2762 = vpack.c.bf16 %v2645, %v2644
    %v2763 = vpack.c.bf16 %v2647, %v2646
    %v2764 = vpack.c.bf16 %v2649, %v2648
    %v2765 = vpack.c.bf16 %v2651, %v2650
    %v2766 = vpack.c.bf16 %v2653, %v2652
    %v2767 = vpack.c.bf16 %v2655, %v2654
    %v2768 = vpack.c.bf16 %v2657, %v2656
    %v2769 = vpack.c.bf16 %v2659, %v2658
    %v2770 = vpack.c.bf16 %v2661, %v2660
    %v2771 = vpack.c.bf16 %v2663, %v2662
    %v2772 = vpack.c.bf16 %v2665, %v2664
    %v2773 = vpack.c.bf16 %v2667, %v2666
    %v2774 = vpack.c.bf16 %v2669, %v2668
    %v2775 = vpack.c.bf16 %v2671, %v2670
    %v2776 = vpack.c.bf16 %v2673, %v2672
    %v2777 = vpack.c.bf16 %v2675, %v2674
    %v2778 = vpack.c.bf16 %v2677, %v2676
    %v2779 = vpack.c.bf16 %v2679, %v2678
    %v2780 = vpack.c.bf16 %v2681, %v2680
    %v2781 = vpack.c.bf16 %v2683, %v2682
    %v2782 = vpack.c.bf16 %v2685, %v2684
    %v2783 = vpack.c.bf16 %v2687, %v2686
    %v2784 = vpack.c.bf16 %v2689, %v2688
    %v2785 = vpack.c.bf16 %v2691, %v2690
    %v2786 = vpack.c.bf16 %v2693, %v2692
    %v2787 = vpack.c.bf16 %v2695, %v2694
    %v2788 = vpack.c.bf16 %v2697, %v2696
    %v2789 = vpack.c.bf16 %v2699, %v2698
    %v2790 = vpack.c.bf16 %v2701, %v2700
    %v2791 = vpack.c.bf16 %v2703, %v2702
    %v2792 = vpack.c.bf16 %v2705, %v2704
    %v2793 = vpack.c.bf16 %v2707, %v2706
    %v2794 = vpack.c.bf16 %v2709, %v2708
    %v2795 = vpack.c.bf16 %v2711, %v2710
    %v2796 = vpack.c.bf16 %v2713, %v2712
    %v2797 = vpack.c.bf16 %v2715, %v2714
    %v2798 = vpack.c.bf16 %v2717, %v2716
    %v2799 = vpack.c.bf16 %v2719, %v2718
    %v2800 = vpack.c.bf16 %v2721, %v2720
    %v2801 = vpack.c.bf16 %v2723, %v2722
    %v2802 = vpack.c.bf16 %v2725, %v2724
    %v2803 = vpack.c.bf16 %v2727, %v2726
    %v2804 = vpack.c.bf16 %v2729, %v2728
    %v2805 = vpack.c.bf16 %v2731, %v2730
    %v2806 = vpack.c.bf16 %v2733, %v2732
    %v2807 = vpack.c.bf16 %v2735, %v2734
    %v2808 = vpack.c.bf16 %v2737, %v2736
    %v2809 = vpack.c.bf16 %v2739, %v2738
    %v2810 = vpack.c.bf16 %v2741, %v2740
    %v2811 = vpack.c.bf16 %v2743, %v2742
    %v2812 = vpack.c.bf16 %v2745, %v2744
    %v2813 = vpack.c.bf16 %v2747, %v2746
    %v2814 = vpack.c.bf16 %v2749, %v2748
    %v2815 = vpack.c.bf16 %v2751, %v2750
    %v2816 = vpack.c.bf16 %v63, %v62
    %v2817 = vpack.c.bf16 %v65, %v64
    %v2818 = vpack.c.bf16 %v67, %v66
    %v2819 = vpack.c.bf16 %v69, %v68
    %v2820 = vpack.c.bf16 %v71, %v70
    %v2821 = vpack.c.bf16 %v73, %v72
    %v2822 = vpack.c.bf16 %v75, %v74
    %v2823 = vpack.c.bf16 %v77, %v76
    %v2824 = vpack.c.bf16 %v79, %v78
    %v2825 = vpack.c.bf16 %v81, %v80
    %v2826 = vpack.c.bf16 %v83, %v82
    %v2827 = vpack.c.bf16 %v85, %v84
    %v2828 = vpack.c.bf16 %v87, %v86
    %v2829 = vpack.c.bf16 %v89, %v88
    %v2830 = vpack.c.bf16 %v91, %v90
    %v2831 = vpack.c.bf16 %v93, %v92
    %v2832 = vpack.c.bf16 %v95, %v94
    %v2833 = vpack.c.bf16 %v97, %v96
    %v2834 = vpack.c.bf16 %v99, %v98
    %v2835 = vpack.c.bf16 %v101, %v100
    %v2836 = vpack.c.bf16 %v103, %v102
    %v2837 = vpack.c.bf16 %v105, %v104
    %v2838 = vpack.c.bf16 %v107, %v106
    %v2839 = vpack.c.bf16 %v109, %v108
    %v2840 = vpack.c.bf16 %v111, %v110
    %v2841 = vpack.c.bf16 %v113, %v112
    %v2842 = vpack.c.bf16 %v115, %v114
    %v2843 = vpack.c.bf16 %v117, %v116
    %v2844 = vpack.c.bf16 %v119, %v118
    %v2845 = vpack.c.bf16 %v121, %v120
    %v2846 = vpack.c.bf16 %v123, %v122
    %v2847 = vpack.c.bf16 %v125, %v124
    %v2848 = vpack.c.bf16 %v127, %v126
    %v2849 = vpack.c.bf16 %v129, %v128
    %v2850 = vpack.c.bf16 %v131, %v130
    %v2851 = vpack.c.bf16 %v133, %v132
    %v2852 = vpack.c.bf16 %v135, %v134
    %v2853 = vpack.c.bf16 %v137, %v136
    %v2854 = vpack.c.bf16 %v139, %v138
    %v2855 = vpack.c.bf16 %v141, %v140
    %v2856 = vpack.c.bf16 %v143, %v142
    %v2857 = vpack.c.bf16 %v145, %v144
    %v2858 = vpack.c.bf16 %v147, %v146
    %v2859 = vpack.c.bf16 %v149, %v148
    %v2860 = vpack.c.bf16 %v151, %v150
    %v2861 = vpack.c.bf16 %v153, %v152
    %v2862 = vpack.c.bf16 %v155, %v154
    %v2863 = vpack.c.bf16 %v157, %v156
    %v2864 = vpack.c.bf16 %v159, %v158
    %v2865 = vpack.c.bf16 %v161, %v160
    %v2866 = vpack.c.bf16 %v163, %v162
    %v2867 = vpack.c.bf16 %v165, %v164
    %v2868 = vpack.c.bf16 %v167, %v166
    %v2869 = vpack.c.bf16 %v169, %v168
    %v2870 = vpack.c.bf16 %v171, %v170
    %v2871 = vpack.c.bf16 %v173, %v172
    %v2872 = vpack.c.bf16 %v175, %v174
    %v2873 = vpack.c.bf16 %v177, %v176
    %v2874 = vpack.c.bf16 %v179, %v178
    %v2875 = vpack.c.bf16 %v181, %v180
    %v2876 = vpack.c.bf16 %v183, %v182
    %v2877 = vpack.c.bf16 %v185, %v184
    %v2878 = vpack.c.bf16 %v187, %v186
    %v2879 = vpack.c.bf16 %v189, %v188
    %v2880 = vrot.slane %v62, 1
    %v2881 = vrot.slane %v63, 1
    %v2882 = vrot.slane %v64, 1
    %v2883 = vrot.slane %v65, 1
    %v2884 = vrot.slane %v66, 1
    %v2885 = vrot.slane %v67, 1
    %v2886 = vrot.slane %v68, 1
    %v2887 = vrot.slane %v69, 1
    %v2888 = vrot.slane %v70, 1
    %v2889 = vrot.slane %v71, 1
    %v2890 = vrot.slane %v72, 1
    %v2891 = vrot.slane %v73, 1
    %v2892 = vrot.slane %v74, 1
    %v2893 = vrot.slane %v75, 1
    %v2894 = vrot.slane %v76, 1
    %v2895 = vrot.slane %v77, 1
    %v2896 = vrot.slane %v78, 1
    %v2897 = vrot.slane %v79, 1
    %v2898 = vrot.slane %v80, 1
    %v2899 = vrot.slane %v81, 1
    %v2900 = vrot.slane %v82, 1
    %v2901 = vrot.slane %v83, 1
    %v2902 = vrot.slane %v84, 1
    %v2903 = vrot.slane %v85, 1
    %v2904 = vrot.slane %v86, 1
    %v2905 = vrot.slane %v87, 1
    %v2906 = vrot.slane %v88, 1
    %v2907 = vrot.slane %v89, 1
    %v2908 = vrot.slane %v90, 1
    %v2909 = vrot.slane %v91, 1
    %v2910 = vrot.slane %v92, 1
    %v2911 = vrot.slane %v93, 1
    %v2912 = vrot.slane %v94, 1
    %v2913 = vrot.slane %v95, 1
    %v2914 = vrot.slane %v96, 1
    %v2915 = vrot.slane %v97, 1
    %v2916 = vrot.slane %v98, 1
    %v2917 = vrot.slane %v99, 1
    %v2918 = vrot.slane %v100, 1
    %v2919 = vrot.slane %v101, 1
    %v2920 = vrot.slane %v102, 1
    %v2921 = vrot.slane %v103, 1
    %v2922 = vrot.slane %v104, 1
    %v2923 = vrot.slane %v105, 1
    %v2924 = vrot.slane %v106, 1
    %v2925 = vrot.slane %v107, 1
    %v2926 = vrot.slane %v108, 1
    %v2927 = vrot.slane %v109, 1
    %v2928 = vrot.slane %v110, 1
    %v2929 = vrot.slane %v111, 1
    %v2930 = vrot.slane %v112, 1
    %v2931 = vrot.slane %v113, 1
    %v2932 = vrot.slane %v114, 1
    %v2933 = vrot.slane %v115, 1
    %v2934 = vrot.slane %v116, 1
    %v2935 = vrot.slane %v117, 1
    %v2936 = vrot.slane %v118, 1
    %v2937 = vrot.slane %v119, 1
    %v2938 = vrot.slane %v120, 1
    %v2939 = vrot.slane %v121, 1
    %v2940 = vrot.slane %v122, 1
    %v2941 = vrot.slane %v123, 1
    %v2942 = vrot.slane %v124, 1
    %v2943 = vrot.slane %v125, 1
    %v2944 = vrot.slane %v126, 1
    %v2945 = vrot.slane %v127, 1
    %v2946 = vrot.slane %v128, 1
    %v2947 = vrot.slane %v129, 1
    %v2948 = vrot.slane %v130, 1
    %v2949 = vrot.slane %v131, 1
    %v2950 = vrot.slane %v132, 1
    %v2951 = vrot.slane %v133, 1
    %v2952 = vrot.slane %v134, 1
    %v2953 = vrot.slane %v135, 1
    %v2954 = vrot.slane %v136, 1
    %v2955 = vrot.slane %v137, 1
    %v2956 = vrot.slane %v138, 1
    %v2957 = vrot.slane %v139, 1
    %v2958 = vrot.slane %v140, 1
    %v2959 = vrot.slane %v141, 1
    %v2960 = vrot.slane %v142, 1
    %v2961 = vrot.slane %v143, 1
    %v2962 = vrot.slane %v144, 1
    %v2963 = vrot.slane %v145, 1
    %v2964 = vrot.slane %v146, 1
    %v2965 = vrot.slane %v147, 1
    %v2966 = vrot.slane %v148, 1
    %v2967 = vrot.slane %v149, 1
    %v2968 = vrot.slane %v150, 1
    %v2969 = vrot.slane %v151, 1
    %v2970 = vrot.slane %v152, 1
    %v2971 = vrot.slane %v153, 1
    %v2972 = vrot.slane %v154, 1
    %v2973 = vrot.slane %v155, 1
    %v2974 = vrot.slane %v156, 1
    %v2975 = vrot.slane %v157, 1
    %v2976 = vrot.slane %v158, 1
    %v2977 = vrot.slane %v159, 1
    %v2978 = vrot.slane %v160, 1
    %v2979 = vrot.slane %v161, 1
    %v2980 = vrot.slane %v162, 1
    %v2981 = vrot.slane %v163, 1
    %v2982 = vrot.slane %v164, 1
    %v2983 = vrot.slane %v165, 1
    %v2984 = vrot.slane %v166, 1
    %v2985 = vrot.slane %v167, 1
    %v2986 = vrot.slane %v168, 1
    %v2987 = vrot.slane %v169, 1
    %v2988 = vrot.slane %v170, 1
    %v2989 = vrot.slane %v171, 1
    %v2990 = vrot.slane %v172, 1
    %v2991 = vrot.slane %v173, 1
    %v2992 = vrot.slane %v174, 1
    %v2993 = vrot.slane %v175, 1
    %v2994 = vrot.slane %v176, 1
    %v2995 = vrot.slane %v177, 1
    %v2996 = vrot.slane %v178, 1
    %v2997 = vrot.slane %v179, 1
    %v2998 = vrot.slane %v180, 1
    %v2999 = vrot.slane %v181, 1
    %v3000 = vrot.slane %v182, 1
    %v3001 = vrot.slane %v183, 1
    %v3002 = vrot.slane %v184, 1
    %v3003 = vrot.slane %v185, 1
    %v3004 = vrot.slane %v186, 1
    %v3005 = vrot.slane %v187, 1
    %v3006 = vrot.slane %v188, 1
    %v3007 = vrot.slane %v189, 1
    %vm3008 = vcmp.lt.s32.totalorder %v191, 7
    %v3009 = vsel %vm3008, %v3006, %v3007
    %v3010 = vsel %vm3008, %v3005, %v3006
    %v3011 = vsel %vm3008, %v3004, %v3005
    %v3012 = vsel %vm3008, %v3003, %v3004
    %v3013 = vsel %vm3008, %v3002, %v3003
    %v3014 = vsel %vm3008, %v3001, %v3002
    %v3015 = vsel %vm3008, %v3000, %v3001
    %v3016 = vsel %vm3008, %v2999, %v3000
    %v3017 = vsel %vm3008, %v2998, %v2999
    %v3018 = vsel %vm3008, %v2997, %v2998
    %v3019 = vsel %vm3008, %v2996, %v2997
    %v3020 = vsel %vm3008, %v2995, %v2996
    %v3021 = vsel %vm3008, %v2994, %v2995
    %v3022 = vsel %vm3008, %v2993, %v2994
    %v3023 = vsel %vm3008, %v2992, %v2993
    %v3024 = vsel %vm3008, %v2991, %v2992
    %v3025 = vsel %vm3008, %v2990, %v2991
    %v3026 = vsel %vm3008, %v2989, %v2990
    %v3027 = vsel %vm3008, %v2988, %v2989
    %v3028 = vsel %vm3008, %v2987, %v2988
    %v3029 = vsel %vm3008, %v2986, %v2987
    %v3030 = vsel %vm3008, %v2985, %v2986
    %v3031 = vsel %vm3008, %v2984, %v2985
    %v3032 = vsel %vm3008, %v2983, %v2984
    %v3033 = vsel %vm3008, %v2982, %v2983
    %v3034 = vsel %vm3008, %v2981, %v2982
    %v3035 = vsel %vm3008, %v2980, %v2981
    %v3036 = vsel %vm3008, %v2979, %v2980
    %v3037 = vsel %vm3008, %v2978, %v2979
    %v3038 = vsel %vm3008, %v2977, %v2978
    %v3039 = vsel %vm3008, %v2976, %v2977
    %v3040 = vsel %vm3008, %v2975, %v2976
    %v3041 = vsel %vm3008, %v2974, %v2975
    %v3042 = vsel %vm3008, %v2973, %v2974
    %v3043 = vsel %vm3008, %v2972, %v2973
    %v3044 = vsel %vm3008, %v2971, %v2972
    %v3045 = vsel %vm3008, %v2970, %v2971
    %v3046 = vsel %vm3008, %v2969, %v2970
    %v3047 = vsel %vm3008, %v2968, %v2969
    %v3048 = vsel %vm3008, %v2967, %v2968
    %v3049 = vsel %vm3008, %v2966, %v2967
    %v3050 = vsel %vm3008, %v2965, %v2966
    %v3051 = vsel %vm3008, %v2964, %v2965
    %v3052 = vsel %vm3008, %v2963, %v2964
    %v3053 = vsel %vm3008, %v2962, %v2963
    %v3054 = vsel %vm3008, %v2961, %v2962
    %v3055 = vsel %vm3008, %v2960, %v2961
    %v3056 = vsel %vm3008, %v2959, %v2960
    %v3057 = vsel %vm3008, %v2958, %v2959
    %v3058 = vsel %vm3008, %v2957, %v2958
    %v3059 = vsel %vm3008, %v2956, %v2957
    %v3060 = vsel %vm3008, %v2955, %v2956
    %v3061 = vsel %vm3008, %v2954, %v2955
    %v3062 = vsel %vm3008, %v2953, %v2954
    %v3063 = vsel %vm3008, %v2952, %v2953
    %v3064 = vsel %vm3008, %v2951, %v2952
    %v3065 = vsel %vm3008, %v2950, %v2951
    %v3066 = vsel %vm3008, %v2949, %v2950
    %v3067 = vsel %vm3008, %v2948, %v2949
    %v3068 = vsel %vm3008, %v2947, %v2948
    %v3069 = vsel %vm3008, %v2946, %v2947
    %v3070 = vsel %vm3008, %v2945, %v2946
    %v3071 = vsel %vm3008, %v2944, %v2945
    %v3072 = vsel %vm3008, %v2943, %v2944
    %v3073 = vsel %vm3008, %v2942, %v2943
    %v3074 = vsel %vm3008, %v2941, %v2942
    %v3075 = vsel %vm3008, %v2940, %v2941
    %v3076 = vsel %vm3008, %v2939, %v2940
    %v3077 = vsel %vm3008, %v2938, %v2939
    %v3078 = vsel %vm3008, %v2937, %v2938
    %v3079 = vsel %vm3008, %v2936, %v2937
    %v3080 = vsel %vm3008, %v2935, %v2936
    %v3081 = vsel %vm3008, %v2934, %v2935
    %v3082 = vsel %vm3008, %v2933, %v2934
    %v3083 = vsel %vm3008, %v2932, %v2933
    %v3084 = vsel %vm3008, %v2931, %v2932
    %v3085 = vsel %vm3008, %v2930, %v2931
    %v3086 = vsel %vm3008, %v2929, %v2930
    %v3087 = vsel %vm3008, %v2928, %v2929
    %v3088 = vsel %vm3008, %v2927, %v2928
    %v3089 = vsel %vm3008, %v2926, %v2927
    %v3090 = vsel %vm3008, %v2925, %v2926
    %v3091 = vsel %vm3008, %v2924, %v2925
    %v3092 = vsel %vm3008, %v2923, %v2924
    %v3093 = vsel %vm3008, %v2922, %v2923
    %v3094 = vsel %vm3008, %v2921, %v2922
    %v3095 = vsel %vm3008, %v2920, %v2921
    %v3096 = vsel %vm3008, %v2919, %v2920
    %v3097 = vsel %vm3008, %v2918, %v2919
    %v3098 = vsel %vm3008, %v2917, %v2918
    %v3099 = vsel %vm3008, %v2916, %v2917
    %v3100 = vsel %vm3008, %v2915, %v2916
    %v3101 = vsel %vm3008, %v2914, %v2915
    %v3102 = vsel %vm3008, %v2913, %v2914
    %v3103 = vsel %vm3008, %v2912, %v2913
    %v3104 = vsel %vm3008, %v2911, %v2912
    %v3105 = vsel %vm3008, %v2910, %v2911
    %v3106 = vsel %vm3008, %v2909, %v2910
    %v3107 = vsel %vm3008, %v2908, %v2909
    %v3108 = vsel %vm3008, %v2907, %v2908
    %v3109 = vsel %vm3008, %v2906, %v2907
    %v3110 = vsel %vm3008, %v2905, %v2906
    %v3111 = vsel %vm3008, %v2904, %v2905
    %v3112 = vsel %vm3008, %v2903, %v2904
    %v3113 = vsel %vm3008, %v2902, %v2903
    %v3114 = vsel %vm3008, %v2901, %v2902
    %v3115 = vsel %vm3008, %v2900, %v2901
    %v3116 = vsel %vm3008, %v2899, %v2900
    %v3117 = vsel %vm3008, %v2898, %v2899
    %v3118 = vsel %vm3008, %v2897, %v2898
    %v3119 = vsel %vm3008, %v2896, %v2897
    %v3120 = vsel %vm3008, %v2895, %v2896
    %v3121 = vsel %vm3008, %v2894, %v2895
    %v3122 = vsel %vm3008, %v2893, %v2894
    %v3123 = vsel %vm3008, %v2892, %v2893
    %v3124 = vsel %vm3008, %v2891, %v2892
    %v3125 = vsel %vm3008, %v2890, %v2891
    %v3126 = vsel %vm3008, %v2889, %v2890
    %v3127 = vsel %vm3008, %v2888, %v2889
    %v3128 = vsel %vm3008, %v2887, %v2888
    %v3129 = vsel %vm3008, %v2886, %v2887
    %v3130 = vsel %vm3008, %v2885, %v2886
    %v3131 = vsel %vm3008, %v2884, %v2885
    %v3132 = vsel %vm3008, %v2883, %v2884
    %v3133 = vsel %vm3008, %v2882, %v2883
    %v3134 = vsel %vm3008, %v2881, %v2882
    %v3135 = vsel %vm3008, %v2880, %v2881
    %v3136 = vsel %vm3008, %v3007, %v2880
    %v3137 = vsel %vm1983, 1, 0
    %v3138 = vsel %vm1984, 1, 0
    %v3139 = vsel %vm1985, 1, 0
    %v3140 = vsel %vm1986, 1, 0
    %v3141 = vsel %vm1987, 1, 0
    %v3142 = vsel %vm1988, 1, 0
    %v3143 = vsel %vm1989, 1, 0
    %v3144 = vsel %vm1990, 1, 0
    %v3145 = vsel %vm1991, 1, 0
    %v3146 = vsel %vm1992, 1, 0
    %v3147 = vsel %vm1993, 1, 0
    %v3148 = vsel %vm1994, 1, 0
    %v3149 = vsel %vm1995, 1, 0
    %v3150 = vsel %vm1996, 1, 0
    %v3151 = vsel %vm1997, 1, 0
    %v3152 = vsel %vm1998, 1, 0
    %v3153 = vsel %vm1999, 1, 0
    %v3154 = vsel %vm2000, 1, 0
    %v3155 = vsel %vm2001, 1, 0
    %v3156 = vsel %vm2002, 1, 0
    %v3157 = vsel %vm2003, 1, 0
    %v3158 = vsel %vm2004, 1, 0
    %v3159 = vsel %vm2005, 1, 0
    %v3160 = vsel %vm2006, 1, 0
    %v3161 = vsel %vm2007, 1, 0
    %v3162 = vsel %vm2008, 1, 0
    %v3163 = vsel %vm2009, 1, 0
    %v3164 = vsel %vm2010, 1, 0
    %v3165 = vsel %vm2011, 1, 0
    %v3166 = vsel %vm2012, 1, 0
    %v3167 = vsel %vm2013, 1, 0
    %v3168 = vsel %vm2014, 1, 0
    %v3169 = vsel %vm2015, 1, 0
    %v3170 = vsel %vm2016, 1, 0
    %v3171 = vsel %vm2017, 1, 0
    %v3172 = vsel %vm2018, 1, 0
    %v3173 = vsel %vm2019, 1, 0
    %v3174 = vsel %vm2020, 1, 0
    %v3175 = vsel %vm2021, 1, 0
    %v3176 = vsel %vm2022, 1, 0
    %v3177 = vsel %vm2023, 1, 0
    %v3178 = vsel %vm2024, 1, 0
    %v3179 = vsel %vm2025, 1, 0
    %v3180 = vsel %vm2026, 1, 0
    %v3181 = vsel %vm2027, 1, 0
    %v3182 = vsel %vm2028, 1, 0
    %v3183 = vsel %vm2029, 1, 0
    %v3184 = vsel %vm2030, 1, 0
    %v3185 = vsel %vm2031, 1, 0
    %v3186 = vsel %vm2032, 1, 0
    %v3187 = vsel %vm2033, 1, 0
    %v3188 = vsel %vm2034, 1, 0
    %v3189 = vsel %vm2035, 1, 0
    %v3190 = vsel %vm2036, 1, 0
    %v3191 = vsel %vm2037, 1, 0
    %v3192 = vsel %vm2038, 1, 0
    %v3193 = vsel %vm2039, 1, 0
    %v3194 = vsel %vm2040, 1, 0
    %v3195 = vsel %vm2041, 1, 0
    %v3196 = vsel %vm2042, 1, 0
    %v3197 = vsel %vm2043, 1, 0
    %v3198 = vsel %vm2044, 1, 0
    %v3199 = vsel %vm2045, 1, 0
    %v3200 = vsel %vm2046, 1, 0
    %v3201 = vsel %vm2047, 1, 0
    %v3202 = vsel %vm2048, 1, 0
    %v3203 = vsel %vm2049, 1, 0
    %v3204 = vsel %vm2050, 1, 0
    %v3205 = vsel %vm2051, 1, 0
    %v3206 = vsel %vm2052, 1, 0
    %v3207 = vsel %vm2053, 1, 0
    %v3208 = vsel %vm2054, 1, 0
    %v3209 = vsel %vm2055, 1, 0
    %v3210 = vsel %vm2056, 1, 0
    %v3211 = vsel %vm2057, 1, 0
    %v3212 = vsel %vm2058, 1, 0
    %v3213 = vsel %vm2059, 1, 0
    %v3214 = vsel %vm2060, 1, 0
    %v3215 = vsel %vm2061, 1, 0
    %v3216 = vsel %vm2062, 1, 0
    %v3217 = vsel %vm2063, 1, 0
    %v3218 = vsel %vm2064, 1, 0
    %v3219 = vsel %vm2065, 1, 0
    %v3220 = vsel %vm2066, 1, 0
    %v3221 = vsel %vm2067, 1, 0
    %v3222 = vsel %vm2068, 1, 0
    %v3223 = vsel %vm2069, 1, 0
    %v3224 = vsel %vm2070, 1, 0
    %v3225 = vsel %vm2071, 1, 0
    %v3226 = vsel %vm2072, 1, 0
    %v3227 = vsel %vm2073, 1, 0
    %v3228 = vsel %vm2074, 1, 0
    %v3229 = vsel %vm2075, 1, 0
    %v3230 = vsel %vm2076, 1, 0
    %v3231 = vsel %vm2077, 1, 0
    %v3232 = vsel %vm2078, 1, 0
    %v3233 = vsel %vm2079, 1, 0
    %v3234 = vsel %vm2080, 1, 0
    %v3235 = vsel %vm2081, 1, 0
    %v3236 = vsel %vm2082, 1, 0
    %v3237 = vsel %vm2083, 1, 0
    %v3238 = vsel %vm2084, 1, 0
    %v3239 = vsel %vm2085, 1, 0
    %v3240 = vsel %vm2086, 1, 0
    %v3241 = vsel %vm2087, 1, 0
    %v3242 = vsel %vm2088, 1, 0
    %v3243 = vsel %vm2089, 1, 0
    %v3244 = vsel %vm2090, 1, 0
    %v3245 = vsel %vm2091, 1, 0
    %v3246 = vsel %vm2092, 1, 0
    %v3247 = vsel %vm2093, 1, 0
    %v3248 = vsel %vm2094, 1, 0
    %v3249 = vsel %vm2095, 1, 0
    %v3250 = vsel %vm2096, 1, 0
    %v3251 = vsel %vm2097, 1, 0
    %v3252 = vsel %vm2098, 1, 0
    %v3253 = vsel %vm2099, 1, 0
    %v3254 = vsel %vm2100, 1, 0
    %v3255 = vsel %vm2101, 1, 0
    %v3256 = vsel %vm2102, 1, 0
    %v3257 = vsel %vm2103, 1, 0
    %v3258 = vsel %vm2104, 1, 0
    %v3259 = vsel %vm2105, 1, 0
    %v3260 = vsel %vm2106, 1, 0
    %v3261 = vsel %vm2107, 1, 0
    %v3262 = vsel %vm2108, 1, 0
    %v3263 = vsel %vm2109, 1, 0
    %v3264 = vsel %vm2110, 1, 0
    %vm3265 = vcmp.eq.s32.totalorder %v3137, 1
    %vm3266 = vcmp.eq.s32.totalorder %v3138, 1
    %vm3267 = vcmp.eq.s32.totalorder %v3139, 1
    %vm3268 = vcmp.eq.s32.totalorder %v3140, 1
    %vm3269 = vcmp.eq.s32.totalorder %v3141, 1
    %vm3270 = vcmp.eq.s32.totalorder %v3142, 1
    %vm3271 = vcmp.eq.s32.totalorder %v3143, 1
    %vm3272 = vcmp.eq.s32.totalorder %v3144, 1
    %vm3273 = vcmp.eq.s32.totalorder %v3145, 1
    %vm3274 = vcmp.eq.s32.totalorder %v3146, 1
    %vm3275 = vcmp.eq.s32.totalorder %v3147, 1
    %vm3276 = vcmp.eq.s32.totalorder %v3148, 1
    %vm3277 = vcmp.eq.s32.totalorder %v3149, 1
    %vm3278 = vcmp.eq.s32.totalorder %v3150, 1
    %vm3279 = vcmp.eq.s32.totalorder %v3151, 1
    %vm3280 = vcmp.eq.s32.totalorder %v3152, 1
    %vm3281 = vcmp.eq.s32.totalorder %v3153, 1
    %vm3282 = vcmp.eq.s32.totalorder %v3154, 1
    %vm3283 = vcmp.eq.s32.totalorder %v3155, 1
    %vm3284 = vcmp.eq.s32.totalorder %v3156, 1
    %vm3285 = vcmp.eq.s32.totalorder %v3157, 1
    %vm3286 = vcmp.eq.s32.totalorder %v3158, 1
    %vm3287 = vcmp.eq.s32.totalorder %v3159, 1
    %vm3288 = vcmp.eq.s32.totalorder %v3160, 1
    %vm3289 = vcmp.eq.s32.totalorder %v3161, 1
    %vm3290 = vcmp.eq.s32.totalorder %v3162, 1
    %vm3291 = vcmp.eq.s32.totalorder %v3163, 1
    %vm3292 = vcmp.eq.s32.totalorder %v3164, 1
    %vm3293 = vcmp.eq.s32.totalorder %v3165, 1
    %vm3294 = vcmp.eq.s32.totalorder %v3166, 1
    %vm3295 = vcmp.eq.s32.totalorder %v3167, 1
    %vm3296 = vcmp.eq.s32.totalorder %v3168, 1
    %vm3297 = vcmp.eq.s32.totalorder %v3169, 1
    %vm3298 = vcmp.eq.s32.totalorder %v3170, 1
    %vm3299 = vcmp.eq.s32.totalorder %v3171, 1
    %vm3300 = vcmp.eq.s32.totalorder %v3172, 1
    %vm3301 = vcmp.eq.s32.totalorder %v3173, 1
    %vm3302 = vcmp.eq.s32.totalorder %v3174, 1
    %vm3303 = vcmp.eq.s32.totalorder %v3175, 1
    %vm3304 = vcmp.eq.s32.totalorder %v3176, 1
    %vm3305 = vcmp.eq.s32.totalorder %v3177, 1
    %vm3306 = vcmp.eq.s32.totalorder %v3178, 1
    %vm3307 = vcmp.eq.s32.totalorder %v3179, 1
    %vm3308 = vcmp.eq.s32.totalorder %v3180, 1
    %vm3309 = vcmp.eq.s32.totalorder %v3181, 1
    %vm3310 = vcmp.eq.s32.totalorder %v3182, 1
    %vm3311 = vcmp.eq.s32.totalorder %v3183, 1
    %vm3312 = vcmp.eq.s32.totalorder %v3184, 1
    %vm3313 = vcmp.eq.s32.totalorder %v3185, 1
    %vm3314 = vcmp.eq.s32.totalorder %v3186, 1
    %vm3315 = vcmp.eq.s32.totalorder %v3187, 1
    %vm3316 = vcmp.eq.s32.totalorder %v3188, 1
    %vm3317 = vcmp.eq.s32.totalorder %v3189, 1
    %vm3318 = vcmp.eq.s32.totalorder %v3190, 1
    %vm3319 = vcmp.eq.s32.totalorder %v3191, 1
    %vm3320 = vcmp.eq.s32.totalorder %v3192, 1
    %vm3321 = vcmp.eq.s32.totalorder %v3193, 1
    %vm3322 = vcmp.eq.s32.totalorder %v3194, 1
    %vm3323 = vcmp.eq.s32.totalorder %v3195, 1
    %vm3324 = vcmp.eq.s32.totalorder %v3196, 1
    %vm3325 = vcmp.eq.s32.totalorder %v3197, 1
    %vm3326 = vcmp.eq.s32.totalorder %v3198, 1
    %vm3327 = vcmp.eq.s32.totalorder %v3199, 1
    %vm3328 = vcmp.eq.s32.totalorder %v3200, 1
    %vm3329 = vcmp.eq.s32.totalorder %v3201, 1
    %vm3330 = vcmp.eq.s32.totalorder %v3202, 1
    %vm3331 = vcmp.eq.s32.totalorder %v3203, 1
    %vm3332 = vcmp.eq.s32.totalorder %v3204, 1
    %vm3333 = vcmp.eq.s32.totalorder %v3205, 1
    %vm3334 = vcmp.eq.s32.totalorder %v3206, 1
    %vm3335 = vcmp.eq.s32.totalorder %v3207, 1
    %vm3336 = vcmp.eq.s32.totalorder %v3208, 1
    %vm3337 = vcmp.eq.s32.totalorder %v3209, 1
    %vm3338 = vcmp.eq.s32.totalorder %v3210, 1
    %vm3339 = vcmp.eq.s32.totalorder %v3211, 1
    %vm3340 = vcmp.eq.s32.totalorder %v3212, 1
    %vm3341 = vcmp.eq.s32.totalorder %v3213, 1
    %vm3342 = vcmp.eq.s32.totalorder %v3214, 1
    %vm3343 = vcmp.eq.s32.totalorder %v3215, 1
    %vm3344 = vcmp.eq.s32.totalorder %v3216, 1
    %vm3345 = vcmp.eq.s32.totalorder %v3217, 1
    %vm3346 = vcmp.eq.s32.totalorder %v3218, 1
    %vm3347 = vcmp.eq.s32.totalorder %v3219, 1
    %vm3348 = vcmp.eq.s32.totalorder %v3220, 1
    %vm3349 = vcmp.eq.s32.totalorder %v3221, 1
    %vm3350 = vcmp.eq.s32.totalorder %v3222, 1
    %vm3351 = vcmp.eq.s32.totalorder %v3223, 1
    %vm3352 = vcmp.eq.s32.totalorder %v3224, 1
    %vm3353 = vcmp.eq.s32.totalorder %v3225, 1
    %vm3354 = vcmp.eq.s32.totalorder %v3226, 1
    %vm3355 = vcmp.eq.s32.totalorder %v3227, 1
    %vm3356 = vcmp.eq.s32.totalorder %v3228, 1
    %vm3357 = vcmp.eq.s32.totalorder %v3229, 1
    %vm3358 = vcmp.eq.s32.totalorder %v3230, 1
    %vm3359 = vcmp.eq.s32.totalorder %v3231, 1
    %vm3360 = vcmp.eq.s32.totalorder %v3232, 1
    %vm3361 = vcmp.eq.s32.totalorder %v3233, 1
    %vm3362 = vcmp.eq.s32.totalorder %v3234, 1
    %vm3363 = vcmp.eq.s32.totalorder %v3235, 1
    %vm3364 = vcmp.eq.s32.totalorder %v3236, 1
    %vm3365 = vcmp.eq.s32.totalorder %v3237, 1
    %vm3366 = vcmp.eq.s32.totalorder %v3238, 1
    %vm3367 = vcmp.eq.s32.totalorder %v3239, 1
    %vm3368 = vcmp.eq.s32.totalorder %v3240, 1
    %vm3369 = vcmp.eq.s32.totalorder %v3241, 1
    %vm3370 = vcmp.eq.s32.totalorder %v3242, 1
    %vm3371 = vcmp.eq.s32.totalorder %v3243, 1
    %vm3372 = vcmp.eq.s32.totalorder %v3244, 1
    %vm3373 = vcmp.eq.s32.totalorder %v3245, 1
    %vm3374 = vcmp.eq.s32.totalorder %v3246, 1
    %vm3375 = vcmp.eq.s32.totalorder %v3247, 1
    %vm3376 = vcmp.eq.s32.totalorder %v3248, 1
    %vm3377 = vcmp.eq.s32.totalorder %v3249, 1
    %vm3378 = vcmp.eq.s32.totalorder %v3250, 1
    %vm3379 = vcmp.eq.s32.totalorder %v3251, 1
    %vm3380 = vcmp.eq.s32.totalorder %v3252, 1
    %vm3381 = vcmp.eq.s32.totalorder %v3253, 1
    %vm3382 = vcmp.eq.s32.totalorder %v3254, 1
    %vm3383 = vcmp.eq.s32.totalorder %v3255, 1
    %vm3384 = vcmp.eq.s32.totalorder %v3256, 1
    %vm3385 = vcmp.eq.s32.totalorder %v3257, 1
    %vm3386 = vcmp.eq.s32.totalorder %v3258, 1
    %vm3387 = vcmp.eq.s32.totalorder %v3259, 1
    %vm3388 = vcmp.eq.s32.totalorder %v3260, 1
    %vm3389 = vcmp.eq.s32.totalorder %v3261, 1
    %vm3390 = vcmp.eq.s32.totalorder %v3262, 1
    %vm3391 = vcmp.eq.s32.totalorder %v3263, 1
    %vm3392 = vcmp.eq.s32.totalorder %v3264, 1
    %v3393 = vsel %vm3265, 0.0, %v3135
    %v3394 = vsel %vm3266, 0.0, %v3134
    %v3395 = vsel %vm3267, 0.0, %v3133
    %v3396 = vsel %vm3268, 0.0, %v3132
    %v3397 = vsel %vm3269, 0.0, %v3131
    %v3398 = vsel %vm3270, 0.0, %v3130
    %v3399 = vsel %vm3271, 0.0, %v3129
    %v3400 = vsel %vm3272, 0.0, %v3128
    %v3401 = vsel %vm3273, 0.0, %v3127
    %v3402 = vsel %vm3274, 0.0, %v3126
    %v3403 = vsel %vm3275, 0.0, %v3125
    %v3404 = vsel %vm3276, 0.0, %v3124
    %v3405 = vsel %vm3277, 0.0, %v3123
    %v3406 = vsel %vm3278, 0.0, %v3122
    %v3407 = vsel %vm3279, 0.0, %v3121
    %v3408 = vsel %vm3280, 0.0, %v3120
    %v3409 = vsel %vm3281, 0.0, %v3119
    %v3410 = vsel %vm3282, 0.0, %v3118
    %v3411 = vsel %vm3283, 0.0, %v3117
    %v3412 = vsel %vm3284, 0.0, %v3116
    %v3413 = vsel %vm3285, 0.0, %v3115
    %v3414 = vsel %vm3286, 0.0, %v3114
    %v3415 = vsel %vm3287, 0.0, %v3113
    %v3416 = vsel %vm3288, 0.0, %v3112
    %v3417 = vsel %vm3289, 0.0, %v3111
    %v3418 = vsel %vm3290, 0.0, %v3110
    %v3419 = vsel %vm3291, 0.0, %v3109
    %v3420 = vsel %vm3292, 0.0, %v3108
    %v3421 = vsel %vm3293, 0.0, %v3107
    %v3422 = vsel %vm3294, 0.0, %v3106
    %v3423 = vsel %vm3295, 0.0, %v3105
    %v3424 = vsel %vm3296, 0.0, %v3104
    %v3425 = vsel %vm3297, 0.0, %v3103
    %v3426 = vsel %vm3298, 0.0, %v3102
    %v3427 = vsel %vm3299, 0.0, %v3101
    %v3428 = vsel %vm3300, 0.0, %v3100
    %v3429 = vsel %vm3301, 0.0, %v3099
    %v3430 = vsel %vm3302, 0.0, %v3098
    %v3431 = vsel %vm3303, 0.0, %v3097
    %v3432 = vsel %vm3304, 0.0, %v3096
    %v3433 = vsel %vm3305, 0.0, %v3095
    %v3434 = vsel %vm3306, 0.0, %v3094
    %v3435 = vsel %vm3307, 0.0, %v3093
    %v3436 = vsel %vm3308, 0.0, %v3092
    %v3437 = vsel %vm3309, 0.0, %v3091
    %v3438 = vsel %vm3310, 0.0, %v3090
    %v3439 = vsel %vm3311, 0.0, %v3089
    %v3440 = vsel %vm3312, 0.0, %v3088
    %v3441 = vsel %vm3313, 0.0, %v3087
    %v3442 = vsel %vm3314, 0.0, %v3086
    %v3443 = vsel %vm3315, 0.0, %v3085
    %v3444 = vsel %vm3316, 0.0, %v3084
    %v3445 = vsel %vm3317, 0.0, %v3083
    %v3446 = vsel %vm3318, 0.0, %v3082
    %v3447 = vsel %vm3319, 0.0, %v3081
    %v3448 = vsel %vm3320, 0.0, %v3080
    %v3449 = vsel %vm3321, 0.0, %v3079
    %v3450 = vsel %vm3322, 0.0, %v3078
    %v3451 = vsel %vm3323, 0.0, %v3077
    %v3452 = vsel %vm3324, 0.0, %v3076
    %v3453 = vsel %vm3325, 0.0, %v3075
    %v3454 = vsel %vm3326, 0.0, %v3074
    %v3455 = vsel %vm3327, 0.0, %v3073
    %v3456 = vsel %vm3328, 0.0, %v3072
    %v3457 = vsel %vm3329, 0.0, %v3071
    %v3458 = vsel %vm3330, 0.0, %v3070
    %v3459 = vsel %vm3331, 0.0, %v3069
    %v3460 = vsel %vm3332, 0.0, %v3068
    %v3461 = vsel %vm3333, 0.0, %v3067
    %v3462 = vsel %vm3334, 0.0, %v3066
    %v3463 = vsel %vm3335, 0.0, %v3065
    %v3464 = vsel %vm3336, 0.0, %v3064
    %v3465 = vsel %vm3337, 0.0, %v3063
    %v3466 = vsel %vm3338, 0.0, %v3062
    %v3467 = vsel %vm3339, 0.0, %v3061
    %v3468 = vsel %vm3340, 0.0, %v3060
    %v3469 = vsel %vm3341, 0.0, %v3059
    %v3470 = vsel %vm3342, 0.0, %v3058
    %v3471 = vsel %vm3343, 0.0, %v3057
    %v3472 = vsel %vm3344, 0.0, %v3056
    %v3473 = vsel %vm3345, 0.0, %v3055
    %v3474 = vsel %vm3346, 0.0, %v3054
    %v3475 = vsel %vm3347, 0.0, %v3053
    %v3476 = vsel %vm3348, 0.0, %v3052
    %v3477 = vsel %vm3349, 0.0, %v3051
    %v3478 = vsel %vm3350, 0.0, %v3050
    %v3479 = vsel %vm3351, 0.0, %v3049
    %v3480 = vsel %vm3352, 0.0, %v3048
    %v3481 = vsel %vm3353, 0.0, %v3047
    %v3482 = vsel %vm3354, 0.0, %v3046
    %v3483 = vsel %vm3355, 0.0, %v3045
    %v3484 = vsel %vm3356, 0.0, %v3044
    %v3485 = vsel %vm3357, 0.0, %v3043
    %v3486 = vsel %vm3358, 0.0, %v3042
    %v3487 = vsel %vm3359, 0.0, %v3041
    %v3488 = vsel %vm3360, 0.0, %v3040
    %v3489 = vsel %vm3361, 0.0, %v3039
    %v3490 = vsel %vm3362, 0.0, %v3038
    %v3491 = vsel %vm3363, 0.0, %v3037
    %v3492 = vsel %vm3364, 0.0, %v3036
    %v3493 = vsel %vm3365, 0.0, %v3035
    %v3494 = vsel %vm3366, 0.0, %v3034
    %v3495 = vsel %vm3367, 0.0, %v3033
    %v3496 = vsel %vm3368, 0.0, %v3032
    %v3497 = vsel %vm3369, 0.0, %v3031
    %v3498 = vsel %vm3370, 0.0, %v3030
    %v3499 = vsel %vm3371, 0.0, %v3029
    %v3500 = vsel %vm3372, 0.0, %v3028
    %v3501 = vsel %vm3373, 0.0, %v3027
    %v3502 = vsel %vm3374, 0.0, %v3026
    %v3503 = vsel %vm3375, 0.0, %v3025
    %v3504 = vsel %vm3376, 0.0, %v3024
    %v3505 = vsel %vm3377, 0.0, %v3023
    %v3506 = vsel %vm3378, 0.0, %v3022
    %v3507 = vsel %vm3379, 0.0, %v3021
    %v3508 = vsel %vm3380, 0.0, %v3020
    %v3509 = vsel %vm3381, 0.0, %v3019
    %v3510 = vsel %vm3382, 0.0, %v3018
    %v3511 = vsel %vm3383, 0.0, %v3017
    %v3512 = vsel %vm3384, 0.0, %v3016
    %v3513 = vsel %vm3385, 0.0, %v3015
    %v3514 = vsel %vm3386, 0.0, %v3014
    %v3515 = vsel %vm3387, 0.0, %v3013
    %v3516 = vsel %vm3388, 0.0, %v3012
    %v3517 = vsel %vm3389, 0.0, %v3011
    %v3518 = vsel %vm3390, 0.0, %v3010
    %v3519 = vsel %vm3391, 0.0, %v3009
    %v3520 = vsel %vm3392, 0.0, %v3136
    %v3521 = vpack.c.bf16 %v3394, %v3393
    %v3522 = vpack.c.bf16 %v3396, %v3395
    %v3523 = vpack.c.bf16 %v3398, %v3397
    %v3524 = vpack.c.bf16 %v3400, %v3399
    %v3525 = vpack.c.bf16 %v3402, %v3401
    %v3526 = vpack.c.bf16 %v3404, %v3403
    %v3527 = vpack.c.bf16 %v3406, %v3405
    %v3528 = vpack.c.bf16 %v3408, %v3407
    %v3529 = vpack.c.bf16 %v3410, %v3409
    %v3530 = vpack.c.bf16 %v3412, %v3411
    %v3531 = vpack.c.bf16 %v3414, %v3413
    %v3532 = vpack.c.bf16 %v3416, %v3415
    %v3533 = vpack.c.bf16 %v3418, %v3417
    %v3534 = vpack.c.bf16 %v3420, %v3419
    %v3535 = vpack.c.bf16 %v3422, %v3421
    %v3536 = vpack.c.bf16 %v3424, %v3423
    %v3537 = vpack.c.bf16 %v3426, %v3425
    %v3538 = vpack.c.bf16 %v3428, %v3427
    %v3539 = vpack.c.bf16 %v3430, %v3429
    %v3540 = vpack.c.bf16 %v3432, %v3431
    %v3541 = vpack.c.bf16 %v3434, %v3433
    %v3542 = vpack.c.bf16 %v3436, %v3435
    %v3543 = vpack.c.bf16 %v3438, %v3437
    %v3544 = vpack.c.bf16 %v3440, %v3439
    %v3545 = vpack.c.bf16 %v3442, %v3441
    %v3546 = vpack.c.bf16 %v3444, %v3443
    %v3547 = vpack.c.bf16 %v3446, %v3445
    %v3548 = vpack.c.bf16 %v3448, %v3447
    %v3549 = vpack.c.bf16 %v3450, %v3449
    %v3550 = vpack.c.bf16 %v3452, %v3451
    %v3551 = vpack.c.bf16 %v3454, %v3453
    %v3552 = vpack.c.bf16 %v3456, %v3455
    %v3553 = vpack.c.bf16 %v3458, %v3457
    %v3554 = vpack.c.bf16 %v3460, %v3459
    %v3555 = vpack.c.bf16 %v3462, %v3461
    %v3556 = vpack.c.bf16 %v3464, %v3463
    %v3557 = vpack.c.bf16 %v3466, %v3465
    %v3558 = vpack.c.bf16 %v3468, %v3467
    %v3559 = vpack.c.bf16 %v3470, %v3469
    %v3560 = vpack.c.bf16 %v3472, %v3471
    %v3561 = vpack.c.bf16 %v3474, %v3473
    %v3562 = vpack.c.bf16 %v3476, %v3475
    %v3563 = vpack.c.bf16 %v3478, %v3477
    %v3564 = vpack.c.bf16 %v3480, %v3479
    %v3565 = vpack.c.bf16 %v3482, %v3481
    %v3566 = vpack.c.bf16 %v3484, %v3483
    %v3567 = vpack.c.bf16 %v3486, %v3485
    %v3568 = vpack.c.bf16 %v3488, %v3487
    %v3569 = vpack.c.bf16 %v3490, %v3489
    %v3570 = vpack.c.bf16 %v3492, %v3491
    %v3571 = vpack.c.bf16 %v3494, %v3493
    %v3572 = vpack.c.bf16 %v3496, %v3495
    %v3573 = vpack.c.bf16 %v3498, %v3497
    %v3574 = vpack.c.bf16 %v3500, %v3499
    %v3575 = vpack.c.bf16 %v3502, %v3501
    %v3576 = vpack.c.bf16 %v3504, %v3503
    %v3577 = vpack.c.bf16 %v3506, %v3505
    %v3578 = vpack.c.bf16 %v3508, %v3507
    %v3579 = vpack.c.bf16 %v3510, %v3509
    %v3580 = vpack.c.bf16 %v3512, %v3511
    %v3581 = vpack.c.bf16 %v3514, %v3513
    %v3582 = vpack.c.bf16 %v3516, %v3515
    %v3583 = vpack.c.bf16 %v3518, %v3517
    %v3584 = vpack.c.bf16 %v3520, %v3519
    %v3585 = vld [vmem:[#allocation5] sm:$0xff]
    %v3586 = vld [vmem:[#allocation5 + $0x8] sm:$0xff]
    %v3587 = vld [vmem:[#allocation5 + $0x10] sm:$0xff]
    %v3588 = vld [vmem:[#allocation5 + $0x18] sm:$0xff]
    %v3589 = vld [vmem:[#allocation5 + $0x20] sm:$0xff]
    %v3590 = vld [vmem:[#allocation5 + $0x28] sm:$0xff]
    %v3591 = vld [vmem:[#allocation5 + $0x30] sm:$0xff]
    %v3592 = vld [vmem:[#allocation5 + $0x38] sm:$0xff]
    %v3593 = vld [vmem:[#allocation5 + $0x40] sm:$0xff]
    %v3594 = vld [vmem:[#allocation5 + $0x48] sm:$0xff]
    %v3595 = vld [vmem:[#allocation5 + $0x50] sm:$0xff]
    %v3596 = vld [vmem:[#allocation5 + $0x58] sm:$0xff]
    %v3597 = vld [vmem:[#allocation5 + $0x60] sm:$0xff]
    %v3598 = vld [vmem:[#allocation5 + $0x68] sm:$0xff]
    %v3599 = vld [vmem:[#allocation5 + $0x70] sm:$0xff]
    %v3600 = vld [vmem:[#allocation5 + $0x78] sm:$0xff]
    %v3601 = vld [vmem:[#allocation5 + $0x80] sm:$0xff]
    %v3602 = vld [vmem:[#allocation5 + $0x88] sm:$0xff]
    %v3603 = vld [vmem:[#allocation5 + $0x90] sm:$0xff]
    %v3604 = vld [vmem:[#allocation5 + $0x98] sm:$0xff]
    %v3605 = vld [vmem:[#allocation5 + $0xa0] sm:$0xff]
    %v3606 = vld [vmem:[#allocation5 + $0xa8] sm:$0xff]
    %v3607 = vld [vmem:[#allocation5 + $0xb0] sm:$0xff]
    %v3608 = vld [vmem:[#allocation5 + $0xb8] sm:$0xff]
    %v3609 = vld [vmem:[#allocation5 + $0xc0] sm:$0xff]
    %v3610 = vld [vmem:[#allocation5 + $0xc8] sm:$0xff]
    %v3611 = vld [vmem:[#allocation5 + $0xd0] sm:$0xff]
    %v3612 = vld [vmem:[#allocation5 + $0xd8] sm:$0xff]
    %v3613 = vld [vmem:[#allocation5 + $0xe0] sm:$0xff]
    %v3614 = vld [vmem:[#allocation5 + $0xe8] sm:$0xff]
    %v3615 = vld [vmem:[#allocation5 + $0xf0] sm:$0xff]
    %v3616 = vld [vmem:[#allocation5 + $0xf8] sm:$0xff]
    %v3617 = vld [vmem:[#allocation5 + $0x100] sm:$0xff]
    %v3618 = vld [vmem:[#allocation5 + $0x108] sm:$0xff]
    %v3619 = vld [vmem:[#allocation5 + $0x110] sm:$0xff]
    %v3620 = vld [vmem:[#allocation5 + $0x118] sm:$0xff]
    %v3621 = vld [vmem:[#allocation5 + $0x120] sm:$0xff]
    %v3622 = vld [vmem:[#allocation5 + $0x128] sm:$0xff]
    %v3623 = vld [vmem:[#allocation5 + $0x130] sm:$0xff]
    %v3624 = vld [vmem:[#allocation5 + $0x138] sm:$0xff]
    %v3625 = vld [vmem:[#allocation5 + $0x140] sm:$0xff]
    %v3626 = vld [vmem:[#allocation5 + $0x148] sm:$0xff]
    %v3627 = vld [vmem:[#allocation5 + $0x150] sm:$0xff]
    %v3628 = vld [vmem:[#allocation5 + $0x158] sm:$0xff]
    %v3629 = vld [vmem:[#allocation5 + $0x160] sm:$0xff]
    %v3630 = vld [vmem:[#allocation5 + $0x168] sm:$0xff]
    %v3631 = vld [vmem:[#allocation5 + $0x170] sm:$0xff]
    %v3632 = vld [vmem:[#allocation5 + $0x178] sm:$0xff]
    %v3633 = vld [vmem:[%s2] sm:$0x3]
    %v3635 = vlaneseq
    %v3636 = vshrl.u32 %v3635, 7
    %v3637 = vsub.s32 0, %v3636
    %v3638 = vrot.slane %v3633, %v3637
    %v3639 = vlaneseq
    %v3640 = vshrl.u32 %v3639, 7
    %v3641 = vsub.s32 1, %v3640
    %v3642 = vrot.slane %v3633, %v3641
    %v3693 = vunpack.c.l.b16 %v3585
    %v3694 = vunpack.c.h.b16 %v3585
    %v3695 = vunpack.c.l.b16 %v3586
    %v3696 = vunpack.c.h.b16 %v3586
    %v3697 = vunpack.c.l.b16 %v3587
    %v3698 = vunpack.c.h.b16 %v3587
    %v3699 = vunpack.c.l.b16 %v3588
    %v3700 = vunpack.c.h.b16 %v3588
    %v3701 = vunpack.c.l.b16 %v3589
    %v3702 = vunpack.c.h.b16 %v3589
    %v3703 = vunpack.c.l.b16 %v3590
    %v3704 = vunpack.c.h.b16 %v3590
    %v3705 = vunpack.c.l.b16 %v3591
    %v3706 = vunpack.c.h.b16 %v3591
    %v3707 = vunpack.c.l.b16 %v3592
    %v3708 = vunpack.c.h.b16 %v3592
    %v3709 = vunpack.c.l.b16 %v3593
    %v3710 = vunpack.c.h.b16 %v3593
    %v3711 = vunpack.c.l.b16 %v3594
    %v3712 = vunpack.c.h.b16 %v3594
    %v3713 = vunpack.c.l.b16 %v3595
    %v3714 = vunpack.c.h.b16 %v3595
    %v3715 = vunpack.c.l.b16 %v3596
    %v3716 = vunpack.c.h.b16 %v3596
    %v3717 = vunpack.c.l.b16 %v3597
    %v3718 = vunpack.c.h.b16 %v3597
    %v3719 = vunpack.c.l.b16 %v3598
    %v3720 = vunpack.c.h.b16 %v3598
    %v3721 = vunpack.c.l.b16 %v3599
    %v3722 = vunpack.c.h.b16 %v3599
    %v3723 = vunpack.c.l.b16 %v3600
    %v3724 = vunpack.c.h.b16 %v3600
    %v3725 = vunpack.c.l.b16 %v3601
    %v3726 = vunpack.c.h.b16 %v3601
    %v3727 = vunpack.c.l.b16 %v3602
    %v3728 = vunpack.c.h.b16 %v3602
    %v3729 = vunpack.c.l.b16 %v3603
    %v3730 = vunpack.c.h.b16 %v3603
    %v3731 = vunpack.c.l.b16 %v3604
    %v3732 = vunpack.c.h.b16 %v3604
    %v3733 = vunpack.c.l.b16 %v3605
    %v3734 = vunpack.c.h.b16 %v3605
    %v3735 = vunpack.c.l.b16 %v3606
    %v3736 = vunpack.c.h.b16 %v3606
    %v3737 = vunpack.c.l.b16 %v3607
    %v3738 = vunpack.c.h.b16 %v3607
    %v3739 = vunpack.c.l.b16 %v3608
    %v3740 = vunpack.c.h.b16 %v3608
    %v3741 = vunpack.c.l.b16 %v3609
    %v3742 = vunpack.c.h.b16 %v3609
    %v3743 = vunpack.c.l.b16 %v3610
    %v3744 = vunpack.c.h.b16 %v3610
    %v3745 = vunpack.c.l.b16 %v3611
    %v3746 = vunpack.c.h.b16 %v3611
    %v3747 = vunpack.c.l.b16 %v3612
    %v3748 = vunpack.c.h.b16 %v3612
    %v3749 = vunpack.c.l.b16 %v3613
    %v3750 = vunpack.c.h.b16 %v3613
    %v3751 = vunpack.c.l.b16 %v3614
    %v3752 = vunpack.c.h.b16 %v3614
    %v3753 = vunpack.c.l.b16 %v3615
    %v3754 = vunpack.c.h.b16 %v3615
    %v3755 = vunpack.c.l.b16 %v3616
    %v3756 = vunpack.c.h.b16 %v3616
    %v3757 = vunpack.c.l.b16 %v3617
    %v3758 = vunpack.c.h.b16 %v3617
    %v3759 = vunpack.c.l.b16 %v3618
    %v3760 = vunpack.c.h.b16 %v3618
    %v3761 = vunpack.c.l.b16 %v3619
    %v3762 = vunpack.c.h.b16 %v3619
    %v3763 = vunpack.c.l.b16 %v3620
    %v3764 = vunpack.c.h.b16 %v3620
    %v3765 = vunpack.c.l.b16 %v3621
    %v3766 = vunpack.c.h.b16 %v3621
    %v3767 = vunpack.c.l.b16 %v3622
    %v3768 = vunpack.c.h.b16 %v3622
    %v3769 = vunpack.c.l.b16 %v3623
    %v3770 = vunpack.c.h.b16 %v3623
    %v3771 = vunpack.c.l.b16 %v3624
    %v3772 = vunpack.c.h.b16 %v3624
    %v3773 = vunpack.c.l.b16 %v3625
    %v3774 = vunpack.c.h.b16 %v3625
    %v3775 = vunpack.c.l.b16 %v3626
    %v3776 = vunpack.c.h.b16 %v3626
    %v3777 = vunpack.c.l.b16 %v3627
    %v3778 = vunpack.c.h.b16 %v3627
    %v3779 = vunpack.c.l.b16 %v3628
    %v3780 = vunpack.c.h.b16 %v3628
    %v3781 = vunpack.c.l.b16 %v3629
    %v3782 = vunpack.c.h.b16 %v3629
    %v3783 = vunpack.c.l.b16 %v3630
    %v3784 = vunpack.c.h.b16 %v3630
    %v3785 = vunpack.c.l.b16 %v3631
    %v3786 = vunpack.c.h.b16 %v3631
    %v3787 = vunpack.c.l.b16 %v3632
    %v3788 = vunpack.c.h.b16 %v3632
    %v3789 = vpack.c.b16 %v3695, %v3693
    %v3790 = vpack.c.b16 %v3696, %v3694
    %v3791 = vpack.c.b16 %v3699, %v3697
    %v3792 = vpack.c.b16 %v3700, %v3698
    %v3793 = vpack.c.b16 %v3703, %v3701
    %v3794 = vpack.c.b16 %v3704, %v3702
    %v3795 = vpack.c.b16 %v3707, %v3705
    %v3796 = vpack.c.b16 %v3708, %v3706
    %v3797 = vpack.c.b16 %v3711, %v3709
    %v3798 = vpack.c.b16 %v3712, %v3710
    %v3799 = vpack.c.b16 %v3715, %v3713
    %v3800 = vpack.c.b16 %v3716, %v3714
    %v3801 = vpack.c.b16 %v3719, %v3717
    %v3802 = vpack.c.b16 %v3720, %v3718
    %v3803 = vpack.c.b16 %v3723, %v3721
    %v3804 = vpack.c.b16 %v3724, %v3722
    %v3805 = vpack.c.b16 %v3727, %v3725
    %v3806 = vpack.c.b16 %v3728, %v3726
    %v3807 = vpack.c.b16 %v3731, %v3729
    %v3808 = vpack.c.b16 %v3732, %v3730
    %v3809 = vpack.c.b16 %v3735, %v3733
    %v3810 = vpack.c.b16 %v3736, %v3734
    %v3811 = vpack.c.b16 %v3739, %v3737
    %v3812 = vpack.c.b16 %v3740, %v3738
    %v3813 = vpack.c.b16 %v3743, %v3741
    %v3814 = vpack.c.b16 %v3744, %v3742
    %v3815 = vpack.c.b16 %v3747, %v3745
    %v3816 = vpack.c.b16 %v3748, %v3746
    %v3817 = vpack.c.b16 %v3751, %v3749
    %v3818 = vpack.c.b16 %v3752, %v3750
    %v3819 = vpack.c.b16 %v3755, %v3753
    %v3820 = vpack.c.b16 %v3756, %v3754
    %v3821 = vpack.c.b16 %v3759, %v3757
    %v3822 = vpack.c.b16 %v3760, %v3758
    %v3823 = vpack.c.b16 %v3763, %v3761
    %v3824 = vpack.c.b16 %v3764, %v3762
    %v3825 = vpack.c.b16 %v3767, %v3765
    %v3826 = vpack.c.b16 %v3768, %v3766
    %v3827 = vpack.c.b16 %v3771, %v3769
    %v3828 = vpack.c.b16 %v3772, %v3770
    %v3829 = vpack.c.b16 %v3775, %v3773
    %v3830 = vpack.c.b16 %v3776, %v3774
    %v3831 = vpack.c.b16 %v3779, %v3777
    %v3832 = vpack.c.b16 %v3780, %v3778
    %v3833 = vpack.c.b16 %v3783, %v3781
    %v3834 = vpack.c.b16 %v3784, %v3782
    %v3835 = vpack.c.b16 %v3787, %v3785
    %v3836 = vpack.c.b16 %v3788, %v3786
    %3885 = vmatprep.subr.bf16.mxu0 %v3804
    %3886 = vmatpush1.bf16.msra.mxu0 %v3803
    %3887 = vmatprep.subr.bf16.mxu0 %v3802
    %3888 = vmatpush1.bf16.msra.mxu0 %v3801
    %3889 = vmatprep.subr.bf16.mxu0 %v3800
    %3890 = vmatpush1.bf16.msra.mxu0 %v3799
    %3891 = vmatprep.subr.bf16.mxu0 %v3798
    %3892 = vmatpush1.bf16.msra.mxu0 %v3797
    %3893 = vmatprep.subr.bf16.mxu0 %v3796
    %3894 = vmatpush1.bf16.msra.mxu0 %v3795
    %3895 = vmatprep.subr.bf16.mxu0 %v3794
    %3896 = vmatpush1.bf16.msra.mxu0 %v3793
    %3897 = vmatprep.subr.bf16.mxu0 %v3792
    %3898 = vmatpush1.bf16.msra.mxu0 %v3791
    %3899 = vmatprep.subr.bf16.mxu0 %v3790
    %3900 = vmatpush1.bf16.msra.mxu0 %v3789
    %3901 = vmatprep.subr.bf16.mxu0 %v3820
    %3902 = vmatpush2.bf16.msra.mxu0 %v3819
    %3903 = vmatprep.subr.bf16.mxu0 %v3818
    %3904 = vmatpush2.bf16.msra.mxu0 %v3817
    %3905 = vmatprep.subr.bf16.mxu0 %v3816
    %3906 = vmatpush2.bf16.msra.mxu0 %v3815
    %3907 = vmatprep.subr.bf16.mxu0 %v3814
    %3908 = vmatpush2.bf16.msra.mxu0 %v3813
    %3909 = vmatprep.subr.bf16.mxu0 %v3812
    %3910 = vmatpush2.bf16.msra.mxu0 %v3811
    %3911 = vmatprep.subr.bf16.mxu0 %v3810
    %3912 = vmatpush2.bf16.msra.mxu0 %v3809
    %3913 = vmatprep.subr.bf16.mxu0 %v3808
    %3914 = vmatpush2.bf16.msra.mxu0 %v3807
    %3915 = vmatprep.subr.bf16.mxu0 %v3806
    %3916 = vmatpush2.bf16.msra.mxu0 %v3805
    %3917 = vmatprep.mubr.bf16.mxu0 %v2816
    %3918 = vmatmul.mubr.bf16.gmra.mxu0 %v2752
    %v3919 = vpop.f32.mrf.mxu0
    %v3920 = vadd.f32 %v3638, %v3919
    %v3921 = vpop.f32.mrf.mxu0
    %v3922 = vadd.f32 %v3642, %v3921
    %v3923 = vpop.f32.mrf.mxu0
    %v3924 = vadd.f32 %v3638, %v3923
    %v3925 = vpop.f32.mrf.mxu0
    %v3926 = vadd.f32 %v3642, %v3925
    %3927 = vmatprep.mubr.bf16.mxu0 %v2817
    %3928 = vmatmul.mubr.bf16.gmra.mxu0 %v2753
    %v3929 = vpop.f32.mrf.mxu0
    %v3930 = vadd.f32 %v3638, %v3929
    %v3931 = vpop.f32.mrf.mxu0
    %v3932 = vadd.f32 %v3642, %v3931
    %v3933 = vpop.f32.mrf.mxu0
    %v3934 = vadd.f32 %v3638, %v3933
    %v3935 = vpop.f32.mrf.mxu0
    %v3936 = vadd.f32 %v3642, %v3935
    %3937 = vmatprep.mubr.bf16.mxu0 %v2818
    %3938 = vmatmul.mubr.bf16.gmra.mxu0 %v2754
    %v3939 = vpop.f32.mrf.mxu0
    %v3940 = vadd.f32 %v3638, %v3939
    %v3941 = vpop.f32.mrf.mxu0
    %v3942 = vadd.f32 %v3642, %v3941
    %v3943 = vpop.f32.mrf.mxu0
    %v3944 = vadd.f32 %v3638, %v3943
    %v3945 = vpop.f32.mrf.mxu0
    %v3946 = vadd.f32 %v3642, %v3945
    %3947 = vmatprep.mubr.bf16.mxu0 %v2819
    %3948 = vmatmul.mubr.bf16.gmra.mxu0 %v2755
    %v3949 = vpop.f32.mrf.mxu0
    %v3950 = vadd.f32 %v3638, %v3949
    %v3951 = vpop.f32.mrf.mxu0
    %v3952 = vadd.f32 %v3642, %v3951
    %v3953 = vpop.f32.mrf.mxu0
    %v3954 = vadd.f32 %v3638, %v3953
    %v3955 = vpop.f32.mrf.mxu0
    %v3956 = vadd.f32 %v3642, %v3955
    %3957 = vmatprep.mubr.bf16.mxu0 %v2820
    %3958 = vmatmul.mubr.bf16.gmra.mxu0 %v2756
    %v3959 = vpop.f32.mrf.mxu0
    %v3960 = vadd.f32 %v3638, %v3959
    %v3961 = vpop.f32.mrf.mxu0
    %v3962 = vadd.f32 %v3642, %v3961
    %v3963 = vpop.f32.mrf.mxu0
    %v3964 = vadd.f32 %v3638, %v3963
    %v3965 = vpop.f32.mrf.mxu0
    %v3966 = vadd.f32 %v3642, %v3965
    %3967 = vmatprep.mubr.bf16.mxu0 %v2821
    %3968 = vmatmul.mubr.bf16.gmra.mxu0 %v2757
    %v3969 = vpop.f32.mrf.mxu0
    %v3970 = vadd.f32 %v3638, %v3969
    %v3971 = vpop.f32.mrf.mxu0
    %v3972 = vadd.f32 %v3642, %v3971
    %v3973 = vpop.f32.mrf.mxu0
    %v3974 = vadd.f32 %v3638, %v3973
    %v3975 = vpop.f32.mrf.mxu0
    %v3976 = vadd.f32 %v3642, %v3975
    %3977 = vmatprep.mubr.bf16.mxu0 %v2822
    %3978 = vmatmul.mubr.bf16.gmra.mxu0 %v2758
    %v3979 = vpop.f32.mrf.mxu0
    %v3980 = vadd.f32 %v3638, %v3979
    %v3981 = vpop.f32.mrf.mxu0
    %v3982 = vadd.f32 %v3642, %v3981
    %v3983 = vpop.f32.mrf.mxu0
    %v3984 = vadd.f32 %v3638, %v3983
    %v3985 = vpop.f32.mrf.mxu0
    %v3986 = vadd.f32 %v3642, %v3985
    %3987 = vmatprep.mubr.bf16.mxu0 %v2823
    %3988 = vmatmul.mubr.bf16.gmra.mxu0 %v2759
    %v3989 = vpop.f32.mrf.mxu0
    %v3990 = vadd.f32 %v3638, %v3989
    %v3991 = vpop.f32.mrf.mxu0
    %v3992 = vadd.f32 %v3642, %v3991
    %v3993 = vpop.f32.mrf.mxu0
    %v3994 = vadd.f32 %v3638, %v3993
    %v3995 = vpop.f32.mrf.mxu0
    %v3996 = vadd.f32 %v3642, %v3995
    %3997 = vmatprep.mubr.bf16.mxu0 %v2824
    %3998 = vmatmul.mubr.bf16.gmra.mxu0 %v2760
    %v3999 = vpop.f32.mrf.mxu0
    %v4000 = vadd.f32 %v3638, %v3999
    %v4001 = vpop.f32.mrf.mxu0
    %v4002 = vadd.f32 %v3642, %v4001
    %v4003 = vpop.f32.mrf.mxu0
    %v4004 = vadd.f32 %v3638, %v4003
    %v4005 = vpop.f32.mrf.mxu0
    %v4006 = vadd.f32 %v3642, %v4005
    %4007 = vmatprep.mubr.bf16.mxu0 %v2825
    %4008 = vmatmul.mubr.bf16.gmra.mxu0 %v2761
    %v4009 = vpop.f32.mrf.mxu0
    %v4010 = vadd.f32 %v3638, %v4009
    %v4011 = vpop.f32.mrf.mxu0
    %v4012 = vadd.f32 %v3642, %v4011
    %v4013 = vpop.f32.mrf.mxu0
    %v4014 = vadd.f32 %v3638, %v4013
    %v4015 = vpop.f32.mrf.mxu0
    %v4016 = vadd.f32 %v3642, %v4015
    %4017 = vmatprep.mubr.bf16.mxu0 %v2826
    %4018 = vmatmul.mubr.bf16.gmra.mxu0 %v2762
    %v4019 = vpop.f32.mrf.mxu0
    %v4020 = vadd.f32 %v3638, %v4019
    %v4021 = vpop.f32.mrf.mxu0
    %v4022 = vadd.f32 %v3642, %v4021
    %v4023 = vpop.f32.mrf.mxu0
    %v4024 = vadd.f32 %v3638, %v4023
    %v4025 = vpop.f32.mrf.mxu0
    %v4026 = vadd.f32 %v3642, %v4025
    %4027 = vmatprep.mubr.bf16.mxu0 %v2827
    %4028 = vmatmul.mubr.bf16.gmra.mxu0 %v2763
    %v4029 = vpop.f32.mrf.mxu0
    %v4030 = vadd.f32 %v3638, %v4029
    %v4031 = vpop.f32.mrf.mxu0
    %v4032 = vadd.f32 %v3642, %v4031
    %v4033 = vpop.f32.mrf.mxu0
    %v4034 = vadd.f32 %v3638, %v4033
    %v4035 = vpop.f32.mrf.mxu0
    %v4036 = vadd.f32 %v3642, %v4035
    %4037 = vmatprep.mubr.bf16.mxu0 %v2828
    %4038 = vmatmul.mubr.bf16.gmra.mxu0 %v2764
    %v4039 = vpop.f32.mrf.mxu0
    %v4040 = vadd.f32 %v3638, %v4039
    %v4041 = vpop.f32.mrf.mxu0
    %v4042 = vadd.f32 %v3642, %v4041
    %v4043 = vpop.f32.mrf.mxu0
    %v4044 = vadd.f32 %v3638, %v4043
    %v4045 = vpop.f32.mrf.mxu0
    %v4046 = vadd.f32 %v3642, %v4045
    %4047 = vmatprep.mubr.bf16.mxu0 %v2829
    %4048 = vmatmul.mubr.bf16.gmra.mxu0 %v2765
    %v4049 = vpop.f32.mrf.mxu0
    %v4050 = vadd.f32 %v3638, %v4049
    %v4051 = vpop.f32.mrf.mxu0
    %v4052 = vadd.f32 %v3642, %v4051
    %v4053 = vpop.f32.mrf.mxu0
    %v4054 = vadd.f32 %v3638, %v4053
    %v4055 = vpop.f32.mrf.mxu0
    %v4056 = vadd.f32 %v3642, %v4055
    %4057 = vmatprep.mubr.bf16.mxu0 %v2830
    %4058 = vmatmul.mubr.bf16.gmra.mxu0 %v2766
    %v4059 = vpop.f32.mrf.mxu0
    %v4060 = vadd.f32 %v3638, %v4059
    %v4061 = vpop.f32.mrf.mxu0
    %v4062 = vadd.f32 %v3642, %v4061
    %v4063 = vpop.f32.mrf.mxu0
    %v4064 = vadd.f32 %v3638, %v4063
    %v4065 = vpop.f32.mrf.mxu0
    %v4066 = vadd.f32 %v3642, %v4065
    %4067 = vmatprep.mubr.bf16.mxu0 %v2831
    %4068 = vmatmul.mubr.bf16.gmra.mxu0 %v2767
    %v4069 = vpop.f32.mrf.mxu0
    %v4070 = vadd.f32 %v3638, %v4069
    %v4071 = vpop.f32.mrf.mxu0
    %v4072 = vadd.f32 %v3642, %v4071
    %v4073 = vpop.f32.mrf.mxu0
    %v4074 = vadd.f32 %v3638, %v4073
    %v4075 = vpop.f32.mrf.mxu0
    %v4076 = vadd.f32 %v3642, %v4075
    %4077 = vmatprep.mubr.bf16.mxu0 %v2832
    %4078 = vmatmul.mubr.bf16.gmra.mxu0 %v2768
    %v4079 = vpop.f32.mrf.mxu0
    %v4080 = vadd.f32 %v3638, %v4079
    %v4081 = vpop.f32.mrf.mxu0
    %v4082 = vadd.f32 %v3642, %v4081
    %v4083 = vpop.f32.mrf.mxu0
    %v4084 = vadd.f32 %v3638, %v4083
    %v4085 = vpop.f32.mrf.mxu0
    %v4086 = vadd.f32 %v3642, %v4085
    %4087 = vmatprep.mubr.bf16.mxu0 %v2833
    %4088 = vmatmul.mubr.bf16.gmra.mxu0 %v2769
    %v4089 = vpop.f32.mrf.mxu0
    %v4090 = vadd.f32 %v3638, %v4089
    %v4091 = vpop.f32.mrf.mxu0
    %v4092 = vadd.f32 %v3642, %v4091
    %v4093 = vpop.f32.mrf.mxu0
    %v4094 = vadd.f32 %v3638, %v4093
    %v4095 = vpop.f32.mrf.mxu0
    %v4096 = vadd.f32 %v3642, %v4095
    %4097 = vmatprep.mubr.bf16.mxu0 %v2834
    %4098 = vmatmul.mubr.bf16.gmra.mxu0 %v2770
    %v4099 = vpop.f32.mrf.mxu0
    %v4100 = vadd.f32 %v3638, %v4099
    %v4101 = vpop.f32.mrf.mxu0
    %v4102 = vadd.f32 %v3642, %v4101
    %v4103 = vpop.f32.mrf.mxu0
    %v4104 = vadd.f32 %v3638, %v4103
    %v4105 = vpop.f32.mrf.mxu0
    %v4106 = vadd.f32 %v3642, %v4105
    %4107 = vmatprep.mubr.bf16.mxu0 %v2835
    %4108 = vmatmul.mubr.bf16.gmra.mxu0 %v2771
    %v4109 = vpop.f32.mrf.mxu0
    %v4110 = vadd.f32 %v3638, %v4109
    %v4111 = vpop.f32.mrf.mxu0
    %v4112 = vadd.f32 %v3642, %v4111
    %v4113 = vpop.f32.mrf.mxu0
    %v4114 = vadd.f32 %v3638, %v4113
    %v4115 = vpop.f32.mrf.mxu0
    %v4116 = vadd.f32 %v3642, %v4115
    %4117 = vmatprep.mubr.bf16.mxu0 %v2836
    %4118 = vmatmul.mubr.bf16.gmra.mxu0 %v2772
    %v4119 = vpop.f32.mrf.mxu0
    %v4120 = vadd.f32 %v3638, %v4119
    %v4121 = vpop.f32.mrf.mxu0
    %v4122 = vadd.f32 %v3642, %v4121
    %v4123 = vpop.f32.mrf.mxu0
    %v4124 = vadd.f32 %v3638, %v4123
    %v4125 = vpop.f32.mrf.mxu0
    %v4126 = vadd.f32 %v3642, %v4125
    %4127 = vmatprep.mubr.bf16.mxu0 %v2837
    %4128 = vmatmul.mubr.bf16.gmra.mxu0 %v2773
    %v4129 = vpop.f32.mrf.mxu0
    %v4130 = vadd.f32 %v3638, %v4129
    %v4131 = vpop.f32.mrf.mxu0
    %v4132 = vadd.f32 %v3642, %v4131
    %v4133 = vpop.f32.mrf.mxu0
    %v4134 = vadd.f32 %v3638, %v4133
    %v4135 = vpop.f32.mrf.mxu0
    %v4136 = vadd.f32 %v3642, %v4135
    %4137 = vmatprep.mubr.bf16.mxu0 %v2838
    %4138 = vmatmul.mubr.bf16.gmra.mxu0 %v2774
    %v4139 = vpop.f32.mrf.mxu0
    %v4140 = vadd.f32 %v3638, %v4139
    %v4141 = vpop.f32.mrf.mxu0
    %v4142 = vadd.f32 %v3642, %v4141
    %v4143 = vpop.f32.mrf.mxu0
    %v4144 = vadd.f32 %v3638, %v4143
    %v4145 = vpop.f32.mrf.mxu0
    %v4146 = vadd.f32 %v3642, %v4145
    %4147 = vmatprep.mubr.bf16.mxu0 %v2839
    %4148 = vmatmul.mubr.bf16.gmra.mxu0 %v2775
    %v4149 = vpop.f32.mrf.mxu0
    %v4150 = vadd.f32 %v3638, %v4149
    %v4151 = vpop.f32.mrf.mxu0
    %v4152 = vadd.f32 %v3642, %v4151
    %v4153 = vpop.f32.mrf.mxu0
    %v4154 = vadd.f32 %v3638, %v4153
    %v4155 = vpop.f32.mrf.mxu0
    %v4156 = vadd.f32 %v3642, %v4155
    %4157 = vmatprep.mubr.bf16.mxu0 %v2840
    %4158 = vmatmul.mubr.bf16.gmra.mxu0 %v2776
    %v4159 = vpop.f32.mrf.mxu0
    %v4160 = vadd.f32 %v3638, %v4159
    %v4161 = vpop.f32.mrf.mxu0
    %v4162 = vadd.f32 %v3642, %v4161
    %v4163 = vpop.f32.mrf.mxu0
    %v4164 = vadd.f32 %v3638, %v4163
    %v4165 = vpop.f32.mrf.mxu0
    %v4166 = vadd.f32 %v3642, %v4165
    %4167 = vmatprep.mubr.bf16.mxu0 %v2841
    %4168 = vmatmul.mubr.bf16.gmra.mxu0 %v2777
    %v4169 = vpop.f32.mrf.mxu0
    %v4170 = vadd.f32 %v3638, %v4169
    %v4171 = vpop.f32.mrf.mxu0
    %v4172 = vadd.f32 %v3642, %v4171
    %v4173 = vpop.f32.mrf.mxu0
    %v4174 = vadd.f32 %v3638, %v4173
    %v4175 = vpop.f32.mrf.mxu0
    %v4176 = vadd.f32 %v3642, %v4175
    %4177 = vmatprep.mubr.bf16.mxu0 %v2842
    %4178 = vmatmul.mubr.bf16.gmra.mxu0 %v2778
    %v4179 = vpop.f32.mrf.mxu0
    %v4180 = vadd.f32 %v3638, %v4179
    %v4181 = vpop.f32.mrf.mxu0
    %v4182 = vadd.f32 %v3642, %v4181
    %v4183 = vpop.f32.mrf.mxu0
    %v4184 = vadd.f32 %v3638, %v4183
    %v4185 = vpop.f32.mrf.mxu0
    %v4186 = vadd.f32 %v3642, %v4185
    %4187 = vmatprep.mubr.bf16.mxu0 %v2843
    %4188 = vmatmul.mubr.bf16.gmra.mxu0 %v2779
    %v4189 = vpop.f32.mrf.mxu0
    %v4190 = vadd.f32 %v3638, %v4189
    %v4191 = vpop.f32.mrf.mxu0
    %v4192 = vadd.f32 %v3642, %v4191
    %v4193 = vpop.f32.mrf.mxu0
    %v4194 = vadd.f32 %v3638, %v4193
    %v4195 = vpop.f32.mrf.mxu0
    %v4196 = vadd.f32 %v3642, %v4195
    %4197 = vmatprep.mubr.bf16.mxu0 %v2844
    %4198 = vmatmul.mubr.bf16.gmra.mxu0 %v2780
    %v4199 = vpop.f32.mrf.mxu0
    %v4200 = vadd.f32 %v3638, %v4199
    %v4201 = vpop.f32.mrf.mxu0
    %v4202 = vadd.f32 %v3642, %v4201
    %v4203 = vpop.f32.mrf.mxu0
    %v4204 = vadd.f32 %v3638, %v4203
    %v4205 = vpop.f32.mrf.mxu0
    %v4206 = vadd.f32 %v3642, %v4205
    %4207 = vmatprep.mubr.bf16.mxu0 %v2845
    %4208 = vmatmul.mubr.bf16.gmra.mxu0 %v2781
    %v4209 = vpop.f32.mrf.mxu0
    %v4210 = vadd.f32 %v3638, %v4209
    %v4211 = vpop.f32.mrf.mxu0
    %v4212 = vadd.f32 %v3642, %v4211
    %v4213 = vpop.f32.mrf.mxu0
    %v4214 = vadd.f32 %v3638, %v4213
    %v4215 = vpop.f32.mrf.mxu0
    %v4216 = vadd.f32 %v3642, %v4215
    %4217 = vmatprep.mubr.bf16.mxu0 %v2846
    %4218 = vmatmul.mubr.bf16.gmra.mxu0 %v2782
    %v4219 = vpop.f32.mrf.mxu0
    %v4220 = vadd.f32 %v3638, %v4219
    %v4221 = vpop.f32.mrf.mxu0
    %v4222 = vadd.f32 %v3642, %v4221
    %v4223 = vpop.f32.mrf.mxu0
    %v4224 = vadd.f32 %v3638, %v4223
    %v4225 = vpop.f32.mrf.mxu0
    %v4226 = vadd.f32 %v3642, %v4225
    %4227 = vmatprep.mubr.bf16.mxu0 %v2847
    %4228 = vmatmul.mubr.bf16.gmra.mxu0 %v2783
    %v4229 = vpop.f32.mrf.mxu0
    %v4230 = vadd.f32 %v3638, %v4229
    %v4231 = vpop.f32.mrf.mxu0
    %v4232 = vadd.f32 %v3642, %v4231
    %v4233 = vpop.f32.mrf.mxu0
    %v4234 = vadd.f32 %v3638, %v4233
    %v4235 = vpop.f32.mrf.mxu0
    %v4236 = vadd.f32 %v3642, %v4235
    %4237 = vmatprep.mubr.bf16.mxu0 %v2848
    %4238 = vmatmul.mubr.bf16.gmra.mxu0 %v2784
    %v4239 = vpop.f32.mrf.mxu0
    %v4240 = vadd.f32 %v3638, %v4239
    %v4241 = vpop.f32.mrf.mxu0
    %v4242 = vadd.f32 %v3642, %v4241
    %v4243 = vpop.f32.mrf.mxu0
    %v4244 = vadd.f32 %v3638, %v4243
    %v4245 = vpop.f32.mrf.mxu0
    %v4246 = vadd.f32 %v3642, %v4245
    %4247 = vmatprep.mubr.bf16.mxu0 %v2849
    %4248 = vmatmul.mubr.bf16.gmra.mxu0 %v2785
    %v4249 = vpop.f32.mrf.mxu0
    %v4250 = vadd.f32 %v3638, %v4249
    %v4251 = vpop.f32.mrf.mxu0
    %v4252 = vadd.f32 %v3642, %v4251
    %v4253 = vpop.f32.mrf.mxu0
    %v4254 = vadd.f32 %v3638, %v4253
    %v4255 = vpop.f32.mrf.mxu0
    %v4256 = vadd.f32 %v3642, %v4255
    %4257 = vmatprep.mubr.bf16.mxu0 %v2850
    %4258 = vmatmul.mubr.bf16.gmra.mxu0 %v2786
    %v4259 = vpop.f32.mrf.mxu0
    %v4260 = vadd.f32 %v3638, %v4259
    %v4261 = vpop.f32.mrf.mxu0
    %v4262 = vadd.f32 %v3642, %v4261
    %v4263 = vpop.f32.mrf.mxu0
    %v4264 = vadd.f32 %v3638, %v4263
    %v4265 = vpop.f32.mrf.mxu0
    %v4266 = vadd.f32 %v3642, %v4265
    %4267 = vmatprep.mubr.bf16.mxu0 %v2851
    %4268 = vmatmul.mubr.bf16.gmra.mxu0 %v2787
    %v4269 = vpop.f32.mrf.mxu0
    %v4270 = vadd.f32 %v3638, %v4269
    %v4271 = vpop.f32.mrf.mxu0
    %v4272 = vadd.f32 %v3642, %v4271
    %v4273 = vpop.f32.mrf.mxu0
    %v4274 = vadd.f32 %v3638, %v4273
    %v4275 = vpop.f32.mrf.mxu0
    %v4276 = vadd.f32 %v3642, %v4275
    %4277 = vmatprep.mubr.bf16.mxu0 %v2852
    %4278 = vmatmul.mubr.bf16.gmra.mxu0 %v2788
    %v4279 = vpop.f32.mrf.mxu0
    %v4280 = vadd.f32 %v3638, %v4279
    %v4281 = vpop.f32.mrf.mxu0
    %v4282 = vadd.f32 %v3642, %v4281
    %v4283 = vpop.f32.mrf.mxu0
    %v4284 = vadd.f32 %v3638, %v4283
    %v4285 = vpop.f32.mrf.mxu0
    %v4286 = vadd.f32 %v3642, %v4285
    %4287 = vmatprep.mubr.bf16.mxu0 %v2853
    %4288 = vmatmul.mubr.bf16.gmra.mxu0 %v2789
    %v4289 = vpop.f32.mrf.mxu0
    %v4290 = vadd.f32 %v3638, %v4289
    %v4291 = vpop.f32.mrf.mxu0
    %v4292 = vadd.f32 %v3642, %v4291
    %v4293 = vpop.f32.mrf.mxu0
    %v4294 = vadd.f32 %v3638, %v4293
    %v4295 = vpop.f32.mrf.mxu0
    %v4296 = vadd.f32 %v3642, %v4295
    %4297 = vmatprep.mubr.bf16.mxu0 %v2854
    %4298 = vmatmul.mubr.bf16.gmra.mxu0 %v2790
    %v4299 = vpop.f32.mrf.mxu0
    %v4300 = vadd.f32 %v3638, %v4299
    %v4301 = vpop.f32.mrf.mxu0
    %v4302 = vadd.f32 %v3642, %v4301
    %v4303 = vpop.f32.mrf.mxu0
    %v4304 = vadd.f32 %v3638, %v4303
    %v4305 = vpop.f32.mrf.mxu0
    %v4306 = vadd.f32 %v3642, %v4305
    %4307 = vmatprep.mubr.bf16.mxu0 %v2855
    %4308 = vmatmul.mubr.bf16.gmra.mxu0 %v2791
    %v4309 = vpop.f32.mrf.mxu0
    %v4310 = vadd.f32 %v3638, %v4309
    %v4311 = vpop.f32.mrf.mxu0
    %v4312 = vadd.f32 %v3642, %v4311
    %v4313 = vpop.f32.mrf.mxu0
    %v4314 = vadd.f32 %v3638, %v4313
    %v4315 = vpop.f32.mrf.mxu0
    %v4316 = vadd.f32 %v3642, %v4315
    %4317 = vmatprep.mubr.bf16.mxu0 %v2856
    %4318 = vmatmul.mubr.bf16.gmra.mxu0 %v2792
    %v4319 = vpop.f32.mrf.mxu0
    %v4320 = vadd.f32 %v3638, %v4319
    %v4321 = vpop.f32.mrf.mxu0
    %v4322 = vadd.f32 %v3642, %v4321
    %v4323 = vpop.f32.mrf.mxu0
    %v4324 = vadd.f32 %v3638, %v4323
    %v4325 = vpop.f32.mrf.mxu0
    %v4326 = vadd.f32 %v3642, %v4325
    %4327 = vmatprep.mubr.bf16.mxu0 %v2857
    %4328 = vmatmul.mubr.bf16.gmra.mxu0 %v2793
    %v4329 = vpop.f32.mrf.mxu0
    %v4330 = vadd.f32 %v3638, %v4329
    %v4331 = vpop.f32.mrf.mxu0
    %v4332 = vadd.f32 %v3642, %v4331
    %v4333 = vpop.f32.mrf.mxu0
    %v4334 = vadd.f32 %v3638, %v4333
    %v4335 = vpop.f32.mrf.mxu0
    %v4336 = vadd.f32 %v3642, %v4335
    %4337 = vmatprep.mubr.bf16.mxu0 %v2858
    %4338 = vmatmul.mubr.bf16.gmra.mxu0 %v2794
    %v4339 = vpop.f32.mrf.mxu0
    %v4340 = vadd.f32 %v3638, %v4339
    %v4341 = vpop.f32.mrf.mxu0
    %v4342 = vadd.f32 %v3642, %v4341
    %v4343 = vpop.f32.mrf.mxu0
    %v4344 = vadd.f32 %v3638, %v4343
    %v4345 = vpop.f32.mrf.mxu0
    %v4346 = vadd.f32 %v3642, %v4345
    %4347 = vmatprep.mubr.bf16.mxu0 %v2859
    %4348 = vmatmul.mubr.bf16.gmra.mxu0 %v2795
    %v4349 = vpop.f32.mrf.mxu0
    %v4350 = vadd.f32 %v3638, %v4349
    %v4351 = vpop.f32.mrf.mxu0
    %v4352 = vadd.f32 %v3642, %v4351
    %v4353 = vpop.f32.mrf.mxu0
    %v4354 = vadd.f32 %v3638, %v4353
    %v4355 = vpop.f32.mrf.mxu0
    %v4356 = vadd.f32 %v3642, %v4355
    %4357 = vmatprep.mubr.bf16.mxu0 %v2860
    %4358 = vmatmul.mubr.bf16.gmra.mxu0 %v2796
    %v4359 = vpop.f32.mrf.mxu0
    %v4360 = vadd.f32 %v3638, %v4359
    %v4361 = vpop.f32.mrf.mxu0
    %v4362 = vadd.f32 %v3642, %v4361
    %v4363 = vpop.f32.mrf.mxu0
    %v4364 = vadd.f32 %v3638, %v4363
    %v4365 = vpop.f32.mrf.mxu0
    %v4366 = vadd.f32 %v3642, %v4365
    %4367 = vmatprep.mubr.bf16.mxu0 %v2861
    %4368 = vmatmul.mubr.bf16.gmra.mxu0 %v2797
    %v4369 = vpop.f32.mrf.mxu0
    %v4370 = vadd.f32 %v3638, %v4369
    %v4371 = vpop.f32.mrf.mxu0
    %v4372 = vadd.f32 %v3642, %v4371
    %v4373 = vpop.f32.mrf.mxu0
    %v4374 = vadd.f32 %v3638, %v4373
    %v4375 = vpop.f32.mrf.mxu0
    %v4376 = vadd.f32 %v3642, %v4375
    %4377 = vmatprep.mubr.bf16.mxu0 %v2862
    %4378 = vmatmul.mubr.bf16.gmra.mxu0 %v2798
    %v4379 = vpop.f32.mrf.mxu0
    %v4380 = vadd.f32 %v3638, %v4379
    %v4381 = vpop.f32.mrf.mxu0
    %v4382 = vadd.f32 %v3642, %v4381
    %v4383 = vpop.f32.mrf.mxu0
    %v4384 = vadd.f32 %v3638, %v4383
    %v4385 = vpop.f32.mrf.mxu0
    %v4386 = vadd.f32 %v3642, %v4385
    %4387 = vmatprep.mubr.bf16.mxu0 %v2863
    %4388 = vmatmul.mubr.bf16.gmra.mxu0 %v2799
    %v4389 = vpop.f32.mrf.mxu0
    %v4390 = vadd.f32 %v3638, %v4389
    %v4391 = vpop.f32.mrf.mxu0
    %v4392 = vadd.f32 %v3642, %v4391
    %v4393 = vpop.f32.mrf.mxu0
    %v4394 = vadd.f32 %v3638, %v4393
    %v4395 = vpop.f32.mrf.mxu0
    %v4396 = vadd.f32 %v3642, %v4395
    %4397 = vmatprep.mubr.bf16.mxu0 %v2864
    %4398 = vmatmul.mubr.bf16.gmra.mxu0 %v2800
    %v4399 = vpop.f32.mrf.mxu0
    %v4400 = vadd.f32 %v3638, %v4399
    %v4401 = vpop.f32.mrf.mxu0
    %v4402 = vadd.f32 %v3642, %v4401
    %v4403 = vpop.f32.mrf.mxu0
    %v4404 = vadd.f32 %v3638, %v4403
    %v4405 = vpop.f32.mrf.mxu0
    %v4406 = vadd.f32 %v3642, %v4405
    %4407 = vmatprep.mubr.bf16.mxu0 %v2865
    %4408 = vmatmul.mubr.bf16.gmra.mxu0 %v2801
    %v4409 = vpop.f32.mrf.mxu0
    %v4410 = vadd.f32 %v3638, %v4409
    %v4411 = vpop.f32.mrf.mxu0
    %v4412 = vadd.f32 %v3642, %v4411
    %v4413 = vpop.f32.mrf.mxu0
    %v4414 = vadd.f32 %v3638, %v4413
    %v4415 = vpop.f32.mrf.mxu0
    %v4416 = vadd.f32 %v3642, %v4415
    %4417 = vmatprep.mubr.bf16.mxu0 %v2866
    %4418 = vmatmul.mubr.bf16.gmra.mxu0 %v2802
    %v4419 = vpop.f32.mrf.mxu0
    %v4420 = vadd.f32 %v3638, %v4419
    %v4421 = vpop.f32.mrf.mxu0
    %v4422 = vadd.f32 %v3642, %v4421
    %v4423 = vpop.f32.mrf.mxu0
    %v4424 = vadd.f32 %v3638, %v4423
    %v4425 = vpop.f32.mrf.mxu0
    %v4426 = vadd.f32 %v3642, %v4425
    %4427 = vmatprep.mubr.bf16.mxu0 %v2867
    %4428 = vmatmul.mubr.bf16.gmra.mxu0 %v2803
    %v4429 = vpop.f32.mrf.mxu0
    %v4430 = vadd.f32 %v3638, %v4429
    %v4431 = vpop.f32.mrf.mxu0
    %v4432 = vadd.f32 %v3642, %v4431
    %v4433 = vpop.f32.mrf.mxu0
    %v4434 = vadd.f32 %v3638, %v4433
    %v4435 = vpop.f32.mrf.mxu0
    %v4436 = vadd.f32 %v3642, %v4435
    %4437 = vmatprep.mubr.bf16.mxu0 %v2868
    %4438 = vmatmul.mubr.bf16.gmra.mxu0 %v2804
    %v4439 = vpop.f32.mrf.mxu0
    %v4440 = vadd.f32 %v3638, %v4439
    %v4441 = vpop.f32.mrf.mxu0
    %v4442 = vadd.f32 %v3642, %v4441
    %v4443 = vpop.f32.mrf.mxu0
    %v4444 = vadd.f32 %v3638, %v4443
    %v4445 = vpop.f32.mrf.mxu0
    %v4446 = vadd.f32 %v3642, %v4445
    %4447 = vmatprep.mubr.bf16.mxu0 %v2869
    %4448 = vmatmul.mubr.bf16.gmra.mxu0 %v2805
    %v4449 = vpop.f32.mrf.mxu0
    %v4450 = vadd.f32 %v3638, %v4449
    %v4451 = vpop.f32.mrf.mxu0
    %v4452 = vadd.f32 %v3642, %v4451
    %v4453 = vpop.f32.mrf.mxu0
    %v4454 = vadd.f32 %v3638, %v4453
    %v4455 = vpop.f32.mrf.mxu0
    %v4456 = vadd.f32 %v3642, %v4455
    %4457 = vmatprep.mubr.bf16.mxu0 %v2870
    %4458 = vmatmul.mubr.bf16.gmra.mxu0 %v2806
    %v4459 = vpop.f32.mrf.mxu0
    %v4460 = vadd.f32 %v3638, %v4459
    %v4461 = vpop.f32.mrf.mxu0
    %v4462 = vadd.f32 %v3642, %v4461
    %v4463 = vpop.f32.mrf.mxu0
    %v4464 = vadd.f32 %v3638, %v4463
    %v4465 = vpop.f32.mrf.mxu0
    %v4466 = vadd.f32 %v3642, %v4465
    %4467 = vmatprep.mubr.bf16.mxu0 %v2871
    %4468 = vmatmul.mubr.bf16.gmra.mxu0 %v2807
    %v4469 = vpop.f32.mrf.mxu0
    %v4470 = vadd.f32 %v3638, %v4469
    %v4471 = vpop.f32.mrf.mxu0
    %v4472 = vadd.f32 %v3642, %v4471
    %v4473 = vpop.f32.mrf.mxu0
    %v4474 = vadd.f32 %v3638, %v4473
    %v4475 = vpop.f32.mrf.mxu0
    %v4476 = vadd.f32 %v3642, %v4475
    %4477 = vmatprep.mubr.bf16.mxu0 %v2872
    %4478 = vmatmul.mubr.bf16.gmra.mxu0 %v2808
    %v4479 = vpop.f32.mrf.mxu0
    %v4480 = vadd.f32 %v3638, %v4479
    %v4481 = vpop.f32.mrf.mxu0
    %v4482 = vadd.f32 %v3642, %v4481
    %v4483 = vpop.f32.mrf.mxu0
    %v4484 = vadd.f32 %v3638, %v4483
    %v4485 = vpop.f32.mrf.mxu0
    %v4486 = vadd.f32 %v3642, %v4485
    %4487 = vmatprep.mubr.bf16.mxu0 %v2873
    %4488 = vmatmul.mubr.bf16.gmra.mxu0 %v2809
    %v4489 = vpop.f32.mrf.mxu0
    %v4490 = vadd.f32 %v3638, %v4489
    %v4491 = vpop.f32.mrf.mxu0
    %v4492 = vadd.f32 %v3642, %v4491
    %v4493 = vpop.f32.mrf.mxu0
    %v4494 = vadd.f32 %v3638, %v4493
    %v4495 = vpop.f32.mrf.mxu0
    %v4496 = vadd.f32 %v3642, %v4495
    %4497 = vmatprep.mubr.bf16.mxu0 %v2874
    %4498 = vmatmul.mubr.bf16.gmra.mxu0 %v2810
    %v4499 = vpop.f32.mrf.mxu0
    %v4500 = vadd.f32 %v3638, %v4499
    %v4501 = vpop.f32.mrf.mxu0
    %v4502 = vadd.f32 %v3642, %v4501
    %v4503 = vpop.f32.mrf.mxu0
    %v4504 = vadd.f32 %v3638, %v4503
    %v4505 = vpop.f32.mrf.mxu0
    %v4506 = vadd.f32 %v3642, %v4505
    %4507 = vmatprep.mubr.bf16.mxu0 %v2875
    %4508 = vmatmul.mubr.bf16.gmra.mxu0 %v2811
    %v4509 = vpop.f32.mrf.mxu0
    %v4510 = vadd.f32 %v3638, %v4509
    %v4511 = vpop.f32.mrf.mxu0
    %v4512 = vadd.f32 %v3642, %v4511
    %v4513 = vpop.f32.mrf.mxu0
    %v4514 = vadd.f32 %v3638, %v4513
    %v4515 = vpop.f32.mrf.mxu0
    %v4516 = vadd.f32 %v3642, %v4515
    %4517 = vmatprep.mubr.bf16.mxu0 %v2876
    %4518 = vmatmul.mubr.bf16.gmra.mxu0 %v2812
    %v4519 = vpop.f32.mrf.mxu0
    %v4520 = vadd.f32 %v3638, %v4519
    %v4521 = vpop.f32.mrf.mxu0
    %v4522 = vadd.f32 %v3642, %v4521
    %v4523 = vpop.f32.mrf.mxu0
    %v4524 = vadd.f32 %v3638, %v4523
    %v4525 = vpop.f32.mrf.mxu0
    %v4526 = vadd.f32 %v3642, %v4525
    %4527 = vmatprep.mubr.bf16.mxu0 %v2877
    %4528 = vmatmul.mubr.bf16.gmra.mxu0 %v2813
    %v4529 = vpop.f32.mrf.mxu0
    %v4530 = vadd.f32 %v3638, %v4529
    %v4531 = vpop.f32.mrf.mxu0
    %v4532 = vadd.f32 %v3642, %v4531
    %v4533 = vpop.f32.mrf.mxu0
    %v4534 = vadd.f32 %v3638, %v4533
    %v4535 = vpop.f32.mrf.mxu0
    %v4536 = vadd.f32 %v3642, %v4535
    %4537 = vmatprep.mubr.bf16.mxu0 %v2878
    %4538 = vmatmul.mubr.bf16.gmra.mxu0 %v2814
    %v4539 = vpop.f32.mrf.mxu0
    %v4540 = vadd.f32 %v3638, %v4539
    %v4541 = vpop.f32.mrf.mxu0
    %v4542 = vadd.f32 %v3642, %v4541
    %v4543 = vpop.f32.mrf.mxu0
    %v4544 = vadd.f32 %v3638, %v4543
    %v4545 = vpop.f32.mrf.mxu0
    %v4546 = vadd.f32 %v3642, %v4545
    %4547 = vmatprep.mubr.bf16.mxu0 %v2879
    %4548 = vmatmul.mubr.bf16.gmra.mxu0 %v2815
    %v4549 = vpop.f32.mrf.mxu0
    %v4550 = vadd.f32 %v3638, %v4549
    %v4551 = vpop.f32.mrf.mxu0
    %v4552 = vadd.f32 %v3642, %v4551
    %v4553 = vpop.f32.mrf.mxu0
    %v4554 = vadd.f32 %v3638, %v4553
    %v4555 = vpop.f32.mrf.mxu0
    %v4556 = vadd.f32 %v3642, %v4555
    %4557 = vdwg.mxu0
    %4558 = vmatprep.subr.bf16.mxu0 %v3836
    %4559 = vmatpush1.bf16.msra.mxu0 %v3835
    %4560 = vmatprep.subr.bf16.mxu0 %v3834
    %4561 = vmatpush1.bf16.msra.mxu0 %v3833
    %4562 = vmatprep.subr.bf16.mxu0 %v3832
    %4563 = vmatpush1.bf16.msra.mxu0 %v3831
    %4564 = vmatprep.subr.bf16.mxu0 %v3830
    %4565 = vmatpush1.bf16.msra.mxu0 %v3829
    %4566 = vmatprep.subr.bf16.mxu0 %v3828
    %4567 = vmatpush1.bf16.msra.mxu0 %v3827
    %4568 = vmatprep.subr.bf16.mxu0 %v3826
    %4569 = vmatpush1.bf16.msra.mxu0 %v3825
    %4570 = vmatprep.subr.bf16.mxu0 %v3824
    %4571 = vmatpush1.bf16.msra.mxu0 %v3823
    %4572 = vmatprep.subr.bf16.mxu0 %v3822
    %4573 = vmatpush1.bf16.msra.mxu0 %v3821
    %4574 = vmatprep.subr.bf16.mxu0 0
    %4575 = vmatpush2.bf16.msra.mxu0 0
    %4576 = vmatprep.subr.bf16.mxu0 0
    %4577 = vmatpush2.bf16.msra.mxu0 0
    %4578 = vmatprep.subr.bf16.mxu0 0
    %4579 = vmatpush2.bf16.msra.mxu0 0
    %4580 = vmatprep.subr.bf16.mxu0 0
    %4581 = vmatpush2.bf16.msra.mxu0 0
    %4582 = vmatprep.subr.bf16.mxu0 0
    %4583 = vmatpush2.bf16.msra.mxu0 0
    %4584 = vmatprep.subr.bf16.mxu0 0
    %4585 = vmatpush2.bf16.msra.mxu0 0
    %4586 = vmatprep.subr.bf16.mxu0 0
    %4587 = vmatpush2.bf16.msra.mxu0 0
    %4588 = vmatprep.subr.bf16.mxu0 0
    %4589 = vmatpush2.bf16.msra.mxu0 0
    %4590 = vmatprep.mubr.bf16.mxu0 0
    %4591 = vmatmul.mubr.bf16.gmra.mxu0 %v3521
    %v4592 = vpop.f32.mrf.mxu0
    %v4593 = vadd.f32 %v3920, %v4592
    %v4594 = vpop.f32.mrf.mxu0
    %v4595 = vadd.f32 %v3922, %v4594
    %v4596 = vpop.f32.mrf.mxu0
    %v4597 = vadd.f32 %v3924, %v4596
    %v4598 = vpop.f32.mrf.mxu0
    %v4599 = vadd.f32 %v3926, %v4598
    %4600 = vmatprep.mubr.bf16.mxu0 0
    %4601 = vmatmul.mubr.bf16.gmra.mxu0 %v3522
    %v4602 = vpop.f32.mrf.mxu0
    %v4603 = vadd.f32 %v3930, %v4602
    %v4604 = vpop.f32.mrf.mxu0
    %v4605 = vadd.f32 %v3932, %v4604
    %v4606 = vpop.f32.mrf.mxu0
    %v4607 = vadd.f32 %v3934, %v4606
    %v4608 = vpop.f32.mrf.mxu0
    %v4609 = vadd.f32 %v3936, %v4608
    %4610 = vmatprep.mubr.bf16.mxu0 0
    %4611 = vmatmul.mubr.bf16.gmra.mxu0 %v3523
    %v4612 = vpop.f32.mrf.mxu0
    %v4613 = vadd.f32 %v3940, %v4612
    %v4614 = vpop.f32.mrf.mxu0
    %v4615 = vadd.f32 %v3942, %v4614
    %v4616 = vpop.f32.mrf.mxu0
    %v4617 = vadd.f32 %v3944, %v4616
    %v4618 = vpop.f32.mrf.mxu0
    %v4619 = vadd.f32 %v3946, %v4618
    %4620 = vmatprep.mubr.bf16.mxu0 0
    %4621 = vmatmul.mubr.bf16.gmra.mxu0 %v3524
    %v4622 = vpop.f32.mrf.mxu0
    %v4623 = vadd.f32 %v3950, %v4622
    %v4624 = vpop.f32.mrf.mxu0
    %v4625 = vadd.f32 %v3952, %v4624
    %v4626 = vpop.f32.mrf.mxu0
    %v4627 = vadd.f32 %v3954, %v4626
    %v4628 = vpop.f32.mrf.mxu0
    %v4629 = vadd.f32 %v3956, %v4628
    %4630 = vmatprep.mubr.bf16.mxu0 0
    %4631 = vmatmul.mubr.bf16.gmra.mxu0 %v3525
    %v4632 = vpop.f32.mrf.mxu0
    %v4633 = vadd.f32 %v3960, %v4632
    %v4634 = vpop.f32.mrf.mxu0
    %v4635 = vadd.f32 %v3962, %v4634
    %v4636 = vpop.f32.mrf.mxu0
    %v4637 = vadd.f32 %v3964, %v4636
    %v4638 = vpop.f32.mrf.mxu0
    %v4639 = vadd.f32 %v3966, %v4638
    %4640 = vmatprep.mubr.bf16.mxu0 0
    %4641 = vmatmul.mubr.bf16.gmra.mxu0 %v3526
    %v4642 = vpop.f32.mrf.mxu0
    %v4643 = vadd.f32 %v3970, %v4642
    %v4644 = vpop.f32.mrf.mxu0
    %v4645 = vadd.f32 %v3972, %v4644
    %v4646 = vpop.f32.mrf.mxu0
    %v4647 = vadd.f32 %v3974, %v4646
    %v4648 = vpop.f32.mrf.mxu0
    %v4649 = vadd.f32 %v3976, %v4648
    %4650 = vmatprep.mubr.bf16.mxu0 0
    %4651 = vmatmul.mubr.bf16.gmra.mxu0 %v3527
    %v4652 = vpop.f32.mrf.mxu0
    %v4653 = vadd.f32 %v3980, %v4652
    %v4654 = vpop.f32.mrf.mxu0
    %v4655 = vadd.f32 %v3982, %v4654
    %v4656 = vpop.f32.mrf.mxu0
    %v4657 = vadd.f32 %v3984, %v4656
    %v4658 = vpop.f32.mrf.mxu0
    %v4659 = vadd.f32 %v3986, %v4658
    %4660 = vmatprep.mubr.bf16.mxu0 0
    %4661 = vmatmul.mubr.bf16.gmra.mxu0 %v3528
    %v4662 = vpop.f32.mrf.mxu0
    %v4663 = vadd.f32 %v3990, %v4662
    %v4664 = vpop.f32.mrf.mxu0
    %v4665 = vadd.f32 %v3992, %v4664
    %v4666 = vpop.f32.mrf.mxu0
    %v4667 = vadd.f32 %v3994, %v4666
    %v4668 = vpop.f32.mrf.mxu0
    %v4669 = vadd.f32 %v3996, %v4668
    %4670 = vmatprep.mubr.bf16.mxu0 0
    %4671 = vmatmul.mubr.bf16.gmra.mxu0 %v3529
    %v4672 = vpop.f32.mrf.mxu0
    %v4673 = vadd.f32 %v4000, %v4672
    %v4674 = vpop.f32.mrf.mxu0
    %v4675 = vadd.f32 %v4002, %v4674
    %v4676 = vpop.f32.mrf.mxu0
    %v4677 = vadd.f32 %v4004, %v4676
    %v4678 = vpop.f32.mrf.mxu0
    %v4679 = vadd.f32 %v4006, %v4678
    %4680 = vmatprep.mubr.bf16.mxu0 0
    %4681 = vmatmul.mubr.bf16.gmra.mxu0 %v3530
    %v4682 = vpop.f32.mrf.mxu0
    %v4683 = vadd.f32 %v4010, %v4682
    %v4684 = vpop.f32.mrf.mxu0
    %v4685 = vadd.f32 %v4012, %v4684
    %v4686 = vpop.f32.mrf.mxu0
    %v4687 = vadd.f32 %v4014, %v4686
    %v4688 = vpop.f32.mrf.mxu0
    %v4689 = vadd.f32 %v4016, %v4688
    %4690 = vmatprep.mubr.bf16.mxu0 0
    %4691 = vmatmul.mubr.bf16.gmra.mxu0 %v3531
    %v4692 = vpop.f32.mrf.mxu0
    %v4693 = vadd.f32 %v4020, %v4692
    %v4694 = vpop.f32.mrf.mxu0
    %v4695 = vadd.f32 %v4022, %v4694
    %v4696 = vpop.f32.mrf.mxu0
    %v4697 = vadd.f32 %v4024, %v4696
    %v4698 = vpop.f32.mrf.mxu0
    %v4699 = vadd.f32 %v4026, %v4698
    %4700 = vmatprep.mubr.bf16.mxu0 0
    %4701 = vmatmul.mubr.bf16.gmra.mxu0 %v3532
    %v4702 = vpop.f32.mrf.mxu0
    %v4703 = vadd.f32 %v4030, %v4702
    %v4704 = vpop.f32.mrf.mxu0
    %v4705 = vadd.f32 %v4032, %v4704
    %v4706 = vpop.f32.mrf.mxu0
    %v4707 = vadd.f32 %v4034, %v4706
    %v4708 = vpop.f32.mrf.mxu0
    %v4709 = vadd.f32 %v4036, %v4708
    %4710 = vmatprep.mubr.bf16.mxu0 0
    %4711 = vmatmul.mubr.bf16.gmra.mxu0 %v3533
    %v4712 = vpop.f32.mrf.mxu0
    %v4713 = vadd.f32 %v4040, %v4712
    %v4714 = vpop.f32.mrf.mxu0
    %v4715 = vadd.f32 %v4042, %v4714
    %v4716 = vpop.f32.mrf.mxu0
    %v4717 = vadd.f32 %v4044, %v4716
    %v4718 = vpop.f32.mrf.mxu0
    %v4719 = vadd.f32 %v4046, %v4718
    %4720 = vmatprep.mubr.bf16.mxu0 0
    %4721 = vmatmul.mubr.bf16.gmra.mxu0 %v3534
    %v4722 = vpop.f32.mrf.mxu0
    %v4723 = vadd.f32 %v4050, %v4722
    %v4724 = vpop.f32.mrf.mxu0
    %v4725 = vadd.f32 %v4052, %v4724
    %v4726 = vpop.f32.mrf.mxu0
    %v4727 = vadd.f32 %v4054, %v4726
    %v4728 = vpop.f32.mrf.mxu0
    %v4729 = vadd.f32 %v4056, %v4728
    %4730 = vmatprep.mubr.bf16.mxu0 0
    %4731 = vmatmul.mubr.bf16.gmra.mxu0 %v3535
    %v4732 = vpop.f32.mrf.mxu0
    %v4733 = vadd.f32 %v4060, %v4732
    %v4734 = vpop.f32.mrf.mxu0
    %v4735 = vadd.f32 %v4062, %v4734
    %v4736 = vpop.f32.mrf.mxu0
    %v4737 = vadd.f32 %v4064, %v4736
    %v4738 = vpop.f32.mrf.mxu0
    %v4739 = vadd.f32 %v4066, %v4738
    %4740 = vmatprep.mubr.bf16.mxu0 0
    %4741 = vmatmul.mubr.bf16.gmra.mxu0 %v3536
    %v4742 = vpop.f32.mrf.mxu0
    %v4743 = vadd.f32 %v4070, %v4742
    %v4744 = vpop.f32.mrf.mxu0
    %v4745 = vadd.f32 %v4072, %v4744
    %v4746 = vpop.f32.mrf.mxu0
    %v4747 = vadd.f32 %v4074, %v4746
    %v4748 = vpop.f32.mrf.mxu0
    %v4749 = vadd.f32 %v4076, %v4748
    %4750 = vmatprep.mubr.bf16.mxu0 0
    %4751 = vmatmul.mubr.bf16.gmra.mxu0 %v3537
    %v4752 = vpop.f32.mrf.mxu0
    %v4753 = vadd.f32 %v4080, %v4752
    %v4754 = vpop.f32.mrf.mxu0
    %v4755 = vadd.f32 %v4082, %v4754
    %v4756 = vpop.f32.mrf.mxu0
    %v4757 = vadd.f32 %v4084, %v4756
    %v4758 = vpop.f32.mrf.mxu0
    %v4759 = vadd.f32 %v4086, %v4758
    %4760 = vmatprep.mubr.bf16.mxu0 0
    %4761 = vmatmul.mubr.bf16.gmra.mxu0 %v3538
    %v4762 = vpop.f32.mrf.mxu0
    %v4763 = vadd.f32 %v4090, %v4762
    %v4764 = vpop.f32.mrf.mxu0
    %v4765 = vadd.f32 %v4092, %v4764
    %v4766 = vpop.f32.mrf.mxu0
    %v4767 = vadd.f32 %v4094, %v4766
    %v4768 = vpop.f32.mrf.mxu0
    %v4769 = vadd.f32 %v4096, %v4768
    %4770 = vmatprep.mubr.bf16.mxu0 0
    %4771 = vmatmul.mubr.bf16.gmra.mxu0 %v3539
    %v4772 = vpop.f32.mrf.mxu0
    %v4773 = vadd.f32 %v4100, %v4772
    %v4774 = vpop.f32.mrf.mxu0
    %v4775 = vadd.f32 %v4102, %v4774
    %v4776 = vpop.f32.mrf.mxu0
    %v4777 = vadd.f32 %v4104, %v4776
    %v4778 = vpop.f32.mrf.mxu0
    %v4779 = vadd.f32 %v4106, %v4778
    %4780 = vmatprep.mubr.bf16.mxu0 0
    %4781 = vmatmul.mubr.bf16.gmra.mxu0 %v3540
    %v4782 = vpop.f32.mrf.mxu0
    %v4783 = vadd.f32 %v4110, %v4782
    %v4784 = vpop.f32.mrf.mxu0
    %v4785 = vadd.f32 %v4112, %v4784
    %v4786 = vpop.f32.mrf.mxu0
    %v4787 = vadd.f32 %v4114, %v4786
    %v4788 = vpop.f32.mrf.mxu0
    %v4789 = vadd.f32 %v4116, %v4788
    %4790 = vmatprep.mubr.bf16.mxu0 0
    %4791 = vmatmul.mubr.bf16.gmra.mxu0 %v3541
    %v4792 = vpop.f32.mrf.mxu0
    %v4793 = vadd.f32 %v4120, %v4792
    %v4794 = vpop.f32.mrf.mxu0
    %v4795 = vadd.f32 %v4122, %v4794
    %v4796 = vpop.f32.mrf.mxu0
    %v4797 = vadd.f32 %v4124, %v4796
    %v4798 = vpop.f32.mrf.mxu0
    %v4799 = vadd.f32 %v4126, %v4798
    %4800 = vmatprep.mubr.bf16.mxu0 0
    %4801 = vmatmul.mubr.bf16.gmra.mxu0 %v3542
    %v4802 = vpop.f32.mrf.mxu0
    %v4803 = vadd.f32 %v4130, %v4802
    %v4804 = vpop.f32.mrf.mxu0
    %v4805 = vadd.f32 %v4132, %v4804
    %v4806 = vpop.f32.mrf.mxu0
    %v4807 = vadd.f32 %v4134, %v4806
    %v4808 = vpop.f32.mrf.mxu0
    %v4809 = vadd.f32 %v4136, %v4808
    %4810 = vmatprep.mubr.bf16.mxu0 0
    %4811 = vmatmul.mubr.bf16.gmra.mxu0 %v3543
    %v4812 = vpop.f32.mrf.mxu0
    %v4813 = vadd.f32 %v4140, %v4812
    %v4814 = vpop.f32.mrf.mxu0
    %v4815 = vadd.f32 %v4142, %v4814
    %v4816 = vpop.f32.mrf.mxu0
    %v4817 = vadd.f32 %v4144, %v4816
    %v4818 = vpop.f32.mrf.mxu0
    %v4819 = vadd.f32 %v4146, %v4818
    %4820 = vmatprep.mubr.bf16.mxu0 0
    %4821 = vmatmul.mubr.bf16.gmra.mxu0 %v3544
    %v4822 = vpop.f32.mrf.mxu0
    %v4823 = vadd.f32 %v4150, %v4822
    %v4824 = vpop.f32.mrf.mxu0
    %v4825 = vadd.f32 %v4152, %v4824
    %v4826 = vpop.f32.mrf.mxu0
    %v4827 = vadd.f32 %v4154, %v4826
    %v4828 = vpop.f32.mrf.mxu0
    %v4829 = vadd.f32 %v4156, %v4828
    %4830 = vmatprep.mubr.bf16.mxu0 0
    %4831 = vmatmul.mubr.bf16.gmra.mxu0 %v3545
    %v4832 = vpop.f32.mrf.mxu0
    %v4833 = vadd.f32 %v4160, %v4832
    %v4834 = vpop.f32.mrf.mxu0
    %v4835 = vadd.f32 %v4162, %v4834
    %v4836 = vpop.f32.mrf.mxu0
    %v4837 = vadd.f32 %v4164, %v4836
    %v4838 = vpop.f32.mrf.mxu0
    %v4839 = vadd.f32 %v4166, %v4838
    %4840 = vmatprep.mubr.bf16.mxu0 0
    %4841 = vmatmul.mubr.bf16.gmra.mxu0 %v3546
    %v4842 = vpop.f32.mrf.mxu0
    %v4843 = vadd.f32 %v4170, %v4842
    %v4844 = vpop.f32.mrf.mxu0
    %v4845 = vadd.f32 %v4172, %v4844
    %v4846 = vpop.f32.mrf.mxu0
    %v4847 = vadd.f32 %v4174, %v4846
    %v4848 = vpop.f32.mrf.mxu0
    %v4849 = vadd.f32 %v4176, %v4848
    %4850 = vmatprep.mubr.bf16.mxu0 0
    %4851 = vmatmul.mubr.bf16.gmra.mxu0 %v3547
    %v4852 = vpop.f32.mrf.mxu0
    %v4853 = vadd.f32 %v4180, %v4852
    %v4854 = vpop.f32.mrf.mxu0
    %v4855 = vadd.f32 %v4182, %v4854
    %v4856 = vpop.f32.mrf.mxu0
    %v4857 = vadd.f32 %v4184, %v4856
    %v4858 = vpop.f32.mrf.mxu0
    %v4859 = vadd.f32 %v4186, %v4858
    %4860 = vmatprep.mubr.bf16.mxu0 0
    %4861 = vmatmul.mubr.bf16.gmra.mxu0 %v3548
    %v4862 = vpop.f32.mrf.mxu0
    %v4863 = vadd.f32 %v4190, %v4862
    %v4864 = vpop.f32.mrf.mxu0
    %v4865 = vadd.f32 %v4192, %v4864
    %v4866 = vpop.f32.mrf.mxu0
    %v4867 = vadd.f32 %v4194, %v4866
    %v4868 = vpop.f32.mrf.mxu0
    %v4869 = vadd.f32 %v4196, %v4868
    %4870 = vmatprep.mubr.bf16.mxu0 0
    %4871 = vmatmul.mubr.bf16.gmra.mxu0 %v3549
    %v4872 = vpop.f32.mrf.mxu0
    %v4873 = vadd.f32 %v4200, %v4872
    %v4874 = vpop.f32.mrf.mxu0
    %v4875 = vadd.f32 %v4202, %v4874
    %v4876 = vpop.f32.mrf.mxu0
    %v4877 = vadd.f32 %v4204, %v4876
    %v4878 = vpop.f32.mrf.mxu0
    %v4879 = vadd.f32 %v4206, %v4878
    %4880 = vmatprep.mubr.bf16.mxu0 0
    %4881 = vmatmul.mubr.bf16.gmra.mxu0 %v3550
    %v4882 = vpop.f32.mrf.mxu0
    %v4883 = vadd.f32 %v4210, %v4882
    %v4884 = vpop.f32.mrf.mxu0
    %v4885 = vadd.f32 %v4212, %v4884
    %v4886 = vpop.f32.mrf.mxu0
    %v4887 = vadd.f32 %v4214, %v4886
    %v4888 = vpop.f32.mrf.mxu0
    %v4889 = vadd.f32 %v4216, %v4888
    %4890 = vmatprep.mubr.bf16.mxu0 0
    %4891 = vmatmul.mubr.bf16.gmra.mxu0 %v3551
    %v4892 = vpop.f32.mrf.mxu0
    %v4893 = vadd.f32 %v4220, %v4892
    %v4894 = vpop.f32.mrf.mxu0
    %v4895 = vadd.f32 %v4222, %v4894
    %v4896 = vpop.f32.mrf.mxu0
    %v4897 = vadd.f32 %v4224, %v4896
    %v4898 = vpop.f32.mrf.mxu0
    %v4899 = vadd.f32 %v4226, %v4898
    %4900 = vmatprep.mubr.bf16.mxu0 0
    %4901 = vmatmul.mubr.bf16.gmra.mxu0 %v3552
    %v4902 = vpop.f32.mrf.mxu0
    %v4903 = vadd.f32 %v4230, %v4902
    %v4904 = vpop.f32.mrf.mxu0
    %v4905 = vadd.f32 %v4232, %v4904
    %v4906 = vpop.f32.mrf.mxu0
    %v4907 = vadd.f32 %v4234, %v4906
    %v4908 = vpop.f32.mrf.mxu0
    %v4909 = vadd.f32 %v4236, %v4908
    %4910 = vmatprep.mubr.bf16.mxu0 0
    %4911 = vmatmul.mubr.bf16.gmra.mxu0 %v3553
    %v4912 = vpop.f32.mrf.mxu0
    %v4913 = vadd.f32 %v4240, %v4912
    %v4914 = vpop.f32.mrf.mxu0
    %v4915 = vadd.f32 %v4242, %v4914
    %v4916 = vpop.f32.mrf.mxu0
    %v4917 = vadd.f32 %v4244, %v4916
    %v4918 = vpop.f32.mrf.mxu0
    %v4919 = vadd.f32 %v4246, %v4918
    %4920 = vmatprep.mubr.bf16.mxu0 0
    %4921 = vmatmul.mubr.bf16.gmra.mxu0 %v3554
    %v4922 = vpop.f32.mrf.mxu0
    %v4923 = vadd.f32 %v4250, %v4922
    %v4924 = vpop.f32.mrf.mxu0
    %v4925 = vadd.f32 %v4252, %v4924
    %v4926 = vpop.f32.mrf.mxu0
    %v4927 = vadd.f32 %v4254, %v4926
    %v4928 = vpop.f32.mrf.mxu0
    %v4929 = vadd.f32 %v4256, %v4928
    %4930 = vmatprep.mubr.bf16.mxu0 0
    %4931 = vmatmul.mubr.bf16.gmra.mxu0 %v3555
    %v4932 = vpop.f32.mrf.mxu0
    %v4933 = vadd.f32 %v4260, %v4932
    %v4934 = vpop.f32.mrf.mxu0
    %v4935 = vadd.f32 %v4262, %v4934
    %v4936 = vpop.f32.mrf.mxu0
    %v4937 = vadd.f32 %v4264, %v4936
    %v4938 = vpop.f32.mrf.mxu0
    %v4939 = vadd.f32 %v4266, %v4938
    %4940 = vmatprep.mubr.bf16.mxu0 0
    %4941 = vmatmul.mubr.bf16.gmra.mxu0 %v3556
    %v4942 = vpop.f32.mrf.mxu0
    %v4943 = vadd.f32 %v4270, %v4942
    %v4944 = vpop.f32.mrf.mxu0
    %v4945 = vadd.f32 %v4272, %v4944
    %v4946 = vpop.f32.mrf.mxu0
    %v4947 = vadd.f32 %v4274, %v4946
    %v4948 = vpop.f32.mrf.mxu0
    %v4949 = vadd.f32 %v4276, %v4948
    %4950 = vmatprep.mubr.bf16.mxu0 0
    %4951 = vmatmul.mubr.bf16.gmra.mxu0 %v3557
    %v4952 = vpop.f32.mrf.mxu0
    %v4953 = vadd.f32 %v4280, %v4952
    %v4954 = vpop.f32.mrf.mxu0
    %v4955 = vadd.f32 %v4282, %v4954
    %v4956 = vpop.f32.mrf.mxu0
    %v4957 = vadd.f32 %v4284, %v4956
    %v4958 = vpop.f32.mrf.mxu0
    %v4959 = vadd.f32 %v4286, %v4958
    %4960 = vmatprep.mubr.bf16.mxu0 0
    %4961 = vmatmul.mubr.bf16.gmra.mxu0 %v3558
    %v4962 = vpop.f32.mrf.mxu0
    %v4963 = vadd.f32 %v4290, %v4962
    %v4964 = vpop.f32.mrf.mxu0
    %v4965 = vadd.f32 %v4292, %v4964
    %v4966 = vpop.f32.mrf.mxu0
    %v4967 = vadd.f32 %v4294, %v4966
    %v4968 = vpop.f32.mrf.mxu0
    %v4969 = vadd.f32 %v4296, %v4968
    %4970 = vmatprep.mubr.bf16.mxu0 0
    %4971 = vmatmul.mubr.bf16.gmra.mxu0 %v3559
    %v4972 = vpop.f32.mrf.mxu0
    %v4973 = vadd.f32 %v4300, %v4972
    %v4974 = vpop.f32.mrf.mxu0
    %v4975 = vadd.f32 %v4302, %v4974
    %v4976 = vpop.f32.mrf.mxu0
    %v4977 = vadd.f32 %v4304, %v4976
    %v4978 = vpop.f32.mrf.mxu0
    %v4979 = vadd.f32 %v4306, %v4978
    %4980 = vmatprep.mubr.bf16.mxu0 0
    %4981 = vmatmul.mubr.bf16.gmra.mxu0 %v3560
    %v4982 = vpop.f32.mrf.mxu0
    %v4983 = vadd.f32 %v4310, %v4982
    %v4984 = vpop.f32.mrf.mxu0
    %v4985 = vadd.f32 %v4312, %v4984
    %v4986 = vpop.f32.mrf.mxu0
    %v4987 = vadd.f32 %v4314, %v4986
    %v4988 = vpop.f32.mrf.mxu0
    %v4989 = vadd.f32 %v4316, %v4988
    %4990 = vmatprep.mubr.bf16.mxu0 0
    %4991 = vmatmul.mubr.bf16.gmra.mxu0 %v3561
    %v4992 = vpop.f32.mrf.mxu0
    %v4993 = vadd.f32 %v4320, %v4992
    %v4994 = vpop.f32.mrf.mxu0
    %v4995 = vadd.f32 %v4322, %v4994
    %v4996 = vpop.f32.mrf.mxu0
    %v4997 = vadd.f32 %v4324, %v4996
    %v4998 = vpop.f32.mrf.mxu0
    %v4999 = vadd.f32 %v4326, %v4998
    %5000 = vmatprep.mubr.bf16.mxu0 0
    %5001 = vmatmul.mubr.bf16.gmra.mxu0 %v3562
    %v5002 = vpop.f32.mrf.mxu0
    %v5003 = vadd.f32 %v4330, %v5002
    %v5004 = vpop.f32.mrf.mxu0
    %v5005 = vadd.f32 %v4332, %v5004
    %v5006 = vpop.f32.mrf.mxu0
    %v5007 = vadd.f32 %v4334, %v5006
    %v5008 = vpop.f32.mrf.mxu0
    %v5009 = vadd.f32 %v4336, %v5008
    %5010 = vmatprep.mubr.bf16.mxu0 0
    %5011 = vmatmul.mubr.bf16.gmra.mxu0 %v3563
    %v5012 = vpop.f32.mrf.mxu0
    %v5013 = vadd.f32 %v4340, %v5012
    %v5014 = vpop.f32.mrf.mxu0
    %v5015 = vadd.f32 %v4342, %v5014
    %v5016 = vpop.f32.mrf.mxu0
    %v5017 = vadd.f32 %v4344, %v5016
    %v5018 = vpop.f32.mrf.mxu0
    %v5019 = vadd.f32 %v4346, %v5018
    %5020 = vmatprep.mubr.bf16.mxu0 0
    %5021 = vmatmul.mubr.bf16.gmra.mxu0 %v3564
    %v5022 = vpop.f32.mrf.mxu0
    %v5023 = vadd.f32 %v4350, %v5022
    %v5024 = vpop.f32.mrf.mxu0
    %v5025 = vadd.f32 %v4352, %v5024
    %v5026 = vpop.f32.mrf.mxu0
    %v5027 = vadd.f32 %v4354, %v5026
    %v5028 = vpop.f32.mrf.mxu0
    %v5029 = vadd.f32 %v4356, %v5028
    %5030 = vmatprep.mubr.bf16.mxu0 0
    %5031 = vmatmul.mubr.bf16.gmra.mxu0 %v3565
    %v5032 = vpop.f32.mrf.mxu0
    %v5033 = vadd.f32 %v4360, %v5032
    %v5034 = vpop.f32.mrf.mxu0
    %v5035 = vadd.f32 %v4362, %v5034
    %v5036 = vpop.f32.mrf.mxu0
    %v5037 = vadd.f32 %v4364, %v5036
    %v5038 = vpop.f32.mrf.mxu0
    %v5039 = vadd.f32 %v4366, %v5038
    %5040 = vmatprep.mubr.bf16.mxu0 0
    %5041 = vmatmul.mubr.bf16.gmra.mxu0 %v3566
    %v5042 = vpop.f32.mrf.mxu0
    %v5043 = vadd.f32 %v4370, %v5042
    %v5044 = vpop.f32.mrf.mxu0
    %v5045 = vadd.f32 %v4372, %v5044
    %v5046 = vpop.f32.mrf.mxu0
    %v5047 = vadd.f32 %v4374, %v5046
    %v5048 = vpop.f32.mrf.mxu0
    %v5049 = vadd.f32 %v4376, %v5048
    %5050 = vmatprep.mubr.bf16.mxu0 0
    %5051 = vmatmul.mubr.bf16.gmra.mxu0 %v3567
    %v5052 = vpop.f32.mrf.mxu0
    %v5053 = vadd.f32 %v4380, %v5052
    %v5054 = vpop.f32.mrf.mxu0
    %v5055 = vadd.f32 %v4382, %v5054
    %v5056 = vpop.f32.mrf.mxu0
    %v5057 = vadd.f32 %v4384, %v5056
    %v5058 = vpop.f32.mrf.mxu0
    %v5059 = vadd.f32 %v4386, %v5058
    %5060 = vmatprep.mubr.bf16.mxu0 0
    %5061 = vmatmul.mubr.bf16.gmra.mxu0 %v3568
    %v5062 = vpop.f32.mrf.mxu0
    %v5063 = vadd.f32 %v4390, %v5062
    %v5064 = vpop.f32.mrf.mxu0
    %v5065 = vadd.f32 %v4392, %v5064
    %v5066 = vpop.f32.mrf.mxu0
    %v5067 = vadd.f32 %v4394, %v5066
    %v5068 = vpop.f32.mrf.mxu0
    %v5069 = vadd.f32 %v4396, %v5068
    %5070 = vmatprep.mubr.bf16.mxu0 0
    %5071 = vmatmul.mubr.bf16.gmra.mxu0 %v3569
    %v5072 = vpop.f32.mrf.mxu0
    %v5073 = vadd.f32 %v4400, %v5072
    %v5074 = vpop.f32.mrf.mxu0
    %v5075 = vadd.f32 %v4402, %v5074
    %v5076 = vpop.f32.mrf.mxu0
    %v5077 = vadd.f32 %v4404, %v5076
    %v5078 = vpop.f32.mrf.mxu0
    %v5079 = vadd.f32 %v4406, %v5078
    %5080 = vmatprep.mubr.bf16.mxu0 0
    %5081 = vmatmul.mubr.bf16.gmra.mxu0 %v3570
    %v5082 = vpop.f32.mrf.mxu0
    %v5083 = vadd.f32 %v4410, %v5082
    %v5084 = vpop.f32.mrf.mxu0
    %v5085 = vadd.f32 %v4412, %v5084
    %v5086 = vpop.f32.mrf.mxu0
    %v5087 = vadd.f32 %v4414, %v5086
    %v5088 = vpop.f32.mrf.mxu0
    %v5089 = vadd.f32 %v4416, %v5088
    %5090 = vmatprep.mubr.bf16.mxu0 0
    %5091 = vmatmul.mubr.bf16.gmra.mxu0 %v3571
    %v5092 = vpop.f32.mrf.mxu0
    %v5093 = vadd.f32 %v4420, %v5092
    %v5094 = vpop.f32.mrf.mxu0
    %v5095 = vadd.f32 %v4422, %v5094
    %v5096 = vpop.f32.mrf.mxu0
    %v5097 = vadd.f32 %v4424, %v5096
    %v5098 = vpop.f32.mrf.mxu0
    %v5099 = vadd.f32 %v4426, %v5098
    %5100 = vmatprep.mubr.bf16.mxu0 0
    %5101 = vmatmul.mubr.bf16.gmra.mxu0 %v3572
    %v5102 = vpop.f32.mrf.mxu0
    %v5103 = vadd.f32 %v4430, %v5102
    %v5104 = vpop.f32.mrf.mxu0
    %v5105 = vadd.f32 %v4432, %v5104
    %v5106 = vpop.f32.mrf.mxu0
    %v5107 = vadd.f32 %v4434, %v5106
    %v5108 = vpop.f32.mrf.mxu0
    %v5109 = vadd.f32 %v4436, %v5108
    %5110 = vmatprep.mubr.bf16.mxu0 0
    %5111 = vmatmul.mubr.bf16.gmra.mxu0 %v3573
    %v5112 = vpop.f32.mrf.mxu0
    %v5113 = vadd.f32 %v4440, %v5112
    %v5114 = vpop.f32.mrf.mxu0
    %v5115 = vadd.f32 %v4442, %v5114
    %v5116 = vpop.f32.mrf.mxu0
    %v5117 = vadd.f32 %v4444, %v5116
    %v5118 = vpop.f32.mrf.mxu0
    %v5119 = vadd.f32 %v4446, %v5118
    %5120 = vmatprep.mubr.bf16.mxu0 0
    %5121 = vmatmul.mubr.bf16.gmra.mxu0 %v3574
    %v5122 = vpop.f32.mrf.mxu0
    %v5123 = vadd.f32 %v4450, %v5122
    %v5124 = vpop.f32.mrf.mxu0
    %v5125 = vadd.f32 %v4452, %v5124
    %v5126 = vpop.f32.mrf.mxu0
    %v5127 = vadd.f32 %v4454, %v5126
    %v5128 = vpop.f32.mrf.mxu0
    %v5129 = vadd.f32 %v4456, %v5128
    %5130 = vmatprep.mubr.bf16.mxu0 0
    %5131 = vmatmul.mubr.bf16.gmra.mxu0 %v3575
    %v5132 = vpop.f32.mrf.mxu0
    %v5133 = vadd.f32 %v4460, %v5132
    %v5134 = vpop.f32.mrf.mxu0
    %v5135 = vadd.f32 %v4462, %v5134
    %v5136 = vpop.f32.mrf.mxu0
    %v5137 = vadd.f32 %v4464, %v5136
    %v5138 = vpop.f32.mrf.mxu0
    %v5139 = vadd.f32 %v4466, %v5138
    %5140 = vmatprep.mubr.bf16.mxu0 0
    %5141 = vmatmul.mubr.bf16.gmra.mxu0 %v3576
    %v5142 = vpop.f32.mrf.mxu0
    %v5143 = vadd.f32 %v4470, %v5142
    %v5144 = vpop.f32.mrf.mxu0
    %v5145 = vadd.f32 %v4472, %v5144
    %v5146 = vpop.f32.mrf.mxu0
    %v5147 = vadd.f32 %v4474, %v5146
    %v5148 = vpop.f32.mrf.mxu0
    %v5149 = vadd.f32 %v4476, %v5148
    %5150 = vmatprep.mubr.bf16.mxu0 0
    %5151 = vmatmul.mubr.bf16.gmra.mxu0 %v3577
    %v5152 = vpop.f32.mrf.mxu0
    %v5153 = vadd.f32 %v4480, %v5152
    %v5154 = vpop.f32.mrf.mxu0
    %v5155 = vadd.f32 %v4482, %v5154
    %v5156 = vpop.f32.mrf.mxu0
    %v5157 = vadd.f32 %v4484, %v5156
    %v5158 = vpop.f32.mrf.mxu0
    %v5159 = vadd.f32 %v4486, %v5158
    %5160 = vmatprep.mubr.bf16.mxu0 0
    %5161 = vmatmul.mubr.bf16.gmra.mxu0 %v3578
    %v5162 = vpop.f32.mrf.mxu0
    %v5163 = vadd.f32 %v4490, %v5162
    %v5164 = vpop.f32.mrf.mxu0
    %v5165 = vadd.f32 %v4492, %v5164
    %v5166 = vpop.f32.mrf.mxu0
    %v5167 = vadd.f32 %v4494, %v5166
    %v5168 = vpop.f32.mrf.mxu0
    %v5169 = vadd.f32 %v4496, %v5168
    %5170 = vmatprep.mubr.bf16.mxu0 0
    %5171 = vmatmul.mubr.bf16.gmra.mxu0 %v3579
    %v5172 = vpop.f32.mrf.mxu0
    %v5173 = vadd.f32 %v4500, %v5172
    %v5174 = vpop.f32.mrf.mxu0
    %v5175 = vadd.f32 %v4502, %v5174
    %v5176 = vpop.f32.mrf.mxu0
    %v5177 = vadd.f32 %v4504, %v5176
    %v5178 = vpop.f32.mrf.mxu0
    %v5179 = vadd.f32 %v4506, %v5178
    %5180 = vmatprep.mubr.bf16.mxu0 0
    %5181 = vmatmul.mubr.bf16.gmra.mxu0 %v3580
    %v5182 = vpop.f32.mrf.mxu0
    %v5183 = vadd.f32 %v4510, %v5182
    %v5184 = vpop.f32.mrf.mxu0
    %v5185 = vadd.f32 %v4512, %v5184
    %v5186 = vpop.f32.mrf.mxu0
    %v5187 = vadd.f32 %v4514, %v5186
    %v5188 = vpop.f32.mrf.mxu0
    %v5189 = vadd.f32 %v4516, %v5188
    %5190 = vmatprep.mubr.bf16.mxu0 0
    %5191 = vmatmul.mubr.bf16.gmra.mxu0 %v3581
    %v5192 = vpop.f32.mrf.mxu0
    %v5193 = vadd.f32 %v4520, %v5192
    %v5194 = vpop.f32.mrf.mxu0
    %v5195 = vadd.f32 %v4522, %v5194
    %v5196 = vpop.f32.mrf.mxu0
    %v5197 = vadd.f32 %v4524, %v5196
    %v5198 = vpop.f32.mrf.mxu0
    %v5199 = vadd.f32 %v4526, %v5198
    %5200 = vmatprep.mubr.bf16.mxu0 0
    %5201 = vmatmul.mubr.bf16.gmra.mxu0 %v3582
    %v5202 = vpop.f32.mrf.mxu0
    %v5203 = vadd.f32 %v4530, %v5202
    %v5204 = vpop.f32.mrf.mxu0
    %v5205 = vadd.f32 %v4532, %v5204
    %v5206 = vpop.f32.mrf.mxu0
    %v5207 = vadd.f32 %v4534, %v5206
    %v5208 = vpop.f32.mrf.mxu0
    %v5209 = vadd.f32 %v4536, %v5208
    %5210 = vmatprep.mubr.bf16.mxu0 0
    %5211 = vmatmul.mubr.bf16.gmra.mxu0 %v3583
    %v5212 = vpop.f32.mrf.mxu0
    %v5213 = vadd.f32 %v4540, %v5212
    %v5214 = vpop.f32.mrf.mxu0
    %v5215 = vadd.f32 %v4542, %v5214
    %v5216 = vpop.f32.mrf.mxu0
    %v5217 = vadd.f32 %v4544, %v5216
    %v5218 = vpop.f32.mrf.mxu0
    %v5219 = vadd.f32 %v4546, %v5218
    %5220 = vmatprep.mubr.bf16.mxu0 0
    %5221 = vmatmul.mubr.bf16.gmra.mxu0 %v3584
    %v5222 = vpop.f32.mrf.mxu0
    %v5223 = vadd.f32 %v4550, %v5222
    %v5224 = vpop.f32.mrf.mxu0
    %v5225 = vadd.f32 %v4552, %v5224
    %v5226 = vpop.f32.mrf.mxu0
    %v5227 = vadd.f32 %v4554, %v5226
    %v5228 = vpop.f32.mrf.mxu0
    %v5229 = vadd.f32 %v4556, %v5228
    %5230 = vdwg.mxu0
    %v5231 = vmul.f32 %v4593, 0.5
    %v5232 = vmul.f32 %v4595, 0.5
    %v5233 = vmul.f32 %v4597, 0.5
    %v5234 = vmul.f32 %v4599, 0.5
    %v5235 = vmul.f32 %v4603, 0.5
    %v5236 = vmul.f32 %v4605, 0.5
    %v5237 = vmul.f32 %v4607, 0.5
    %v5238 = vmul.f32 %v4609, 0.5
    %v5239 = vmul.f32 %v4613, 0.5
    %v5240 = vmul.f32 %v4615, 0.5
    %v5241 = vmul.f32 %v4617, 0.5
    %v5242 = vmul.f32 %v4619, 0.5
    %v5243 = vmul.f32 %v4623, 0.5
    %v5244 = vmul.f32 %v4625, 0.5
    %v5245 = vmul.f32 %v4627, 0.5
    %v5246 = vmul.f32 %v4629, 0.5
    %v5247 = vmul.f32 %v4633, 0.5
    %v5248 = vmul.f32 %v4635, 0.5
    %v5249 = vmul.f32 %v4637, 0.5
    %v5250 = vmul.f32 %v4639, 0.5
    %v5251 = vmul.f32 %v4643, 0.5
    %v5252 = vmul.f32 %v4645, 0.5
    %v5253 = vmul.f32 %v4647, 0.5
    %v5254 = vmul.f32 %v4649, 0.5
    %v5255 = vmul.f32 %v4653, 0.5
    %v5256 = vmul.f32 %v4655, 0.5
    %v5257 = vmul.f32 %v4657, 0.5
    %v5258 = vmul.f32 %v4659, 0.5
    %v5259 = vmul.f32 %v4663, 0.5
    %v5260 = vmul.f32 %v4665, 0.5
    %v5261 = vmul.f32 %v4667, 0.5
    %v5262 = vmul.f32 %v4669, 0.5
    %v5263 = vmul.f32 %v4673, 0.5
    %v5264 = vmul.f32 %v4675, 0.5
    %v5265 = vmul.f32 %v4677, 0.5
    %v5266 = vmul.f32 %v4679, 0.5
    %v5267 = vmul.f32 %v4683, 0.5
    %v5268 = vmul.f32 %v4685, 0.5
    %v5269 = vmul.f32 %v4687, 0.5
    %v5270 = vmul.f32 %v4689, 0.5
    %v5271 = vmul.f32 %v4693, 0.5
    %v5272 = vmul.f32 %v4695, 0.5
    %v5273 = vmul.f32 %v4697, 0.5
    %v5274 = vmul.f32 %v4699, 0.5
    %v5275 = vmul.f32 %v4703, 0.5
    %v5276 = vmul.f32 %v4705, 0.5
    %v5277 = vmul.f32 %v4707, 0.5
    %v5278 = vmul.f32 %v4709, 0.5
    %v5279 = vmul.f32 %v4713, 0.5
    %v5280 = vmul.f32 %v4715, 0.5
    %v5281 = vmul.f32 %v4717, 0.5
    %v5282 = vmul.f32 %v4719, 0.5
    %v5283 = vmul.f32 %v4723, 0.5
    %v5284 = vmul.f32 %v4725, 0.5
    %v5285 = vmul.f32 %v4727, 0.5
    %v5286 = vmul.f32 %v4729, 0.5
    %v5287 = vmul.f32 %v4733, 0.5
    %v5288 = vmul.f32 %v4735, 0.5
    %v5289 = vmul.f32 %v4737, 0.5
    %v5290 = vmul.f32 %v4739, 0.5
    %v5291 = vmul.f32 %v4743, 0.5
    %v5292 = vmul.f32 %v4745, 0.5
    %v5293 = vmul.f32 %v4747, 0.5
    %v5294 = vmul.f32 %v4749, 0.5
    %v5295 = vmul.f32 %v4753, 0.5
    %v5296 = vmul.f32 %v4755, 0.5
    %v5297 = vmul.f32 %v4757, 0.5
    %v5298 = vmul.f32 %v4759, 0.5
    %v5299 = vmul.f32 %v4763, 0.5
    %v5300 = vmul.f32 %v4765, 0.5
    %v5301 = vmul.f32 %v4767, 0.5
    %v5302 = vmul.f32 %v4769, 0.5
    %v5303 = vmul.f32 %v4773, 0.5
    %v5304 = vmul.f32 %v4775, 0.5
    %v5305 = vmul.f32 %v4777, 0.5
    %v5306 = vmul.f32 %v4779, 0.5
    %v5307 = vmul.f32 %v4783, 0.5
    %v5308 = vmul.f32 %v4785, 0.5
    %v5309 = vmul.f32 %v4787, 0.5
    %v5310 = vmul.f32 %v4789, 0.5
    %v5311 = vmul.f32 %v4793, 0.5
    %v5312 = vmul.f32 %v4795, 0.5
    %v5313 = vmul.f32 %v4797, 0.5
    %v5314 = vmul.f32 %v4799, 0.5
    %v5315 = vmul.f32 %v4803, 0.5
    %v5316 = vmul.f32 %v4805, 0.5
    %v5317 = vmul.f32 %v4807, 0.5
    %v5318 = vmul.f32 %v4809, 0.5
    %v5319 = vmul.f32 %v4813, 0.5
    %v5320 = vmul.f32 %v4815, 0.5
    %v5321 = vmul.f32 %v4817, 0.5
    %v5322 = vmul.f32 %v4819, 0.5
    %v5323 = vmul.f32 %v4823, 0.5
    %v5324 = vmul.f32 %v4825, 0.5
    %v5325 = vmul.f32 %v4827, 0.5
    %v5326 = vmul.f32 %v4829, 0.5
    %v5327 = vmul.f32 %v4833, 0.5
    %v5328 = vmul.f32 %v4835, 0.5
    %v5329 = vmul.f32 %v4837, 0.5
    %v5330 = vmul.f32 %v4839, 0.5
    %v5331 = vmul.f32 %v4843, 0.5
    %v5332 = vmul.f32 %v4845, 0.5
    %v5333 = vmul.f32 %v4847, 0.5
    %v5334 = vmul.f32 %v4849, 0.5
    %v5335 = vmul.f32 %v4853, 0.5
    %v5336 = vmul.f32 %v4855, 0.5
    %v5337 = vmul.f32 %v4857, 0.5
    %v5338 = vmul.f32 %v4859, 0.5
    %v5339 = vmul.f32 %v4863, 0.5
    %v5340 = vmul.f32 %v4865, 0.5
    %v5341 = vmul.f32 %v4867, 0.5
    %v5342 = vmul.f32 %v4869, 0.5
    %v5343 = vmul.f32 %v4873, 0.5
    %v5344 = vmul.f32 %v4875, 0.5
    %v5345 = vmul.f32 %v4877, 0.5
    %v5346 = vmul.f32 %v4879, 0.5
    %v5347 = vmul.f32 %v4883, 0.5
    %v5348 = vmul.f32 %v4885, 0.5
    %v5349 = vmul.f32 %v4887, 0.5
    %v5350 = vmul.f32 %v4889, 0.5
    %v5351 = vmul.f32 %v4893, 0.5
    %v5352 = vmul.f32 %v4895, 0.5
    %v5353 = vmul.f32 %v4897, 0.5
    %v5354 = vmul.f32 %v4899, 0.5
    %v5355 = vmul.f32 %v4903, 0.5
    %v5356 = vmul.f32 %v4905, 0.5
    %v5357 = vmul.f32 %v4907, 0.5
    %v5358 = vmul.f32 %v4909, 0.5
    %v5359 = vmul.f32 %v4913, 0.5
    %v5360 = vmul.f32 %v4915, 0.5
    %v5361 = vmul.f32 %v4917, 0.5
    %v5362 = vmul.f32 %v4919, 0.5
    %v5363 = vmul.f32 %v4923, 0.5
    %v5364 = vmul.f32 %v4925, 0.5
    %v5365 = vmul.f32 %v4927, 0.5
    %v5366 = vmul.f32 %v4929, 0.5
    %v5367 = vmul.f32 %v4933, 0.5
    %v5368 = vmul.f32 %v4935, 0.5
    %v5369 = vmul.f32 %v4937, 0.5
    %v5370 = vmul.f32 %v4939, 0.5
    %v5371 = vmul.f32 %v4943, 0.5
    %v5372 = vmul.f32 %v4945, 0.5
    %v5373 = vmul.f32 %v4947, 0.5
    %v5374 = vmul.f32 %v4949, 0.5
    %v5375 = vmul.f32 %v4953, 0.5
    %v5376 = vmul.f32 %v4955, 0.5
    %v5377 = vmul.f32 %v4957, 0.5
    %v5378 = vmul.f32 %v4959, 0.5
    %v5379 = vmul.f32 %v4963, 0.5
    %v5380 = vmul.f32 %v4965, 0.5
    %v5381 = vmul.f32 %v4967, 0.5
    %v5382 = vmul.f32 %v4969, 0.5
    %v5383 = vmul.f32 %v4973, 0.5
    %v5384 = vmul.f32 %v4975, 0.5
    %v5385 = vmul.f32 %v4977, 0.5
    %v5386 = vmul.f32 %v4979, 0.5
    %v5387 = vmul.f32 %v4983, 0.5
    %v5388 = vmul.f32 %v4985, 0.5
    %v5389 = vmul.f32 %v4987, 0.5
    %v5390 = vmul.f32 %v4989, 0.5
    %v5391 = vmul.f32 %v4993, 0.5
    %v5392 = vmul.f32 %v4995, 0.5
    %v5393 = vmul.f32 %v4997, 0.5
    %v5394 = vmul.f32 %v4999, 0.5
    %v5395 = vmul.f32 %v5003, 0.5
    %v5396 = vmul.f32 %v5005, 0.5
    %v5397 = vmul.f32 %v5007, 0.5
    %v5398 = vmul.f32 %v5009, 0.5
    %v5399 = vmul.f32 %v5013, 0.5
    %v5400 = vmul.f32 %v5015, 0.5
    %v5401 = vmul.f32 %v5017, 0.5
    %v5402 = vmul.f32 %v5019, 0.5
    %v5403 = vmul.f32 %v5023, 0.5
    %v5404 = vmul.f32 %v5025, 0.5
    %v5405 = vmul.f32 %v5027, 0.5
    %v5406 = vmul.f32 %v5029, 0.5
    %v5407 = vmul.f32 %v5033, 0.5
    %v5408 = vmul.f32 %v5035, 0.5
    %v5409 = vmul.f32 %v5037, 0.5
    %v5410 = vmul.f32 %v5039, 0.5
    %v5411 = vmul.f32 %v5043, 0.5
    %v5412 = vmul.f32 %v5045, 0.5
    %v5413 = vmul.f32 %v5047, 0.5
    %v5414 = vmul.f32 %v5049, 0.5
    %v5415 = vmul.f32 %v5053, 0.5
    %v5416 = vmul.f32 %v5055, 0.5
    %v5417 = vmul.f32 %v5057, 0.5
    %v5418 = vmul.f32 %v5059, 0.5
    %v5419 = vmul.f32 %v5063, 0.5
    %v5420 = vmul.f32 %v5065, 0.5
    %v5421 = vmul.f32 %v5067, 0.5
    %v5422 = vmul.f32 %v5069, 0.5
    %v5423 = vmul.f32 %v5073, 0.5
    %v5424 = vmul.f32 %v5075, 0.5
    %v5425 = vmul.f32 %v5077, 0.5
    %v5426 = vmul.f32 %v5079, 0.5
    %v5427 = vmul.f32 %v5083, 0.5
    %v5428 = vmul.f32 %v5085, 0.5
    %v5429 = vmul.f32 %v5087, 0.5
    %v5430 = vmul.f32 %v5089, 0.5
    %v5431 = vmul.f32 %v5093, 0.5
    %v5432 = vmul.f32 %v5095, 0.5
    %v5433 = vmul.f32 %v5097, 0.5
    %v5434 = vmul.f32 %v5099, 0.5
    %v5435 = vmul.f32 %v5103, 0.5
    %v5436 = vmul.f32 %v5105, 0.5
    %v5437 = vmul.f32 %v5107, 0.5
    %v5438 = vmul.f32 %v5109, 0.5
    %v5439 = vmul.f32 %v5113, 0.5
    %v5440 = vmul.f32 %v5115, 0.5
    %v5441 = vmul.f32 %v5117, 0.5
    %v5442 = vmul.f32 %v5119, 0.5
    %v5443 = vmul.f32 %v5123, 0.5
    %v5444 = vmul.f32 %v5125, 0.5
    %v5445 = vmul.f32 %v5127, 0.5
    %v5446 = vmul.f32 %v5129, 0.5
    %v5447 = vmul.f32 %v5133, 0.5
    %v5448 = vmul.f32 %v5135, 0.5
    %v5449 = vmul.f32 %v5137, 0.5
    %v5450 = vmul.f32 %v5139, 0.5
    %v5451 = vmul.f32 %v5143, 0.5
    %v5452 = vmul.f32 %v5145, 0.5
    %v5453 = vmul.f32 %v5147, 0.5
    %v5454 = vmul.f32 %v5149, 0.5
    %v5455 = vmul.f32 %v5153, 0.5
    %v5456 = vmul.f32 %v5155, 0.5
    %v5457 = vmul.f32 %v5157, 0.5
    %v5458 = vmul.f32 %v5159, 0.5
    %v5459 = vmul.f32 %v5163, 0.5
    %v5460 = vmul.f32 %v5165, 0.5
    %v5461 = vmul.f32 %v5167, 0.5
    %v5462 = vmul.f32 %v5169, 0.5
    %v5463 = vmul.f32 %v5173, 0.5
    %v5464 = vmul.f32 %v5175, 0.5
    %v5465 = vmul.f32 %v5177, 0.5
    %v5466 = vmul.f32 %v5179, 0.5
    %v5467 = vmul.f32 %v5183, 0.5
    %v5468 = vmul.f32 %v5185, 0.5
    %v5469 = vmul.f32 %v5187, 0.5
    %v5470 = vmul.f32 %v5189, 0.5
    %v5471 = vmul.f32 %v5193, 0.5
    %v5472 = vmul.f32 %v5195, 0.5
    %v5473 = vmul.f32 %v5197, 0.5
    %v5474 = vmul.f32 %v5199, 0.5
    %v5475 = vmul.f32 %v5203, 0.5
    %v5476 = vmul.f32 %v5205, 0.5
    %v5477 = vmul.f32 %v5207, 0.5
    %v5478 = vmul.f32 %v5209, 0.5
    %v5479 = vmul.f32 %v5213, 0.5
    %v5480 = vmul.f32 %v5215, 0.5
    %v5481 = vmul.f32 %v5217, 0.5
    %v5482 = vmul.f32 %v5219, 0.5
    %v5483 = vmul.f32 %v5223, 0.5
    %v5484 = vmul.f32 %v5225, 0.5
    %v5485 = vmul.f32 %v5227, 0.5
    %v5486 = vmul.f32 %v5229, 0.5
    %v5487 = vmul.f32 %v4593, %v4593
    %v5488 = vmul.f32 %v4595, %v4595
    %v5489 = vmul.f32 %v4597, %v4597
    %v5490 = vmul.f32 %v4599, %v4599
    %v5491 = vmul.f32 %v4603, %v4603
    %v5492 = vmul.f32 %v4605, %v4605
    %v5493 = vmul.f32 %v4607, %v4607
    %v5494 = vmul.f32 %v4609, %v4609
    %v5495 = vmul.f32 %v4613, %v4613
    %v5496 = vmul.f32 %v4615, %v4615
    %v5497 = vmul.f32 %v4617, %v4617
    %v5498 = vmul.f32 %v4619, %v4619
    %v5499 = vmul.f32 %v4623, %v4623
    %v5500 = vmul.f32 %v4625, %v4625
    %v5501 = vmul.f32 %v4627, %v4627
    %v5502 = vmul.f32 %v4629, %v4629
    %v5503 = vmul.f32 %v4633, %v4633
    %v5504 = vmul.f32 %v4635, %v4635
    %v5505 = vmul.f32 %v4637, %v4637
    %v5506 = vmul.f32 %v4639, %v4639
    %v5507 = vmul.f32 %v4643, %v4643
    %v5508 = vmul.f32 %v4645, %v4645
    %v5509 = vmul.f32 %v4647, %v4647
    %v5510 = vmul.f32 %v4649, %v4649
    %v5511 = vmul.f32 %v4653, %v4653
    %v5512 = vmul.f32 %v4655, %v4655
    %v5513 = vmul.f32 %v4657, %v4657
    %v5514 = vmul.f32 %v4659, %v4659
    %v5515 = vmul.f32 %v4663, %v4663
    %v5516 = vmul.f32 %v4665, %v4665
    %v5517 = vmul.f32 %v4667, %v4667
    %v5518 = vmul.f32 %v4669, %v4669
    %v5519 = vmul.f32 %v4673, %v4673
    %v5520 = vmul.f32 %v4675, %v4675
    %v5521 = vmul.f32 %v4677, %v4677
    %v5522 = vmul.f32 %v4679, %v4679
    %v5523 = vmul.f32 %v4683, %v4683
    %v5524 = vmul.f32 %v4685, %v4685
    %v5525 = vmul.f32 %v4687, %v4687
    %v5526 = vmul.f32 %v4689, %v4689
    %v5527 = vmul.f32 %v4693, %v4693
    %v5528 = vmul.f32 %v4695, %v4695
    %v5529 = vmul.f32 %v4697, %v4697
    %v5530 = vmul.f32 %v4699, %v4699
    %v5531 = vmul.f32 %v4703, %v4703
    %v5532 = vmul.f32 %v4705, %v4705
    %v5533 = vmul.f32 %v4707, %v4707
    %v5534 = vmul.f32 %v4709, %v4709
    %v5535 = vmul.f32 %v4713, %v4713
    %v5536 = vmul.f32 %v4715, %v4715
    %v5537 = vmul.f32 %v4717, %v4717
    %v5538 = vmul.f32 %v4719, %v4719
    %v5539 = vmul.f32 %v4723, %v4723
    %v5540 = vmul.f32 %v4725, %v4725
    %v5541 = vmul.f32 %v4727, %v4727
    %v5542 = vmul.f32 %v4729, %v4729
    %v5543 = vmul.f32 %v4733, %v4733
    %v5544 = vmul.f32 %v4735, %v4735
    %v5545 = vmul.f32 %v4737, %v4737
    %v5546 = vmul.f32 %v4739, %v4739
    %v5547 = vmul.f32 %v4743, %v4743
    %v5548 = vmul.f32 %v4745, %v4745
    %v5549 = vmul.f32 %v4747, %v4747
    %v5550 = vmul.f32 %v4749, %v4749
    %v5551 = vmul.f32 %v4753, %v4753
    %v5552 = vmul.f32 %v4755, %v4755
    %v5553 = vmul.f32 %v4757, %v4757
    %v5554 = vmul.f32 %v4759, %v4759
    %v5555 = vmul.f32 %v4763, %v4763
    %v5556 = vmul.f32 %v4765, %v4765
    %v5557 = vmul.f32 %v4767, %v4767
    %v5558 = vmul.f32 %v4769, %v4769
    %v5559 = vmul.f32 %v4773, %v4773
    %v5560 = vmul.f32 %v4775, %v4775
    %v5561 = vmul.f32 %v4777, %v4777
    %v5562 = vmul.f32 %v4779, %v4779
    %v5563 = vmul.f32 %v4783, %v4783
    %v5564 = vmul.f32 %v4785, %v4785
    %v5565 = vmul.f32 %v4787, %v4787
    %v5566 = vmul.f32 %v4789, %v4789
    %v5567 = vmul.f32 %v4793, %v4793
    %v5568 = vmul.f32 %v4795, %v4795
    %v5569 = vmul.f32 %v4797, %v4797
    %v5570 = vmul.f32 %v4799, %v4799
    %v5571 = vmul.f32 %v4803, %v4803
    %v5572 = vmul.f32 %v4805, %v4805
    %v5573 = vmul.f32 %v4807, %v4807
    %v5574 = vmul.f32 %v4809, %v4809
    %v5575 = vmul.f32 %v4813, %v4813
    %v5576 = vmul.f32 %v4815, %v4815
    %v5577 = vmul.f32 %v4817, %v4817
    %v5578 = vmul.f32 %v4819, %v4819
    %v5579 = vmul.f32 %v4823, %v4823
    %v5580 = vmul.f32 %v4825, %v4825
    %v5581 = vmul.f32 %v4827, %v4827
    %v5582 = vmul.f32 %v4829, %v4829
    %v5583 = vmul.f32 %v4833, %v4833
    %v5584 = vmul.f32 %v4835, %v4835
    %v5585 = vmul.f32 %v4837, %v4837
    %v5586 = vmul.f32 %v4839, %v4839
    %v5587 = vmul.f32 %v4843, %v4843
    %v5588 = vmul.f32 %v4845, %v4845
    %v5589 = vmul.f32 %v4847, %v4847
    %v5590 = vmul.f32 %v4849, %v4849
    %v5591 = vmul.f32 %v4853, %v4853
    %v5592 = vmul.f32 %v4855, %v4855
    %v5593 = vmul.f32 %v4857, %v4857
    %v5594 = vmul.f32 %v4859, %v4859
    %v5595 = vmul.f32 %v4863, %v4863
    %v5596 = vmul.f32 %v4865, %v4865
    %v5597 = vmul.f32 %v4867, %v4867
    %v5598 = vmul.f32 %v4869, %v4869
    %v5599 = vmul.f32 %v4873, %v4873
    %v5600 = vmul.f32 %v4875, %v4875
    %v5601 = vmul.f32 %v4877, %v4877
    %v5602 = vmul.f32 %v4879, %v4879
    %v5603 = vmul.f32 %v4883, %v4883
    %v5604 = vmul.f32 %v4885, %v4885
    %v5605 = vmul.f32 %v4887, %v4887
    %v5606 = vmul.f32 %v4889, %v4889
    %v5607 = vmul.f32 %v4893, %v4893
    %v5608 = vmul.f32 %v4895, %v4895
    %v5609 = vmul.f32 %v4897, %v4897
    %v5610 = vmul.f32 %v4899, %v4899
    %v5611 = vmul.f32 %v4903, %v4903
    %v5612 = vmul.f32 %v4905, %v4905
    %v5613 = vmul.f32 %v4907, %v4907
    %v5614 = vmul.f32 %v4909, %v4909
    %v5615 = vmul.f32 %v4913, %v4913
    %v5616 = vmul.f32 %v4915, %v4915
    %v5617 = vmul.f32 %v4917, %v4917
    %v5618 = vmul.f32 %v4919, %v4919
    %v5619 = vmul.f32 %v4923, %v4923
    %v5620 = vmul.f32 %v4925, %v4925
    %v5621 = vmul.f32 %v4927, %v4927
    %v5622 = vmul.f32 %v4929, %v4929
    %v5623 = vmul.f32 %v4933, %v4933
    %v5624 = vmul.f32 %v4935, %v4935
    %v5625 = vmul.f32 %v4937, %v4937
    %v5626 = vmul.f32 %v4939, %v4939
    %v5627 = vmul.f32 %v4943, %v4943
    %v5628 = vmul.f32 %v4945, %v4945
    %v5629 = vmul.f32 %v4947, %v4947
    %v5630 = vmul.f32 %v4949, %v4949
    %v5631 = vmul.f32 %v4953, %v4953
    %v5632 = vmul.f32 %v4955, %v4955
    %v5633 = vmul.f32 %v4957, %v4957
    %v5634 = vmul.f32 %v4959, %v4959
    %v5635 = vmul.f32 %v4963, %v4963
    %v5636 = vmul.f32 %v4965, %v4965
    %v5637 = vmul.f32 %v4967, %v4967
    %v5638 = vmul.f32 %v4969, %v4969
    %v5639 = vmul.f32 %v4973, %v4973
    %v5640 = vmul.f32 %v4975, %v4975
    %v5641 = vmul.f32 %v4977, %v4977
    %v5642 = vmul.f32 %v4979, %v4979
    %v5643 = vmul.f32 %v4983, %v4983
    %v5644 = vmul.f32 %v4985, %v4985
    %v5645 = vmul.f32 %v4987, %v4987
    %v5646 = vmul.f32 %v4989, %v4989
    %v5647 = vmul.f32 %v4993, %v4993
    %v5648 = vmul.f32 %v4995, %v4995
    %v5649 = vmul.f32 %v4997, %v4997
    %v5650 = vmul.f32 %v4999, %v4999
    %v5651 = vmul.f32 %v5003, %v5003
    %v5652 = vmul.f32 %v5005, %v5005
    %v5653 = vmul.f32 %v5007, %v5007
    %v5654 = vmul.f32 %v5009, %v5009
    %v5655 = vmul.f32 %v5013, %v5013
    %v5656 = vmul.f32 %v5015, %v5015
    %v5657 = vmul.f32 %v5017, %v5017
    %v5658 = vmul.f32 %v5019, %v5019
    %v5659 = vmul.f32 %v5023, %v5023
    %v5660 = vmul.f32 %v5025, %v5025
    %v5661 = vmul.f32 %v5027, %v5027
    %v5662 = vmul.f32 %v5029, %v5029
    %v5663 = vmul.f32 %v5033, %v5033
    %v5664 = vmul.f32 %v5035, %v5035
    %v5665 = vmul.f32 %v5037, %v5037
    %v5666 = vmul.f32 %v5039, %v5039
    %v5667 = vmul.f32 %v5043, %v5043
    %v5668 = vmul.f32 %v5045, %v5045
    %v5669 = vmul.f32 %v5047, %v5047
    %v5670 = vmul.f32 %v5049, %v5049
    %v5671 = vmul.f32 %v5053, %v5053
    %v5672 = vmul.f32 %v5055, %v5055
    %v5673 = vmul.f32 %v5057, %v5057
    %v5674 = vmul.f32 %v5059, %v5059
    %v5675 = vmul.f32 %v5063, %v5063
    %v5676 = vmul.f32 %v5065, %v5065
    %v5677 = vmul.f32 %v5067, %v5067
    %v5678 = vmul.f32 %v5069, %v5069
    %v5679 = vmul.f32 %v5073, %v5073
    %v5680 = vmul.f32 %v5075, %v5075
    %v5681 = vmul.f32 %v5077, %v5077
    %v5682 = vmul.f32 %v5079, %v5079
    %v5683 = vmul.f32 %v5083, %v5083
    %v5684 = vmul.f32 %v5085, %v5085
    %v5685 = vmul.f32 %v5087, %v5087
    %v5686 = vmul.f32 %v5089, %v5089
    %v5687 = vmul.f32 %v5093, %v5093
    %v5688 = vmul.f32 %v5095, %v5095
    %v5689 = vmul.f32 %v5097, %v5097
    %v5690 = vmul.f32 %v5099, %v5099
    %v5691 = vmul.f32 %v5103, %v5103
    %v5692 = vmul.f32 %v5105, %v5105
    %v5693 = vmul.f32 %v5107, %v5107
    %v5694 = vmul.f32 %v5109, %v5109
    %v5695 = vmul.f32 %v5113, %v5113
    %v5696 = vmul.f32 %v5115, %v5115
    %v5697 = vmul.f32 %v5117, %v5117
    %v5698 = vmul.f32 %v5119, %v5119
    %v5699 = vmul.f32 %v5123, %v5123
    %v5700 = vmul.f32 %v5125, %v5125
    %v5701 = vmul.f32 %v5127, %v5127
    %v5702 = vmul.f32 %v5129, %v5129
    %v5703 = vmul.f32 %v5133, %v5133
    %v5704 = vmul.f32 %v5135, %v5135
    %v5705 = vmul.f32 %v5137, %v5137
    %v5706 = vmul.f32 %v5139, %v5139
    %v5707 = vmul.f32 %v5143, %v5143
    %v5708 = vmul.f32 %v5145, %v5145
    %v5709 = vmul.f32 %v5147, %v5147
    %v5710 = vmul.f32 %v5149, %v5149
    %v5711 = vmul.f32 %v5153, %v5153
    %v5712 = vmul.f32 %v5155, %v5155
    %v5713 = vmul.f32 %v5157, %v5157
    %v5714 = vmul.f32 %v5159, %v5159
    %v5715 = vmul.f32 %v5163, %v5163
    %v5716 = vmul.f32 %v5165, %v5165
    %v5717 = vmul.f32 %v5167, %v5167
    %v5718 = vmul.f32 %v5169, %v5169
    %v5719 = vmul.f32 %v5173, %v5173
    %v5720 = vmul.f32 %v5175, %v5175
    %v5721 = vmul.f32 %v5177, %v5177
    %v5722 = vmul.f32 %v5179, %v5179
    %v5723 = vmul.f32 %v5183, %v5183
    %v5724 = vmul.f32 %v5185, %v5185
    %v5725 = vmul.f32 %v5187, %v5187
    %v5726 = vmul.f32 %v5189, %v5189
    %v5727 = vmul.f32 %v5193, %v5193
    %v5728 = vmul.f32 %v5195, %v5195
    %v5729 = vmul.f32 %v5197, %v5197
    %v5730 = vmul.f32 %v5199, %v5199
    %v5731 = vmul.f32 %v5203, %v5203
    %v5732 = vmul.f32 %v5205, %v5205
    %v5733 = vmul.f32 %v5207, %v5207
    %v5734 = vmul.f32 %v5209, %v5209
    %v5735 = vmul.f32 %v5213, %v5213
    %v5736 = vmul.f32 %v5215, %v5215
    %v5737 = vmul.f32 %v5217, %v5217
    %v5738 = vmul.f32 %v5219, %v5219
    %v5739 = vmul.f32 %v5223, %v5223
    %v5740 = vmul.f32 %v5225, %v5225
    %v5741 = vmul.f32 %v5227, %v5227
    %v5742 = vmul.f32 %v5229, %v5229
    %v5743 = vmul.f32 %v5487, %v4593
    %v5744 = vmul.f32 %v5488, %v4595
    %v5745 = vmul.f32 %v5489, %v4597
    %v5746 = vmul.f32 %v5490, %v4599
    %v5747 = vmul.f32 %v5491, %v4603
    %v5748 = vmul.f32 %v5492, %v4605
    %v5749 = vmul.f32 %v5493, %v4607
    %v5750 = vmul.f32 %v5494, %v4609
    %v5751 = vmul.f32 %v5495, %v4613
    %v5752 = vmul.f32 %v5496, %v4615
    %v5753 = vmul.f32 %v5497, %v4617
    %v5754 = vmul.f32 %v5498, %v4619
    %v5755 = vmul.f32 %v5499, %v4623
    %v5756 = vmul.f32 %v5500, %v4625
    %v5757 = vmul.f32 %v5501, %v4627
    %v5758 = vmul.f32 %v5502, %v4629
    %v5759 = vmul.f32 %v5503, %v4633
    %v5760 = vmul.f32 %v5504, %v4635
    %v5761 = vmul.f32 %v5505, %v4637
    %v5762 = vmul.f32 %v5506, %v4639
    %v5763 = vmul.f32 %v5507, %v4643
    %v5764 = vmul.f32 %v5508, %v4645
    %v5765 = vmul.f32 %v5509, %v4647
    %v5766 = vmul.f32 %v5510, %v4649
    %v5767 = vmul.f32 %v5511, %v4653
    %v5768 = vmul.f32 %v5512, %v4655
    %v5769 = vmul.f32 %v5513, %v4657
    %v5770 = vmul.f32 %v5514, %v4659
    %v5771 = vmul.f32 %v5515, %v4663
    %v5772 = vmul.f32 %v5516, %v4665
    %v5773 = vmul.f32 %v5517, %v4667
    %v5774 = vmul.f32 %v5518, %v4669
    %v5775 = vmul.f32 %v5519, %v4673
    %v5776 = vmul.f32 %v5520, %v4675
    %v5777 = vmul.f32 %v5521, %v4677
    %v5778 = vmul.f32 %v5522, %v4679
    %v5779 = vmul.f32 %v5523, %v4683
    %v5780 = vmul.f32 %v5524, %v4685
    %v5781 = vmul.f32 %v5525, %v4687
    %v5782 = vmul.f32 %v5526, %v4689
    %v5783 = vmul.f32 %v5527, %v4693
    %v5784 = vmul.f32 %v5528, %v4695
    %v5785 = vmul.f32 %v5529, %v4697
    %v5786 = vmul.f32 %v5530, %v4699
    %v5787 = vmul.f32 %v5531, %v4703
    %v5788 = vmul.f32 %v5532, %v4705
    %v5789 = vmul.f32 %v5533, %v4707
    %v5790 = vmul.f32 %v5534, %v4709
    %v5791 = vmul.f32 %v5535, %v4713
    %v5792 = vmul.f32 %v5536, %v4715
    %v5793 = vmul.f32 %v5537, %v4717
    %v5794 = vmul.f32 %v5538, %v4719
    %v5795 = vmul.f32 %v5539, %v4723
    %v5796 = vmul.f32 %v5540, %v4725
    %v5797 = vmul.f32 %v5541, %v4727
    %v5798 = vmul.f32 %v5542, %v4729
    %v5799 = vmul.f32 %v5543, %v4733
    %v5800 = vmul.f32 %v5544, %v4735
    %v5801 = vmul.f32 %v5545, %v4737
    %v5802 = vmul.f32 %v5546, %v4739
    %v5803 = vmul.f32 %v5547, %v4743
    %v5804 = vmul.f32 %v5548, %v4745
    %v5805 = vmul.f32 %v5549, %v4747
    %v5806 = vmul.f32 %v5550, %v4749
    %v5807 = vmul.f32 %v5551, %v4753
    %v5808 = vmul.f32 %v5552, %v4755
    %v5809 = vmul.f32 %v5553, %v4757
    %v5810 = vmul.f32 %v5554, %v4759
    %v5811 = vmul.f32 %v5555, %v4763
    %v5812 = vmul.f32 %v5556, %v4765
    %v5813 = vmul.f32 %v5557, %v4767
    %v5814 = vmul.f32 %v5558, %v4769
    %v5815 = vmul.f32 %v5559, %v4773
    %v5816 = vmul.f32 %v5560, %v4775
    %v5817 = vmul.f32 %v5561, %v4777
    %v5818 = vmul.f32 %v5562, %v4779
    %v5819 = vmul.f32 %v5563, %v4783
    %v5820 = vmul.f32 %v5564, %v4785
    %v5821 = vmul.f32 %v5565, %v4787
    %v5822 = vmul.f32 %v5566, %v4789
    %v5823 = vmul.f32 %v5567, %v4793
    %v5824 = vmul.f32 %v5568, %v4795
    %v5825 = vmul.f32 %v5569, %v4797
    %v5826 = vmul.f32 %v5570, %v4799
    %v5827 = vmul.f32 %v5571, %v4803
    %v5828 = vmul.f32 %v5572, %v4805
    %v5829 = vmul.f32 %v5573, %v4807
    %v5830 = vmul.f32 %v5574, %v4809
    %v5831 = vmul.f32 %v5575, %v4813
    %v5832 = vmul.f32 %v5576, %v4815
    %v5833 = vmul.f32 %v5577, %v4817
    %v5834 = vmul.f32 %v5578, %v4819
    %v5835 = vmul.f32 %v5579, %v4823
    %v5836 = vmul.f32 %v5580, %v4825
    %v5837 = vmul.f32 %v5581, %v4827
    %v5838 = vmul.f32 %v5582, %v4829
    %v5839 = vmul.f32 %v5583, %v4833
    %v5840 = vmul.f32 %v5584, %v4835
    %v5841 = vmul.f32 %v5585, %v4837
    %v5842 = vmul.f32 %v5586, %v4839
    %v5843 = vmul.f32 %v5587, %v4843
    %v5844 = vmul.f32 %v5588, %v4845
    %v5845 = vmul.f32 %v5589, %v4847
    %v5846 = vmul.f32 %v5590, %v4849
    %v5847 = vmul.f32 %v5591, %v4853
    %v5848 = vmul.f32 %v5592, %v4855
    %v5849 = vmul.f32 %v5593, %v4857
    %v5850 = vmul.f32 %v5594, %v4859
    %v5851 = vmul.f32 %v5595, %v4863
    %v5852 = vmul.f32 %v5596, %v4865
    %v5853 = vmul.f32 %v5597, %v4867
    %v5854 = vmul.f32 %v5598, %v4869
    %v5855 = vmul.f32 %v5599, %v4873
    %v5856 = vmul.f32 %v5600, %v4875
    %v5857 = vmul.f32 %v5601, %v4877
    %v5858 = vmul.f32 %v5602, %v4879
    %v5859 = vmul.f32 %v5603, %v4883
    %v5860 = vmul.f32 %v5604, %v4885
    %v5861 = vmul.f32 %v5605, %v4887
    %v5862 = vmul.f32 %v5606, %v4889
    %v5863 = vmul.f32 %v5607, %v4893
    %v5864 = vmul.f32 %v5608, %v4895
    %v5865 = vmul.f32 %v5609, %v4897
    %v5866 = vmul.f32 %v5610, %v4899
    %v5867 = vmul.f32 %v5611, %v4903
    %v5868 = vmul.f32 %v5612, %v4905
    %v5869 = vmul.f32 %v5613, %v4907
    %v5870 = vmul.f32 %v5614, %v4909
    %v5871 = vmul.f32 %v5615, %v4913
    %v5872 = vmul.f32 %v5616, %v4915
    %v5873 = vmul.f32 %v5617, %v4917
    %v5874 = vmul.f32 %v5618, %v4919
    %v5875 = vmul.f32 %v5619, %v4923
    %v5876 = vmul.f32 %v5620, %v4925
    %v5877 = vmul.f32 %v5621, %v4927
    %v5878 = vmul.f32 %v5622, %v4929
    %v5879 = vmul.f32 %v5623, %v4933
    %v5880 = vmul.f32 %v5624, %v4935
    %v5881 = vmul.f32 %v5625, %v4937
    %v5882 = vmul.f32 %v5626, %v4939
    %v5883 = vmul.f32 %v5627, %v4943
    %v5884 = vmul.f32 %v5628, %v4945
    %v5885 = vmul.f32 %v5629, %v4947
    %v5886 = vmul.f32 %v5630, %v4949
    %v5887 = vmul.f32 %v5631, %v4953
    %v5888 = vmul.f32 %v5632, %v4955
    %v5889 = vmul.f32 %v5633, %v4957
    %v5890 = vmul.f32 %v5634, %v4959
    %v5891 = vmul.f32 %v5635, %v4963
    %v5892 = vmul.f32 %v5636, %v4965
    %v5893 = vmul.f32 %v5637, %v4967
    %v5894 = vmul.f32 %v5638, %v4969
    %v5895 = vmul.f32 %v5639, %v4973
    %v5896 = vmul.f32 %v5640, %v4975
    %v5897 = vmul.f32 %v5641, %v4977
    %v5898 = vmul.f32 %v5642, %v4979
    %v5899 = vmul.f32 %v5643, %v4983
    %v5900 = vmul.f32 %v5644, %v4985
    %v5901 = vmul.f32 %v5645, %v4987
    %v5902 = vmul.f32 %v5646, %v4989
    %v5903 = vmul.f32 %v5647, %v4993
    %v5904 = vmul.f32 %v5648, %v4995
    %v5905 = vmul.f32 %v5649, %v4997
    %v5906 = vmul.f32 %v5650, %v4999
    %v5907 = vmul.f32 %v5651, %v5003
    %v5908 = vmul.f32 %v5652, %v5005
    %v5909 = vmul.f32 %v5653, %v5007
    %v5910 = vmul.f32 %v5654, %v5009
    %v5911 = vmul.f32 %v5655, %v5013
    %v5912 = vmul.f32 %v5656, %v5015
    %v5913 = vmul.f32 %v5657, %v5017
    %v5914 = vmul.f32 %v5658, %v5019
    %v5915 = vmul.f32 %v5659, %v5023
    %v5916 = vmul.f32 %v5660, %v5025
    %v5917 = vmul.f32 %v5661, %v5027
    %v5918 = vmul.f32 %v5662, %v5029
    %v5919 = vmul.f32 %v5663, %v5033
    %v5920 = vmul.f32 %v5664, %v5035
    %v5921 = vmul.f32 %v5665, %v5037
    %v5922 = vmul.f32 %v5666, %v5039
    %v5923 = vmul.f32 %v5667, %v5043
    %v5924 = vmul.f32 %v5668, %v5045
    %v5925 = vmul.f32 %v5669, %v5047
    %v5926 = vmul.f32 %v5670, %v5049
    %v5927 = vmul.f32 %v5671, %v5053
    %v5928 = vmul.f32 %v5672, %v5055
    %v5929 = vmul.f32 %v5673, %v5057
    %v5930 = vmul.f32 %v5674, %v5059
    %v5931 = vmul.f32 %v5675, %v5063
    %v5932 = vmul.f32 %v5676, %v5065
    %v5933 = vmul.f32 %v5677, %v5067
    %v5934 = vmul.f32 %v5678, %v5069
    %v5935 = vmul.f32 %v5679, %v5073
    %v5936 = vmul.f32 %v5680, %v5075
    %v5937 = vmul.f32 %v5681, %v5077
    %v5938 = vmul.f32 %v5682, %v5079
    %v5939 = vmul.f32 %v5683, %v5083
    %v5940 = vmul.f32 %v5684, %v5085
    %v5941 = vmul.f32 %v5685, %v5087
    %v5942 = vmul.f32 %v5686, %v5089
    %v5943 = vmul.f32 %v5687, %v5093
    %v5944 = vmul.f32 %v5688, %v5095
    %v5945 = vmul.f32 %v5689, %v5097
    %v5946 = vmul.f32 %v5690, %v5099
    %v5947 = vmul.f32 %v5691, %v5103
    %v5948 = vmul.f32 %v5692, %v5105
    %v5949 = vmul.f32 %v5693, %v5107
    %v5950 = vmul.f32 %v5694, %v5109
    %v5951 = vmul.f32 %v5695, %v5113
    %v5952 = vmul.f32 %v5696, %v5115
    %v5953 = vmul.f32 %v5697, %v5117
    %v5954 = vmul.f32 %v5698, %v5119
    %v5955 = vmul.f32 %v5699, %v5123
    %v5956 = vmul.f32 %v5700, %v5125
    %v5957 = vmul.f32 %v5701, %v5127
    %v5958 = vmul.f32 %v5702, %v5129
    %v5959 = vmul.f32 %v5703, %v5133
    %v5960 = vmul.f32 %v5704, %v5135
    %v5961 = vmul.f32 %v5705, %v5137
    %v5962 = vmul.f32 %v5706, %v5139
    %v5963 = vmul.f32 %v5707, %v5143
    %v5964 = vmul.f32 %v5708, %v5145
    %v5965 = vmul.f32 %v5709, %v5147
    %v5966 = vmul.f32 %v5710, %v5149
    %v5967 = vmul.f32 %v5711, %v5153
    %v5968 = vmul.f32 %v5712, %v5155
    %v5969 = vmul.f32 %v5713, %v5157
    %v5970 = vmul.f32 %v5714, %v5159
    %v5971 = vmul.f32 %v5715, %v5163
    %v5972 = vmul.f32 %v5716, %v5165
    %v5973 = vmul.f32 %v5717, %v5167
    %v5974 = vmul.f32 %v5718, %v5169
    %v5975 = vmul.f32 %v5719, %v5173
    %v5976 = vmul.f32 %v5720, %v5175
    %v5977 = vmul.f32 %v5721, %v5177
    %v5978 = vmul.f32 %v5722, %v5179
    %v5979 = vmul.f32 %v5723, %v5183
    %v5980 = vmul.f32 %v5724, %v5185
    %v5981 = vmul.f32 %v5725, %v5187
    %v5982 = vmul.f32 %v5726, %v5189
    %v5983 = vmul.f32 %v5727, %v5193
    %v5984 = vmul.f32 %v5728, %v5195
    %v5985 = vmul.f32 %v5729, %v5197
    %v5986 = vmul.f32 %v5730, %v5199
    %v5987 = vmul.f32 %v5731, %v5203
    %v5988 = vmul.f32 %v5732, %v5205
    %v5989 = vmul.f32 %v5733, %v5207
    %v5990 = vmul.f32 %v5734, %v5209
    %v5991 = vmul.f32 %v5735, %v5213
    %v5992 = vmul.f32 %v5736, %v5215
    %v5993 = vmul.f32 %v5737, %v5217
    %v5994 = vmul.f32 %v5738, %v5219
    %v5995 = vmul.f32 %v5739, %v5223
    %v5996 = vmul.f32 %v5740, %v5225
    %v5997 = vmul.f32 %v5741, %v5227
    %v5998 = vmul.f32 %v5742, %v5229
    %v5999 = vmul.f32 %v5743, 0.044715
    %v6000 = vmul.f32 %v5744, 0.044715
    %v6001 = vmul.f32 %v5745, 0.044715
    %v6002 = vmul.f32 %v5746, 0.044715
    %v6003 = vmul.f32 %v5747, 0.044715
    %v6004 = vmul.f32 %v5748, 0.044715
    %v6005 = vmul.f32 %v5749, 0.044715
    %v6006 = vmul.f32 %v5750, 0.044715
    %v6007 = vmul.f32 %v5751, 0.044715
    %v6008 = vmul.f32 %v5752, 0.044715
    %v6009 = vmul.f32 %v5753, 0.044715
    %v6010 = vmul.f32 %v5754, 0.044715
    %v6011 = vmul.f32 %v5755, 0.044715
    %v6012 = vmul.f32 %v5756, 0.044715
    %v6013 = vmul.f32 %v5757, 0.044715
    %v6014 = vmul.f32 %v5758, 0.044715
    %v6015 = vmul.f32 %v5759, 0.044715
    %v6016 = vmul.f32 %v5760, 0.044715
    %v6017 = vmul.f32 %v5761, 0.044715
    %v6018 = vmul.f32 %v5762, 0.044715
    %v6019 = vmul.f32 %v5763, 0.044715
    %v6020 = vmul.f32 %v5764, 0.044715
    %v6021 = vmul.f32 %v5765, 0.044715
    %v6022 = vmul.f32 %v5766, 0.044715
    %v6023 = vmul.f32 %v5767, 0.044715
    %v6024 = vmul.f32 %v5768, 0.044715
    %v6025 = vmul.f32 %v5769, 0.044715
    %v6026 = vmul.f32 %v5770, 0.044715
    %v6027 = vmul.f32 %v5771, 0.044715
    %v6028 = vmul.f32 %v5772, 0.044715
    %v6029 = vmul.f32 %v5773, 0.044715
    %v6030 = vmul.f32 %v5774, 0.044715
    %v6031 = vmul.f32 %v5775, 0.044715
    %v6032 = vmul.f32 %v5776, 0.044715
    %v6033 = vmul.f32 %v5777, 0.044715
    %v6034 = vmul.f32 %v5778, 0.044715
    %v6035 = vmul.f32 %v5779, 0.044715
    %v6036 = vmul.f32 %v5780, 0.044715
    %v6037 = vmul.f32 %v5781, 0.044715
    %v6038 = vmul.f32 %v5782, 0.044715
    %v6039 = vmul.f32 %v5783, 0.044715
    %v6040 = vmul.f32 %v5784, 0.044715
    %v6041 = vmul.f32 %v5785, 0.044715
    %v6042 = vmul.f32 %v5786, 0.044715
    %v6043 = vmul.f32 %v5787, 0.044715
    %v6044 = vmul.f32 %v5788, 0.044715
    %v6045 = vmul.f32 %v5789, 0.044715
    %v6046 = vmul.f32 %v5790, 0.044715
    %v6047 = vmul.f32 %v5791, 0.044715
    %v6048 = vmul.f32 %v5792, 0.044715
    %v6049 = vmul.f32 %v5793, 0.044715
    %v6050 = vmul.f32 %v5794, 0.044715
    %v6051 = vmul.f32 %v5795, 0.044715
    %v6052 = vmul.f32 %v5796, 0.044715
    %v6053 = vmul.f32 %v5797, 0.044715
    %v6054 = vmul.f32 %v5798, 0.044715
    %v6055 = vmul.f32 %v5799, 0.044715
    %v6056 = vmul.f32 %v5800, 0.044715
    %v6057 = vmul.f32 %v5801, 0.044715
    %v6058 = vmul.f32 %v5802, 0.044715
    %v6059 = vmul.f32 %v5803, 0.044715
    %v6060 = vmul.f32 %v5804, 0.044715
    %v6061 = vmul.f32 %v5805, 0.044715
    %v6062 = vmul.f32 %v5806, 0.044715
    %v6063 = vmul.f32 %v5807, 0.044715
    %v6064 = vmul.f32 %v5808, 0.044715
    %v6065 = vmul.f32 %v5809, 0.044715
    %v6066 = vmul.f32 %v5810, 0.044715
    %v6067 = vmul.f32 %v5811, 0.044715
    %v6068 = vmul.f32 %v5812, 0.044715
    %v6069 = vmul.f32 %v5813, 0.044715
    %v6070 = vmul.f32 %v5814, 0.044715
    %v6071 = vmul.f32 %v5815, 0.044715
    %v6072 = vmul.f32 %v5816, 0.044715
    %v6073 = vmul.f32 %v5817, 0.044715
    %v6074 = vmul.f32 %v5818, 0.044715
    %v6075 = vmul.f32 %v5819, 0.044715
    %v6076 = vmul.f32 %v5820, 0.044715
    %v6077 = vmul.f32 %v5821, 0.044715
    %v6078 = vmul.f32 %v5822, 0.044715
    %v6079 = vmul.f32 %v5823, 0.044715
    %v6080 = vmul.f32 %v5824, 0.044715
    %v6081 = vmul.f32 %v5825, 0.044715
    %v6082 = vmul.f32 %v5826, 0.044715
    %v6083 = vmul.f32 %v5827, 0.044715
    %v6084 = vmul.f32 %v5828, 0.044715
    %v6085 = vmul.f32 %v5829, 0.044715
    %v6086 = vmul.f32 %v5830, 0.044715
    %v6087 = vmul.f32 %v5831, 0.044715
    %v6088 = vmul.f32 %v5832, 0.044715
    %v6089 = vmul.f32 %v5833, 0.044715
    %v6090 = vmul.f32 %v5834, 0.044715
    %v6091 = vmul.f32 %v5835, 0.044715
    %v6092 = vmul.f32 %v5836, 0.044715
    %v6093 = vmul.f32 %v5837, 0.044715
    %v6094 = vmul.f32 %v5838, 0.044715
    %v6095 = vmul.f32 %v5839, 0.044715
    %v6096 = vmul.f32 %v5840, 0.044715
    %v6097 = vmul.f32 %v5841, 0.044715
    %v6098 = vmul.f32 %v5842, 0.044715
    %v6099 = vmul.f32 %v5843, 0.044715
    %v6100 = vmul.f32 %v5844, 0.044715
    %v6101 = vmul.f32 %v5845, 0.044715
    %v6102 = vmul.f32 %v5846, 0.044715
    %v6103 = vmul.f32 %v5847, 0.044715
    %v6104 = vmul.f32 %v5848, 0.044715
    %v6105 = vmul.f32 %v5849, 0.044715
    %v6106 = vmul.f32 %v5850, 0.044715
    %v6107 = vmul.f32 %v5851, 0.044715
    %v6108 = vmul.f32 %v5852, 0.044715
    %v6109 = vmul.f32 %v5853, 0.044715
    %v6110 = vmul.f32 %v5854, 0.044715
    %v6111 = vmul.f32 %v5855, 0.044715
    %v6112 = vmul.f32 %v5856, 0.044715
    %v6113 = vmul.f32 %v5857, 0.044715
    %v6114 = vmul.f32 %v5858, 0.044715
    %v6115 = vmul.f32 %v5859, 0.044715
    %v6116 = vmul.f32 %v5860, 0.044715
    %v6117 = vmul.f32 %v5861, 0.044715
    %v6118 = vmul.f32 %v5862, 0.044715
    %v6119 = vmul.f32 %v5863, 0.044715
    %v6120 = vmul.f32 %v5864, 0.044715
    %v6121 = vmul.f32 %v5865, 0.044715
    %v6122 = vmul.f32 %v5866, 0.044715
    %v6123 = vmul.f32 %v5867, 0.044715
    %v6124 = vmul.f32 %v5868, 0.044715
    %v6125 = vmul.f32 %v5869, 0.044715
    %v6126 = vmul.f32 %v5870, 0.044715
    %v6127 = vmul.f32 %v5871, 0.044715
    %v6128 = vmul.f32 %v5872, 0.044715
    %v6129 = vmul.f32 %v5873, 0.044715
    %v6130 = vmul.f32 %v5874, 0.044715
    %v6131 = vmul.f32 %v5875, 0.044715
    %v6132 = vmul.f32 %v5876, 0.044715
    %v6133 = vmul.f32 %v5877, 0.044715
    %v6134 = vmul.f32 %v5878, 0.044715
    %v6135 = vmul.f32 %v5879, 0.044715
    %v6136 = vmul.f32 %v5880, 0.044715
    %v6137 = vmul.f32 %v5881, 0.044715
    %v6138 = vmul.f32 %v5882, 0.044715
    %v6139 = vmul.f32 %v5883, 0.044715
    %v6140 = vmul.f32 %v5884, 0.044715
    %v6141 = vmul.f32 %v5885, 0.044715
    %v6142 = vmul.f32 %v5886, 0.044715
    %v6143 = vmul.f32 %v5887, 0.044715
    %v6144 = vmul.f32 %v5888, 0.044715
    %v6145 = vmul.f32 %v5889, 0.044715
    %v6146 = vmul.f32 %v5890, 0.044715
    %v6147 = vmul.f32 %v5891, 0.044715
    %v6148 = vmul.f32 %v5892, 0.044715
    %v6149 = vmul.f32 %v5893, 0.044715
    %v6150 = vmul.f32 %v5894, 0.044715
    %v6151 = vmul.f32 %v5895, 0.044715
    %v6152 = vmul.f32 %v5896, 0.044715
    %v6153 = vmul.f32 %v5897, 0.044715
    %v6154 = vmul.f32 %v5898, 0.044715
    %v6155 = vmul.f32 %v5899, 0.044715
    %v6156 = vmul.f32 %v5900, 0.044715
    %v6157 = vmul.f32 %v5901, 0.044715
    %v6158 = vmul.f32 %v5902, 0.044715
    %v6159 = vmul.f32 %v5903, 0.044715
    %v6160 = vmul.f32 %v5904, 0.044715
    %v6161 = vmul.f32 %v5905, 0.044715
    %v6162 = vmul.f32 %v5906, 0.044715
    %v6163 = vmul.f32 %v5907, 0.044715
    %v6164 = vmul.f32 %v5908, 0.044715
    %v6165 = vmul.f32 %v5909, 0.044715
    %v6166 = vmul.f32 %v5910, 0.044715
    %v6167 = vmul.f32 %v5911, 0.044715
    %v6168 = vmul.f32 %v5912, 0.044715
    %v6169 = vmul.f32 %v5913, 0.044715
    %v6170 = vmul.f32 %v5914, 0.044715
    %v6171 = vmul.f32 %v5915, 0.044715
    %v6172 = vmul.f32 %v5916, 0.044715
    %v6173 = vmul.f32 %v5917, 0.044715
    %v6174 = vmul.f32 %v5918, 0.044715
    %v6175 = vmul.f32 %v5919, 0.044715
    %v6176 = vmul.f32 %v5920, 0.044715
    %v6177 = vmul.f32 %v5921, 0.044715
    %v6178 = vmul.f32 %v5922, 0.044715
    %v6179 = vmul.f32 %v5923, 0.044715
    %v6180 = vmul.f32 %v5924, 0.044715
    %v6181 = vmul.f32 %v5925, 0.044715
    %v6182 = vmul.f32 %v5926, 0.044715
    %v6183 = vmul.f32 %v5927, 0.044715
    %v6184 = vmul.f32 %v5928, 0.044715
    %v6185 = vmul.f32 %v5929, 0.044715
    %v6186 = vmul.f32 %v5930, 0.044715
    %v6187 = vmul.f32 %v5931, 0.044715
    %v6188 = vmul.f32 %v5932, 0.044715
    %v6189 = vmul.f32 %v5933, 0.044715
    %v6190 = vmul.f32 %v5934, 0.044715
    %v6191 = vmul.f32 %v5935, 0.044715
    %v6192 = vmul.f32 %v5936, 0.044715
    %v6193 = vmul.f32 %v5937, 0.044715
    %v6194 = vmul.f32 %v5938, 0.044715
    %v6195 = vmul.f32 %v5939, 0.044715
    %v6196 = vmul.f32 %v5940, 0.044715
    %v6197 = vmul.f32 %v5941, 0.044715
    %v6198 = vmul.f32 %v5942, 0.044715
    %v6199 = vmul.f32 %v5943, 0.044715
    %v6200 = vmul.f32 %v5944, 0.044715
    %v6201 = vmul.f32 %v5945, 0.044715
    %v6202 = vmul.f32 %v5946, 0.044715
    %v6203 = vmul.f32 %v5947, 0.044715
    %v6204 = vmul.f32 %v5948, 0.044715
    %v6205 = vmul.f32 %v5949, 0.044715
    %v6206 = vmul.f32 %v5950, 0.044715
    %v6207 = vmul.f32 %v5951, 0.044715
    %v6208 = vmul.f32 %v5952, 0.044715
    %v6209 = vmul.f32 %v5953, 0.044715
    %v6210 = vmul.f32 %v5954, 0.044715
    %v6211 = vmul.f32 %v5955, 0.044715
    %v6212 = vmul.f32 %v5956, 0.044715
    %v6213 = vmul.f32 %v5957, 0.044715
    %v6214 = vmul.f32 %v5958, 0.044715
    %v6215 = vmul.f32 %v5959, 0.044715
    %v6216 = vmul.f32 %v5960, 0.044715
    %v6217 = vmul.f32 %v5961, 0.044715
    %v6218 = vmul.f32 %v5962, 0.044715
    %v6219 = vmul.f32 %v5963, 0.044715
    %v6220 = vmul.f32 %v5964, 0.044715
    %v6221 = vmul.f32 %v5965, 0.044715
    %v6222 = vmul.f32 %v5966, 0.044715
    %v6223 = vmul.f32 %v5967, 0.044715
    %v6224 = vmul.f32 %v5968, 0.044715
    %v6225 = vmul.f32 %v5969, 0.044715
    %v6226 = vmul.f32 %v5970, 0.044715
    %v6227 = vmul.f32 %v5971, 0.044715
    %v6228 = vmul.f32 %v5972, 0.044715
    %v6229 = vmul.f32 %v5973, 0.044715
    %v6230 = vmul.f32 %v5974, 0.044715
    %v6231 = vmul.f32 %v5975, 0.044715
    %v6232 = vmul.f32 %v5976, 0.044715
    %v6233 = vmul.f32 %v5977, 0.044715
    %v6234 = vmul.f32 %v5978, 0.044715
    %v6235 = vmul.f32 %v5979, 0.044715
    %v6236 = vmul.f32 %v5980, 0.044715
    %v6237 = vmul.f32 %v5981, 0.044715
    %v6238 = vmul.f32 %v5982, 0.044715
    %v6239 = vmul.f32 %v5983, 0.044715
    %v6240 = vmul.f32 %v5984, 0.044715
    %v6241 = vmul.f32 %v5985, 0.044715
    %v6242 = vmul.f32 %v5986, 0.044715
    %v6243 = vmul.f32 %v5987, 0.044715
    %v6244 = vmul.f32 %v5988, 0.044715
    %v6245 = vmul.f32 %v5989, 0.044715
    %v6246 = vmul.f32 %v5990, 0.044715
    %v6247 = vmul.f32 %v5991, 0.044715
    %v6248 = vmul.f32 %v5992, 0.044715
    %v6249 = vmul.f32 %v5993, 0.044715
    %v6250 = vmul.f32 %v5994, 0.044715
    %v6251 = vmul.f32 %v5995, 0.044715
    %v6252 = vmul.f32 %v5996, 0.044715
    %v6253 = vmul.f32 %v5997, 0.044715
    %v6254 = vmul.f32 %v5998, 0.044715
    %v6255 = vadd.f32 %v4593, %v5999
    %v6256 = vadd.f32 %v4595, %v6000
    %v6257 = vadd.f32 %v4597, %v6001
    %v6258 = vadd.f32 %v4599, %v6002
    %v6259 = vadd.f32 %v4603, %v6003
    %v6260 = vadd.f32 %v4605, %v6004
    %v6261 = vadd.f32 %v4607, %v6005
    %v6262 = vadd.f32 %v4609, %v6006
    %v6263 = vadd.f32 %v4613, %v6007
    %v6264 = vadd.f32 %v4615, %v6008
    %v6265 = vadd.f32 %v4617, %v6009
    %v6266 = vadd.f32 %v4619, %v6010
    %v6267 = vadd.f32 %v4623, %v6011
    %v6268 = vadd.f32 %v4625, %v6012
    %v6269 = vadd.f32 %v4627, %v6013
    %v6270 = vadd.f32 %v4629, %v6014
    %v6271 = vadd.f32 %v4633, %v6015
    %v6272 = vadd.f32 %v4635, %v6016
    %v6273 = vadd.f32 %v4637, %v6017
    %v6274 = vadd.f32 %v4639, %v6018
    %v6275 = vadd.f32 %v4643, %v6019
    %v6276 = vadd.f32 %v4645, %v6020
    %v6277 = vadd.f32 %v4647, %v6021
    %v6278 = vadd.f32 %v4649, %v6022
    %v6279 = vadd.f32 %v4653, %v6023
    %v6280 = vadd.f32 %v4655, %v6024
    %v6281 = vadd.f32 %v4657, %v6025
    %v6282 = vadd.f32 %v4659, %v6026
    %v6283 = vadd.f32 %v4663, %v6027
    %v6284 = vadd.f32 %v4665, %v6028
    %v6285 = vadd.f32 %v4667, %v6029
    %v6286 = vadd.f32 %v4669, %v6030
    %v6287 = vadd.f32 %v4673, %v6031
    %v6288 = vadd.f32 %v4675, %v6032
    %v6289 = vadd.f32 %v4677, %v6033
    %v6290 = vadd.f32 %v4679, %v6034
    %v6291 = vadd.f32 %v4683, %v6035
    %v6292 = vadd.f32 %v4685, %v6036
    %v6293 = vadd.f32 %v4687, %v6037
    %v6294 = vadd.f32 %v4689, %v6038
    %v6295 = vadd.f32 %v4693, %v6039
    %v6296 = vadd.f32 %v4695, %v6040
    %v6297 = vadd.f32 %v4697, %v6041
    %v6298 = vadd.f32 %v4699, %v6042
    %v6299 = vadd.f32 %v4703, %v6043
    %v6300 = vadd.f32 %v4705, %v6044
    %v6301 = vadd.f32 %v4707, %v6045
    %v6302 = vadd.f32 %v4709, %v6046
    %v6303 = vadd.f32 %v4713, %v6047
    %v6304 = vadd.f32 %v4715, %v6048
    %v6305 = vadd.f32 %v4717, %v6049
    %v6306 = vadd.f32 %v4719, %v6050
    %v6307 = vadd.f32 %v4723, %v6051
    %v6308 = vadd.f32 %v4725, %v6052
    %v6309 = vadd.f32 %v4727, %v6053
    %v6310 = vadd.f32 %v4729, %v6054
    %v6311 = vadd.f32 %v4733, %v6055
    %v6312 = vadd.f32 %v4735, %v6056
    %v6313 = vadd.f32 %v4737, %v6057
    %v6314 = vadd.f32 %v4739, %v6058
    %v6315 = vadd.f32 %v4743, %v6059
    %v6316 = vadd.f32 %v4745, %v6060
    %v6317 = vadd.f32 %v4747, %v6061
    %v6318 = vadd.f32 %v4749, %v6062
    %v6319 = vadd.f32 %v4753, %v6063
    %v6320 = vadd.f32 %v4755, %v6064
    %v6321 = vadd.f32 %v4757, %v6065
    %v6322 = vadd.f32 %v4759, %v6066
    %v6323 = vadd.f32 %v4763, %v6067
    %v6324 = vadd.f32 %v4765, %v6068
    %v6325 = vadd.f32 %v4767, %v6069
    %v6326 = vadd.f32 %v4769, %v6070
    %v6327 = vadd.f32 %v4773, %v6071
    %v6328 = vadd.f32 %v4775, %v6072
    %v6329 = vadd.f32 %v4777, %v6073
    %v6330 = vadd.f32 %v4779, %v6074
    %v6331 = vadd.f32 %v4783, %v6075
    %v6332 = vadd.f32 %v4785, %v6076
    %v6333 = vadd.f32 %v4787, %v6077
    %v6334 = vadd.f32 %v4789, %v6078
    %v6335 = vadd.f32 %v4793, %v6079
    %v6336 = vadd.f32 %v4795, %v6080
    %v6337 = vadd.f32 %v4797, %v6081
    %v6338 = vadd.f32 %v4799, %v6082
    %v6339 = vadd.f32 %v4803, %v6083
    %v6340 = vadd.f32 %v4805, %v6084
    %v6341 = vadd.f32 %v4807, %v6085
    %v6342 = vadd.f32 %v4809, %v6086
    %v6343 = vadd.f32 %v4813, %v6087
    %v6344 = vadd.f32 %v4815, %v6088
    %v6345 = vadd.f32 %v4817, %v6089
    %v6346 = vadd.f32 %v4819, %v6090
    %v6347 = vadd.f32 %v4823, %v6091
    %v6348 = vadd.f32 %v4825, %v6092
    %v6349 = vadd.f32 %v4827, %v6093
    %v6350 = vadd.f32 %v4829, %v6094
    %v6351 = vadd.f32 %v4833, %v6095
    %v6352 = vadd.f32 %v4835, %v6096
    %v6353 = vadd.f32 %v4837, %v6097
    %v6354 = vadd.f32 %v4839, %v6098
    %v6355 = vadd.f32 %v4843, %v6099
    %v6356 = vadd.f32 %v4845, %v6100
    %v6357 = vadd.f32 %v4847, %v6101
    %v6358 = vadd.f32 %v4849, %v6102
    %v6359 = vadd.f32 %v4853, %v6103
    %v6360 = vadd.f32 %v4855, %v6104
    %v6361 = vadd.f32 %v4857, %v6105
    %v6362 = vadd.f32 %v4859, %v6106
    %v6363 = vadd.f32 %v4863, %v6107
    %v6364 = vadd.f32 %v4865, %v6108
    %v6365 = vadd.f32 %v4867, %v6109
    %v6366 = vadd.f32 %v4869, %v6110
    %v6367 = vadd.f32 %v4873, %v6111
    %v6368 = vadd.f32 %v4875, %v6112
    %v6369 = vadd.f32 %v4877, %v6113
    %v6370 = vadd.f32 %v4879, %v6114
    %v6371 = vadd.f32 %v4883, %v6115
    %v6372 = vadd.f32 %v4885, %v6116
    %v6373 = vadd.f32 %v4887, %v6117
    %v6374 = vadd.f32 %v4889, %v6118
    %v6375 = vadd.f32 %v4893, %v6119
    %v6376 = vadd.f32 %v4895, %v6120
    %v6377 = vadd.f32 %v4897, %v6121
    %v6378 = vadd.f32 %v4899, %v6122
    %v6379 = vadd.f32 %v4903, %v6123
    %v6380 = vadd.f32 %v4905, %v6124
    %v6381 = vadd.f32 %v4907, %v6125
    %v6382 = vadd.f32 %v4909, %v6126
    %v6383 = vadd.f32 %v4913, %v6127
    %v6384 = vadd.f32 %v4915, %v6128
    %v6385 = vadd.f32 %v4917, %v6129
    %v6386 = vadd.f32 %v4919, %v6130
    %v6387 = vadd.f32 %v4923, %v6131
    %v6388 = vadd.f32 %v4925, %v6132
    %v6389 = vadd.f32 %v4927, %v6133
    %v6390 = vadd.f32 %v4929, %v6134
    %v6391 = vadd.f32 %v4933, %v6135
    %v6392 = vadd.f32 %v4935, %v6136
    %v6393 = vadd.f32 %v4937, %v6137
    %v6394 = vadd.f32 %v4939, %v6138
    %v6395 = vadd.f32 %v4943, %v6139
    %v6396 = vadd.f32 %v4945, %v6140
    %v6397 = vadd.f32 %v4947, %v6141
    %v6398 = vadd.f32 %v4949, %v6142
    %v6399 = vadd.f32 %v4953, %v6143
    %v6400 = vadd.f32 %v4955, %v6144
    %v6401 = vadd.f32 %v4957, %v6145
    %v6402 = vadd.f32 %v4959, %v6146
    %v6403 = vadd.f32 %v4963, %v6147
    %v6404 = vadd.f32 %v4965, %v6148
    %v6405 = vadd.f32 %v4967, %v6149
    %v6406 = vadd.f32 %v4969, %v6150
    %v6407 = vadd.f32 %v4973, %v6151
    %v6408 = vadd.f32 %v4975, %v6152
    %v6409 = vadd.f32 %v4977, %v6153
    %v6410 = vadd.f32 %v4979, %v6154
    %v6411 = vadd.f32 %v4983, %v6155
    %v6412 = vadd.f32 %v4985, %v6156
    %v6413 = vadd.f32 %v4987, %v6157
    %v6414 = vadd.f32 %v4989, %v6158
    %v6415 = vadd.f32 %v4993, %v6159
    %v6416 = vadd.f32 %v4995, %v6160
    %v6417 = vadd.f32 %v4997, %v6161
    %v6418 = vadd.f32 %v4999, %v6162
    %v6419 = vadd.f32 %v5003, %v6163
    %v6420 = vadd.f32 %v5005, %v6164
    %v6421 = vadd.f32 %v5007, %v6165
    %v6422 = vadd.f32 %v5009, %v6166
    %v6423 = vadd.f32 %v5013, %v6167
    %v6424 = vadd.f32 %v5015, %v6168
    %v6425 = vadd.f32 %v5017, %v6169
    %v6426 = vadd.f32 %v5019, %v6170
    %v6427 = vadd.f32 %v5023, %v6171
    %v6428 = vadd.f32 %v5025, %v6172
    %v6429 = vadd.f32 %v5027, %v6173
    %v6430 = vadd.f32 %v5029, %v6174
    %v6431 = vadd.f32 %v5033, %v6175
    %v6432 = vadd.f32 %v5035, %v6176
    %v6433 = vadd.f32 %v5037, %v6177
    %v6434 = vadd.f32 %v5039, %v6178
    %v6435 = vadd.f32 %v5043, %v6179
    %v6436 = vadd.f32 %v5045, %v6180
    %v6437 = vadd.f32 %v5047, %v6181
    %v6438 = vadd.f32 %v5049, %v6182
    %v6439 = vadd.f32 %v5053, %v6183
    %v6440 = vadd.f32 %v5055, %v6184
    %v6441 = vadd.f32 %v5057, %v6185
    %v6442 = vadd.f32 %v5059, %v6186
    %v6443 = vadd.f32 %v5063, %v6187
    %v6444 = vadd.f32 %v5065, %v6188
    %v6445 = vadd.f32 %v5067, %v6189
    %v6446 = vadd.f32 %v5069, %v6190
    %v6447 = vadd.f32 %v5073, %v6191
    %v6448 = vadd.f32 %v5075, %v6192
    %v6449 = vadd.f32 %v5077, %v6193
    %v6450 = vadd.f32 %v5079, %v6194
    %v6451 = vadd.f32 %v5083, %v6195
    %v6452 = vadd.f32 %v5085, %v6196
    %v6453 = vadd.f32 %v5087, %v6197
    %v6454 = vadd.f32 %v5089, %v6198
    %v6455 = vadd.f32 %v5093, %v6199
    %v6456 = vadd.f32 %v5095, %v6200
    %v6457 = vadd.f32 %v5097, %v6201
    %v6458 = vadd.f32 %v5099, %v6202
    %v6459 = vadd.f32 %v5103, %v6203
    %v6460 = vadd.f32 %v5105, %v6204
    %v6461 = vadd.f32 %v5107, %v6205
    %v6462 = vadd.f32 %v5109, %v6206
    %v6463 = vadd.f32 %v5113, %v6207
    %v6464 = vadd.f32 %v5115, %v6208
    %v6465 = vadd.f32 %v5117, %v6209
    %v6466 = vadd.f32 %v5119, %v6210
    %v6467 = vadd.f32 %v5123, %v6211
    %v6468 = vadd.f32 %v5125, %v6212
    %v6469 = vadd.f32 %v5127, %v6213
    %v6470 = vadd.f32 %v5129, %v6214
    %v6471 = vadd.f32 %v5133, %v6215
    %v6472 = vadd.f32 %v5135, %v6216
    %v6473 = vadd.f32 %v5137, %v6217
    %v6474 = vadd.f32 %v5139, %v6218
    %v6475 = vadd.f32 %v5143, %v6219
    %v6476 = vadd.f32 %v5145, %v6220
    %v6477 = vadd.f32 %v5147, %v6221
    %v6478 = vadd.f32 %v5149, %v6222
    %v6479 = vadd.f32 %v5153, %v6223
    %v6480 = vadd.f32 %v5155, %v6224
    %v6481 = vadd.f32 %v5157, %v6225
    %v6482 = vadd.f32 %v5159, %v6226
    %v6483 = vadd.f32 %v5163, %v6227
    %v6484 = vadd.f32 %v5165, %v6228
    %v6485 = vadd.f32 %v5167, %v6229
    %v6486 = vadd.f32 %v5169, %v6230
    %v6487 = vadd.f32 %v5173, %v6231
    %v6488 = vadd.f32 %v5175, %v6232
    %v6489 = vadd.f32 %v5177, %v6233
    %v6490 = vadd.f32 %v5179, %v6234
    %v6491 = vadd.f32 %v5183, %v6235
    %v6492 = vadd.f32 %v5185, %v6236
    %v6493 = vadd.f32 %v5187, %v6237
    %v6494 = vadd.f32 %v5189, %v6238
    %v6495 = vadd.f32 %v5193, %v6239
    %v6496 = vadd.f32 %v5195, %v6240
    %v6497 = vadd.f32 %v5197, %v6241
    %v6498 = vadd.f32 %v5199, %v6242
    %v6499 = vadd.f32 %v5203, %v6243
    %v6500 = vadd.f32 %v5205, %v6244
    %v6501 = vadd.f32 %v5207, %v6245
    %v6502 = vadd.f32 %v5209, %v6246
    %v6503 = vadd.f32 %v5213, %v6247
    %v6504 = vadd.f32 %v5215, %v6248
    %v6505 = vadd.f32 %v5217, %v6249
    %v6506 = vadd.f32 %v5219, %v6250
    %v6507 = vadd.f32 %v5223, %v6251
    %v6508 = vadd.f32 %v5225, %v6252
    %v6509 = vadd.f32 %v5227, %v6253
    %v6510 = vadd.f32 %v5229, %v6254
    %v6511 = vmul.f32 %v6255, 0.7978846
    %v6512 = vmul.f32 %v6256, 0.7978846
    %v6513 = vmul.f32 %v6257, 0.7978846
    %v6514 = vmul.f32 %v6258, 0.7978846
    %v6515 = vmul.f32 %v6259, 0.7978846
    %v6516 = vmul.f32 %v6260, 0.7978846
    %v6517 = vmul.f32 %v6261, 0.7978846
    %v6518 = vmul.f32 %v6262, 0.7978846
    %v6519 = vmul.f32 %v6263, 0.7978846
    %v6520 = vmul.f32 %v6264, 0.7978846
    %v6521 = vmul.f32 %v6265, 0.7978846
    %v6522 = vmul.f32 %v6266, 0.7978846
    %v6523 = vmul.f32 %v6267, 0.7978846
    %v6524 = vmul.f32 %v6268, 0.7978846
    %v6525 = vmul.f32 %v6269, 0.7978846
    %v6526 = vmul.f32 %v6270, 0.7978846
    %v6527 = vmul.f32 %v6271, 0.7978846
    %v6528 = vmul.f32 %v6272, 0.7978846
    %v6529 = vmul.f32 %v6273, 0.7978846
    %v6530 = vmul.f32 %v6274, 0.7978846
    %v6531 = vmul.f32 %v6275, 0.7978846
    %v6532 = vmul.f32 %v6276, 0.7978846
    %v6533 = vmul.f32 %v6277, 0.7978846
    %v6534 = vmul.f32 %v6278, 0.7978846
    %v6535 = vmul.f32 %v6279, 0.7978846
    %v6536 = vmul.f32 %v6280, 0.7978846
    %v6537 = vmul.f32 %v6281, 0.7978846
    %v6538 = vmul.f32 %v6282, 0.7978846
    %v6539 = vmul.f32 %v6283, 0.7978846
    %v6540 = vmul.f32 %v6284, 0.7978846
    %v6541 = vmul.f32 %v6285, 0.7978846
    %v6542 = vmul.f32 %v6286, 0.7978846
    %v6543 = vmul.f32 %v6287, 0.7978846
    %v6544 = vmul.f32 %v6288, 0.7978846
    %v6545 = vmul.f32 %v6289, 0.7978846
    %v6546 = vmul.f32 %v6290, 0.7978846
    %v6547 = vmul.f32 %v6291, 0.7978846
    %v6548 = vmul.f32 %v6292, 0.7978846
    %v6549 = vmul.f32 %v6293, 0.7978846
    %v6550 = vmul.f32 %v6294, 0.7978846
    %v6551 = vmul.f32 %v6295, 0.7978846
    %v6552 = vmul.f32 %v6296, 0.7978846
    %v6553 = vmul.f32 %v6297, 0.7978846
    %v6554 = vmul.f32 %v6298, 0.7978846
    %v6555 = vmul.f32 %v6299, 0.7978846
    %v6556 = vmul.f32 %v6300, 0.7978846
    %v6557 = vmul.f32 %v6301, 0.7978846
    %v6558 = vmul.f32 %v6302, 0.7978846
    %v6559 = vmul.f32 %v6303, 0.7978846
    %v6560 = vmul.f32 %v6304, 0.7978846
    %v6561 = vmul.f32 %v6305, 0.7978846
    %v6562 = vmul.f32 %v6306, 0.7978846
    %v6563 = vmul.f32 %v6307, 0.7978846
    %v6564 = vmul.f32 %v6308, 0.7978846
    %v6565 = vmul.f32 %v6309, 0.7978846
    %v6566 = vmul.f32 %v6310, 0.7978846
    %v6567 = vmul.f32 %v6311, 0.7978846
    %v6568 = vmul.f32 %v6312, 0.7978846
    %v6569 = vmul.f32 %v6313, 0.7978846
    %v6570 = vmul.f32 %v6314, 0.7978846
    %v6571 = vmul.f32 %v6315, 0.7978846
    %v6572 = vmul.f32 %v6316, 0.7978846
    %v6573 = vmul.f32 %v6317, 0.7978846
    %v6574 = vmul.f32 %v6318, 0.7978846
    %v6575 = vmul.f32 %v6319, 0.7978846
    %v6576 = vmul.f32 %v6320, 0.7978846
    %v6577 = vmul.f32 %v6321, 0.7978846
    %v6578 = vmul.f32 %v6322, 0.7978846
    %v6579 = vmul.f32 %v6323, 0.7978846
    %v6580 = vmul.f32 %v6324, 0.7978846
    %v6581 = vmul.f32 %v6325, 0.7978846
    %v6582 = vmul.f32 %v6326, 0.7978846
    %v6583 = vmul.f32 %v6327, 0.7978846
    %v6584 = vmul.f32 %v6328, 0.7978846
    %v6585 = vmul.f32 %v6329, 0.7978846
    %v6586 = vmul.f32 %v6330, 0.7978846
    %v6587 = vmul.f32 %v6331, 0.7978846
    %v6588 = vmul.f32 %v6332, 0.7978846
    %v6589 = vmul.f32 %v6333, 0.7978846
    %v6590 = vmul.f32 %v6334, 0.7978846
    %v6591 = vmul.f32 %v6335, 0.7978846
    %v6592 = vmul.f32 %v6336, 0.7978846
    %v6593 = vmul.f32 %v6337, 0.7978846
    %v6594 = vmul.f32 %v6338, 0.7978846
    %v6595 = vmul.f32 %v6339, 0.7978846
    %v6596 = vmul.f32 %v6340, 0.7978846
    %v6597 = vmul.f32 %v6341, 0.7978846
    %v6598 = vmul.f32 %v6342, 0.7978846
    %v6599 = vmul.f32 %v6343, 0.7978846
    %v6600 = vmul.f32 %v6344, 0.7978846
    %v6601 = vmul.f32 %v6345, 0.7978846
    %v6602 = vmul.f32 %v6346, 0.7978846
    %v6603 = vmul.f32 %v6347, 0.7978846
    %v6604 = vmul.f32 %v6348, 0.7978846
    %v6605 = vmul.f32 %v6349, 0.7978846
    %v6606 = vmul.f32 %v6350, 0.7978846
    %v6607 = vmul.f32 %v6351, 0.7978846
    %v6608 = vmul.f32 %v6352, 0.7978846
    %v6609 = vmul.f32 %v6353, 0.7978846
    %v6610 = vmul.f32 %v6354, 0.7978846
    %v6611 = vmul.f32 %v6355, 0.7978846
    %v6612 = vmul.f32 %v6356, 0.7978846
    %v6613 = vmul.f32 %v6357, 0.7978846
    %v6614 = vmul.f32 %v6358, 0.7978846
    %v6615 = vmul.f32 %v6359, 0.7978846
    %v6616 = vmul.f32 %v6360, 0.7978846
    %v6617 = vmul.f32 %v6361, 0.7978846
    %v6618 = vmul.f32 %v6362, 0.7978846
    %v6619 = vmul.f32 %v6363, 0.7978846
    %v6620 = vmul.f32 %v6364, 0.7978846
    %v6621 = vmul.f32 %v6365, 0.7978846
    %v6622 = vmul.f32 %v6366, 0.7978846
    %v6623 = vmul.f32 %v6367, 0.7978846
    %v6624 = vmul.f32 %v6368, 0.7978846
    %v6625 = vmul.f32 %v6369, 0.7978846
    %v6626 = vmul.f32 %v6370, 0.7978846
    %v6627 = vmul.f32 %v6371, 0.7978846
    %v6628 = vmul.f32 %v6372, 0.7978846
    %v6629 = vmul.f32 %v6373, 0.7978846
    %v6630 = vmul.f32 %v6374, 0.7978846
    %v6631 = vmul.f32 %v6375, 0.7978846
    %v6632 = vmul.f32 %v6376, 0.7978846
    %v6633 = vmul.f32 %v6377, 0.7978846
    %v6634 = vmul.f32 %v6378, 0.7978846
    %v6635 = vmul.f32 %v6379, 0.7978846
    %v6636 = vmul.f32 %v6380, 0.7978846
    %v6637 = vmul.f32 %v6381, 0.7978846
    %v6638 = vmul.f32 %v6382, 0.7978846
    %v6639 = vmul.f32 %v6383, 0.7978846
    %v6640 = vmul.f32 %v6384, 0.7978846
    %v6641 = vmul.f32 %v6385, 0.7978846
    %v6642 = vmul.f32 %v6386, 0.7978846
    %v6643 = vmul.f32 %v6387, 0.7978846
    %v6644 = vmul.f32 %v6388, 0.7978846
    %v6645 = vmul.f32 %v6389, 0.7978846
    %v6646 = vmul.f32 %v6390, 0.7978846
    %v6647 = vmul.f32 %v6391, 0.7978846
    %v6648 = vmul.f32 %v6392, 0.7978846
    %v6649 = vmul.f32 %v6393, 0.7978846
    %v6650 = vmul.f32 %v6394, 0.7978846
    %v6651 = vmul.f32 %v6395, 0.7978846
    %v6652 = vmul.f32 %v6396, 0.7978846
    %v6653 = vmul.f32 %v6397, 0.7978846
    %v6654 = vmul.f32 %v6398, 0.7978846
    %v6655 = vmul.f32 %v6399, 0.7978846
    %v6656 = vmul.f32 %v6400, 0.7978846
    %v6657 = vmul.f32 %v6401, 0.7978846
    %v6658 = vmul.f32 %v6402, 0.7978846
    %v6659 = vmul.f32 %v6403, 0.7978846
    %v6660 = vmul.f32 %v6404, 0.7978846
    %v6661 = vmul.f32 %v6405, 0.7978846
    %v6662 = vmul.f32 %v6406, 0.7978846
    %v6663 = vmul.f32 %v6407, 0.7978846
    %v6664 = vmul.f32 %v6408, 0.7978846
    %v6665 = vmul.f32 %v6409, 0.7978846
    %v6666 = vmul.f32 %v6410, 0.7978846
    %v6667 = vmul.f32 %v6411, 0.7978846
    %v6668 = vmul.f32 %v6412, 0.7978846
    %v6669 = vmul.f32 %v6413, 0.7978846
    %v6670 = vmul.f32 %v6414, 0.7978846
    %v6671 = vmul.f32 %v6415, 0.7978846
    %v6672 = vmul.f32 %v6416, 0.7978846
    %v6673 = vmul.f32 %v6417, 0.7978846
    %v6674 = vmul.f32 %v6418, 0.7978846
    %v6675 = vmul.f32 %v6419, 0.7978846
    %v6676 = vmul.f32 %v6420, 0.7978846
    %v6677 = vmul.f32 %v6421, 0.7978846
    %v6678 = vmul.f32 %v6422, 0.7978846
    %v6679 = vmul.f32 %v6423, 0.7978846
    %v6680 = vmul.f32 %v6424, 0.7978846
    %v6681 = vmul.f32 %v6425, 0.7978846
    %v6682 = vmul.f32 %v6426, 0.7978846
    %v6683 = vmul.f32 %v6427, 0.7978846
    %v6684 = vmul.f32 %v6428, 0.7978846
    %v6685 = vmul.f32 %v6429, 0.7978846
    %v6686 = vmul.f32 %v6430, 0.7978846
    %v6687 = vmul.f32 %v6431, 0.7978846
    %v6688 = vmul.f32 %v6432, 0.7978846
    %v6689 = vmul.f32 %v6433, 0.7978846
    %v6690 = vmul.f32 %v6434, 0.7978846
    %v6691 = vmul.f32 %v6435, 0.7978846
    %v6692 = vmul.f32 %v6436, 0.7978846
    %v6693 = vmul.f32 %v6437, 0.7978846
    %v6694 = vmul.f32 %v6438, 0.7978846
    %v6695 = vmul.f32 %v6439, 0.7978846
    %v6696 = vmul.f32 %v6440, 0.7978846
    %v6697 = vmul.f32 %v6441, 0.7978846
    %v6698 = vmul.f32 %v6442, 0.7978846
    %v6699 = vmul.f32 %v6443, 0.7978846
    %v6700 = vmul.f32 %v6444, 0.7978846
    %v6701 = vmul.f32 %v6445, 0.7978846
    %v6702 = vmul.f32 %v6446, 0.7978846
    %v6703 = vmul.f32 %v6447, 0.7978846
    %v6704 = vmul.f32 %v6448, 0.7978846
    %v6705 = vmul.f32 %v6449, 0.7978846
    %v6706 = vmul.f32 %v6450, 0.7978846
    %v6707 = vmul.f32 %v6451, 0.7978846
    %v6708 = vmul.f32 %v6452, 0.7978846
    %v6709 = vmul.f32 %v6453, 0.7978846
    %v6710 = vmul.f32 %v6454, 0.7978846
    %v6711 = vmul.f32 %v6455, 0.7978846
    %v6712 = vmul.f32 %v6456, 0.7978846
    %v6713 = vmul.f32 %v6457, 0.7978846
    %v6714 = vmul.f32 %v6458, 0.7978846
    %v6715 = vmul.f32 %v6459, 0.7978846
    %v6716 = vmul.f32 %v6460, 0.7978846
    %v6717 = vmul.f32 %v6461, 0.7978846
    %v6718 = vmul.f32 %v6462, 0.7978846
    %v6719 = vmul.f32 %v6463, 0.7978846
    %v6720 = vmul.f32 %v6464, 0.7978846
    %v6721 = vmul.f32 %v6465, 0.7978846
    %v6722 = vmul.f32 %v6466, 0.7978846
    %v6723 = vmul.f32 %v6467, 0.7978846
    %v6724 = vmul.f32 %v6468, 0.7978846
    %v6725 = vmul.f32 %v6469, 0.7978846
    %v6726 = vmul.f32 %v6470, 0.7978846
    %v6727 = vmul.f32 %v6471, 0.7978846
    %v6728 = vmul.f32 %v6472, 0.7978846
    %v6729 = vmul.f32 %v6473, 0.7978846
    %v6730 = vmul.f32 %v6474, 0.7978846
    %v6731 = vmul.f32 %v6475, 0.7978846
    %v6732 = vmul.f32 %v6476, 0.7978846
    %v6733 = vmul.f32 %v6477, 0.7978846
    %v6734 = vmul.f32 %v6478, 0.7978846
    %v6735 = vmul.f32 %v6479, 0.7978846
    %v6736 = vmul.f32 %v6480, 0.7978846
    %v6737 = vmul.f32 %v6481, 0.7978846
    %v6738 = vmul.f32 %v6482, 0.7978846
    %v6739 = vmul.f32 %v6483, 0.7978846
    %v6740 = vmul.f32 %v6484, 0.7978846
    %v6741 = vmul.f32 %v6485, 0.7978846
    %v6742 = vmul.f32 %v6486, 0.7978846
    %v6743 = vmul.f32 %v6487, 0.7978846
    %v6744 = vmul.f32 %v6488, 0.7978846
    %v6745 = vmul.f32 %v6489, 0.7978846
    %v6746 = vmul.f32 %v6490, 0.7978846
    %v6747 = vmul.f32 %v6491, 0.7978846
    %v6748 = vmul.f32 %v6492, 0.7978846
    %v6749 = vmul.f32 %v6493, 0.7978846
    %v6750 = vmul.f32 %v6494, 0.7978846
    %v6751 = vmul.f32 %v6495, 0.7978846
    %v6752 = vmul.f32 %v6496, 0.7978846
    %v6753 = vmul.f32 %v6497, 0.7978846
    %v6754 = vmul.f32 %v6498, 0.7978846
    %v6755 = vmul.f32 %v6499, 0.7978846
    %v6756 = vmul.f32 %v6500, 0.7978846
    %v6757 = vmul.f32 %v6501, 0.7978846
    %v6758 = vmul.f32 %v6502, 0.7978846
    %v6759 = vmul.f32 %v6503, 0.7978846
    %v6760 = vmul.f32 %v6504, 0.7978846
    %v6761 = vmul.f32 %v6505, 0.7978846
    %v6762 = vmul.f32 %v6506, 0.7978846
    %v6763 = vmul.f32 %v6507, 0.7978846
    %v6764 = vmul.f32 %v6508, 0.7978846
    %v6765 = vmul.f32 %v6509, 0.7978846
    %v6766 = vmul.f32 %v6510, 0.7978846
    %v6767 = vtanh.pop %v6511
    %v6768 = vtanh.pop %v6512
    %v6769 = vtanh.pop %v6513
    %v6770 = vtanh.pop %v6514
    %v6771 = vtanh.pop %v6515
    %v6772 = vtanh.pop %v6516
    %v6773 = vtanh.pop %v6517
    %v6774 = vtanh.pop %v6518
    %v6775 = vtanh.pop %v6519
    %v6776 = vtanh.pop %v6520
    %v6777 = vtanh.pop %v6521
    %v6778 = vtanh.pop %v6522
    %v6779 = vtanh.pop %v6523
    %v6780 = vtanh.pop %v6524
    %v6781 = vtanh.pop %v6525
    %v6782 = vtanh.pop %v6526
    %v6783 = vtanh.pop %v6527
    %v6784 = vtanh.pop %v6528
    %v6785 = vtanh.pop %v6529
    %v6786 = vtanh.pop %v6530
    %v6787 = vtanh.pop %v6531
    %v6788 = vtanh.pop %v6532
    %v6789 = vtanh.pop %v6533
    %v6790 = vtanh.pop %v6534
    %v6791 = vtanh.pop %v6535
    %v6792 = vtanh.pop %v6536
    %v6793 = vtanh.pop %v6537
    %v6794 = vtanh.pop %v6538
    %v6795 = vtanh.pop %v6539
    %v6796 = vtanh.pop %v6540
    %v6797 = vtanh.pop %v6541
    %v6798 = vtanh.pop %v6542
    %v6799 = vtanh.pop %v6543
    %v6800 = vtanh.pop %v6544
    %v6801 = vtanh.pop %v6545
    %v6802 = vtanh.pop %v6546
    %v6803 = vtanh.pop %v6547
    %v6804 = vtanh.pop %v6548
    %v6805 = vtanh.pop %v6549
    %v6806 = vtanh.pop %v6550
    %v6807 = vtanh.pop %v6551
    %v6808 = vtanh.pop %v6552
    %v6809 = vtanh.pop %v6553
    %v6810 = vtanh.pop %v6554
    %v6811 = vtanh.pop %v6555
    %v6812 = vtanh.pop %v6556
    %v6813 = vtanh.pop %v6557
    %v6814 = vtanh.pop %v6558
    %v6815 = vtanh.pop %v6559
    %v6816 = vtanh.pop %v6560
    %v6817 = vtanh.pop %v6561
    %v6818 = vtanh.pop %v6562
    %v6819 = vtanh.pop %v6563
    %v6820 = vtanh.pop %v6564
    %v6821 = vtanh.pop %v6565
    %v6822 = vtanh.pop %v6566
    %v6823 = vtanh.pop %v6567
    %v6824 = vtanh.pop %v6568
    %v6825 = vtanh.pop %v6569
    %v6826 = vtanh.pop %v6570
    %v6827 = vtanh.pop %v6571
    %v6828 = vtanh.pop %v6572
    %v6829 = vtanh.pop %v6573
    %v6830 = vtanh.pop %v6574
    %v6831 = vtanh.pop %v6575
    %v6832 = vtanh.pop %v6576
    %v6833 = vtanh.pop %v6577
    %v6834 = vtanh.pop %v6578
    %v6835 = vtanh.pop %v6579
    %v6836 = vtanh.pop %v6580
    %v6837 = vtanh.pop %v6581
    %v6838 = vtanh.pop %v6582
    %v6839 = vtanh.pop %v6583
    %v6840 = vtanh.pop %v6584
    %v6841 = vtanh.pop %v6585
    %v6842 = vtanh.pop %v6586
    %v6843 = vtanh.pop %v6587
    %v6844 = vtanh.pop %v6588
    %v6845 = vtanh.pop %v6589
    %v6846 = vtanh.pop %v6590
    %v6847 = vtanh.pop %v6591
    %v6848 = vtanh.pop %v6592
    %v6849 = vtanh.pop %v6593
    %v6850 = vtanh.pop %v6594
    %v6851 = vtanh.pop %v6595
    %v6852 = vtanh.pop %v6596
    %v6853 = vtanh.pop %v6597
    %v6854 = vtanh.pop %v6598
    %v6855 = vtanh.pop %v6599
    %v6856 = vtanh.pop %v6600
    %v6857 = vtanh.pop %v6601
    %v6858 = vtanh.pop %v6602
    %v6859 = vtanh.pop %v6603
    %v6860 = vtanh.pop %v6604
    %v6861 = vtanh.pop %v6605
    %v6862 = vtanh.pop %v6606
    %v6863 = vtanh.pop %v6607
    %v6864 = vtanh.pop %v6608
    %v6865 = vtanh.pop %v6609
    %v6866 = vtanh.pop %v6610
    %v6867 = vtanh.pop %v6611
    %v6868 = vtanh.pop %v6612
    %v6869 = vtanh.pop %v6613
    %v6870 = vtanh.pop %v6614
    %v6871 = vtanh.pop %v6615
    %v6872 = vtanh.pop %v6616
    %v6873 = vtanh.pop %v6617
    %v6874 = vtanh.pop %v6618
    %v6875 = vtanh.pop %v6619
    %v6876 = vtanh.pop %v6620
    %v6877 = vtanh.pop %v6621
    %v6878 = vtanh.pop %v6622
    %v6879 = vtanh.pop %v6623
    %v6880 = vtanh.pop %v6624
    %v6881 = vtanh.pop %v6625
    %v6882 = vtanh.pop %v6626
    %v6883 = vtanh.pop %v6627
    %v6884 = vtanh.pop %v6628
    %v6885 = vtanh.pop %v6629
    %v6886 = vtanh.pop %v6630
    %v6887 = vtanh.pop %v6631
    %v6888 = vtanh.pop %v6632
    %v6889 = vtanh.pop %v6633
    %v6890 = vtanh.pop %v6634
    %v6891 = vtanh.pop %v6635
    %v6892 = vtanh.pop %v6636
    %v6893 = vtanh.pop %v6637
    %v6894 = vtanh.pop %v6638
    %v6895 = vtanh.pop %v6639
    %v6896 = vtanh.pop %v6640
    %v6897 = vtanh.pop %v6641
    %v6898 = vtanh.pop %v6642
    %v6899 = vtanh.pop %v6643
    %v6900 = vtanh.pop %v6644
    %v6901 = vtanh.pop %v6645
    %v6902 = vtanh.pop %v6646
    %v6903 = vtanh.pop %v6647
    %v6904 = vtanh.pop %v6648
    %v6905 = vtanh.pop %v6649
    %v6906 = vtanh.pop %v6650
    %v6907 = vtanh.pop %v6651
    %v6908 = vtanh.pop %v6652
    %v6909 = vtanh.pop %v6653
    %v6910 = vtanh.pop %v6654
    %v6911 = vtanh.pop %v6655
    %v6912 = vtanh.pop %v6656
    %v6913 = vtanh.pop %v6657
    %v6914 = vtanh.pop %v6658
    %v6915 = vtanh.pop %v6659
    %v6916 = vtanh.pop %v6660
    %v6917 = vtanh.pop %v6661
    %v6918 = vtanh.pop %v6662
    %v6919 = vtanh.pop %v6663
    %v6920 = vtanh.pop %v6664
    %v6921 = vtanh.pop %v6665
    %v6922 = vtanh.pop %v6666
    %v6923 = vtanh.pop %v6667
    %v6924 = vtanh.pop %v6668
    %v6925 = vtanh.pop %v6669
    %v6926 = vtanh.pop %v6670
    %v6927 = vtanh.pop %v6671
    %v6928 = vtanh.pop %v6672
    %v6929 = vtanh.pop %v6673
    %v6930 = vtanh.pop %v6674
    %v6931 = vtanh.pop %v6675
    %v6932 = vtanh.pop %v6676
    %v6933 = vtanh.pop %v6677
    %v6934 = vtanh.pop %v6678
    %v6935 = vtanh.pop %v6679
    %v6936 = vtanh.pop %v6680
    %v6937 = vtanh.pop %v6681
    %v6938 = vtanh.pop %v6682
    %v6939 = vtanh.pop %v6683
    %v6940 = vtanh.pop %v6684
    %v6941 = vtanh.pop %v6685
    %v6942 = vtanh.pop %v6686
    %v6943 = vtanh.pop %v6687
    %v6944 = vtanh.pop %v6688
    %v6945 = vtanh.pop %v6689
    %v6946 = vtanh.pop %v6690
    %v6947 = vtanh.pop %v6691
    %v6948 = vtanh.pop %v6692
    %v6949 = vtanh.pop %v6693
    %v6950 = vtanh.pop %v6694
    %v6951 = vtanh.pop %v6695
    %v6952 = vtanh.pop %v6696
    %v6953 = vtanh.pop %v6697
    %v6954 = vtanh.pop %v6698
    %v6955 = vtanh.pop %v6699
    %v6956 = vtanh.pop %v6700
    %v6957 = vtanh.pop %v6701
    %v6958 = vtanh.pop %v6702
    %v6959 = vtanh.pop %v6703
    %v6960 = vtanh.pop %v6704
    %v6961 = vtanh.pop %v6705
    %v6962 = vtanh.pop %v6706
    %v6963 = vtanh.pop %v6707
    %v6964 = vtanh.pop %v6708
    %v6965 = vtanh.pop %v6709
    %v6966 = vtanh.pop %v6710
    %v6967 = vtanh.pop %v6711
    %v6968 = vtanh.pop %v6712
    %v6969 = vtanh.pop %v6713
    %v6970 = vtanh.pop %v6714
    %v6971 = vtanh.pop %v6715
    %v6972 = vtanh.pop %v6716
    %v6973 = vtanh.pop %v6717
    %v6974 = vtanh.pop %v6718
    %v6975 = vtanh.pop %v6719
    %v6976 = vtanh.pop %v6720
    %v6977 = vtanh.pop %v6721
    %v6978 = vtanh.pop %v6722
    %v6979 = vtanh.pop %v6723
    %v6980 = vtanh.pop %v6724
    %v6981 = vtanh.pop %v6725
    %v6982 = vtanh.pop %v6726
    %v6983 = vtanh.pop %v6727
    %v6984 = vtanh.pop %v6728
    %v6985 = vtanh.pop %v6729
    %v6986 = vtanh.pop %v6730
    %v6987 = vtanh.pop %v6731
    %v6988 = vtanh.pop %v6732
    %v6989 = vtanh.pop %v6733
    %v6990 = vtanh.pop %v6734
    %v6991 = vtanh.pop %v6735
    %v6992 = vtanh.pop %v6736
    %v6993 = vtanh.pop %v6737
    %v6994 = vtanh.pop %v6738
    %v6995 = vtanh.pop %v6739
    %v6996 = vtanh.pop %v6740
    %v6997 = vtanh.pop %v6741
    %v6998 = vtanh.pop %v6742
    %v6999 = vtanh.pop %v6743
    %v7000 = vtanh.pop %v6744
    %v7001 = vtanh.pop %v6745
    %v7002 = vtanh.pop %v6746
    %v7003 = vtanh.pop %v6747
    %v7004 = vtanh.pop %v6748
    %v7005 = vtanh.pop %v6749
    %v7006 = vtanh.pop %v6750
    %v7007 = vtanh.pop %v6751
    %v7008 = vtanh.pop %v6752
    %v7009 = vtanh.pop %v6753
    %v7010 = vtanh.pop %v6754
    %v7011 = vtanh.pop %v6755
    %v7012 = vtanh.pop %v6756
    %v7013 = vtanh.pop %v6757
    %v7014 = vtanh.pop %v6758
    %v7015 = vtanh.pop %v6759
    %v7016 = vtanh.pop %v6760
    %v7017 = vtanh.pop %v6761
    %v7018 = vtanh.pop %v6762
    %v7019 = vtanh.pop %v6763
    %v7020 = vtanh.pop %v6764
    %v7021 = vtanh.pop %v6765
    %v7022 = vtanh.pop %v6766
    %v7023 = vadd.f32 %v6767, 1.0
    %v7024 = vadd.f32 %v6768, 1.0
    %v7025 = vadd.f32 %v6769, 1.0
    %v7026 = vadd.f32 %v6770, 1.0
    %v7027 = vadd.f32 %v6771, 1.0
    %v7028 = vadd.f32 %v6772, 1.0
    %v7029 = vadd.f32 %v6773, 1.0
    %v7030 = vadd.f32 %v6774, 1.0
    %v7031 = vadd.f32 %v6775, 1.0
    %v7032 = vadd.f32 %v6776, 1.0
    %v7033 = vadd.f32 %v6777, 1.0
    %v7034 = vadd.f32 %v6778, 1.0
    %v7035 = vadd.f32 %v6779, 1.0
    %v7036 = vadd.f32 %v6780, 1.0
    %v7037 = vadd.f32 %v6781, 1.0
    %v7038 = vadd.f32 %v6782, 1.0
    %v7039 = vadd.f32 %v6783, 1.0
    %v7040 = vadd.f32 %v6784, 1.0
    %v7041 = vadd.f32 %v6785, 1.0
    %v7042 = vadd.f32 %v6786, 1.0
    %v7043 = vadd.f32 %v6787, 1.0
    %v7044 = vadd.f32 %v6788, 1.0
    %v7045 = vadd.f32 %v6789, 1.0
    %v7046 = vadd.f32 %v6790, 1.0
    %v7047 = vadd.f32 %v6791, 1.0
    %v7048 = vadd.f32 %v6792, 1.0
    %v7049 = vadd.f32 %v6793, 1.0
    %v7050 = vadd.f32 %v6794, 1.0
    %v7051 = vadd.f32 %v6795, 1.0
    %v7052 = vadd.f32 %v6796, 1.0
    %v7053 = vadd.f32 %v6797, 1.0
    %v7054 = vadd.f32 %v6798, 1.0
    %v7055 = vadd.f32 %v6799, 1.0
    %v7056 = vadd.f32 %v6800, 1.0
    %v7057 = vadd.f32 %v6801, 1.0
    %v7058 = vadd.f32 %v6802, 1.0
    %v7059 = vadd.f32 %v6803, 1.0
    %v7060 = vadd.f32 %v6804, 1.0
    %v7061 = vadd.f32 %v6805, 1.0
    %v7062 = vadd.f32 %v6806, 1.0
    %v7063 = vadd.f32 %v6807, 1.0
    %v7064 = vadd.f32 %v6808, 1.0
    %v7065 = vadd.f32 %v6809, 1.0
    %v7066 = vadd.f32 %v6810, 1.0
    %v7067 = vadd.f32 %v6811, 1.0
    %v7068 = vadd.f32 %v6812, 1.0
    %v7069 = vadd.f32 %v6813, 1.0
    %v7070 = vadd.f32 %v6814, 1.0
    %v7071 = vadd.f32 %v6815, 1.0
    %v7072 = vadd.f32 %v6816, 1.0
    %v7073 = vadd.f32 %v6817, 1.0
    %v7074 = vadd.f32 %v6818, 1.0
    %v7075 = vadd.f32 %v6819, 1.0
    %v7076 = vadd.f32 %v6820, 1.0
    %v7077 = vadd.f32 %v6821, 1.0
    %v7078 = vadd.f32 %v6822, 1.0
    %v7079 = vadd.f32 %v6823, 1.0
    %v7080 = vadd.f32 %v6824, 1.0
    %v7081 = vadd.f32 %v6825, 1.0
    %v7082 = vadd.f32 %v6826, 1.0
    %v7083 = vadd.f32 %v6827, 1.0
    %v7084 = vadd.f32 %v6828, 1.0
    %v7085 = vadd.f32 %v6829, 1.0
    %v7086 = vadd.f32 %v6830, 1.0
    %v7087 = vadd.f32 %v6831, 1.0
    %v7088 = vadd.f32 %v6832, 1.0
    %v7089 = vadd.f32 %v6833, 1.0
    %v7090 = vadd.f32 %v6834, 1.0
    %v7091 = vadd.f32 %v6835, 1.0
    %v7092 = vadd.f32 %v6836, 1.0
    %v7093 = vadd.f32 %v6837, 1.0
    %v7094 = vadd.f32 %v6838, 1.0
    %v7095 = vadd.f32 %v6839, 1.0
    %v7096 = vadd.f32 %v6840, 1.0
    %v7097 = vadd.f32 %v6841, 1.0
    %v7098 = vadd.f32 %v6842, 1.0
    %v7099 = vadd.f32 %v6843, 1.0
    %v7100 = vadd.f32 %v6844, 1.0
    %v7101 = vadd.f32 %v6845, 1.0
    %v7102 = vadd.f32 %v6846, 1.0
    %v7103 = vadd.f32 %v6847, 1.0
    %v7104 = vadd.f32 %v6848, 1.0
    %v7105 = vadd.f32 %v6849, 1.0
    %v7106 = vadd.f32 %v6850, 1.0
    %v7107 = vadd.f32 %v6851, 1.0
    %v7108 = vadd.f32 %v6852, 1.0
    %v7109 = vadd.f32 %v6853, 1.0
    %v7110 = vadd.f32 %v6854, 1.0
    %v7111 = vadd.f32 %v6855, 1.0
    %v7112 = vadd.f32 %v6856, 1.0
    %v7113 = vadd.f32 %v6857, 1.0
    %v7114 = vadd.f32 %v6858, 1.0
    %v7115 = vadd.f32 %v6859, 1.0
    %v7116 = vadd.f32 %v6860, 1.0
    %v7117 = vadd.f32 %v6861, 1.0
    %v7118 = vadd.f32 %v6862, 1.0
    %v7119 = vadd.f32 %v6863, 1.0
    %v7120 = vadd.f32 %v6864, 1.0
    %v7121 = vadd.f32 %v6865, 1.0
    %v7122 = vadd.f32 %v6866, 1.0
    %v7123 = vadd.f32 %v6867, 1.0
    %v7124 = vadd.f32 %v6868, 1.0
    %v7125 = vadd.f32 %v6869, 1.0
    %v7126 = vadd.f32 %v6870, 1.0
    %v7127 = vadd.f32 %v6871, 1.0
    %v7128 = vadd.f32 %v6872, 1.0
    %v7129 = vadd.f32 %v6873, 1.0
    %v7130 = vadd.f32 %v6874, 1.0
    %v7131 = vadd.f32 %v6875, 1.0
    %v7132 = vadd.f32 %v6876, 1.0
    %v7133 = vadd.f32 %v6877, 1.0
    %v7134 = vadd.f32 %v6878, 1.0
    %v7135 = vadd.f32 %v6879, 1.0
    %v7136 = vadd.f32 %v6880, 1.0
    %v7137 = vadd.f32 %v6881, 1.0
    %v7138 = vadd.f32 %v6882, 1.0
    %v7139 = vadd.f32 %v6883, 1.0
    %v7140 = vadd.f32 %v6884, 1.0
    %v7141 = vadd.f32 %v6885, 1.0
    %v7142 = vadd.f32 %v6886, 1.0
    %v7143 = vadd.f32 %v6887, 1.0
    %v7144 = vadd.f32 %v6888, 1.0
    %v7145 = vadd.f32 %v6889, 1.0
    %v7146 = vadd.f32 %v6890, 1.0
    %v7147 = vadd.f32 %v6891, 1.0
    %v7148 = vadd.f32 %v6892, 1.0
    %v7149 = vadd.f32 %v6893, 1.0
    %v7150 = vadd.f32 %v6894, 1.0
    %v7151 = vadd.f32 %v6895, 1.0
    %v7152 = vadd.f32 %v6896, 1.0
    %v7153 = vadd.f32 %v6897, 1.0
    %v7154 = vadd.f32 %v6898, 1.0
    %v7155 = vadd.f32 %v6899, 1.0
    %v7156 = vadd.f32 %v6900, 1.0
    %v7157 = vadd.f32 %v6901, 1.0
    %v7158 = vadd.f32 %v6902, 1.0
    %v7159 = vadd.f32 %v6903, 1.0
    %v7160 = vadd.f32 %v6904, 1.0
    %v7161 = vadd.f32 %v6905, 1.0
    %v7162 = vadd.f32 %v6906, 1.0
    %v7163 = vadd.f32 %v6907, 1.0
    %v7164 = vadd.f32 %v6908, 1.0
    %v7165 = vadd.f32 %v6909, 1.0
    %v7166 = vadd.f32 %v6910, 1.0
    %v7167 = vadd.f32 %v6911, 1.0
    %v7168 = vadd.f32 %v6912, 1.0
    %v7169 = vadd.f32 %v6913, 1.0
    %v7170 = vadd.f32 %v6914, 1.0
    %v7171 = vadd.f32 %v6915, 1.0
    %v7172 = vadd.f32 %v6916, 1.0
    %v7173 = vadd.f32 %v6917, 1.0
    %v7174 = vadd.f32 %v6918, 1.0
    %v7175 = vadd.f32 %v6919, 1.0
    %v7176 = vadd.f32 %v6920, 1.0
    %v7177 = vadd.f32 %v6921, 1.0
    %v7178 = vadd.f32 %v6922, 1.0
    %v7179 = vadd.f32 %v6923, 1.0
    %v7180 = vadd.f32 %v6924, 1.0
    %v7181 = vadd.f32 %v6925, 1.0
    %v7182 = vadd.f32 %v6926, 1.0
    %v7183 = vadd.f32 %v6927, 1.0
    %v7184 = vadd.f32 %v6928, 1.0
    %v7185 = vadd.f32 %v6929, 1.0
    %v7186 = vadd.f32 %v6930, 1.0
    %v7187 = vadd.f32 %v6931, 1.0
    %v7188 = vadd.f32 %v6932, 1.0
    %v7189 = vadd.f32 %v6933, 1.0
    %v7190 = vadd.f32 %v6934, 1.0
    %v7191 = vadd.f32 %v6935, 1.0
    %v7192 = vadd.f32 %v6936, 1.0
    %v7193 = vadd.f32 %v6937, 1.0
    %v7194 = vadd.f32 %v6938, 1.0
    %v7195 = vadd.f32 %v6939, 1.0
    %v7196 = vadd.f32 %v6940, 1.0
    %v7197 = vadd.f32 %v6941, 1.0
    %v7198 = vadd.f32 %v6942, 1.0
    %v7199 = vadd.f32 %v6943, 1.0
    %v7200 = vadd.f32 %v6944, 1.0
    %v7201 = vadd.f32 %v6945, 1.0
    %v7202 = vadd.f32 %v6946, 1.0
    %v7203 = vadd.f32 %v6947, 1.0
    %v7204 = vadd.f32 %v6948, 1.0
    %v7205 = vadd.f32 %v6949, 1.0
    %v7206 = vadd.f32 %v6950, 1.0
    %v7207 = vadd.f32 %v6951, 1.0
    %v7208 = vadd.f32 %v6952, 1.0
    %v7209 = vadd.f32 %v6953, 1.0
    %v7210 = vadd.f32 %v6954, 1.0
    %v7211 = vadd.f32 %v6955, 1.0
    %v7212 = vadd.f32 %v6956, 1.0
    %v7213 = vadd.f32 %v6957, 1.0
    %v7214 = vadd.f32 %v6958, 1.0
    %v7215 = vadd.f32 %v6959, 1.0
    %v7216 = vadd.f32 %v6960, 1.0
    %v7217 = vadd.f32 %v6961, 1.0
    %v7218 = vadd.f32 %v6962, 1.0
    %v7219 = vadd.f32 %v6963, 1.0
    %v7220 = vadd.f32 %v6964, 1.0
    %v7221 = vadd.f32 %v6965, 1.0
    %v7222 = vadd.f32 %v6966, 1.0
    %v7223 = vadd.f32 %v6967, 1.0
    %v7224 = vadd.f32 %v6968, 1.0
    %v7225 = vadd.f32 %v6969, 1.0
    %v7226 = vadd.f32 %v6970, 1.0
    %v7227 = vadd.f32 %v6971, 1.0
    %v7228 = vadd.f32 %v6972, 1.0
    %v7229 = vadd.f32 %v6973, 1.0
    %v7230 = vadd.f32 %v6974, 1.0
    %v7231 = vadd.f32 %v6975, 1.0
    %v7232 = vadd.f32 %v6976, 1.0
    %v7233 = vadd.f32 %v6977, 1.0
    %v7234 = vadd.f32 %v6978, 1.0
    %v7235 = vadd.f32 %v6979, 1.0
    %v7236 = vadd.f32 %v6980, 1.0
    %v7237 = vadd.f32 %v6981, 1.0
    %v7238 = vadd.f32 %v6982, 1.0
    %v7239 = vadd.f32 %v6983, 1.0
    %v7240 = vadd.f32 %v6984, 1.0
    %v7241 = vadd.f32 %v6985, 1.0
    %v7242 = vadd.f32 %v6986, 1.0
    %v7243 = vadd.f32 %v6987, 1.0
    %v7244 = vadd.f32 %v6988, 1.0
    %v7245 = vadd.f32 %v6989, 1.0
    %v7246 = vadd.f32 %v6990, 1.0
    %v7247 = vadd.f32 %v6991, 1.0
    %v7248 = vadd.f32 %v6992, 1.0
    %v7249 = vadd.f32 %v6993, 1.0
    %v7250 = vadd.f32 %v6994, 1.0
    %v7251 = vadd.f32 %v6995, 1.0
    %v7252 = vadd.f32 %v6996, 1.0
    %v7253 = vadd.f32 %v6997, 1.0
    %v7254 = vadd.f32 %v6998, 1.0
    %v7255 = vadd.f32 %v6999, 1.0
    %v7256 = vadd.f32 %v7000, 1.0
    %v7257 = vadd.f32 %v7001, 1.0
    %v7258 = vadd.f32 %v7002, 1.0
    %v7259 = vadd.f32 %v7003, 1.0
    %v7260 = vadd.f32 %v7004, 1.0
    %v7261 = vadd.f32 %v7005, 1.0
    %v7262 = vadd.f32 %v7006, 1.0
    %v7263 = vadd.f32 %v7007, 1.0
    %v7264 = vadd.f32 %v7008, 1.0
    %v7265 = vadd.f32 %v7009, 1.0
    %v7266 = vadd.f32 %v7010, 1.0
    %v7267 = vadd.f32 %v7011, 1.0
    %v7268 = vadd.f32 %v7012, 1.0
    %v7269 = vadd.f32 %v7013, 1.0
    %v7270 = vadd.f32 %v7014, 1.0
    %v7271 = vadd.f32 %v7015, 1.0
    %v7272 = vadd.f32 %v7016, 1.0
    %v7273 = vadd.f32 %v7017, 1.0
    %v7274 = vadd.f32 %v7018, 1.0
    %v7275 = vadd.f32 %v7019, 1.0
    %v7276 = vadd.f32 %v7020, 1.0
    %v7277 = vadd.f32 %v7021, 1.0
    %v7278 = vadd.f32 %v7022, 1.0
    %v7279 = vmul.f32 %v5231, %v7023
    %v7280 = vmul.f32 %v5232, %v7024
    %v7281 = vmul.f32 %v5233, %v7025
    %v7282 = vmul.f32 %v5234, %v7026
    %v7283 = vmul.f32 %v5235, %v7027
    %v7284 = vmul.f32 %v5236, %v7028
    %v7285 = vmul.f32 %v5237, %v7029
    %v7286 = vmul.f32 %v5238, %v7030
    %v7287 = vmul.f32 %v5239, %v7031
    %v7288 = vmul.f32 %v5240, %v7032
    %v7289 = vmul.f32 %v5241, %v7033
    %v7290 = vmul.f32 %v5242, %v7034
    %v7291 = vmul.f32 %v5243, %v7035
    %v7292 = vmul.f32 %v5244, %v7036
    %v7293 = vmul.f32 %v5245, %v7037
    %v7294 = vmul.f32 %v5246, %v7038
    %v7295 = vmul.f32 %v5247, %v7039
    %v7296 = vmul.f32 %v5248, %v7040
    %v7297 = vmul.f32 %v5249, %v7041
    %v7298 = vmul.f32 %v5250, %v7042
    %v7299 = vmul.f32 %v5251, %v7043
    %v7300 = vmul.f32 %v5252, %v7044
    %v7301 = vmul.f32 %v5253, %v7045
    %v7302 = vmul.f32 %v5254, %v7046
    %v7303 = vmul.f32 %v5255, %v7047
    %v7304 = vmul.f32 %v5256, %v7048
    %v7305 = vmul.f32 %v5257, %v7049
    %v7306 = vmul.f32 %v5258, %v7050
    %v7307 = vmul.f32 %v5259, %v7051
    %v7308 = vmul.f32 %v5260, %v7052
    %v7309 = vmul.f32 %v5261, %v7053
    %v7310 = vmul.f32 %v5262, %v7054
    %v7311 = vmul.f32 %v5263, %v7055
    %v7312 = vmul.f32 %v5264, %v7056
    %v7313 = vmul.f32 %v5265, %v7057
    %v7314 = vmul.f32 %v5266, %v7058
    %v7315 = vmul.f32 %v5267, %v7059
    %v7316 = vmul.f32 %v5268, %v7060
    %v7317 = vmul.f32 %v5269, %v7061
    %v7318 = vmul.f32 %v5270, %v7062
    %v7319 = vmul.f32 %v5271, %v7063
    %v7320 = vmul.f32 %v5272, %v7064
    %v7321 = vmul.f32 %v5273, %v7065
    %v7322 = vmul.f32 %v5274, %v7066
    %v7323 = vmul.f32 %v5275, %v7067
    %v7324 = vmul.f32 %v5276, %v7068
    %v7325 = vmul.f32 %v5277, %v7069
    %v7326 = vmul.f32 %v5278, %v7070
    %v7327 = vmul.f32 %v5279, %v7071
    %v7328 = vmul.f32 %v5280, %v7072
    %v7329 = vmul.f32 %v5281, %v7073
    %v7330 = vmul.f32 %v5282, %v7074
    %v7331 = vmul.f32 %v5283, %v7075
    %v7332 = vmul.f32 %v5284, %v7076
    %v7333 = vmul.f32 %v5285, %v7077
    %v7334 = vmul.f32 %v5286, %v7078
    %v7335 = vmul.f32 %v5287, %v7079
    %v7336 = vmul.f32 %v5288, %v7080
    %v7337 = vmul.f32 %v5289, %v7081
    %v7338 = vmul.f32 %v5290, %v7082
    %v7339 = vmul.f32 %v5291, %v7083
    %v7340 = vmul.f32 %v5292, %v7084
    %v7341 = vmul.f32 %v5293, %v7085
    %v7342 = vmul.f32 %v5294, %v7086
    %v7343 = vmul.f32 %v5295, %v7087
    %v7344 = vmul.f32 %v5296, %v7088
    %v7345 = vmul.f32 %v5297, %v7089
    %v7346 = vmul.f32 %v5298, %v7090
    %v7347 = vmul.f32 %v5299, %v7091
    %v7348 = vmul.f32 %v5300, %v7092
    %v7349 = vmul.f32 %v5301, %v7093
    %v7350 = vmul.f32 %v5302, %v7094
    %v7351 = vmul.f32 %v5303, %v7095
    %v7352 = vmul.f32 %v5304, %v7096
    %v7353 = vmul.f32 %v5305, %v7097
    %v7354 = vmul.f32 %v5306, %v7098
    %v7355 = vmul.f32 %v5307, %v7099
    %v7356 = vmul.f32 %v5308, %v7100
    %v7357 = vmul.f32 %v5309, %v7101
    %v7358 = vmul.f32 %v5310, %v7102
    %v7359 = vmul.f32 %v5311, %v7103
    %v7360 = vmul.f32 %v5312, %v7104
    %v7361 = vmul.f32 %v5313, %v7105
    %v7362 = vmul.f32 %v5314, %v7106
    %v7363 = vmul.f32 %v5315, %v7107
    %v7364 = vmul.f32 %v5316, %v7108
    %v7365 = vmul.f32 %v5317, %v7109
    %v7366 = vmul.f32 %v5318, %v7110
    %v7367 = vmul.f32 %v5319, %v7111
    %v7368 = vmul.f32 %v5320, %v7112
    %v7369 = vmul.f32 %v5321, %v7113
    %v7370 = vmul.f32 %v5322, %v7114
    %v7371 = vmul.f32 %v5323, %v7115
    %v7372 = vmul.f32 %v5324, %v7116
    %v7373 = vmul.f32 %v5325, %v7117
    %v7374 = vmul.f32 %v5326, %v7118
    %v7375 = vmul.f32 %v5327, %v7119
    %v7376 = vmul.f32 %v5328, %v7120
    %v7377 = vmul.f32 %v5329, %v7121
    %v7378 = vmul.f32 %v5330, %v7122
    %v7379 = vmul.f32 %v5331, %v7123
    %v7380 = vmul.f32 %v5332, %v7124
    %v7381 = vmul.f32 %v5333, %v7125
    %v7382 = vmul.f32 %v5334, %v7126
    %v7383 = vmul.f32 %v5335, %v7127
    %v7384 = vmul.f32 %v5336, %v7128
    %v7385 = vmul.f32 %v5337, %v7129
    %v7386 = vmul.f32 %v5338, %v7130
    %v7387 = vmul.f32 %v5339, %v7131
    %v7388 = vmul.f32 %v5340, %v7132
    %v7389 = vmul.f32 %v5341, %v7133
    %v7390 = vmul.f32 %v5342, %v7134
    %v7391 = vmul.f32 %v5343, %v7135
    %v7392 = vmul.f32 %v5344, %v7136
    %v7393 = vmul.f32 %v5345, %v7137
    %v7394 = vmul.f32 %v5346, %v7138
    %v7395 = vmul.f32 %v5347, %v7139
    %v7396 = vmul.f32 %v5348, %v7140
    %v7397 = vmul.f32 %v5349, %v7141
    %v7398 = vmul.f32 %v5350, %v7142
    %v7399 = vmul.f32 %v5351, %v7143
    %v7400 = vmul.f32 %v5352, %v7144
    %v7401 = vmul.f32 %v5353, %v7145
    %v7402 = vmul.f32 %v5354, %v7146
    %v7403 = vmul.f32 %v5355, %v7147
    %v7404 = vmul.f32 %v5356, %v7148
    %v7405 = vmul.f32 %v5357, %v7149
    %v7406 = vmul.f32 %v5358, %v7150
    %v7407 = vmul.f32 %v5359, %v7151
    %v7408 = vmul.f32 %v5360, %v7152
    %v7409 = vmul.f32 %v5361, %v7153
    %v7410 = vmul.f32 %v5362, %v7154
    %v7411 = vmul.f32 %v5363, %v7155
    %v7412 = vmul.f32 %v5364, %v7156
    %v7413 = vmul.f32 %v5365, %v7157
    %v7414 = vmul.f32 %v5366, %v7158
    %v7415 = vmul.f32 %v5367, %v7159
    %v7416 = vmul.f32 %v5368, %v7160
    %v7417 = vmul.f32 %v5369, %v7161
    %v7418 = vmul.f32 %v5370, %v7162
    %v7419 = vmul.f32 %v5371, %v7163
    %v7420 = vmul.f32 %v5372, %v7164
    %v7421 = vmul.f32 %v5373, %v7165
    %v7422 = vmul.f32 %v5374, %v7166
    %v7423 = vmul.f32 %v5375, %v7167
    %v7424 = vmul.f32 %v5376, %v7168
    %v7425 = vmul.f32 %v5377, %v7169
    %v7426 = vmul.f32 %v5378, %v7170
    %v7427 = vmul.f32 %v5379, %v7171
    %v7428 = vmul.f32 %v5380, %v7172
    %v7429 = vmul.f32 %v5381, %v7173
    %v7430 = vmul.f32 %v5382, %v7174
    %v7431 = vmul.f32 %v5383, %v7175
    %v7432 = vmul.f32 %v5384, %v7176
    %v7433 = vmul.f32 %v5385, %v7177
    %v7434 = vmul.f32 %v5386, %v7178
    %v7435 = vmul.f32 %v5387, %v7179
    %v7436 = vmul.f32 %v5388, %v7180
    %v7437 = vmul.f32 %v5389, %v7181
    %v7438 = vmul.f32 %v5390, %v7182
    %v7439 = vmul.f32 %v5391, %v7183
    %v7440 = vmul.f32 %v5392, %v7184
    %v7441 = vmul.f32 %v5393, %v7185
    %v7442 = vmul.f32 %v5394, %v7186
    %v7443 = vmul.f32 %v5395, %v7187
    %v7444 = vmul.f32 %v5396, %v7188
    %v7445 = vmul.f32 %v5397, %v7189
    %v7446 = vmul.f32 %v5398, %v7190
    %v7447 = vmul.f32 %v5399, %v7191
    %v7448 = vmul.f32 %v5400, %v7192
    %v7449 = vmul.f32 %v5401, %v7193
    %v7450 = vmul.f32 %v5402, %v7194
    %v7451 = vmul.f32 %v5403, %v7195
    %v7452 = vmul.f32 %v5404, %v7196
    %v7453 = vmul.f32 %v5405, %v7197
    %v7454 = vmul.f32 %v5406, %v7198
    %v7455 = vmul.f32 %v5407, %v7199
    %v7456 = vmul.f32 %v5408, %v7200
    %v7457 = vmul.f32 %v5409, %v7201
    %v7458 = vmul.f32 %v5410, %v7202
    %v7459 = vmul.f32 %v5411, %v7203
    %v7460 = vmul.f32 %v5412, %v7204
    %v7461 = vmul.f32 %v5413, %v7205
    %v7462 = vmul.f32 %v5414, %v7206
    %v7463 = vmul.f32 %v5415, %v7207
    %v7464 = vmul.f32 %v5416, %v7208
    %v7465 = vmul.f32 %v5417, %v7209
    %v7466 = vmul.f32 %v5418, %v7210
    %v7467 = vmul.f32 %v5419, %v7211
    %v7468 = vmul.f32 %v5420, %v7212
    %v7469 = vmul.f32 %v5421, %v7213
    %v7470 = vmul.f32 %v5422, %v7214
    %v7471 = vmul.f32 %v5423, %v7215
    %v7472 = vmul.f32 %v5424, %v7216
    %v7473 = vmul.f32 %v5425, %v7217
    %v7474 = vmul.f32 %v5426, %v7218
    %v7475 = vmul.f32 %v5427, %v7219
    %v7476 = vmul.f32 %v5428, %v7220
    %v7477 = vmul.f32 %v5429, %v7221
    %v7478 = vmul.f32 %v5430, %v7222
    %v7479 = vmul.f32 %v5431, %v7223
    %v7480 = vmul.f32 %v5432, %v7224
    %v7481 = vmul.f32 %v5433, %v7225
    %v7482 = vmul.f32 %v5434, %v7226
    %v7483 = vmul.f32 %v5435, %v7227
    %v7484 = vmul.f32 %v5436, %v7228
    %v7485 = vmul.f32 %v5437, %v7229
    %v7486 = vmul.f32 %v5438, %v7230
    %v7487 = vmul.f32 %v5439, %v7231
    %v7488 = vmul.f32 %v5440, %v7232
    %v7489 = vmul.f32 %v5441, %v7233
    %v7490 = vmul.f32 %v5442, %v7234
    %v7491 = vmul.f32 %v5443, %v7235
    %v7492 = vmul.f32 %v5444, %v7236
    %v7493 = vmul.f32 %v5445, %v7237
    %v7494 = vmul.f32 %v5446, %v7238
    %v7495 = vmul.f32 %v5447, %v7239
    %v7496 = vmul.f32 %v5448, %v7240
    %v7497 = vmul.f32 %v5449, %v7241
    %v7498 = vmul.f32 %v5450, %v7242
    %v7499 = vmul.f32 %v5451, %v7243
    %v7500 = vmul.f32 %v5452, %v7244
    %v7501 = vmul.f32 %v5453, %v7245
    %v7502 = vmul.f32 %v5454, %v7246
    %v7503 = vmul.f32 %v5455, %v7247
    %v7504 = vmul.f32 %v5456, %v7248
    %v7505 = vmul.f32 %v5457, %v7249
    %v7506 = vmul.f32 %v5458, %v7250
    %v7507 = vmul.f32 %v5459, %v7251
    %v7508 = vmul.f32 %v5460, %v7252
    %v7509 = vmul.f32 %v5461, %v7253
    %v7510 = vmul.f32 %v5462, %v7254
    %v7511 = vmul.f32 %v5463, %v7255
    %v7512 = vmul.f32 %v5464, %v7256
    %v7513 = vmul.f32 %v5465, %v7257
    %v7514 = vmul.f32 %v5466, %v7258
    %v7515 = vmul.f32 %v5467, %v7259
    %v7516 = vmul.f32 %v5468, %v7260
    %v7517 = vmul.f32 %v5469, %v7261
    %v7518 = vmul.f32 %v5470, %v7262
    %v7519 = vmul.f32 %v5471, %v7263
    %v7520 = vmul.f32 %v5472, %v7264
    %v7521 = vmul.f32 %v5473, %v7265
    %v7522 = vmul.f32 %v5474, %v7266
    %v7523 = vmul.f32 %v5475, %v7267
    %v7524 = vmul.f32 %v5476, %v7268
    %v7525 = vmul.f32 %v5477, %v7269
    %v7526 = vmul.f32 %v5478, %v7270
    %v7527 = vmul.f32 %v5479, %v7271
    %v7528 = vmul.f32 %v5480, %v7272
    %v7529 = vmul.f32 %v5481, %v7273
    %v7530 = vmul.f32 %v5482, %v7274
    %v7531 = vmul.f32 %v5483, %v7275
    %v7532 = vmul.f32 %v5484, %v7276
    %v7533 = vmul.f32 %v5485, %v7277
    %v7534 = vmul.f32 %v5486, %v7278
    %v7535 = vadd.f32 %v7279, %v7281
    %v7536 = vadd.f32 %v7535, %v7283
    %v7537 = vadd.f32 %v7536, %v7285
    %v7538 = vadd.f32 %v7537, %v7287
    %v7539 = vadd.f32 %v7538, %v7289
    %v7540 = vadd.f32 %v7539, %v7291
    %v7541 = vadd.f32 %v7540, %v7293
    %v7542 = vadd.f32 %v7541, %v7295
    %v7543 = vadd.f32 %v7542, %v7297
    %v7544 = vadd.f32 %v7543, %v7299
    %v7545 = vadd.f32 %v7544, %v7301
    %v7546 = vadd.f32 %v7545, %v7303
    %v7547 = vadd.f32 %v7546, %v7305
    %v7548 = vadd.f32 %v7547, %v7307
    %v7549 = vadd.f32 %v7548, %v7309
    %v7550 = vrot.slane %v7549, 4
    %v7551 = vadd.f32 %v7549, %v7550
    %v7552 = vrot.slane %v7551, 2
    %v7553 = vadd.f32 %v7551, %v7552
    %v7554 = vrot.slane %v7553, 1
    %v7555 = vadd.f32 %v7553, %v7554
    %v7556 = vadd.f32 %v7280, %v7282
    %v7557 = vadd.f32 %v7556, %v7284
    %v7558 = vadd.f32 %v7557, %v7286
    %v7559 = vadd.f32 %v7558, %v7288
    %v7560 = vadd.f32 %v7559, %v7290
    %v7561 = vadd.f32 %v7560, %v7292
    %v7562 = vadd.f32 %v7561, %v7294
    %v7563 = vadd.f32 %v7562, %v7296
    %v7564 = vadd.f32 %v7563, %v7298
    %v7565 = vadd.f32 %v7564, %v7300
    %v7566 = vadd.f32 %v7565, %v7302
    %v7567 = vadd.f32 %v7566, %v7304
    %v7568 = vadd.f32 %v7567, %v7306
    %v7569 = vadd.f32 %v7568, %v7308
    %v7570 = vadd.f32 %v7569, %v7310
    %v7571 = vrot.slane %v7570, 4
    %v7572 = vadd.f32 %v7570, %v7571
    %v7573 = vrot.slane %v7572, 2
    %v7574 = vadd.f32 %v7572, %v7573
    %v7575 = vrot.slane %v7574, 1
    %v7576 = vadd.f32 %v7574, %v7575
    %v7577 = vadd.f32 %v7311, %v7313
    %v7578 = vadd.f32 %v7577, %v7315
    %v7579 = vadd.f32 %v7578, %v7317
    %v7580 = vadd.f32 %v7579, %v7319
    %v7581 = vadd.f32 %v7580, %v7321
    %v7582 = vadd.f32 %v7581, %v7323
    %v7583 = vadd.f32 %v7582, %v7325
    %v7584 = vadd.f32 %v7583, %v7327
    %v7585 = vadd.f32 %v7584, %v7329
    %v7586 = vadd.f32 %v7585, %v7331
    %v7587 = vadd.f32 %v7586, %v7333
    %v7588 = vadd.f32 %v7587, %v7335
    %v7589 = vadd.f32 %v7588, %v7337
    %v7590 = vadd.f32 %v7589, %v7339
    %v7591 = vadd.f32 %v7590, %v7341
    %v7592 = vrot.slane %v7591, 4
    %v7593 = vadd.f32 %v7591, %v7592
    %v7594 = vrot.slane %v7593, 2
    %v7595 = vadd.f32 %v7593, %v7594
    %v7596 = vrot.slane %v7595, 1
    %v7597 = vadd.f32 %v7595, %v7596
    %v7598 = vadd.f32 %v7312, %v7314
    %v7599 = vadd.f32 %v7598, %v7316
    %v7600 = vadd.f32 %v7599, %v7318
    %v7601 = vadd.f32 %v7600, %v7320
    %v7602 = vadd.f32 %v7601, %v7322
    %v7603 = vadd.f32 %v7602, %v7324
    %v7604 = vadd.f32 %v7603, %v7326
    %v7605 = vadd.f32 %v7604, %v7328
    %v7606 = vadd.f32 %v7605, %v7330
    %v7607 = vadd.f32 %v7606, %v7332
    %v7608 = vadd.f32 %v7607, %v7334
    %v7609 = vadd.f32 %v7608, %v7336
    %v7610 = vadd.f32 %v7609, %v7338
    %v7611 = vadd.f32 %v7610, %v7340
    %v7612 = vadd.f32 %v7611, %v7342
    %v7613 = vrot.slane %v7612, 4
    %v7614 = vadd.f32 %v7612, %v7613
    %v7615 = vrot.slane %v7614, 2
    %v7616 = vadd.f32 %v7614, %v7615
    %v7617 = vrot.slane %v7616, 1
    %v7618 = vadd.f32 %v7616, %v7617
    %v7619 = vadd.f32 %v7343, %v7345
    %v7620 = vadd.f32 %v7619, %v7347
    %v7621 = vadd.f32 %v7620, %v7349
    %v7622 = vadd.f32 %v7621, %v7351
    %v7623 = vadd.f32 %v7622, %v7353
    %v7624 = vadd.f32 %v7623, %v7355
    %v7625 = vadd.f32 %v7624, %v7357
    %v7626 = vadd.f32 %v7625, %v7359
    %v7627 = vadd.f32 %v7626, %v7361
    %v7628 = vadd.f32 %v7627, %v7363
    %v7629 = vadd.f32 %v7628, %v7365
    %v7630 = vadd.f32 %v7629, %v7367
    %v7631 = vadd.f32 %v7630, %v7369
    %v7632 = vadd.f32 %v7631, %v7371
    %v7633 = vadd.f32 %v7632, %v7373
    %v7634 = vrot.slane %v7633, 4
    %v7635 = vadd.f32 %v7633, %v7634
    %v7636 = vrot.slane %v7635, 2
    %v7637 = vadd.f32 %v7635, %v7636
    %v7638 = vrot.slane %v7637, 1
    %v7639 = vadd.f32 %v7637, %v7638
    %v7640 = vadd.f32 %v7344, %v7346
    %v7641 = vadd.f32 %v7640, %v7348
    %v7642 = vadd.f32 %v7641, %v7350
    %v7643 = vadd.f32 %v7642, %v7352
    %v7644 = vadd.f32 %v7643, %v7354
    %v7645 = vadd.f32 %v7644, %v7356
    %v7646 = vadd.f32 %v7645, %v7358
    %v7647 = vadd.f32 %v7646, %v7360
    %v7648 = vadd.f32 %v7647, %v7362
    %v7649 = vadd.f32 %v7648, %v7364
    %v7650 = vadd.f32 %v7649, %v7366
    %v7651 = vadd.f32 %v7650, %v7368
    %v7652 = vadd.f32 %v7651, %v7370
    %v7653 = vadd.f32 %v7652, %v7372
    %v7654 = vadd.f32 %v7653, %v7374
    %v7655 = vrot.slane %v7654, 4
    %v7656 = vadd.f32 %v7654, %v7655
    %v7657 = vrot.slane %v7656, 2
    %v7658 = vadd.f32 %v7656, %v7657
    %v7659 = vrot.slane %v7658, 1
    %v7660 = vadd.f32 %v7658, %v7659
    %v7661 = vadd.f32 %v7375, %v7377
    %v7662 = vadd.f32 %v7661, %v7379
    %v7663 = vadd.f32 %v7662, %v7381
    %v7664 = vadd.f32 %v7663, %v7383
    %v7665 = vadd.f32 %v7664, %v7385
    %v7666 = vadd.f32 %v7665, %v7387
    %v7667 = vadd.f32 %v7666, %v7389
    %v7668 = vadd.f32 %v7667, %v7391
    %v7669 = vadd.f32 %v7668, %v7393
    %v7670 = vadd.f32 %v7669, %v7395
    %v7671 = vadd.f32 %v7670, %v7397
    %v7672 = vadd.f32 %v7671, %v7399
    %v7673 = vadd.f32 %v7672, %v7401
    %v7674 = vadd.f32 %v7673, %v7403
    %v7675 = vadd.f32 %v7674, %v7405
    %v7676 = vrot.slane %v7675, 4
    %v7677 = vadd.f32 %v7675, %v7676
    %v7678 = vrot.slane %v7677, 2
    %v7679 = vadd.f32 %v7677, %v7678
    %v7680 = vrot.slane %v7679, 1
    %v7681 = vadd.f32 %v7679, %v7680
    %v7682 = vadd.f32 %v7376, %v7378
    %v7683 = vadd.f32 %v7682, %v7380
    %v7684 = vadd.f32 %v7683, %v7382
    %v7685 = vadd.f32 %v7684, %v7384
    %v7686 = vadd.f32 %v7685, %v7386
    %v7687 = vadd.f32 %v7686, %v7388
    %v7688 = vadd.f32 %v7687, %v7390
    %v7689 = vadd.f32 %v7688, %v7392
    %v7690 = vadd.f32 %v7689, %v7394
    %v7691 = vadd.f32 %v7690, %v7396
    %v7692 = vadd.f32 %v7691, %v7398
    %v7693 = vadd.f32 %v7692, %v7400
    %v7694 = vadd.f32 %v7693, %v7402
    %v7695 = vadd.f32 %v7694, %v7404
    %v7696 = vadd.f32 %v7695, %v7406
    %v7697 = vrot.slane %v7696, 4
    %v7698 = vadd.f32 %v7696, %v7697
    %v7699 = vrot.slane %v7698, 2
    %v7700 = vadd.f32 %v7698, %v7699
    %v7701 = vrot.slane %v7700, 1
    %v7702 = vadd.f32 %v7700, %v7701
    %v7703 = vadd.f32 %v7407, %v7409
    %v7704 = vadd.f32 %v7703, %v7411
    %v7705 = vadd.f32 %v7704, %v7413
    %v7706 = vadd.f32 %v7705, %v7415
    %v7707 = vadd.f32 %v7706, %v7417
    %v7708 = vadd.f32 %v7707, %v7419
    %v7709 = vadd.f32 %v7708, %v7421
    %v7710 = vadd.f32 %v7709, %v7423
    %v7711 = vadd.f32 %v7710, %v7425
    %v7712 = vadd.f32 %v7711, %v7427
    %v7713 = vadd.f32 %v7712, %v7429
    %v7714 = vadd.f32 %v7713, %v7431
    %v7715 = vadd.f32 %v7714, %v7433
    %v7716 = vadd.f32 %v7715, %v7435
    %v7717 = vadd.f32 %v7716, %v7437
    %v7718 = vrot.slane %v7717, 4
    %v7719 = vadd.f32 %v7717, %v7718
    %v7720 = vrot.slane %v7719, 2
    %v7721 = vadd.f32 %v7719, %v7720
    %v7722 = vrot.slane %v7721, 1
    %v7723 = vadd.f32 %v7721, %v7722
    %v7724 = vadd.f32 %v7408, %v7410
    %v7725 = vadd.f32 %v7724, %v7412
    %v7726 = vadd.f32 %v7725, %v7414
    %v7727 = vadd.f32 %v7726, %v7416
    %v7728 = vadd.f32 %v7727, %v7418
    %v7729 = vadd.f32 %v7728, %v7420
    %v7730 = vadd.f32 %v7729, %v7422
    %v7731 = vadd.f32 %v7730, %v7424
    %v7732 = vadd.f32 %v7731, %v7426
    %v7733 = vadd.f32 %v7732, %v7428
    %v7734 = vadd.f32 %v7733, %v7430
    %v7735 = vadd.f32 %v7734, %v7432
    %v7736 = vadd.f32 %v7735, %v7434
    %v7737 = vadd.f32 %v7736, %v7436
    %v7738 = vadd.f32 %v7737, %v7438
    %v7739 = vrot.slane %v7738, 4
    %v7740 = vadd.f32 %v7738, %v7739
    %v7741 = vrot.slane %v7740, 2
    %v7742 = vadd.f32 %v7740, %v7741
    %v7743 = vrot.slane %v7742, 1
    %v7744 = vadd.f32 %v7742, %v7743
    %v7745 = vadd.f32 %v7439, %v7441
    %v7746 = vadd.f32 %v7745, %v7443
    %v7747 = vadd.f32 %v7746, %v7445
    %v7748 = vadd.f32 %v7747, %v7447
    %v7749 = vadd.f32 %v7748, %v7449
    %v7750 = vadd.f32 %v7749, %v7451
    %v7751 = vadd.f32 %v7750, %v7453
    %v7752 = vadd.f32 %v7751, %v7455
    %v7753 = vadd.f32 %v7752, %v7457
    %v7754 = vadd.f32 %v7753, %v7459
    %v7755 = vadd.f32 %v7754, %v7461
    %v7756 = vadd.f32 %v7755, %v7463
    %v7757 = vadd.f32 %v7756, %v7465
    %v7758 = vadd.f32 %v7757, %v7467
    %v7759 = vadd.f32 %v7758, %v7469
    %v7760 = vrot.slane %v7759, 4
    %v7761 = vadd.f32 %v7759, %v7760
    %v7762 = vrot.slane %v7761, 2
    %v7763 = vadd.f32 %v7761, %v7762
    %v7764 = vrot.slane %v7763, 1
    %v7765 = vadd.f32 %v7763, %v7764
    %v7766 = vadd.f32 %v7440, %v7442
    %v7767 = vadd.f32 %v7766, %v7444
    %v7768 = vadd.f32 %v7767, %v7446
    %v7769 = vadd.f32 %v7768, %v7448
    %v7770 = vadd.f32 %v7769, %v7450
    %v7771 = vadd.f32 %v7770, %v7452
    %v7772 = vadd.f32 %v7771, %v7454
    %v7773 = vadd.f32 %v7772, %v7456
    %v7774 = vadd.f32 %v7773, %v7458
    %v7775 = vadd.f32 %v7774, %v7460
    %v7776 = vadd.f32 %v7775, %v7462
    %v7777 = vadd.f32 %v7776, %v7464
    %v7778 = vadd.f32 %v7777, %v7466
    %v7779 = vadd.f32 %v7778, %v7468
    %v7780 = vadd.f32 %v7779, %v7470
    %v7781 = vrot.slane %v7780, 4
    %v7782 = vadd.f32 %v7780, %v7781
    %v7783 = vrot.slane %v7782, 2
    %v7784 = vadd.f32 %v7782, %v7783
    %v7785 = vrot.slane %v7784, 1
    %v7786 = vadd.f32 %v7784, %v7785
    %v7787 = vadd.f32 %v7471, %v7473
    %v7788 = vadd.f32 %v7787, %v7475
    %v7789 = vadd.f32 %v7788, %v7477
    %v7790 = vadd.f32 %v7789, %v7479
    %v7791 = vadd.f32 %v7790, %v7481
    %v7792 = vadd.f32 %v7791, %v7483
    %v7793 = vadd.f32 %v7792, %v7485
    %v7794 = vadd.f32 %v7793, %v7487
    %v7795 = vadd.f32 %v7794, %v7489
    %v7796 = vadd.f32 %v7795, %v7491
    %v7797 = vadd.f32 %v7796, %v7493
    %v7798 = vadd.f32 %v7797, %v7495
    %v7799 = vadd.f32 %v7798, %v7497
    %v7800 = vadd.f32 %v7799, %v7499
    %v7801 = vadd.f32 %v7800, %v7501
    %v7802 = vrot.slane %v7801, 4
    %v7803 = vadd.f32 %v7801, %v7802
    %v7804 = vrot.slane %v7803, 2
    %v7805 = vadd.f32 %v7803, %v7804
    %v7806 = vrot.slane %v7805, 1
    %v7807 = vadd.f32 %v7805, %v7806
    %v7808 = vadd.f32 %v7472, %v7474
    %v7809 = vadd.f32 %v7808, %v7476
    %v7810 = vadd.f32 %v7809, %v7478
    %v7811 = vadd.f32 %v7810, %v7480
    %v7812 = vadd.f32 %v7811, %v7482
    %v7813 = vadd.f32 %v7812, %v7484
    %v7814 = vadd.f32 %v7813, %v7486
    %v7815 = vadd.f32 %v7814, %v7488
    %v7816 = vadd.f32 %v7815, %v7490
    %v7817 = vadd.f32 %v7816, %v7492
    %v7818 = vadd.f32 %v7817, %v7494
    %v7819 = vadd.f32 %v7818, %v7496
    %v7820 = vadd.f32 %v7819, %v7498
    %v7821 = vadd.f32 %v7820, %v7500
    %v7822 = vadd.f32 %v7821, %v7502
    %v7823 = vrot.slane %v7822, 4
    %v7824 = vadd.f32 %v7822, %v7823
    %v7825 = vrot.slane %v7824, 2
    %v7826 = vadd.f32 %v7824, %v7825
    %v7827 = vrot.slane %v7826, 1
    %v7828 = vadd.f32 %v7826, %v7827
    %v7829 = vadd.f32 %v7503, %v7505
    %v7830 = vadd.f32 %v7829, %v7507
    %v7831 = vadd.f32 %v7830, %v7509
    %v7832 = vadd.f32 %v7831, %v7511
    %v7833 = vadd.f32 %v7832, %v7513
    %v7834 = vadd.f32 %v7833, %v7515
    %v7835 = vadd.f32 %v7834, %v7517
    %v7836 = vadd.f32 %v7835, %v7519
    %v7837 = vadd.f32 %v7836, %v7521
    %v7838 = vadd.f32 %v7837, %v7523
    %v7839 = vadd.f32 %v7838, %v7525
    %v7840 = vadd.f32 %v7839, %v7527
    %v7841 = vadd.f32 %v7840, %v7529
    %v7842 = vadd.f32 %v7841, %v7531
    %v7843 = vadd.f32 %v7842, %v7533
    %v7844 = vrot.slane %v7843, 4
    %v7845 = vadd.f32 %v7843, %v7844
    %v7846 = vrot.slane %v7845, 2
    %v7847 = vadd.f32 %v7845, %v7846
    %v7848 = vrot.slane %v7847, 1
    %v7849 = vadd.f32 %v7847, %v7848
    %v7850 = vadd.f32 %v7504, %v7506
    %v7851 = vadd.f32 %v7850, %v7508
    %v7852 = vadd.f32 %v7851, %v7510
    %v7853 = vadd.f32 %v7852, %v7512
    %v7854 = vadd.f32 %v7853, %v7514
    %v7855 = vadd.f32 %v7854, %v7516
    %v7856 = vadd.f32 %v7855, %v7518
    %v7857 = vadd.f32 %v7856, %v7520
    %v7858 = vadd.f32 %v7857, %v7522
    %v7859 = vadd.f32 %v7858, %v7524
    %v7860 = vadd.f32 %v7859, %v7526
    %v7861 = vadd.f32 %v7860, %v7528
    %v7862 = vadd.f32 %v7861, %v7530
    %v7863 = vadd.f32 %v7862, %v7532
    %v7864 = vadd.f32 %v7863, %v7534
    %v7865 = vrot.slane %v7864, 4
    %v7866 = vadd.f32 %v7864, %v7865
    %v7867 = vrot.slane %v7866, 2
    %v7868 = vadd.f32 %v7866, %v7867
    %v7869 = vrot.slane %v7868, 1
    %v7870 = vadd.f32 %v7868, %v7869
    %v7871 = vpack.c.bf16 %v7555, %v7555
    %v7872 = vpack.c.bf16 %v7576, %v7576
    %v7873 = vpack.c.bf16 %v7597, %v7597
    %v7874 = vpack.c.bf16 %v7618, %v7618
    %v7875 = vpack.c.bf16 %v7639, %v7639
    %v7876 = vpack.c.bf16 %v7660, %v7660
    %v7877 = vpack.c.bf16 %v7681, %v7681
    %v7878 = vpack.c.bf16 %v7702, %v7702
    %v7879 = vpack.c.bf16 %v7723, %v7723
    %v7880 = vpack.c.bf16 %v7744, %v7744
    %v7881 = vpack.c.bf16 %v7765, %v7765
    %v7882 = vpack.c.bf16 %v7786, %v7786
    %v7883 = vpack.c.bf16 %v7807, %v7807
    %v7884 = vpack.c.bf16 %v7828, %v7828
    %v7885 = vpack.c.bf16 %v7849, %v7849
    %v7886 = vpack.c.bf16 %v7870, %v7870
    %v7887 = vld [vmem:[%s3] sm:$0xf]
    %v7888 = vld [vmem:[%s3 + $0x4] sm:$0xf]
    %v7889 = vld [vmem:[%s3 + $0x8] sm:$0xf]
    %v7890 = vld [vmem:[%s3 + $0xc] sm:$0xf]
    %v7891 = vld [vmem:[%s3 + $0x10] sm:$0xf]
    %v7892 = vld [vmem:[%s3 + $0x14] sm:$0xf]
    %v7893 = vld [vmem:[%s3 + $0x18] sm:$0xf]
    %v7894 = vld [vmem:[%s3 + $0x1c] sm:$0xf]
    %v7895 = vld [vmem:[%s3 + $0x20] sm:$0xf]
    %v7896 = vld [vmem:[%s3 + $0x24] sm:$0xf]
    %v7897 = vld [vmem:[%s3 + $0x28] sm:$0xf]
    %v7898 = vld [vmem:[%s3 + $0x2c] sm:$0xf]
    %v7899 = vld [vmem:[%s3 + $0x30] sm:$0xf]
    %v7900 = vld [vmem:[%s3 + $0x34] sm:$0xf]
    %v7901 = vld [vmem:[%s3 + $0x38] sm:$0xf]
    %v7902 = vld [vmem:[%s3 + $0x3c] sm:$0xf]
    %v7903 = vld [vmem:[%s3 + $0x40] sm:$0xf]
    %v7904 = vld [vmem:[%s3 + $0x44] sm:$0xf]
    %v7905 = vld [vmem:[%s3 + $0x48] sm:$0xf]
    %v7906 = vld [vmem:[%s3 + $0x4c] sm:$0xf]
    %v7907 = vld [vmem:[%s3 + $0x50] sm:$0xf]
    %v7908 = vld [vmem:[%s3 + $0x54] sm:$0xf]
    %v7909 = vld [vmem:[%s3 + $0x58] sm:$0xf]
    %v7910 = vld [vmem:[%s3 + $0x5c] sm:$0xf]
    %v7911 = vld [vmem:[%s3 + $0x60] sm:$0xf]
    %v7912 = vld [vmem:[%s3 + $0x64] sm:$0xf]
    %v7913 = vld [vmem:[%s3 + $0x68] sm:$0xf]
    %v7914 = vld [vmem:[%s3 + $0x6c] sm:$0xf]
    %v7915 = vld [vmem:[%s3 + $0x70] sm:$0xf]
    %v7916 = vld [vmem:[%s3 + $0x74] sm:$0xf]
    %v7917 = vld [vmem:[%s3 + $0x78] sm:$0xf]
    %v7918 = vld [vmem:[%s3 + $0x7c] sm:$0xf]
    %v7919 = vld [vmem:[%s4] sm:$0x1]
    %v7921 = vlaneseq
    %v7922 = vshrl.u32 %v7921, 7
    %v7923 = vsub.s32 0, %v7922
    %v7924 = vrot.slane %v7919, %v7923
    %v7942 = vunpack.c.l.b16 %v7871
    %v7943 = vunpack.c.l.b16 %v7872
    %v7944 = vunpack.c.l.b16 %v7873
    %v7945 = vunpack.c.l.b16 %v7874
    %v7946 = vunpack.c.l.b16 %v7875
    %v7947 = vunpack.c.l.b16 %v7876
    %v7948 = vunpack.c.l.b16 %v7877
    %v7949 = vunpack.c.l.b16 %v7878
    %v7950 = vunpack.c.l.b16 %v7879
    %v7951 = vunpack.c.l.b16 %v7880
    %v7952 = vunpack.c.l.b16 %v7881
    %v7953 = vunpack.c.l.b16 %v7882
    %v7954 = vunpack.c.l.b16 %v7883
    %v7955 = vunpack.c.l.b16 %v7884
    %v7956 = vunpack.c.l.b16 %v7885
    %v7957 = vunpack.c.l.b16 %v7886
    %vm7958 = vcmask 1041409
    %v7959 = vsel %vm7958, %v7944, %v7942
    %vm7960 = vcmask 1042434
    %v7961 = vsel %vm7960, %v7946, %v7959
    %vm7962 = vcmask 1043459
    %v7963 = vsel %vm7962, %v7948, %v7961
    %vm7964 = vcmask 1044484
    %v7965 = vsel %vm7964, %v7950, %v7963
    %vm7966 = vcmask 1045509
    %v7967 = vsel %vm7966, %v7952, %v7965
    %vm7968 = vcmask 1046534
    %v7969 = vsel %vm7968, %v7954, %v7967
    %vm7970 = vcmask 1047559
    %v7971 = vsel %vm7970, %v7956, %v7969
    %v7972 = vsel %vm7958, %v7945, %v7943
    %v7973 = vsel %vm7960, %v7947, %v7972
    %v7974 = vsel %vm7962, %v7949, %v7973
    %v7975 = vsel %vm7964, %v7951, %v7974
    %v7976 = vsel %vm7966, %v7953, %v7975
    %v7977 = vsel %vm7968, %v7955, %v7976
    %v7978 = vsel %vm7970, %v7957, %v7977
    %v7979 = vpack.c.b16 %v7971, %v7971
    %v7980 = vpack.c.b16 %v7978, %v7978
    %v8015 = vunpack.c.l.b16 %v7887
    %v8016 = vunpack.c.l.b16 %v7888
    %v8017 = vunpack.c.l.b16 %v7889
    %v8018 = vunpack.c.l.b16 %v7890
    %v8019 = vunpack.c.l.b16 %v7891
    %v8020 = vunpack.c.l.b16 %v7892
    %v8021 = vunpack.c.l.b16 %v7893
    %v8022 = vunpack.c.l.b16 %v7894
    %v8023 = vunpack.c.l.b16 %v7895
    %v8024 = vunpack.c.l.b16 %v7896
    %v8025 = vunpack.c.l.b16 %v7897
    %v8026 = vunpack.c.l.b16 %v7898
    %v8027 = vunpack.c.l.b16 %v7899
    %v8028 = vunpack.c.l.b16 %v7900
    %v8029 = vunpack.c.l.b16 %v7901
    %v8030 = vunpack.c.l.b16 %v7902
    %v8031 = vunpack.c.l.b16 %v7903
    %v8032 = vunpack.c.l.b16 %v7904
    %v8033 = vunpack.c.l.b16 %v7905
    %v8034 = vunpack.c.l.b16 %v7906
    %v8035 = vunpack.c.l.b16 %v7907
    %v8036 = vunpack.c.l.b16 %v7908
    %v8037 = vunpack.c.l.b16 %v7909
    %v8038 = vunpack.c.l.b16 %v7910
    %v8039 = vunpack.c.l.b16 %v7911
    %v8040 = vunpack.c.l.b16 %v7912
    %v8041 = vunpack.c.l.b16 %v7913
    %v8042 = vunpack.c.l.b16 %v7914
    %v8043 = vunpack.c.l.b16 %v7915
    %v8044 = vunpack.c.l.b16 %v7916
    %v8045 = vunpack.c.l.b16 %v7917
    %v8046 = vunpack.c.l.b16 %v7918
    %v8047 = vpack.c.b16 %v8016, %v8015
    %v8048 = vpack.c.b16 %v8018, %v8017
    %v8049 = vpack.c.b16 %v8020, %v8019
    %v8050 = vpack.c.b16 %v8022, %v8021
    %v8051 = vpack.c.b16 %v8024, %v8023
    %v8052 = vpack.c.b16 %v8026, %v8025
    %v8053 = vpack.c.b16 %v8028, %v8027
    %v8054 = vpack.c.b16 %v8030, %v8029
    %v8055 = vpack.c.b16 %v8032, %v8031
    %v8056 = vpack.c.b16 %v8034, %v8033
    %v8057 = vpack.c.b16 %v8036, %v8035
    %v8058 = vpack.c.b16 %v8038, %v8037
    %v8059 = vpack.c.b16 %v8040, %v8039
    %v8060 = vpack.c.b16 %v8042, %v8041
    %v8061 = vpack.c.b16 %v8044, %v8043
    %v8062 = vpack.c.b16 %v8046, %v8045
    %8079 = vmatprep.subr.bf16.mxu0 0
    %8080 = vmatpush1.bf16.msra.mxu0 %v8054
    %8081 = vmatprep.subr.bf16.mxu0 0
    %8082 = vmatpush1.bf16.msra.mxu0 %v8053
    %8083 = vmatprep.subr.bf16.mxu0 0
    %8084 = vmatpush1.bf16.msra.mxu0 %v8052
    %8085 = vmatprep.subr.bf16.mxu0 0
    %8086 = vmatpush1.bf16.msra.mxu0 %v8051
    %8087 = vmatprep.subr.bf16.mxu0 0
    %8088 = vmatpush1.bf16.msra.mxu0 %v8050
    %8089 = vmatprep.subr.bf16.mxu0 0
    %8090 = vmatpush1.bf16.msra.mxu0 %v8049
    %8091 = vmatprep.subr.bf16.mxu0 0
    %8092 = vmatpush1.bf16.msra.mxu0 %v8048
    %8093 = vmatprep.subr.bf16.mxu0 0
    %8094 = vmatpush1.bf16.msra.mxu0 %v8047
    %8095 = vmatprep.subr.bf16.mxu0 0
    %8096 = vmatpush2.bf16.msra.mxu0 %v8062
    %8097 = vmatprep.subr.bf16.mxu0 0
    %8098 = vmatpush2.bf16.msra.mxu0 %v8061
    %8099 = vmatprep.subr.bf16.mxu0 0
    %8100 = vmatpush2.bf16.msra.mxu0 %v8060
    %8101 = vmatprep.subr.bf16.mxu0 0
    %8102 = vmatpush2.bf16.msra.mxu0 %v8059
    %8103 = vmatprep.subr.bf16.mxu0 0
    %8104 = vmatpush2.bf16.msra.mxu0 %v8058
    %8105 = vmatprep.subr.bf16.mxu0 0
    %8106 = vmatpush2.bf16.msra.mxu0 %v8057
    %8107 = vmatprep.subr.bf16.mxu0 0
    %8108 = vmatpush2.bf16.msra.mxu0 %v8056
    %8109 = vmatprep.subr.bf16.mxu0 0
    %8110 = vmatpush2.bf16.msra.mxu0 %v8055
    %8111 = vmatprep.mubr.bf16.mxu0 %v7980
    %8112 = vmatmul.mubr.bf16.gmra.mxu0 %v7979
    %v8113 = vpop.f32.mrf.mxu0
    %v8114 = vadd.f32 %v7924, %v8113
    %v8115 = vpop.f32.mrf.mxu0
    %v8116 = vpop.f32.mrf.mxu0
    %v8117 = vpop.f32.mrf.mxu0
    %8118 = vdwg.mxu0
    %v8119 = vmul.f32 %v8114, 0.5
    %v8120 = vrcp.pop 1.4142135
    %v8121 = vmul.f32 %v8114, %v8120
    %v8122 = verf.f32.pop %v8121
    %v8123 = vadd.f32 %v8122, 1.0
    %v8124 = vmul.f32 %v8119, %v8123
    %v8125 = vpack.c.bf16 %v8124, %v8124
    %v8126 = vld [vmem:[%s5] sm:$0xff]
    %v8127 = vld [vmem:[%s5 + $0x8] sm:$0xff]
    %v8128 = vld [vmem:[%s6] sm:$0x3]
    %v8130 = vlaneseq
    %v8131 = vshrl.u32 %v8130, 7
    %v8132 = vsub.s32 0, %v8131
    %v8133 = vrot.slane %v8128, %v8132
    %v8134 = vlaneseq
    %v8135 = vshrl.u32 %v8134, 7
    %v8136 = vsub.s32 1, %v8135
    %v8137 = vrot.slane %v8128, %v8136
    %v8142 = vunpack.c.l.b16 %v8126
    %v8143 = vunpack.c.h.b16 %v8126
    %v8144 = vunpack.c.l.b16 %v8127
    %v8145 = vunpack.c.h.b16 %v8127
    %v8146 = vpack.c.b16 %v8144, %v8142
    %v8147 = vpack.c.b16 %v8145, %v8143
    %vm8150 = vcmask 130048
    %v8152 = vsel %vm8150, %v8125, 0
    %8154 = vmatprep.subr.bf16.mxu0 0
    %8155 = vmatpush1.bf16.msra.mxu0 0
    %8156 = vmatprep.subr.bf16.mxu0 0
    %8157 = vmatpush1.bf16.msra.mxu0 0
    %8158 = vmatprep.subr.bf16.mxu0 0
    %8159 = vmatpush1.bf16.msra.mxu0 0
    %8160 = vmatprep.subr.bf16.mxu0 0
    %8161 = vmatpush1.bf16.msra.mxu0 0
    %8162 = vmatprep.subr.bf16.mxu0 0
    %8163 = vmatpush1.bf16.msra.mxu0 0
    %8164 = vmatprep.subr.bf16.mxu0 0
    %8165 = vmatpush1.bf16.msra.mxu0 0
    %8166 = vmatprep.subr.bf16.mxu0 0
    %8167 = vmatpush1.bf16.msra.mxu0 0
    %8168 = vmatprep.subr.bf16.mxu0 %v8147
    %8169 = vmatpush1.bf16.msra.mxu0 %v8146
    %8170 = vmatprep.subr.bf16.mxu0 0
    %8171 = vmatpush2.bf16.msra.mxu0 0
    %8172 = vmatprep.subr.bf16.mxu0 0
    %8173 = vmatpush2.bf16.msra.mxu0 0
    %8174 = vmatprep.subr.bf16.mxu0 0
    %8175 = vmatpush2.bf16.msra.mxu0 0
    %8176 = vmatprep.subr.bf16.mxu0 0
    %8177 = vmatpush2.bf16.msra.mxu0 0
    %8178 = vmatprep.subr.bf16.mxu0 0
    %8179 = vmatpush2.bf16.msra.mxu0 0
    %8180 = vmatprep.subr.bf16.mxu0 0
    %8181 = vmatpush2.bf16.msra.mxu0 0
    %8182 = vmatprep.subr.bf16.mxu0 0
    %8183 = vmatpush2.bf16.msra.mxu0 0
    %8184 = vmatprep.subr.bf16.mxu0 0
    %8185 = vmatpush2.bf16.msra.mxu0 0
    %8186 = vmatprep.mubr.bf16.mxu0 0
    %8187 = vmatmul.mubr.bf16.gmra.mxu0 %v8152
    %v8188 = vpop.f32.mrf.mxu0
    %v8189 = vadd.f32 %v8133, %v8188
    %v8190 = vpop.f32.mrf.mxu0
    %v8191 = vadd.f32 %v8137, %v8190
    %v8192 = vpop.f32.mrf.mxu0
    %v8193 = vpop.f32.mrf.mxu0
    %8194 = vdwg.mxu0
    %v8195 = vxor.u32 %v8189, 2147483648
    %v8196 = vxor.u32 %v8191, 2147483648
    %v8197 = vmul.f32 %v8195, 1.442695
    %v8198 = vpow.pop %v8197
    %v8199 = vmul.f32 %v8196, 1.442695
    %v8200 = vpow.pop %v8199
    %v8201 = vadd.f32 %v8198, 1.0
    %v8202 = vadd.f32 %v8200, 1.0
    %v8203 = vrcp.pop %v8201
    %v8204 = vmul.f32 1.0, %v8203
    %v8205 = vrcp.pop %v8202
    %v8206 = vmul.f32 1.0, %v8205
    %v8209 = vcombine.low %v8204, %v8206
    %v8210 = vcombine.high %v8204, %v8206
    %v8212 = vunpack.c.l.s4 1966171168
    %v8213 = vunpack.c.0.s8 %v8212
    %v8214 = vlaneseq
    %v8215 = vshrl.u32 %v8214, 7
    %v8216 = vsub.s32 %v8213, %v8215
    %v8217 = vrot.slane %v8209, %v8216
    %v8219 = vunpack.c.l.s4 1966171168
    %v8220 = vunpack.c.0.s8 %v8219
    %v8221 = vlaneseq
    %v8222 = vshrl.u32 %v8221, 7
    %v8223 = vsub.s32 %v8220, %v8222
    %v8224 = vrot.slane %v8210, %v8223
    %v8225 = vcombine.high %v8217, %v8217
    %v8226 = vcombine.high %v8224, %v8224
    %v8228 = vunpack.c.l.s4 1966171168
    %v8229 = vunpack.c.0.s8 %v8228
    %v8230 = vlaneseq
    %v8231 = vshrl.u32 %v8230, 7
    %v8232 = vsub.s32 %v8229, %v8231
    %v8233 = vrot.slane %v8217, %v8232
    %v8235 = vunpack.c.l.s4 1966171168
    %v8236 = vunpack.c.0.s8 %v8235
    %v8237 = vlaneseq
    %v8238 = vshrl.u32 %v8237, 7
    %v8239 = vsub.s32 %v8236, %v8238
    %v8240 = vrot.slane %v8224, %v8239
    %v8242 = vunpack.c.l.s4 1966171168
    %v8243 = vunpack.c.0.s8 %v8242
    %v8244 = vlaneseq
    %v8245 = vshrl.u32 %v8244, 7
    %v8246 = vsub.s32 %v8243, %v8245
    %v8247 = vrot.slane %v8225, %v8246
    %v8249 = vunpack.c.l.s4 1966171168
    %v8250 = vunpack.c.0.s8 %v8249
    %v8251 = vlaneseq
    %v8252 = vshrl.u32 %v8251, 7
    %v8253 = vsub.s32 %v8250, %v8252
    %v8254 = vrot.slane %v8226, %v8253
    %v8255 = vcombine.high %v8233, %v8233
    %v8256 = vcombine.high %v8240, %v8240
    %v8257 = vcombine.high %v8247, %v8247
    %v8258 = vcombine.high %v8254, %v8254
    %v8259 = vlaneseq
    %v8260 = vshrl.u32 %v8259, 7
    %v8261 = vsub.s32 0, %v8260
    %v8262 = vrot.slane %v8233, %v8261
    %v8263 = vlaneseq
    %v8264 = vshrl.u32 %v8263, 7
    %v8265 = vsub.s32 1, %v8264
    %v8266 = vrot.slane %v8233, %v8265
    %v8267 = vlaneseq
    %v8268 = vshrl.u32 %v8267, 7
    %v8269 = vsub.s32 0, %v8268
    %v8270 = vrot.slane %v8247, %v8269
    %v8271 = vlaneseq
    %v8272 = vshrl.u32 %v8271, 7
    %v8273 = vsub.s32 1, %v8272
    %v8274 = vrot.slane %v8247, %v8273
    %v8275 = vlaneseq
    %v8276 = vshrl.u32 %v8275, 7
    %v8277 = vsub.s32 0, %v8276
    %v8278 = vrot.slane %v8255, %v8277
    %v8279 = vlaneseq
    %v8280 = vshrl.u32 %v8279, 7
    %v8281 = vsub.s32 1, %v8280
    %v8282 = vrot.slane %v8255, %v8281
    %v8283 = vlaneseq
    %v8284 = vshrl.u32 %v8283, 7
    %v8285 = vsub.s32 0, %v8284
    %v8286 = vrot.slane %v8257, %v8285
    %v8287 = vlaneseq
    %v8288 = vshrl.u32 %v8287, 7
    %v8289 = vsub.s32 1, %v8288
    %v8290 = vrot.slane %v8257, %v8289
    %v8291 = vlaneseq
    %v8292 = vshrl.u32 %v8291, 7
    %v8293 = vsub.s32 0, %v8292
    %v8294 = vrot.slane %v8240, %v8293
    %v8295 = vlaneseq
    %v8296 = vshrl.u32 %v8295, 7
    %v8297 = vsub.s32 1, %v8296
    %v8298 = vrot.slane %v8240, %v8297
    %v8299 = vlaneseq
    %v8300 = vshrl.u32 %v8299, 7
    %v8301 = vsub.s32 0, %v8300
    %v8302 = vrot.slane %v8254, %v8301
    %v8303 = vlaneseq
    %v8304 = vshrl.u32 %v8303, 7
    %v8305 = vsub.s32 1, %v8304
    %v8306 = vrot.slane %v8254, %v8305
    %v8307 = vlaneseq
    %v8308 = vshrl.u32 %v8307, 7
    %v8309 = vsub.s32 0, %v8308
    %v8310 = vrot.slane %v8256, %v8309
    %v8311 = vlaneseq
    %v8312 = vshrl.u32 %v8311, 7
    %v8313 = vsub.s32 1, %v8312
    %v8314 = vrot.slane %v8256, %v8313
    %v8315 = vlaneseq
    %v8316 = vshrl.u32 %v8315, 7
    %v8317 = vsub.s32 0, %v8316
    %v8318 = vrot.slane %v8258, %v8317
    %v8319 = vlaneseq
    %v8320 = vshrl.u32 %v8319, 7
    %v8321 = vsub.s32 1, %v8320
    %v8322 = vrot.slane %v8258, %v8321
    %v8339 = vmul.f32 %v7279, %v8262
    %v8340 = vmul.f32 %v7280, %v8266
    %v8341 = vmul.f32 %v7281, %v8262
    %v8342 = vmul.f32 %v7282, %v8266
    %v8343 = vmul.f32 %v7283, %v8262
    %v8344 = vmul.f32 %v7284, %v8266
    %v8345 = vmul.f32 %v7285, %v8262
    %v8346 = vmul.f32 %v7286, %v8266
    %v8347 = vmul.f32 %v7287, %v8262
    %v8348 = vmul.f32 %v7288, %v8266
    %v8349 = vmul.f32 %v7289, %v8262
    %v8350 = vmul.f32 %v7290, %v8266
    %v8351 = vmul.f32 %v7291, %v8262
    %v8352 = vmul.f32 %v7292, %v8266
    %v8353 = vmul.f32 %v7293, %v8262
    %v8354 = vmul.f32 %v7294, %v8266
    %v8355 = vmul.f32 %v7295, %v8262
    %v8356 = vmul.f32 %v7296, %v8266
    %v8357 = vmul.f32 %v7297, %v8262
    %v8358 = vmul.f32 %v7298, %v8266
    %v8359 = vmul.f32 %v7299, %v8262
    %v8360 = vmul.f32 %v7300, %v8266
    %v8361 = vmul.f32 %v7301, %v8262
    %v8362 = vmul.f32 %v7302, %v8266
    %v8363 = vmul.f32 %v7303, %v8262
    %v8364 = vmul.f32 %v7304, %v8266
    %v8365 = vmul.f32 %v7305, %v8262
    %v8366 = vmul.f32 %v7306, %v8266
    %v8367 = vmul.f32 %v7307, %v8262
    %v8368 = vmul.f32 %v7308, %v8266
    %v8369 = vmul.f32 %v7309, %v8262
    %v8370 = vmul.f32 %v7310, %v8266
    %v8371 = vmul.f32 %v7311, %v8270
    %v8372 = vmul.f32 %v7312, %v8274
    %v8373 = vmul.f32 %v7313, %v8270
    %v8374 = vmul.f32 %v7314, %v8274
    %v8375 = vmul.f32 %v7315, %v8270
    %v8376 = vmul.f32 %v7316, %v8274
    %v8377 = vmul.f32 %v7317, %v8270
    %v8378 = vmul.f32 %v7318, %v8274
    %v8379 = vmul.f32 %v7319, %v8270
    %v8380 = vmul.f32 %v7320, %v8274
    %v8381 = vmul.f32 %v7321, %v8270
    %v8382 = vmul.f32 %v7322, %v8274
    %v8383 = vmul.f32 %v7323, %v8270
    %v8384 = vmul.f32 %v7324, %v8274
    %v8385 = vmul.f32 %v7325, %v8270
    %v8386 = vmul.f32 %v7326, %v8274
    %v8387 = vmul.f32 %v7327, %v8270
    %v8388 = vmul.f32 %v7328, %v8274
    %v8389 = vmul.f32 %v7329, %v8270
    %v8390 = vmul.f32 %v7330, %v8274
    %v8391 = vmul.f32 %v7331, %v8270
    %v8392 = vmul.f32 %v7332, %v8274
    %v8393 = vmul.f32 %v7333, %v8270
    %v8394 = vmul.f32 %v7334, %v8274
    %v8395 = vmul.f32 %v7335, %v8270
    %v8396 = vmul.f32 %v7336, %v8274
    %v8397 = vmul.f32 %v7337, %v8270
    %v8398 = vmul.f32 %v7338, %v8274
    %v8399 = vmul.f32 %v7339, %v8270
    %v8400 = vmul.f32 %v7340, %v8274
    %v8401 = vmul.f32 %v7341, %v8270
    %v8402 = vmul.f32 %v7342, %v8274
    %v8403 = vmul.f32 %v7343, %v8278
    %v8404 = vmul.f32 %v7344, %v8282
    %v8405 = vmul.f32 %v7345, %v8278
    %v8406 = vmul.f32 %v7346, %v8282
    %v8407 = vmul.f32 %v7347, %v8278
    %v8408 = vmul.f32 %v7348, %v8282
    %v8409 = vmul.f32 %v7349, %v8278
    %v8410 = vmul.f32 %v7350, %v8282
    %v8411 = vmul.f32 %v7351, %v8278
    %v8412 = vmul.f32 %v7352, %v8282
    %v8413 = vmul.f32 %v7353, %v8278
    %v8414 = vmul.f32 %v7354, %v8282
    %v8415 = vmul.f32 %v7355, %v8278
    %v8416 = vmul.f32 %v7356, %v8282
    %v8417 = vmul.f32 %v7357, %v8278
    %v8418 = vmul.f32 %v7358, %v8282
    %v8419 = vmul.f32 %v7359, %v8278
    %v8420 = vmul.f32 %v7360, %v8282
    %v8421 = vmul.f32 %v7361, %v8278
    %v8422 = vmul.f32 %v7362, %v8282
    %v8423 = vmul.f32 %v7363, %v8278
    %v8424 = vmul.f32 %v7364, %v8282
    %v8425 = vmul.f32 %v7365, %v8278
    %v8426 = vmul.f32 %v7366, %v8282
    %v8427 = vmul.f32 %v7367, %v8278
    %v8428 = vmul.f32 %v7368, %v8282
    %v8429 = vmul.f32 %v7369, %v8278
    %v8430 = vmul.f32 %v7370, %v8282
    %v8431 = vmul.f32 %v7371, %v8278
    %v8432 = vmul.f32 %v7372, %v8282
    %v8433 = vmul.f32 %v7373, %v8278
    %v8434 = vmul.f32 %v7374, %v8282
    %v8435 = vmul.f32 %v7375, %v8286
    %v8436 = vmul.f32 %v7376, %v8290
    %v8437 = vmul.f32 %v7377, %v8286
    %v8438 = vmul.f32 %v7378, %v8290
    %v8439 = vmul.f32 %v7379, %v8286
    %v8440 = vmul.f32 %v7380, %v8290
    %v8441 = vmul.f32 %v7381, %v8286
    %v8442 = vmul.f32 %v7382, %v8290
    %v8443 = vmul.f32 %v7383, %v8286
    %v8444 = vmul.f32 %v7384, %v8290
    %v8445 = vmul.f32 %v7385, %v8286
    %v8446 = vmul.f32 %v7386, %v8290
    %v8447 = vmul.f32 %v7387, %v8286
    %v8448 = vmul.f32 %v7388, %v8290
    %v8449 = vmul.f32 %v7389, %v8286
    %v8450 = vmul.f32 %v7390, %v8290
    %v8451 = vmul.f32 %v7391, %v8286
    %v8452 = vmul.f32 %v7392, %v8290
    %v8453 = vmul.f32 %v7393, %v8286
    %v8454 = vmul.f32 %v7394, %v8290
    %v8455 = vmul.f32 %v7395, %v8286
    %v8456 = vmul.f32 %v7396, %v8290
    %v8457 = vmul.f32 %v7397, %v8286
    %v8458 = vmul.f32 %v7398, %v8290
    %v8459 = vmul.f32 %v7399, %v8286
    %v8460 = vmul.f32 %v7400, %v8290
    %v8461 = vmul.f32 %v7401, %v8286
    %v8462 = vmul.f32 %v7402, %v8290
    %v8463 = vmul.f32 %v7403, %v8286
    %v8464 = vmul.f32 %v7404, %v8290
    %v8465 = vmul.f32 %v7405, %v8286
    %v8466 = vmul.f32 %v7406, %v8290
    %v8467 = vmul.f32 %v7407, %v8294
    %v8468 = vmul.f32 %v7408, %v8298
    %v8469 = vmul.f32 %v7409, %v8294
    %v8470 = vmul.f32 %v7410, %v8298
    %v8471 = vmul.f32 %v7411, %v8294
    %v8472 = vmul.f32 %v7412, %v8298
    %v8473 = vmul.f32 %v7413, %v8294
    %v8474 = vmul.f32 %v7414, %v8298
    %v8475 = vmul.f32 %v7415, %v8294
    %v8476 = vmul.f32 %v7416, %v8298
    %v8477 = vmul.f32 %v7417, %v8294
    %v8478 = vmul.f32 %v7418, %v8298
    %v8479 = vmul.f32 %v7419, %v8294
    %v8480 = vmul.f32 %v7420, %v8298
    %v8481 = vmul.f32 %v7421, %v8294
    %v8482 = vmul.f32 %v7422, %v8298
    %v8483 = vmul.f32 %v7423, %v8294
    %v8484 = vmul.f32 %v7424, %v8298
    %v8485 = vmul.f32 %v7425, %v8294
    %v8486 = vmul.f32 %v7426, %v8298
    %v8487 = vmul.f32 %v7427, %v8294
    %v8488 = vmul.f32 %v7428, %v8298
    %v8489 = vmul.f32 %v7429, %v8294
    %v8490 = vmul.f32 %v7430, %v8298
    %v8491 = vmul.f32 %v7431, %v8294
    %v8492 = vmul.f32 %v7432, %v8298
    %v8493 = vmul.f32 %v7433, %v8294
    %v8494 = vmul.f32 %v7434, %v8298
    %v8495 = vmul.f32 %v7435, %v8294
    %v8496 = vmul.f32 %v7436, %v8298
    %v8497 = vmul.f32 %v7437, %v8294
    %v8498 = vmul.f32 %v7438, %v8298
    %v8499 = vmul.f32 %v7439, %v8302
    %v8500 = vmul.f32 %v7440, %v8306
    %v8501 = vmul.f32 %v7441, %v8302
    %v8502 = vmul.f32 %v7442, %v8306
    %v8503 = vmul.f32 %v7443, %v8302
    %v8504 = vmul.f32 %v7444, %v8306
    %v8505 = vmul.f32 %v7445, %v8302
    %v8506 = vmul.f32 %v7446, %v8306
    %v8507 = vmul.f32 %v7447, %v8302
    %v8508 = vmul.f32 %v7448, %v8306
    %v8509 = vmul.f32 %v7449, %v8302
    %v8510 = vmul.f32 %v7450, %v8306
    %v8511 = vmul.f32 %v7451, %v8302
    %v8512 = vmul.f32 %v7452, %v8306
    %v8513 = vmul.f32 %v7453, %v8302
    %v8514 = vmul.f32 %v7454, %v8306
    %v8515 = vmul.f32 %v7455, %v8302
    %v8516 = vmul.f32 %v7456, %v8306
    %v8517 = vmul.f32 %v7457, %v8302
    %v8518 = vmul.f32 %v7458, %v8306
    %v8519 = vmul.f32 %v7459, %v8302
    %v8520 = vmul.f32 %v7460, %v8306
    %v8521 = vmul.f32 %v7461, %v8302
    %v8522 = vmul.f32 %v7462, %v8306
    %v8523 = vmul.f32 %v7463, %v8302
    %v8524 = vmul.f32 %v7464, %v8306
    %v8525 = vmul.f32 %v7465, %v8302
    %v8526 = vmul.f32 %v7466, %v8306
    %v8527 = vmul.f32 %v7467, %v8302
    %v8528 = vmul.f32 %v7468, %v8306
    %v8529 = vmul.f32 %v7469, %v8302
    %v8530 = vmul.f32 %v7470, %v8306
    %v8531 = vmul.f32 %v7471, %v8310
    %v8532 = vmul.f32 %v7472, %v8314
    %v8533 = vmul.f32 %v7473, %v8310
    %v8534 = vmul.f32 %v7474, %v8314
    %v8535 = vmul.f32 %v7475, %v8310
    %v8536 = vmul.f32 %v7476, %v8314
    %v8537 = vmul.f32 %v7477, %v8310
    %v8538 = vmul.f32 %v7478, %v8314
    %v8539 = vmul.f32 %v7479, %v8310
    %v8540 = vmul.f32 %v7480, %v8314
    %v8541 = vmul.f32 %v7481, %v8310
    %v8542 = vmul.f32 %v7482, %v8314
    %v8543 = vmul.f32 %v7483, %v8310
    %v8544 = vmul.f32 %v7484, %v8314
    %v8545 = vmul.f32 %v7485, %v8310
    %v8546 = vmul.f32 %v7486, %v8314
    %v8547 = vmul.f32 %v7487, %v8310
    %v8548 = vmul.f32 %v7488, %v8314
    %v8549 = vmul.f32 %v7489, %v8310
    %v8550 = vmul.f32 %v7490, %v8314
    %v8551 = vmul.f32 %v7491, %v8310
    %v8552 = vmul.f32 %v7492, %v8314
    %v8553 = vmul.f32 %v7493, %v8310
    %v8554 = vmul.f32 %v7494, %v8314
    %v8555 = vmul.f32 %v7495, %v8310
    %v8556 = vmul.f32 %v7496, %v8314
    %v8557 = vmul.f32 %v7497, %v8310
    %v8558 = vmul.f32 %v7498, %v8314
    %v8559 = vmul.f32 %v7499, %v8310
    %v8560 = vmul.f32 %v7500, %v8314
    %v8561 = vmul.f32 %v7501, %v8310
    %v8562 = vmul.f32 %v7502, %v8314
    %v8563 = vmul.f32 %v7503, %v8318
    %v8564 = vmul.f32 %v7504, %v8322
    %v8565 = vmul.f32 %v7505, %v8318
    %v8566 = vmul.f32 %v7506, %v8322
    %v8567 = vmul.f32 %v7507, %v8318
    %v8568 = vmul.f32 %v7508, %v8322
    %v8569 = vmul.f32 %v7509, %v8318
    %v8570 = vmul.f32 %v7510, %v8322
    %v8571 = vmul.f32 %v7511, %v8318
    %v8572 = vmul.f32 %v7512, %v8322
    %v8573 = vmul.f32 %v7513, %v8318
    %v8574 = vmul.f32 %v7514, %v8322
    %v8575 = vmul.f32 %v7515, %v8318
    %v8576 = vmul.f32 %v7516, %v8322
    %v8577 = vmul.f32 %v7517, %v8318
    %v8578 = vmul.f32 %v7518, %v8322
    %v8579 = vmul.f32 %v7519, %v8318
    %v8580 = vmul.f32 %v7520, %v8322
    %v8581 = vmul.f32 %v7521, %v8318
    %v8582 = vmul.f32 %v7522, %v8322
    %v8583 = vmul.f32 %v7523, %v8318
    %v8584 = vmul.f32 %v7524, %v8322
    %v8585 = vmul.f32 %v7525, %v8318
    %v8586 = vmul.f32 %v7526, %v8322
    %v8587 = vmul.f32 %v7527, %v8318
    %v8588 = vmul.f32 %v7528, %v8322
    %v8589 = vmul.f32 %v7529, %v8318
    %v8590 = vmul.f32 %v7530, %v8322
    %v8591 = vmul.f32 %v7531, %v8318
    %v8592 = vmul.f32 %v7532, %v8322
    %v8593 = vmul.f32 %v7533, %v8318
    %v8594 = vmul.f32 %v7534, %v8322
    %v8595 = vpack.c.bf16 %v8341, %v8339
    %v8596 = vpack.c.bf16 %v8342, %v8340
    %v8597 = vpack.c.bf16 %v8345, %v8343
    %v8598 = vpack.c.bf16 %v8346, %v8344
    %v8599 = vpack.c.bf16 %v8349, %v8347
    %v8600 = vpack.c.bf16 %v8350, %v8348
    %v8601 = vpack.c.bf16 %v8353, %v8351
    %v8602 = vpack.c.bf16 %v8354, %v8352
    %v8603 = vpack.c.bf16 %v8357, %v8355
    %v8604 = vpack.c.bf16 %v8358, %v8356
    %v8605 = vpack.c.bf16 %v8361, %v8359
    %v8606 = vpack.c.bf16 %v8362, %v8360
    %v8607 = vpack.c.bf16 %v8365, %v8363
    %v8608 = vpack.c.bf16 %v8366, %v8364
    %v8609 = vpack.c.bf16 %v8369, %v8367
    %v8610 = vpack.c.bf16 %v8370, %v8368
    %v8611 = vpack.c.bf16 %v8373, %v8371
    %v8612 = vpack.c.bf16 %v8374, %v8372
    %v8613 = vpack.c.bf16 %v8377, %v8375
    %v8614 = vpack.c.bf16 %v8378, %v8376
    %v8615 = vpack.c.bf16 %v8381, %v8379
    %v8616 = vpack.c.bf16 %v8382, %v8380
    %v8617 = vpack.c.bf16 %v8385, %v8383
    %v8618 = vpack.c.bf16 %v8386, %v8384
    %v8619 = vpack.c.bf16 %v8389, %v8387
    %v8620 = vpack.c.bf16 %v8390, %v8388
    %v8621 = vpack.c.bf16 %v8393, %v8391
    %v8622 = vpack.c.bf16 %v8394, %v8392
    %v8623 = vpack.c.bf16 %v8397, %v8395
    %v8624 = vpack.c.bf16 %v8398, %v8396
    %v8625 = vpack.c.bf16 %v8401, %v8399
    %v8626 = vpack.c.bf16 %v8402, %v8400
    %v8627 = vpack.c.bf16 %v8405, %v8403
    %v8628 = vpack.c.bf16 %v8406, %v8404
    %v8629 = vpack.c.bf16 %v8409, %v8407
    %v8630 = vpack.c.bf16 %v8410, %v8408
    %v8631 = vpack.c.bf16 %v8413, %v8411
    %v8632 = vpack.c.bf16 %v8414, %v8412
    %v8633 = vpack.c.bf16 %v8417, %v8415
    %v8634 = vpack.c.bf16 %v8418, %v8416
    %v8635 = vpack.c.bf16 %v8421, %v8419
    %v8636 = vpack.c.bf16 %v8422, %v8420
    %v8637 = vpack.c.bf16 %v8425, %v8423
    %v8638 = vpack.c.bf16 %v8426, %v8424
    %v8639 = vpack.c.bf16 %v8429, %v8427
    %v8640 = vpack.c.bf16 %v8430, %v8428
    %v8641 = vpack.c.bf16 %v8433, %v8431
    %v8642 = vpack.c.bf16 %v8434, %v8432
    %v8643 = vpack.c.bf16 %v8437, %v8435
    %v8644 = vpack.c.bf16 %v8438, %v8436
    %v8645 = vpack.c.bf16 %v8441, %v8439
    %v8646 = vpack.c.bf16 %v8442, %v8440
    %v8647 = vpack.c.bf16 %v8445, %v8443
    %v8648 = vpack.c.bf16 %v8446, %v8444
    %v8649 = vpack.c.bf16 %v8449, %v8447
    %v8650 = vpack.c.bf16 %v8450, %v8448
    %v8651 = vpack.c.bf16 %v8453, %v8451
    %v8652 = vpack.c.bf16 %v8454, %v8452
    %v8653 = vpack.c.bf16 %v8457, %v8455
    %v8654 = vpack.c.bf16 %v8458, %v8456
    %v8655 = vpack.c.bf16 %v8461, %v8459
    %v8656 = vpack.c.bf16 %v8462, %v8460
    %v8657 = vpack.c.bf16 %v8465, %v8463
    %v8658 = vpack.c.bf16 %v8466, %v8464
    %v8659 = vpack.c.bf16 %v8469, %v8467
    %v8660 = vpack.c.bf16 %v8470, %v8468
    %v8661 = vpack.c.bf16 %v8473, %v8471
    %v8662 = vpack.c.bf16 %v8474, %v8472
    %v8663 = vpack.c.bf16 %v8477, %v8475
    %v8664 = vpack.c.bf16 %v8478, %v8476
    %v8665 = vpack.c.bf16 %v8481, %v8479
    %v8666 = vpack.c.bf16 %v8482, %v8480
    %v8667 = vpack.c.bf16 %v8485, %v8483
    %v8668 = vpack.c.bf16 %v8486, %v8484
    %v8669 = vpack.c.bf16 %v8489, %v8487
    %v8670 = vpack.c.bf16 %v8490, %v8488
    %v8671 = vpack.c.bf16 %v8493, %v8491
    %v8672 = vpack.c.bf16 %v8494, %v8492
    %v8673 = vpack.c.bf16 %v8497, %v8495
    %v8674 = vpack.c.bf16 %v8498, %v8496
    %v8675 = vpack.c.bf16 %v8501, %v8499
    %v8676 = vpack.c.bf16 %v8502, %v8500
    %v8677 = vpack.c.bf16 %v8505, %v8503
    %v8678 = vpack.c.bf16 %v8506, %v8504
    %v8679 = vpack.c.bf16 %v8509, %v8507
    %v8680 = vpack.c.bf16 %v8510, %v8508
    %v8681 = vpack.c.bf16 %v8513, %v8511
    %v8682 = vpack.c.bf16 %v8514, %v8512
    %v8683 = vpack.c.bf16 %v8517, %v8515
    %v8684 = vpack.c.bf16 %v8518, %v8516
    %v8685 = vpack.c.bf16 %v8521, %v8519
    %v8686 = vpack.c.bf16 %v8522, %v8520
    %v8687 = vpack.c.bf16 %v8525, %v8523
    %v8688 = vpack.c.bf16 %v8526, %v8524
    %v8689 = vpack.c.bf16 %v8529, %v8527
    %v8690 = vpack.c.bf16 %v8530, %v8528
    %v8691 = vpack.c.bf16 %v8533, %v8531
    %v8692 = vpack.c.bf16 %v8534, %v8532
    %v8693 = vpack.c.bf16 %v8537, %v8535
    %v8694 = vpack.c.bf16 %v8538, %v8536
    %v8695 = vpack.c.bf16 %v8541, %v8539
    %v8696 = vpack.c.bf16 %v8542, %v8540
    %v8697 = vpack.c.bf16 %v8545, %v8543
    %v8698 = vpack.c.bf16 %v8546, %v8544
    %v8699 = vpack.c.bf16 %v8549, %v8547
    %v8700 = vpack.c.bf16 %v8550, %v8548
    %v8701 = vpack.c.bf16 %v8553, %v8551
    %v8702 = vpack.c.bf16 %v8554, %v8552
    %v8703 = vpack.c.bf16 %v8557, %v8555
    %v8704 = vpack.c.bf16 %v8558, %v8556
    %v8705 = vpack.c.bf16 %v8561, %v8559
    %v8706 = vpack.c.bf16 %v8562, %v8560
    %v8707 = vpack.c.bf16 %v8565, %v8563
    %v8708 = vpack.c.bf16 %v8566, %v8564
    %v8709 = vpack.c.bf16 %v8569, %v8567
    %v8710 = vpack.c.bf16 %v8570, %v8568
    %v8711 = vpack.c.bf16 %v8573, %v8571
    %v8712 = vpack.c.bf16 %v8574, %v8572
    %v8713 = vpack.c.bf16 %v8577, %v8575
    %v8714 = vpack.c.bf16 %v8578, %v8576
    %v8715 = vpack.c.bf16 %v8581, %v8579
    %v8716 = vpack.c.bf16 %v8582, %v8580
    %v8717 = vpack.c.bf16 %v8585, %v8583
    %v8718 = vpack.c.bf16 %v8586, %v8584
    %v8719 = vpack.c.bf16 %v8589, %v8587
    %v8720 = vpack.c.bf16 %v8590, %v8588
    %v8721 = vpack.c.bf16 %v8593, %v8591
    %v8722 = vpack.c.bf16 %v8594, %v8592
    %v8723 = vld [vmem:[%s7] sm:$0xf]
    %v8724 = vld [vmem:[%s7 + $0x4] sm:$0xf]
    %v8725 = vld [vmem:[%s7 + $0x8] sm:$0xf]
    %v8726 = vld [vmem:[%s7 + $0xc] sm:$0xf]
    %v8727 = vld [vmem:[%s7 + $0x10] sm:$0xf]
    %v8728 = vld [vmem:[%s7 + $0x14] sm:$0xf]
    %v8729 = vld [vmem:[%s7 + $0x18] sm:$0xf]
    %v8730 = vld [vmem:[%s7 + $0x1c] sm:$0xf]
    %v8731 = vld [vmem:[%s7 + $0x20] sm:$0xf]
    %v8732 = vld [vmem:[%s7 + $0x24] sm:$0xf]
    %v8733 = vld [vmem:[%s7 + $0x28] sm:$0xf]
    %v8734 = vld [vmem:[%s7 + $0x2c] sm:$0xf]
    %v8735 = vld [vmem:[%s7 + $0x30] sm:$0xf]
    %v8736 = vld [vmem:[%s7 + $0x34] sm:$0xf]
    %v8737 = vld [vmem:[%s7 + $0x38] sm:$0xf]
    %v8738 = vld [vmem:[%s7 + $0x3c] sm:$0xf]
    %v8739 = vld [vmem:[%s7 + $0x40] sm:$0xf]
    %v8740 = vld [vmem:[%s7 + $0x44] sm:$0xf]
    %v8741 = vld [vmem:[%s7 + $0x48] sm:$0xf]
    %v8742 = vld [vmem:[%s7 + $0x4c] sm:$0xf]
    %v8743 = vld [vmem:[%s7 + $0x50] sm:$0xf]
    %v8744 = vld [vmem:[%s7 + $0x54] sm:$0xf]
    %v8745 = vld [vmem:[%s7 + $0x58] sm:$0xf]
    %v8746 = vld [vmem:[%s7 + $0x5c] sm:$0xf]
    %v8747 = vld [vmem:[%s7 + $0x60] sm:$0xf]
    %v8748 = vld [vmem:[%s7 + $0x64] sm:$0xf]
    %v8749 = vld [vmem:[%s7 + $0x68] sm:$0xf]
    %v8750 = vld [vmem:[%s7 + $0x6c] sm:$0xf]
    %v8751 = vld [vmem:[%s7 + $0x70] sm:$0xf]
    %v8752 = vld [vmem:[%s7 + $0x74] sm:$0xf]
    %v8753 = vld [vmem:[%s7 + $0x78] sm:$0xf]
    %v8754 = vld [vmem:[%s7 + $0x7c] sm:$0xf]
    %v8755 = vld [vmem:[%s8] sm:$0x1]
    %v8757 = vlaneseq
    %v8758 = vshrl.u32 %v8757, 7
    %v8759 = vsub.s32 0, %v8758
    %v8760 = vrot.slane %v8755, %v8759
    %v8794 = vunpack.c.l.b16 %v8723
    %v8795 = vunpack.c.l.b16 %v8724
    %v8796 = vunpack.c.l.b16 %v8725
    %v8797 = vunpack.c.l.b16 %v8726
    %v8798 = vunpack.c.l.b16 %v8727
    %v8799 = vunpack.c.l.b16 %v8728
    %v8800 = vunpack.c.l.b16 %v8729
    %v8801 = vunpack.c.l.b16 %v8730
    %v8802 = vunpack.c.l.b16 %v8731
    %v8803 = vunpack.c.l.b16 %v8732
    %v8804 = vunpack.c.l.b16 %v8733
    %v8805 = vunpack.c.l.b16 %v8734
    %v8806 = vunpack.c.l.b16 %v8735
    %v8807 = vunpack.c.l.b16 %v8736
    %v8808 = vunpack.c.l.b16 %v8737
    %v8809 = vunpack.c.l.b16 %v8738
    %v8810 = vunpack.c.l.b16 %v8739
    %v8811 = vunpack.c.l.b16 %v8740
    %v8812 = vunpack.c.l.b16 %v8741
    %v8813 = vunpack.c.l.b16 %v8742
    %v8814 = vunpack.c.l.b16 %v8743
    %v8815 = vunpack.c.l.b16 %v8744
    %v8816 = vunpack.c.l.b16 %v8745
    %v8817 = vunpack.c.l.b16 %v8746
    %v8818 = vunpack.c.l.b16 %v8747
    %v8819 = vunpack.c.l.b16 %v8748
    %v8820 = vunpack.c.l.b16 %v8749
    %v8821 = vunpack.c.l.b16 %v8750
    %v8822 = vunpack.c.l.b16 %v8751
    %v8823 = vunpack.c.l.b16 %v8752
    %v8824 = vunpack.c.l.b16 %v8753
    %v8825 = vunpack.c.l.b16 %v8754
    %v8826 = vpack.c.b16 %v8795, %v8794
    %v8827 = vpack.c.b16 %v8797, %v8796
    %v8828 = vpack.c.b16 %v8799, %v8798
    %v8829 = vpack.c.b16 %v8801, %v8800
    %v8830 = vpack.c.b16 %v8803, %v8802
    %v8831 = vpack.c.b16 %v8805, %v8804
    %v8832 = vpack.c.b16 %v8807, %v8806
    %v8833 = vpack.c.b16 %v8809, %v8808
    %v8834 = vpack.c.b16 %v8811, %v8810
    %v8835 = vpack.c.b16 %v8813, %v8812
    %v8836 = vpack.c.b16 %v8815, %v8814
    %v8837 = vpack.c.b16 %v8817, %v8816
    %v8838 = vpack.c.b16 %v8819, %v8818
    %v8839 = vpack.c.b16 %v8821, %v8820
    %v8840 = vpack.c.b16 %v8823, %v8822
    %v8841 = vpack.c.b16 %v8825, %v8824
    %8858 = vmatprep.subr.bf16.mxu0 0
    %8859 = vmatpush1.bf16.msra.mxu0 %v8833
    %8860 = vmatprep.subr.bf16.mxu0 0
    %8861 = vmatpush1.bf16.msra.mxu0 %v8832
    %8862 = vmatprep.subr.bf16.mxu0 0
    %8863 = vmatpush1.bf16.msra.mxu0 %v8831
    %8864 = vmatprep.subr.bf16.mxu0 0
    %8865 = vmatpush1.bf16.msra.mxu0 %v8830
    %8866 = vmatprep.subr.bf16.mxu0 0
    %8867 = vmatpush1.bf16.msra.mxu0 %v8829
    %8868 = vmatprep.subr.bf16.mxu0 0
    %8869 = vmatpush1.bf16.msra.mxu0 %v8828
    %8870 = vmatprep.subr.bf16.mxu0 0
    %8871 = vmatpush1.bf16.msra.mxu0 %v8827
    %8872 = vmatprep.subr.bf16.mxu0 0
    %8873 = vmatpush1.bf16.msra.mxu0 %v8826
    %8874 = vmatprep.subr.bf16.mxu0 0
    %8875 = vmatpush2.bf16.msra.mxu0 %v8841
    %8876 = vmatprep.subr.bf16.mxu0 0
    %8877 = vmatpush2.bf16.msra.mxu0 %v8840
    %8878 = vmatprep.subr.bf16.mxu0 0
    %8879 = vmatpush2.bf16.msra.mxu0 %v8839
    %8880 = vmatprep.subr.bf16.mxu0 0
    %8881 = vmatpush2.bf16.msra.mxu0 %v8838
    %8882 = vmatprep.subr.bf16.mxu0 0
    %8883 = vmatpush2.bf16.msra.mxu0 %v8837
    %8884 = vmatprep.subr.bf16.mxu0 0
    %8885 = vmatpush2.bf16.msra.mxu0 %v8836
    %8886 = vmatprep.subr.bf16.mxu0 0
    %8887 = vmatpush2.bf16.msra.mxu0 %v8835
    %8888 = vmatprep.subr.bf16.mxu0 0
    %8889 = vmatpush2.bf16.msra.mxu0 %v8834
    %8890 = vmatprep.mubr.bf16.mxu0 %v8596
    %8891 = vmatmul.mubr.bf16.gmra.mxu0 %v8595
    %v8892 = vpop.f32.mrf.mxu0
    %v8893 = vadd.f32 %v8760, %v8892
    %v8894 = vpop.f32.mrf.mxu0
    %v8895 = vpop.f32.mrf.mxu0
    %v8896 = vadd.f32 %v8760, %v8895
    %v8897 = vpop.f32.mrf.mxu0
    %8898 = vmatprep.mubr.bf16.mxu0 %v8598
    %8899 = vmatmul.mubr.bf16.gmra.mxu0 %v8597
    %v8900 = vpop.f32.mrf.mxu0
    %v8901 = vadd.f32 %v8760, %v8900
    %v8902 = vpop.f32.mrf.mxu0
    %v8903 = vpop.f32.mrf.mxu0
    %v8904 = vadd.f32 %v8760, %v8903
    %v8905 = vpop.f32.mrf.mxu0
    %8906 = vmatprep.mubr.bf16.mxu0 %v8600
    %8907 = vmatmul.mubr.bf16.gmra.mxu0 %v8599
    %v8908 = vpop.f32.mrf.mxu0
    %v8909 = vadd.f32 %v8760, %v8908
    %v8910 = vpop.f32.mrf.mxu0
    %v8911 = vpop.f32.mrf.mxu0
    %v8912 = vadd.f32 %v8760, %v8911
    %v8913 = vpop.f32.mrf.mxu0
    %8914 = vmatprep.mubr.bf16.mxu0 %v8602
    %8915 = vmatmul.mubr.bf16.gmra.mxu0 %v8601
    %v8916 = vpop.f32.mrf.mxu0
    %v8917 = vadd.f32 %v8760, %v8916
    %v8918 = vpop.f32.mrf.mxu0
    %v8919 = vpop.f32.mrf.mxu0
    %v8920 = vadd.f32 %v8760, %v8919
    %v8921 = vpop.f32.mrf.mxu0
    %8922 = vmatprep.mubr.bf16.mxu0 %v8604
    %8923 = vmatmul.mubr.bf16.gmra.mxu0 %v8603
    %v8924 = vpop.f32.mrf.mxu0
    %v8925 = vadd.f32 %v8760, %v8924
    %v8926 = vpop.f32.mrf.mxu0
    %v8927 = vpop.f32.mrf.mxu0
    %v8928 = vadd.f32 %v8760, %v8927
    %v8929 = vpop.f32.mrf.mxu0
    %8930 = vmatprep.mubr.bf16.mxu0 %v8606
    %8931 = vmatmul.mubr.bf16.gmra.mxu0 %v8605
    %v8932 = vpop.f32.mrf.mxu0
    %v8933 = vadd.f32 %v8760, %v8932
    %v8934 = vpop.f32.mrf.mxu0
    %v8935 = vpop.f32.mrf.mxu0
    %v8936 = vadd.f32 %v8760, %v8935
    %v8937 = vpop.f32.mrf.mxu0
    %8938 = vmatprep.mubr.bf16.mxu0 %v8608
    %8939 = vmatmul.mubr.bf16.gmra.mxu0 %v8607
    %v8940 = vpop.f32.mrf.mxu0
    %v8941 = vadd.f32 %v8760, %v8940
    %v8942 = vpop.f32.mrf.mxu0
    %v8943 = vpop.f32.mrf.mxu0
    %v8944 = vadd.f32 %v8760, %v8943
    %v8945 = vpop.f32.mrf.mxu0
    %8946 = vmatprep.mubr.bf16.mxu0 %v8610
    %8947 = vmatmul.mubr.bf16.gmra.mxu0 %v8609
    %v8948 = vpop.f32.mrf.mxu0
    %v8949 = vadd.f32 %v8760, %v8948
    %v8950 = vpop.f32.mrf.mxu0
    %v8951 = vpop.f32.mrf.mxu0
    %v8952 = vadd.f32 %v8760, %v8951
    %v8953 = vpop.f32.mrf.mxu0
    %8954 = vmatprep.mubr.bf16.mxu0 %v8612
    %8955 = vmatmul.mubr.bf16.gmra.mxu0 %v8611
    %v8956 = vpop.f32.mrf.mxu0
    %v8957 = vadd.f32 %v8760, %v8956
    %v8958 = vpop.f32.mrf.mxu0
    %v8959 = vpop.f32.mrf.mxu0
    %v8960 = vadd.f32 %v8760, %v8959
    %v8961 = vpop.f32.mrf.mxu0
    %8962 = vmatprep.mubr.bf16.mxu0 %v8614
    %8963 = vmatmul.mubr.bf16.gmra.mxu0 %v8613
    %v8964 = vpop.f32.mrf.mxu0
    %v8965 = vadd.f32 %v8760, %v8964
    %v8966 = vpop.f32.mrf.mxu0
    %v8967 = vpop.f32.mrf.mxu0
    %v8968 = vadd.f32 %v8760, %v8967
    %v8969 = vpop.f32.mrf.mxu0
    %8970 = vmatprep.mubr.bf16.mxu0 %v8616
    %8971 = vmatmul.mubr.bf16.gmra.mxu0 %v8615
    %v8972 = vpop.f32.mrf.mxu0
    %v8973 = vadd.f32 %v8760, %v8972
    %v8974 = vpop.f32.mrf.mxu0
    %v8975 = vpop.f32.mrf.mxu0
    %v8976 = vadd.f32 %v8760, %v8975
    %v8977 = vpop.f32.mrf.mxu0
    %8978 = vmatprep.mubr.bf16.mxu0 %v8618
    %8979 = vmatmul.mubr.bf16.gmra.mxu0 %v8617
    %v8980 = vpop.f32.mrf.mxu0
    %v8981 = vadd.f32 %v8760, %v8980
    %v8982 = vpop.f32.mrf.mxu0
    %v8983 = vpop.f32.mrf.mxu0
    %v8984 = vadd.f32 %v8760, %v8983
    %v8985 = vpop.f32.mrf.mxu0
    %8986 = vmatprep.mubr.bf16.mxu0 %v8620
    %8987 = vmatmul.mubr.bf16.gmra.mxu0 %v8619
    %v8988 = vpop.f32.mrf.mxu0
    %v8989 = vadd.f32 %v8760, %v8988
    %v8990 = vpop.f32.mrf.mxu0
    %v8991 = vpop.f32.mrf.mxu0
    %v8992 = vadd.f32 %v8760, %v8991
    %v8993 = vpop.f32.mrf.mxu0
    %8994 = vmatprep.mubr.bf16.mxu0 %v8622
    %8995 = vmatmul.mubr.bf16.gmra.mxu0 %v8621
    %v8996 = vpop.f32.mrf.mxu0
    %v8997 = vadd.f32 %v8760, %v8996
    %v8998 = vpop.f32.mrf.mxu0
    %v8999 = vpop.f32.mrf.mxu0
    %v9000 = vadd.f32 %v8760, %v8999
    %v9001 = vpop.f32.mrf.mxu0
    %9002 = vmatprep.mubr.bf16.mxu0 %v8624
    %9003 = vmatmul.mubr.bf16.gmra.mxu0 %v8623
    %v9004 = vpop.f32.mrf.mxu0
    %v9005 = vadd.f32 %v8760, %v9004
    %v9006 = vpop.f32.mrf.mxu0
    %v9007 = vpop.f32.mrf.mxu0
    %v9008 = vadd.f32 %v8760, %v9007
    %v9009 = vpop.f32.mrf.mxu0
    %9010 = vmatprep.mubr.bf16.mxu0 %v8626
    %9011 = vmatmul.mubr.bf16.gmra.mxu0 %v8625
    %v9012 = vpop.f32.mrf.mxu0
    %v9013 = vadd.f32 %v8760, %v9012
    %v9014 = vpop.f32.mrf.mxu0
    %v9015 = vpop.f32.mrf.mxu0
    %v9016 = vadd.f32 %v8760, %v9015
    %v9017 = vpop.f32.mrf.mxu0
    %9018 = vmatprep.mubr.bf16.mxu0 %v8628
    %9019 = vmatmul.mubr.bf16.gmra.mxu0 %v8627
    %v9020 = vpop.f32.mrf.mxu0
    %v9021 = vadd.f32 %v8760, %v9020
    %v9022 = vpop.f32.mrf.mxu0
    %v9023 = vpop.f32.mrf.mxu0
    %v9024 = vadd.f32 %v8760, %v9023
    %v9025 = vpop.f32.mrf.mxu0
    %9026 = vmatprep.mubr.bf16.mxu0 %v8630
    %9027 = vmatmul.mubr.bf16.gmra.mxu0 %v8629
    %v9028 = vpop.f32.mrf.mxu0
    %v9029 = vadd.f32 %v8760, %v9028
    %v9030 = vpop.f32.mrf.mxu0
    %v9031 = vpop.f32.mrf.mxu0
    %v9032 = vadd.f32 %v8760, %v9031
    %v9033 = vpop.f32.mrf.mxu0
    %9034 = vmatprep.mubr.bf16.mxu0 %v8632
    %9035 = vmatmul.mubr.bf16.gmra.mxu0 %v8631
    %v9036 = vpop.f32.mrf.mxu0
    %v9037 = vadd.f32 %v8760, %v9036
    %v9038 = vpop.f32.mrf.mxu0
    %v9039 = vpop.f32.mrf.mxu0
    %v9040 = vadd.f32 %v8760, %v9039
    %v9041 = vpop.f32.mrf.mxu0
    %9042 = vmatprep.mubr.bf16.mxu0 %v8634
    %9043 = vmatmul.mubr.bf16.gmra.mxu0 %v8633
    %v9044 = vpop.f32.mrf.mxu0
    %v9045 = vadd.f32 %v8760, %v9044
    %v9046 = vpop.f32.mrf.mxu0
    %v9047 = vpop.f32.mrf.mxu0
    %v9048 = vadd.f32 %v8760, %v9047
    %v9049 = vpop.f32.mrf.mxu0
    %9050 = vmatprep.mubr.bf16.mxu0 %v8636
    %9051 = vmatmul.mubr.bf16.gmra.mxu0 %v8635
    %v9052 = vpop.f32.mrf.mxu0
    %v9053 = vadd.f32 %v8760, %v9052
    %v9054 = vpop.f32.mrf.mxu0
    %v9055 = vpop.f32.mrf.mxu0
    %v9056 = vadd.f32 %v8760, %v9055
    %v9057 = vpop.f32.mrf.mxu0
    %9058 = vmatprep.mubr.bf16.mxu0 %v8638
    %9059 = vmatmul.mubr.bf16.gmra.mxu0 %v8637
    %v9060 = vpop.f32.mrf.mxu0
    %v9061 = vadd.f32 %v8760, %v9060
    %v9062 = vpop.f32.mrf.mxu0
    %v9063 = vpop.f32.mrf.mxu0
    %v9064 = vadd.f32 %v8760, %v9063
    %v9065 = vpop.f32.mrf.mxu0
    %9066 = vmatprep.mubr.bf16.mxu0 %v8640
    %9067 = vmatmul.mubr.bf16.gmra.mxu0 %v8639
    %v9068 = vpop.f32.mrf.mxu0
    %v9069 = vadd.f32 %v8760, %v9068
    %v9070 = vpop.f32.mrf.mxu0
    %v9071 = vpop.f32.mrf.mxu0
    %v9072 = vadd.f32 %v8760, %v9071
    %v9073 = vpop.f32.mrf.mxu0
    %9074 = vmatprep.mubr.bf16.mxu0 %v8642
    %9075 = vmatmul.mubr.bf16.gmra.mxu0 %v8641
    %v9076 = vpop.f32.mrf.mxu0
    %v9077 = vadd.f32 %v8760, %v9076
    %v9078 = vpop.f32.mrf.mxu0
    %v9079 = vpop.f32.mrf.mxu0
    %v9080 = vadd.f32 %v8760, %v9079
    %v9081 = vpop.f32.mrf.mxu0
    %9082 = vmatprep.mubr.bf16.mxu0 %v8644
    %9083 = vmatmul.mubr.bf16.gmra.mxu0 %v8643
    %v9084 = vpop.f32.mrf.mxu0
    %v9085 = vadd.f32 %v8760, %v9084
    %v9086 = vpop.f32.mrf.mxu0
    %v9087 = vpop.f32.mrf.mxu0
    %v9088 = vadd.f32 %v8760, %v9087
    %v9089 = vpop.f32.mrf.mxu0
    %9090 = vmatprep.mubr.bf16.mxu0 %v8646
    %9091 = vmatmul.mubr.bf16.gmra.mxu0 %v8645
    %v9092 = vpop.f32.mrf.mxu0
    %v9093 = vadd.f32 %v8760, %v9092
    %v9094 = vpop.f32.mrf.mxu0
    %v9095 = vpop.f32.mrf.mxu0
    %v9096 = vadd.f32 %v8760, %v9095
    %v9097 = vpop.f32.mrf.mxu0
    %9098 = vmatprep.mubr.bf16.mxu0 %v8648
    %9099 = vmatmul.mubr.bf16.gmra.mxu0 %v8647
    %v9100 = vpop.f32.mrf.mxu0
    %v9101 = vadd.f32 %v8760, %v9100
    %v9102 = vpop.f32.mrf.mxu0
    %v9103 = vpop.f32.mrf.mxu0
    %v9104 = vadd.f32 %v8760, %v9103
    %v9105 = vpop.f32.mrf.mxu0
    %9106 = vmatprep.mubr.bf16.mxu0 %v8650
    %9107 = vmatmul.mubr.bf16.gmra.mxu0 %v8649
    %v9108 = vpop.f32.mrf.mxu0
    %v9109 = vadd.f32 %v8760, %v9108
    %v9110 = vpop.f32.mrf.mxu0
    %v9111 = vpop.f32.mrf.mxu0
    %v9112 = vadd.f32 %v8760, %v9111
    %v9113 = vpop.f32.mrf.mxu0
    %9114 = vmatprep.mubr.bf16.mxu0 %v8652
    %9115 = vmatmul.mubr.bf16.gmra.mxu0 %v8651
    %v9116 = vpop.f32.mrf.mxu0
    %v9117 = vadd.f32 %v8760, %v9116
    %v9118 = vpop.f32.mrf.mxu0
    %v9119 = vpop.f32.mrf.mxu0
    %v9120 = vadd.f32 %v8760, %v9119
    %v9121 = vpop.f32.mrf.mxu0
    %9122 = vmatprep.mubr.bf16.mxu0 %v8654
    %9123 = vmatmul.mubr.bf16.gmra.mxu0 %v8653
    %v9124 = vpop.f32.mrf.mxu0
    %v9125 = vadd.f32 %v8760, %v9124
    %v9126 = vpop.f32.mrf.mxu0
    %v9127 = vpop.f32.mrf.mxu0
    %v9128 = vadd.f32 %v8760, %v9127
    %v9129 = vpop.f32.mrf.mxu0
    %9130 = vmatprep.mubr.bf16.mxu0 %v8656
    %9131 = vmatmul.mubr.bf16.gmra.mxu0 %v8655
    %v9132 = vpop.f32.mrf.mxu0
    %v9133 = vadd.f32 %v8760, %v9132
    %v9134 = vpop.f32.mrf.mxu0
    %v9135 = vpop.f32.mrf.mxu0
    %v9136 = vadd.f32 %v8760, %v9135
    %v9137 = vpop.f32.mrf.mxu0
    %9138 = vmatprep.mubr.bf16.mxu0 %v8658
    %9139 = vmatmul.mubr.bf16.gmra.mxu0 %v8657
    %v9140 = vpop.f32.mrf.mxu0
    %v9141 = vadd.f32 %v8760, %v9140
    %v9142 = vpop.f32.mrf.mxu0
    %v9143 = vpop.f32.mrf.mxu0
    %v9144 = vadd.f32 %v8760, %v9143
    %v9145 = vpop.f32.mrf.mxu0
    %9146 = vmatprep.mubr.bf16.mxu0 %v8660
    %9147 = vmatmul.mubr.bf16.gmra.mxu0 %v8659
    %v9148 = vpop.f32.mrf.mxu0
    %v9149 = vadd.f32 %v8760, %v9148
    %v9150 = vpop.f32.mrf.mxu0
    %v9151 = vpop.f32.mrf.mxu0
    %v9152 = vadd.f32 %v8760, %v9151
    %v9153 = vpop.f32.mrf.mxu0
    %9154 = vmatprep.mubr.bf16.mxu0 %v8662
    %9155 = vmatmul.mubr.bf16.gmra.mxu0 %v8661
    %v9156 = vpop.f32.mrf.mxu0
    %v9157 = vadd.f32 %v8760, %v9156
    %v9158 = vpop.f32.mrf.mxu0
    %v9159 = vpop.f32.mrf.mxu0
    %v9160 = vadd.f32 %v8760, %v9159
    %v9161 = vpop.f32.mrf.mxu0
    %9162 = vmatprep.mubr.bf16.mxu0 %v8664
    %9163 = vmatmul.mubr.bf16.gmra.mxu0 %v8663
    %v9164 = vpop.f32.mrf.mxu0
    %v9165 = vadd.f32 %v8760, %v9164
    %v9166 = vpop.f32.mrf.mxu0
    %v9167 = vpop.f32.mrf.mxu0
    %v9168 = vadd.f32 %v8760, %v9167
    %v9169 = vpop.f32.mrf.mxu0
    %9170 = vmatprep.mubr.bf16.mxu0 %v8666
    %9171 = vmatmul.mubr.bf16.gmra.mxu0 %v8665
    %v9172 = vpop.f32.mrf.mxu0
    %v9173 = vadd.f32 %v8760, %v9172
    %v9174 = vpop.f32.mrf.mxu0
    %v9175 = vpop.f32.mrf.mxu0
    %v9176 = vadd.f32 %v8760, %v9175
    %v9177 = vpop.f32.mrf.mxu0
    %9178 = vmatprep.mubr.bf16.mxu0 %v8668
    %9179 = vmatmul.mubr.bf16.gmra.mxu0 %v8667
    %v9180 = vpop.f32.mrf.mxu0
    %v9181 = vadd.f32 %v8760, %v9180
    %v9182 = vpop.f32.mrf.mxu0
    %v9183 = vpop.f32.mrf.mxu0
    %v9184 = vadd.f32 %v8760, %v9183
    %v9185 = vpop.f32.mrf.mxu0
    %9186 = vmatprep.mubr.bf16.mxu0 %v8670
    %9187 = vmatmul.mubr.bf16.gmra.mxu0 %v8669
    %v9188 = vpop.f32.mrf.mxu0
    %v9189 = vadd.f32 %v8760, %v9188
    %v9190 = vpop.f32.mrf.mxu0
    %v9191 = vpop.f32.mrf.mxu0
    %v9192 = vadd.f32 %v8760, %v9191
    %v9193 = vpop.f32.mrf.mxu0
    %9194 = vmatprep.mubr.bf16.mxu0 %v8672
    %9195 = vmatmul.mubr.bf16.gmra.mxu0 %v8671
    %v9196 = vpop.f32.mrf.mxu0
    %v9197 = vadd.f32 %v8760, %v9196
    %v9198 = vpop.f32.mrf.mxu0
    %v9199 = vpop.f32.mrf.mxu0
    %v9200 = vadd.f32 %v8760, %v9199
    %v9201 = vpop.f32.mrf.mxu0
    %9202 = vmatprep.mubr.bf16.mxu0 %v8674
    %9203 = vmatmul.mubr.bf16.gmra.mxu0 %v8673
    %v9204 = vpop.f32.mrf.mxu0
    %v9205 = vadd.f32 %v8760, %v9204
    %v9206 = vpop.f32.mrf.mxu0
    %v9207 = vpop.f32.mrf.mxu0
    %v9208 = vadd.f32 %v8760, %v9207
    %v9209 = vpop.f32.mrf.mxu0
    %9210 = vmatprep.mubr.bf16.mxu0 %v8676
    %9211 = vmatmul.mubr.bf16.gmra.mxu0 %v8675
    %v9212 = vpop.f32.mrf.mxu0
    %v9213 = vadd.f32 %v8760, %v9212
    %v9214 = vpop.f32.mrf.mxu0
    %v9215 = vpop.f32.mrf.mxu0
    %v9216 = vadd.f32 %v8760, %v9215
    %v9217 = vpop.f32.mrf.mxu0
    %9218 = vmatprep.mubr.bf16.mxu0 %v8678
    %9219 = vmatmul.mubr.bf16.gmra.mxu0 %v8677
    %v9220 = vpop.f32.mrf.mxu0
    %v9221 = vadd.f32 %v8760, %v9220
    %v9222 = vpop.f32.mrf.mxu0
    %v9223 = vpop.f32.mrf.mxu0
    %v9224 = vadd.f32 %v8760, %v9223
    %v9225 = vpop.f32.mrf.mxu0
    %9226 = vmatprep.mubr.bf16.mxu0 %v8680
    %9227 = vmatmul.mubr.bf16.gmra.mxu0 %v8679
    %v9228 = vpop.f32.mrf.mxu0
    %v9229 = vadd.f32 %v8760, %v9228
    %v9230 = vpop.f32.mrf.mxu0
    %v9231 = vpop.f32.mrf.mxu0
    %v9232 = vadd.f32 %v8760, %v9231
    %v9233 = vpop.f32.mrf.mxu0
    %9234 = vmatprep.mubr.bf16.mxu0 %v8682
    %9235 = vmatmul.mubr.bf16.gmra.mxu0 %v8681
    %v9236 = vpop.f32.mrf.mxu0
    %v9237 = vadd.f32 %v8760, %v9236
    %v9238 = vpop.f32.mrf.mxu0
    %v9239 = vpop.f32.mrf.mxu0
    %v9240 = vadd.f32 %v8760, %v9239
    %v9241 = vpop.f32.mrf.mxu0
    %9242 = vmatprep.mubr.bf16.mxu0 %v8684
    %9243 = vmatmul.mubr.bf16.gmra.mxu0 %v8683
    %v9244 = vpop.f32.mrf.mxu0
    %v9245 = vadd.f32 %v8760, %v9244
    %v9246 = vpop.f32.mrf.mxu0
    %v9247 = vpop.f32.mrf.mxu0
    %v9248 = vadd.f32 %v8760, %v9247
    %v9249 = vpop.f32.mrf.mxu0
    %9250 = vmatprep.mubr.bf16.mxu0 %v8686
    %9251 = vmatmul.mubr.bf16.gmra.mxu0 %v8685
    %v9252 = vpop.f32.mrf.mxu0
    %v9253 = vadd.f32 %v8760, %v9252
    %v9254 = vpop.f32.mrf.mxu0
    %v9255 = vpop.f32.mrf.mxu0
    %v9256 = vadd.f32 %v8760, %v9255
    %v9257 = vpop.f32.mrf.mxu0
    %9258 = vmatprep.mubr.bf16.mxu0 %v8688
    %9259 = vmatmul.mubr.bf16.gmra.mxu0 %v8687
    %v9260 = vpop.f32.mrf.mxu0
    %v9261 = vadd.f32 %v8760, %v9260
    %v9262 = vpop.f32.mrf.mxu0
    %v9263 = vpop.f32.mrf.mxu0
    %v9264 = vadd.f32 %v8760, %v9263
    %v9265 = vpop.f32.mrf.mxu0
    %9266 = vmatprep.mubr.bf16.mxu0 %v8690
    %9267 = vmatmul.mubr.bf16.gmra.mxu0 %v8689
    %v9268 = vpop.f32.mrf.mxu0
    %v9269 = vadd.f32 %v8760, %v9268
    %v9270 = vpop.f32.mrf.mxu0
    %v9271 = vpop.f32.mrf.mxu0
    %v9272 = vadd.f32 %v8760, %v9271
    %v9273 = vpop.f32.mrf.mxu0
    %9274 = vmatprep.mubr.bf16.mxu0 %v8692
    %9275 = vmatmul.mubr.bf16.gmra.mxu0 %v8691
    %v9276 = vpop.f32.mrf.mxu0
    %v9277 = vadd.f32 %v8760, %v9276
    %v9278 = vpop.f32.mrf.mxu0
    %v9279 = vpop.f32.mrf.mxu0
    %v9280 = vadd.f32 %v8760, %v9279
    %v9281 = vpop.f32.mrf.mxu0
    %9282 = vmatprep.mubr.bf16.mxu0 %v8694
    %9283 = vmatmul.mubr.bf16.gmra.mxu0 %v8693
    %v9284 = vpop.f32.mrf.mxu0
    %v9285 = vadd.f32 %v8760, %v9284
    %v9286 = vpop.f32.mrf.mxu0
    %v9287 = vpop.f32.mrf.mxu0
    %v9288 = vadd.f32 %v8760, %v9287
    %v9289 = vpop.f32.mrf.mxu0
    %9290 = vmatprep.mubr.bf16.mxu0 %v8696
    %9291 = vmatmul.mubr.bf16.gmra.mxu0 %v8695
    %v9292 = vpop.f32.mrf.mxu0
    %v9293 = vadd.f32 %v8760, %v9292
    %v9294 = vpop.f32.mrf.mxu0
    %v9295 = vpop.f32.mrf.mxu0
    %v9296 = vadd.f32 %v8760, %v9295
    %v9297 = vpop.f32.mrf.mxu0
    %9298 = vmatprep.mubr.bf16.mxu0 %v8698
    %9299 = vmatmul.mubr.bf16.gmra.mxu0 %v8697
    %v9300 = vpop.f32.mrf.mxu0
    %v9301 = vadd.f32 %v8760, %v9300
    %v9302 = vpop.f32.mrf.mxu0
    %v9303 = vpop.f32.mrf.mxu0
    %v9304 = vadd.f32 %v8760, %v9303
    %v9305 = vpop.f32.mrf.mxu0
    %9306 = vmatprep.mubr.bf16.mxu0 %v8700
    %9307 = vmatmul.mubr.bf16.gmra.mxu0 %v8699
    %v9308 = vpop.f32.mrf.mxu0
    %v9309 = vadd.f32 %v8760, %v9308
    %v9310 = vpop.f32.mrf.mxu0
    %v9311 = vpop.f32.mrf.mxu0
    %v9312 = vadd.f32 %v8760, %v9311
    %v9313 = vpop.f32.mrf.mxu0
    %9314 = vmatprep.mubr.bf16.mxu0 %v8702
    %9315 = vmatmul.mubr.bf16.gmra.mxu0 %v8701
    %v9316 = vpop.f32.mrf.mxu0
    %v9317 = vadd.f32 %v8760, %v9316
    %v9318 = vpop.f32.mrf.mxu0
    %v9319 = vpop.f32.mrf.mxu0
    %v9320 = vadd.f32 %v8760, %v9319
    %v9321 = vpop.f32.mrf.mxu0
    %9322 = vmatprep.mubr.bf16.mxu0 %v8704
    %9323 = vmatmul.mubr.bf16.gmra.mxu0 %v8703
    %v9324 = vpop.f32.mrf.mxu0
    %v9325 = vadd.f32 %v8760, %v9324
    %v9326 = vpop.f32.mrf.mxu0
    %v9327 = vpop.f32.mrf.mxu0
    %v9328 = vadd.f32 %v8760, %v9327
    %v9329 = vpop.f32.mrf.mxu0
    %9330 = vmatprep.mubr.bf16.mxu0 %v8706
    %9331 = vmatmul.mubr.bf16.gmra.mxu0 %v8705
    %v9332 = vpop.f32.mrf.mxu0
    %v9333 = vadd.f32 %v8760, %v9332
    %v9334 = vpop.f32.mrf.mxu0
    %v9335 = vpop.f32.mrf.mxu0
    %v9336 = vadd.f32 %v8760, %v9335
    %v9337 = vpop.f32.mrf.mxu0
    %9338 = vmatprep.mubr.bf16.mxu0 %v8708
    %9339 = vmatmul.mubr.bf16.gmra.mxu0 %v8707
    %v9340 = vpop.f32.mrf.mxu0
    %v9341 = vadd.f32 %v8760, %v9340
    %v9342 = vpop.f32.mrf.mxu0
    %v9343 = vpop.f32.mrf.mxu0
    %v9344 = vadd.f32 %v8760, %v9343
    %v9345 = vpop.f32.mrf.mxu0
    %9346 = vmatprep.mubr.bf16.mxu0 %v8710
    %9347 = vmatmul.mubr.bf16.gmra.mxu0 %v8709
    %v9348 = vpop.f32.mrf.mxu0
    %v9349 = vadd.f32 %v8760, %v9348
    %v9350 = vpop.f32.mrf.mxu0
    %v9351 = vpop.f32.mrf.mxu0
    %v9352 = vadd.f32 %v8760, %v9351
    %v9353 = vpop.f32.mrf.mxu0
    %9354 = vmatprep.mubr.bf16.mxu0 %v8712
    %9355 = vmatmul.mubr.bf16.gmra.mxu0 %v8711
    %v9356 = vpop.f32.mrf.mxu0
    %v9357 = vadd.f32 %v8760, %v9356
    %v9358 = vpop.f32.mrf.mxu0
    %v9359 = vpop.f32.mrf.mxu0
    %v9360 = vadd.f32 %v8760, %v9359
    %v9361 = vpop.f32.mrf.mxu0
    %9362 = vmatprep.mubr.bf16.mxu0 %v8714
    %9363 = vmatmul.mubr.bf16.gmra.mxu0 %v8713
    %v9364 = vpop.f32.mrf.mxu0
    %v9365 = vadd.f32 %v8760, %v9364
    %v9366 = vpop.f32.mrf.mxu0
    %v9367 = vpop.f32.mrf.mxu0
    %v9368 = vadd.f32 %v8760, %v9367
    %v9369 = vpop.f32.mrf.mxu0
    %9370 = vmatprep.mubr.bf16.mxu0 %v8716
    %9371 = vmatmul.mubr.bf16.gmra.mxu0 %v8715
    %v9372 = vpop.f32.mrf.mxu0
    %v9373 = vadd.f32 %v8760, %v9372
    %v9374 = vpop.f32.mrf.mxu0
    %v9375 = vpop.f32.mrf.mxu0
    %v9376 = vadd.f32 %v8760, %v9375
    %v9377 = vpop.f32.mrf.mxu0
    %9378 = vmatprep.mubr.bf16.mxu0 %v8718
    %9379 = vmatmul.mubr.bf16.gmra.mxu0 %v8717
    %v9380 = vpop.f32.mrf.mxu0
    %v9381 = vadd.f32 %v8760, %v9380
    %v9382 = vpop.f32.mrf.mxu0
    %v9383 = vpop.f32.mrf.mxu0
    %v9384 = vadd.f32 %v8760, %v9383
    %v9385 = vpop.f32.mrf.mxu0
    %9386 = vmatprep.mubr.bf16.mxu0 %v8720
    %9387 = vmatmul.mubr.bf16.gmra.mxu0 %v8719
    %v9388 = vpop.f32.mrf.mxu0
    %v9389 = vadd.f32 %v8760, %v9388
    %v9390 = vpop.f32.mrf.mxu0
    %v9391 = vpop.f32.mrf.mxu0
    %v9392 = vadd.f32 %v8760, %v9391
    %v9393 = vpop.f32.mrf.mxu0
    %9394 = vmatprep.mubr.bf16.mxu0 %v8722
    %9395 = vmatmul.mubr.bf16.gmra.mxu0 %v8721
    %v9396 = vpop.f32.mrf.mxu0
    %v9397 = vadd.f32 %v8760, %v9396
    %v9398 = vpop.f32.mrf.mxu0
    %v9399 = vpop.f32.mrf.mxu0
    %v9400 = vadd.f32 %v8760, %v9399
    %v9401 = vpop.f32.mrf.mxu0
    %9402 = vdwg.mxu0
    %v9403 = vadd.f32 %v62, %v8893
    %v9404 = vadd.f32 %v63, %v8896
    %v9405 = vadd.f32 %v64, %v8901
    %v9406 = vadd.f32 %v65, %v8904
    %v9407 = vadd.f32 %v66, %v8909
    %v9408 = vadd.f32 %v67, %v8912
    %v9409 = vadd.f32 %v68, %v8917
    %v9410 = vadd.f32 %v69, %v8920
    %v9411 = vadd.f32 %v70, %v8925
    %v9412 = vadd.f32 %v71, %v8928
    %v9413 = vadd.f32 %v72, %v8933
    %v9414 = vadd.f32 %v73, %v8936
    %v9415 = vadd.f32 %v74, %v8941
    %v9416 = vadd.f32 %v75, %v8944
    %v9417 = vadd.f32 %v76, %v8949
    %v9418 = vadd.f32 %v77, %v8952
    %v9419 = vadd.f32 %v78, %v8957
    %v9420 = vadd.f32 %v79, %v8960
    %v9421 = vadd.f32 %v80, %v8965
    %v9422 = vadd.f32 %v81, %v8968
    %v9423 = vadd.f32 %v82, %v8973
    %v9424 = vadd.f32 %v83, %v8976
    %v9425 = vadd.f32 %v84, %v8981
    %v9426 = vadd.f32 %v85, %v8984
    %v9427 = vadd.f32 %v86, %v8989
    %v9428 = vadd.f32 %v87, %v8992
    %v9429 = vadd.f32 %v88, %v8997
    %v9430 = vadd.f32 %v89, %v9000
    %v9431 = vadd.f32 %v90, %v9005
    %v9432 = vadd.f32 %v91, %v9008
    %v9433 = vadd.f32 %v92, %v9013
    %v9434 = vadd.f32 %v93, %v9016
    %v9435 = vadd.f32 %v94, %v9021
    %v9436 = vadd.f32 %v95, %v9024
    %v9437 = vadd.f32 %v96, %v9029
    %v9438 = vadd.f32 %v97, %v9032
    %v9439 = vadd.f32 %v98, %v9037
    %v9440 = vadd.f32 %v99, %v9040
    %v9441 = vadd.f32 %v100, %v9045
    %v9442 = vadd.f32 %v101, %v9048
    %v9443 = vadd.f32 %v102, %v9053
    %v9444 = vadd.f32 %v103, %v9056
    %v9445 = vadd.f32 %v104, %v9061
    %v9446 = vadd.f32 %v105, %v9064
    %v9447 = vadd.f32 %v106, %v9069
    %v9448 = vadd.f32 %v107, %v9072
    %v9449 = vadd.f32 %v108, %v9077
    %v9450 = vadd.f32 %v109, %v9080
    %v9451 = vadd.f32 %v110, %v9085
    %v9452 = vadd.f32 %v111, %v9088
    %v9453 = vadd.f32 %v112, %v9093
    %v9454 = vadd.f32 %v113, %v9096
    %v9455 = vadd.f32 %v114, %v9101
    %v9456 = vadd.f32 %v115, %v9104
    %v9457 = vadd.f32 %v116, %v9109
    %v9458 = vadd.f32 %v117, %v9112
    %v9459 = vadd.f32 %v118, %v9117
    %v9460 = vadd.f32 %v119, %v9120
    %v9461 = vadd.f32 %v120, %v9125
    %v9462 = vadd.f32 %v121, %v9128
    %v9463 = vadd.f32 %v122, %v9133
    %v9464 = vadd.f32 %v123, %v9136
    %v9465 = vadd.f32 %v124, %v9141
    %v9466 = vadd.f32 %v125, %v9144
    %v9467 = vadd.f32 %v126, %v9149
    %v9468 = vadd.f32 %v127, %v9152
    %v9469 = vadd.f32 %v128, %v9157
    %v9470 = vadd.f32 %v129, %v9160
    %v9471 = vadd.f32 %v130, %v9165
    %v9472 = vadd.f32 %v131, %v9168
    %v9473 = vadd.f32 %v132, %v9173
    %v9474 = vadd.f32 %v133, %v9176
    %v9475 = vadd.f32 %v134, %v9181
    %v9476 = vadd.f32 %v135, %v9184
    %v9477 = vadd.f32 %v136, %v9189
    %v9478 = vadd.f32 %v137, %v9192
    %v9479 = vadd.f32 %v138, %v9197
    %v9480 = vadd.f32 %v139, %v9200
    %v9481 = vadd.f32 %v140, %v9205
    %v9482 = vadd.f32 %v141, %v9208
    %v9483 = vadd.f32 %v142, %v9213
    %v9484 = vadd.f32 %v143, %v9216
    %v9485 = vadd.f32 %v144, %v9221
    %v9486 = vadd.f32 %v145, %v9224
    %v9487 = vadd.f32 %v146, %v9229
    %v9488 = vadd.f32 %v147, %v9232
    %v9489 = vadd.f32 %v148, %v9237
    %v9490 = vadd.f32 %v149, %v9240
    %v9491 = vadd.f32 %v150, %v9245
    %v9492 = vadd.f32 %v151, %v9248
    %v9493 = vadd.f32 %v152, %v9253
    %v9494 = vadd.f32 %v153, %v9256
    %v9495 = vadd.f32 %v154, %v9261
    %v9496 = vadd.f32 %v155, %v9264
    %v9497 = vadd.f32 %v156, %v9269
    %v9498 = vadd.f32 %v157, %v9272
    %v9499 = vadd.f32 %v158, %v9277
    %v9500 = vadd.f32 %v159, %v9280
    %v9501 = vadd.f32 %v160, %v9285
    %v9502 = vadd.f32 %v161, %v9288
    %v9503 = vadd.f32 %v162, %v9293
    %v9504 = vadd.f32 %v163, %v9296
    %v9505 = vadd.f32 %v164, %v9301
    %v9506 = vadd.f32 %v165, %v9304
    %v9507 = vadd.f32 %v166, %v9309
    %v9508 = vadd.f32 %v167, %v9312
    %v9509 = vadd.f32 %v168, %v9317
    %v9510 = vadd.f32 %v169, %v9320
    %v9511 = vadd.f32 %v170, %v9325
    %v9512 = vadd.f32 %v171, %v9328
    %v9513 = vadd.f32 %v172, %v9333
    %v9514 = vadd.f32 %v173, %v9336
    %v9515 = vadd.f32 %v174, %v9341
    %v9516 = vadd.f32 %v175, %v9344
    %v9517 = vadd.f32 %v176, %v9349
    %v9518 = vadd.f32 %v177, %v9352
    %v9519 = vadd.f32 %v178, %v9357
    %v9520 = vadd.f32 %v179, %v9360
    %v9521 = vadd.f32 %v180, %v9365
    %v9522 = vadd.f32 %v181, %v9368
    %v9523 = vadd.f32 %v182, %v9373
    %v9524 = vadd.f32 %v183, %v9376
    %v9525 = vadd.f32 %v184, %v9381
    %v9526 = vadd.f32 %v185, %v9384
    %v9527 = vadd.f32 %v186, %v9389
    %v9528 = vadd.f32 %v187, %v9392
    %v9529 = vadd.f32 %v188, %v9397
    %v9530 = vadd.f32 %v189, %v9400
    %9531 = vst [vmem:[#allocation7] sm:$0xff] %v9403
    %9532 = vst [vmem:[#allocation7 + $0x8] sm:$0xff] %v9404
    %9533 = vst [vmem:[#allocation7 + $0x10] sm:$0xff] %v9405
    %9534 = vst [vmem:[#allocation7 + $0x18] sm:$0xff] %v9406
    %9535 = vst [vmem:[#allocation7 + $0x20] sm:$0xff] %v9407
    %9536 = vst [vmem:[#allocation7 + $0x28] sm:$0xff] %v9408
    %9537 = vst [vmem:[#allocation7 + $0x30] sm:$0xff] %v9409
    %9538 = vst [vmem:[#allocation7 + $0x38] sm:$0xff] %v9410
    %9539 = vst [vmem:[#allocation7 + $0x40] sm:$0xff] %v9411
    %9540 = vst [vmem:[#allocation7 + $0x48] sm:$0xff] %v9412
    %9541 = vst [vmem:[#allocation7 + $0x50] sm:$0xff] %v9413
    %9542 = vst [vmem:[#allocation7 + $0x58] sm:$0xff] %v9414
    %9543 = vst [vmem:[#allocation7 + $0x60] sm:$0xff] %v9415
    %9544 = vst [vmem:[#allocation7 + $0x68] sm:$0xff] %v9416
    %9545 = vst [vmem:[#allocation7 + $0x70] sm:$0xff] %v9417
    %9546 = vst [vmem:[#allocation7 + $0x78] sm:$0xff] %v9418
    %9547 = vst [vmem:[#allocation7 + $0x80] sm:$0xff] %v9419
    %9548 = vst [vmem:[#allocation7 + $0x88] sm:$0xff] %v9420
    %9549 = vst [vmem:[#allocation7 + $0x90] sm:$0xff] %v9421
    %9550 = vst [vmem:[#allocation7 + $0x98] sm:$0xff] %v9422
    %9551 = vst [vmem:[#allocation7 + $0xa0] sm:$0xff] %v9423
    %9552 = vst [vmem:[#allocation7 + $0xa8] sm:$0xff] %v9424
    %9553 = vst [vmem:[#allocation7 + $0xb0] sm:$0xff] %v9425
    %9554 = vst [vmem:[#allocation7 + $0xb8] sm:$0xff] %v9426
    %9555 = vst [vmem:[#allocation7 + $0xc0] sm:$0xff] %v9427
    %9556 = vst [vmem:[#allocation7 + $0xc8] sm:$0xff] %v9428
    %9557 = vst [vmem:[#allocation7 + $0xd0] sm:$0xff] %v9429
    %9558 = vst [vmem:[#allocation7 + $0xd8] sm:$0xff] %v9430
    %9559 = vst [vmem:[#allocation7 + $0xe0] sm:$0xff] %v9431
    %9560 = vst [vmem:[#allocation7 + $0xe8] sm:$0xff] %v9432
    %9561 = vst [vmem:[#allocation7 + $0xf0] sm:$0xff] %v9433
    %9562 = vst [vmem:[#allocation7 + $0xf8] sm:$0xff] %v9434
    %9563 = vst [vmem:[#allocation7 + $0x100] sm:$0xff] %v9435
    %9564 = vst [vmem:[#allocation7 + $0x108] sm:$0xff] %v9436
    %9565 = vst [vmem:[#allocation7 + $0x110] sm:$0xff] %v9437
    %9566 = vst [vmem:[#allocation7 + $0x118] sm:$0xff] %v9438
    %9567 = vst [vmem:[#allocation7 + $0x120] sm:$0xff] %v9439
    %9568 = vst [vmem:[#allocation7 + $0x128] sm:$0xff] %v9440
    %9569 = vst [vmem:[#allocation7 + $0x130] sm:$0xff] %v9441
    %9570 = vst [vmem:[#allocation7 + $0x138] sm:$0xff] %v9442
    %9571 = vst [vmem:[#allocation7 + $0x140] sm:$0xff] %v9443
    %9572 = vst [vmem:[#allocation7 + $0x148] sm:$0xff] %v9444
    %9573 = vst [vmem:[#allocation7 + $0x150] sm:$0xff] %v9445
    %9574 = vst [vmem:[#allocation7 + $0x158] sm:$0xff] %v9446
    %9575 = vst [vmem:[#allocation7 + $0x160] sm:$0xff] %v9447
    %9576 = vst [vmem:[#allocation7 + $0x168] sm:$0xff] %v9448
    %9577 = vst [vmem:[#allocation7 + $0x170] sm:$0xff] %v9449
    %9578 = vst [vmem:[#allocation7 + $0x178] sm:$0xff] %v9450
    %9579 = vst [vmem:[#allocation7 + $0x180] sm:$0xff] %v9451
    %9580 = vst [vmem:[#allocation7 + $0x188] sm:$0xff] %v9452
    %9581 = vst [vmem:[#allocation7 + $0x190] sm:$0xff] %v9453
    %9582 = vst [vmem:[#allocation7 + $0x198] sm:$0xff] %v9454
    %9583 = vst [vmem:[#allocation7 + $0x1a0] sm:$0xff] %v9455
    %9584 = vst [vmem:[#allocation7 + $0x1a8] sm:$0xff] %v9456
    %9585 = vst [vmem:[#allocation7 + $0x1b0] sm:$0xff] %v9457
    %9586 = vst [vmem:[#allocation7 + $0x1b8] sm:$0xff] %v9458
    %9587 = vst [vmem:[#allocation7 + $0x1c0] sm:$0xff] %v9459
    %9588 = vst [vmem:[#allocation7 + $0x1c8] sm:$0xff] %v9460
    %9589 = vst [vmem:[#allocation7 + $0x1d0] sm:$0xff] %v9461
    %9590 = vst [vmem:[#allocation7 + $0x1d8] sm:$0xff] %v9462
    %9591 = vst [vmem:[#allocation7 + $0x1e0] sm:$0xff] %v9463
    %9592 = vst [vmem:[#allocation7 + $0x1e8] sm:$0xff] %v9464
    %9593 = vst [vmem:[#allocation7 + $0x1f0] sm:$0xff] %v9465
    %9594 = vst [vmem:[#allocation7 + $0x1f8] sm:$0xff] %v9466
    %9595 = vst [vmem:[#allocation7 + $0x200] sm:$0xff] %v9467
    %9596 = vst [vmem:[#allocation7 + $0x208] sm:$0xff] %v9468
    %9597 = vst [vmem:[#allocation7 + $0x210] sm:$0xff] %v9469
    %9598 = vst [vmem:[#allocation7 + $0x218] sm:$0xff] %v9470
    %9599 = vst [vmem:[#allocation7 + $0x220] sm:$0xff] %v9471
    %9600 = vst [vmem:[#allocation7 + $0x228] sm:$0xff] %v9472
    %9601 = vst [vmem:[#allocation7 + $0x230] sm:$0xff] %v9473
    %9602 = vst [vmem:[#allocation7 + $0x238] sm:$0xff] %v9474
    %9603 = vst [vmem:[#allocation7 + $0x240] sm:$0xff] %v9475
    %9604 = vst [vmem:[#allocation7 + $0x248] sm:$0xff] %v9476
    %9605 = vst [vmem:[#allocation7 + $0x250] sm:$0xff] %v9477
    %9606 = vst [vmem:[#allocation7 + $0x258] sm:$0xff] %v9478
    %9607 = vst [vmem:[#allocation7 + $0x260] sm:$0xff] %v9479
    %9608 = vst [vmem:[#allocation7 + $0x268] sm:$0xff] %v9480
    %9609 = vst [vmem:[#allocation7 + $0x270] sm:$0xff] %v9481
    %9610 = vst [vmem:[#allocation7 + $0x278] sm:$0xff] %v9482
    %9611 = vst [vmem:[#allocation7 + $0x280] sm:$0xff] %v9483
    %9612 = vst [vmem:[#allocation7 + $0x288] sm:$0xff] %v9484
    %9613 = vst [vmem:[#allocation7 + $0x290] sm:$0xff] %v9485
    %9614 = vst [vmem:[#allocation7 + $0x298] sm:$0xff] %v9486
    %9615 = vst [vmem:[#allocation7 + $0x2a0] sm:$0xff] %v9487
    %9616 = vst [vmem:[#allocation7 + $0x2a8] sm:$0xff] %v9488
    %9617 = vst [vmem:[#allocation7 + $0x2b0] sm:$0xff] %v9489
    %9618 = vst [vmem:[#allocation7 + $0x2b8] sm:$0xff] %v9490
    %9619 = vst [vmem:[#allocation7 + $0x2c0] sm:$0xff] %v9491
    %9620 = vst [vmem:[#allocation7 + $0x2c8] sm:$0xff] %v9492
    %9621 = vst [vmem:[#allocation7 + $0x2d0] sm:$0xff] %v9493
    %9622 = vst [vmem:[#allocation7 + $0x2d8] sm:$0xff] %v9494
    %9623 = vst [vmem:[#allocation7 + $0x2e0] sm:$0xff] %v9495
    %9624 = vst [vmem:[#allocation7 + $0x2e8] sm:$0xff] %v9496
    %9625 = vst [vmem:[#allocation7 + $0x2f0] sm:$0xff] %v9497
    %9626 = vst [vmem:[#allocation7 + $0x2f8] sm:$0xff] %v9498
    %9627 = vst [vmem:[#allocation7 + $0x300] sm:$0xff] %v9499
    %9628 = vst [vmem:[#allocation7 + $0x308] sm:$0xff] %v9500
    %9629 = vst [vmem:[#allocation7 + $0x310] sm:$0xff] %v9501
    %9630 = vst [vmem:[#allocation7 + $0x318] sm:$0xff] %v9502
    %9631 = vst [vmem:[#allocation7 + $0x320] sm:$0xff] %v9503
    %9632 = vst [vmem:[#allocation7 + $0x328] sm:$0xff] %v9504
    %9633 = vst [vmem:[#allocation7 + $0x330] sm:$0xff] %v9505
    %9634 = vst [vmem:[#allocation7 + $0x338] sm:$0xff] %v9506
    %9635 = vst [vmem:[#allocation7 + $0x340] sm:$0xff] %v9507
    %9636 = vst [vmem:[#allocation7 + $0x348] sm:$0xff] %v9508
    %9637 = vst [vmem:[#allocation7 + $0x350] sm:$0xff] %v9509
    %9638 = vst [vmem:[#allocation7 + $0x358] sm:$0xff] %v9510
    %9639 = vst [vmem:[#allocation7 + $0x360] sm:$0xff] %v9511
    %9640 = vst [vmem:[#allocation7 + $0x368] sm:$0xff] %v9512
    %9641 = vst [vmem:[#allocation7 + $0x370] sm:$0xff] %v9513
    %9642 = vst [vmem:[#allocation7 + $0x378] sm:$0xff] %v9514
    %9643 = vst [vmem:[#allocation7 + $0x380] sm:$0xff] %v9515
    %9644 = vst [vmem:[#allocation7 + $0x388] sm:$0xff] %v9516
    %9645 = vst [vmem:[#allocation7 + $0x390] sm:$0xff] %v9517
    %9646 = vst [vmem:[#allocation7 + $0x398] sm:$0xff] %v9518
    %9647 = vst [vmem:[#allocation7 + $0x3a0] sm:$0xff] %v9519
    %9648 = vst [vmem:[#allocation7 + $0x3a8] sm:$0xff] %v9520
    %9649 = vst [vmem:[#allocation7 + $0x3b0] sm:$0xff] %v9521
    %9650 = vst [vmem:[#allocation7 + $0x3b8] sm:$0xff] %v9522
    %9651 = vst [vmem:[#allocation7 + $0x3c0] sm:$0xff] %v9523
    %9652 = vst [vmem:[#allocation7 + $0x3c8] sm:$0xff] %v9524
    %9653 = vst [vmem:[#allocation7 + $0x3d0] sm:$0xff] %v9525
    %9654 = vst [vmem:[#allocation7 + $0x3d8] sm:$0xff] %v9526
    %9655 = vst [vmem:[#allocation7 + $0x3e0] sm:$0xff] %v9527
    %9656 = vst [vmem:[#allocation7 + $0x3e8] sm:$0xff] %v9528
    %9657 = vst [vmem:[#allocation7 + $0x3f0] sm:$0xff] %v9529
    %9658 = vst [vmem:[#allocation7 + $0x3f8] sm:$0xff] %v9530
    // Predicated region
    $region46: #{tpu_custom_call.1} parent=1 // pred_check
      _
    $region47: #{tpu_custom_call.1} parent=1 // pred_check_branch
      %9660 = sbr.rel (0) target = $region49
    $region48: #{tpu_custom_call.1} parent=1 // pred_region
      %s9662 = ssub.s32 16384, 16384
      %9663 = vsyncadd [#allocation4], %s9662
      %s9664 = sshll.u32 [#allocation7], 4
      %s9665 = int_to_ptr.vmem [resolvable:$true] %s9664
      %9670 = dma.vmem_to_hbm [thread:$0]  %s9665, 16384, %s9, [#allocation4], 128, 128, 8
    $region49: #{tpu_custom_call.1} parent=1 // pred_fallthru
      _
    // Predicated region
    $region50: #{tpu_custom_call.1} parent=1 // pred_check
      _
    $region51: #{tpu_custom_call.1} parent=1 // pred_check_branch
      %9672 = sbr.rel (0) target = $region53
    $region52: #{tpu_custom_call.1} parent=1 // pred_region
      %9673 = dma.done [#allocation4], 16384
    $region53: #{tpu_custom_call.1} parent=1 // pred_fallthru
      _
    %9674 = vsyncpa [#allocation3], 1
    %9675 = vsyncpa [#allocation6], 1
    %9676 = vsyncpa [#allocation4], 1

</llo_original>
